<compile_context>
chip_gen: v6e
topology: v6e:2x2x1
jax: 0.10.0
libtpu: 0.0.40
codegen_flags: <defaults>
</compile_context>

<pallas_src>
import functools

import jax
import jax.numpy as jnp
import numpy as np
from jax import lax
from jax.experimental import pallas as pl
from jax.experimental.pallas import tpu as pltpu

VMEM_SPEC = pl.BlockSpec(memory_space=pltpu.MemorySpace.VMEM)
GATE_PITCH = 128            # each GRU gate padded to its own 128-lane block
BF16 = jnp.bfloat16
F32 = jnp.float32


# ---------------------------------------------------------------------------
# Fused cVAE forward kernel (grid-less, everything in VMEM)
# ---------------------------------------------------------------------------
def cvae_kernel(x_ref, eps_ref,
                # stacked encoder GRU (past | future), gates at lane offsets 0/128/256
                enc_wih, enc_b, enc_whh, enc_bhn,
                # fused encoder_mu / encoder_logvar MLPs
                mw1, mb1, mw2, mb2, mw3, mb3,
                # decoder GRU (gates padded to 128 lanes), fc + output_layer
                dec_wi, dec_wh, dec_b, dec_bhn,
                dec_wf, dec_bf, dec_wo, dec_bo,
                out_ref, zmu_ref, zlv_ref):
    GP = GATE_PITCH
    Bp, L = eps_ref.shape
    D = x_ref.shape[1] // 2
    He = enc_whh.shape[0]            # stacked encoder hidden = 2 * rnn_units
    Hu = He // 2                     # rnn_units
    Hd = dec_wh.shape[0]             # rnn_units + latent_dim
    Fc = dec_wf.shape[1]
    T = x_ref.shape[0] // Bp
    T_out = out_ref.shape[1] // D

    def leaky(v):                    # nn.LeakyReLU() default slope
        return jnp.where(v > 0, v, 0.01 * v)

    # ---------------- stacked encoder GRUs (PyTorch gate order r, z, n) ----------------
    x = x_ref[...]                                                   # (T*Bp, 2D) f32
    # hoisted input->hidden projection: ONE matmul for all T steps and BOTH encoders
    gi = jnp.dot(x.astype(BF16), enc_wih[...],
                 preferred_element_type=F32) + enc_b[...]            # (T*Bp, 3*GP)
    whh = enc_whh[...]
    bhn = jnp.broadcast_to(enc_bhn[...], (Bp, He))                   # broadcast once
    h = jnp.zeros((Bp, He), F32)                                     # [h_past | h_future]
    for t in range(T):                                               # static unroll
        lo = t * Bp
        gh = jnp.dot(h.astype(BF16), whh, preferred_element_type=F32)   # 1 push / step
        r = jax.nn.sigmoid(gi[lo:lo + Bp, 0:He] + gh[:, 0:He])
        z = jax.nn.sigmoid(gi[lo:lo + Bp, GP:GP + He] + gh[:, GP:GP + He])
        n = jnp.tanh(gi[lo:lo + Bp, 2 * GP:2 * GP + He] +
                     r * (gh[:, 2 * GP:2 * GP + He] + bhn))
        h = (1.0 - z) * n + z * h

    feat = h                         # (Bp, 2*Hu) — features concat is free by construction

    # ---------------- fused encoder_mu / encoder_logvar MLPs ----------------
    a = jnp.dot(feat.astype(BF16), mw1[...], preferred_element_type=F32) + mb1[...]
    a = leaky(a)
    a = jnp.dot(a.astype(BF16), mw2[...], preferred_element_type=F32) + mb2[...]
    a = leaky(a)
    a = jnp.dot(a, mw3[...], preferred_element_type=F32) + mb3[...]  # (Bp, 2*GP) f32 heads
    z_mu = a[:, 0:L]
    z_lv = a[:, GP:GP + L]
    zmu_ref[...] = z_mu
    zlv_ref[...] = z_lv

    # ---------------- reparameterize (eps supplied for determinism) ----------------
    z_lat = z_mu + eps_ref[...] * jnp.exp(0.5 * z_lv)

    # ---------------- autoregressive decoder ----------------
    hd = jnp.concatenate([h[:, 0:Hu], z_lat], axis=1)                # (Bp, Hu + L)
    y = x[(T - 1) * Bp:, 0:D]                                        # past[:, -1, :]
    wi = dec_wi[...]
    wh = dec_wh[...]
    db = jnp.broadcast_to(dec_b[...], (Bp, 3 * GP))
    dbhn = jnp.broadcast_to(dec_bhn[...], (Bp, Hd))
    wf = dec_wf[...]
    wo = dec_wo[...]
    bfc = jnp.broadcast_to(dec_bf[...], (Bp, Fc))
    bo = jnp.broadcast_to(dec_bo[...], (Bp, D))

    ys = []
    for _ in range(T_out):                                           # static unroll
        gy = jnp.dot(y.astype(BF16), wi, preferred_element_type=F32) + db
        gh = jnp.dot(hd.astype(BF16), wh, preferred_element_type=F32)
        r = jax.nn.sigmoid(gy[:, 0:Hd] + gh[:, 0:Hd])
        zg = jax.nn.sigmoid(gy[:, GP:GP + Hd] + gh[:, GP:GP + Hd])
        n = jnp.tanh(gy[:, 2 * GP:2 * GP + Hd] + r * (gh[:, 2 * GP:2 * GP + Hd] + dbhn))
        hd = (1.0 - zg) * n + zg * hd
        fc = jnp.maximum(jnp.dot(hd.astype(BF16), wf, preferred_element_type=F32) + bfc, 0.0)
        y = jnp.dot(fc.astype(BF16), wo, preferred_element_type=F32) + bo
        ys.append(y)

    # single lane-dense writeback instead of T_out masked D-wide stores
    out_ref[...] = jnp.concatenate(ys, axis=1)                       # (Bp, T_out*D)


# ---------------------------------------------------------------------------
# parameter re-packing (runs inside jit; tiny static XLA ops)
# ---------------------------------------------------------------------------
def _pack_stacked_encoder(p_past, p_fut):
    """Two GRUs -> one block-diagonal recurrence; each gate padded to a 128-lane block."""
    wih_p, whh_p, bih_p, bhh_p = p_past
    wih_f, whh_f, bih_f, bhh_f = p_fut
    D = wih_p.shape[0]
    H = whh_p.shape[0]
    GP = GATE_PITCH
    wih = jnp.zeros((2 * D, 3 * GP), F32)
    whh = jnp.zeros((2 * H, 3 * GP), F32)
    b = jnp.zeros((1, 3 * GP), F32)
    bhn = jnp.zeros((1, 2 * H), F32)
    for g in range(3):                                      # gate order r, z, n
        wih = wih.at[:D, g * GP:g * GP + H].set(wih_p[:, g * H:(g + 1) * H])
        wih = wih.at[D:, g * GP + H:g * GP + 2 * H].set(wih_f[:, g * H:(g + 1) * H])
        whh = whh.at[:H, g * GP:g * GP + H].set(whh_p[:, g * H:(g + 1) * H])
        whh = whh.at[H:, g * GP + H:g * GP + 2 * H].set(whh_f[:, g * H:(g + 1) * H])
    for g in range(2):                                      # r, z: fold b_ih + b_hh
        b = b.at[:, g * GP:g * GP + H].set(
            bih_p[:, g * H:(g + 1) * H] + bhh_p[:, g * H:(g + 1) * H])
        b = b.at[:, g * GP + H:g * GP + 2 * H].set(
            bih_f[:, g * H:(g + 1) * H] + bhh_f[:, g * H:(g + 1) * H])
    b = b.at[:, 2 * GP:2 * GP + H].set(bih_p[:, 2 * H:])    # n: b_ih only
    b = b.at[:, 2 * GP + H:2 * GP + 2 * H].set(bih_f[:, 2 * H:])
    bhn = bhn.at[:, :H].set(bhh_p[:, 2 * H:])               # n: b_hh kept separate
    bhn = bhn.at[:, H:].set(bhh_f[:, 2 * H:])
    return wih.astype(BF16), b, whh.astype(BF16), bhn


def _pack_decoder_gru(p):
    wih, whh, bih, bhh = p
    H = whh.shape[0]
    GP = GATE_PITCH
    wi = jnp.zeros((wih.shape[0], 3 * GP), F32)
    wh = jnp.zeros((H, 3 * GP), F32)
    b = jnp.zeros((1, 3 * GP), F32)
    for g in range(3):
        wi = wi.at[:, g * GP:g * GP + H].set(wih[:, g * H:(g + 1) * H])
        wh = wh.at[:, g * GP:g * GP + H].set(whh[:, g * H:(g + 1) * H])
    for g in range(2):
        b = b.at[:, g * GP:g * GP + H].set(bih[:, g * H:(g + 1) * H] + bhh[:, g * H:(g + 1) * H])
    b = b.at[:, 2 * GP:2 * GP + H].set(bih[:, 2 * H:])
    bhn = bhh[:, 2 * H:]
    return wi.astype(BF16), wh.astype(BF16), b, bhn


def _pack_mlps(mu, lv):
    mw1, mb1, mw2, mb2, mw3, mb3 = mu
    vw1, vb1, vw2, vb2, vw3, vb3 = lv
    GP = GATE_PITCH
    L = mw3.shape[1]
    h1 = mw1.shape[1]                                       # 512
    h2 = mw2.shape[1]                                       # 256
    w1 = jnp.concatenate([mw1, vw1], axis=1).astype(BF16)   # (2H, 2*h1)
    b1 = jnp.concatenate([mb1, vb1], axis=1)
    w2 = jnp.zeros((2 * h1, 2 * h2), F32)                   # block-diagonal layer 2
    w2 = w2.at[:h1, :h2].set(mw2).at[h1:, h2:].set(vw2)
    w2 = w2.astype(BF16)
    b2 = jnp.concatenate([mb2, vb2], axis=1)
    w3 = jnp.zeros((2 * h2, 2 * GP), F32)                   # heads at 128-aligned offsets
    w3 = w3.at[:h2, :L].set(mw3).at[h2:, GP:GP + L].set(vw3)
    b3 = jnp.zeros((1, 2 * GP), F32)
    b3 = b3.at[:, :L].set(mb3).at[:, GP:GP + L].set(vb3)
    return w1, b1, w2, b2, w3, b3


# ---------------------------------------------------------------------------
# full cVAE forward (one pallas_call)
# ---------------------------------------------------------------------------
@functools.partial(jax.jit, static_argnames=("target_length",))
def cvae_forward(params, past, future, eps, target_length):
    B, T_p, D = past.shape
    T_f = future.shape[1]
    L = eps.shape[1]
    assert T_p == T_f, "stacked-encoder kernel assumes len(past) == len(future)"
    # TODO(synk): support T_p != T_f by running the tail of the longer sequence in a
    # second (non-stacked) loop; the reference module allows unequal lengths.

    Bp = ((B + 7) // 8) * 8                         # pad batch to a sublane multiple
    pad = Bp - B
    past_p = jnp.pad(past, ((0, pad), (0, 0), (0, 0)))
    future_p = jnp.pad(future, ((0, pad), (0, 0), (0, 0)))
    eps_p = jnp.pad(eps, ((0, pad), (0, 0)))

    # time-major flattened, past|future stacked along lanes: row (t*Bp + b) = [past|future][b, t]
    x_comb = jnp.concatenate([past_p, future_p], axis=2)             # (Bp, T, 2D)
    x_tm = jnp.transpose(x_comb, (1, 0, 2)).reshape(T_p * Bp, 2 * D)

    enc = _pack_stacked_encoder(params["rnn_phi"], params["rnn_x"])
    mlp = _pack_mlps(params["mu_mlp"], params["logvar_mlp"])
    dec = _pack_decoder_gru(params["rnn_pred"])
    w_fc, b_fc = params["fc"]
    w_out, b_out = params["output_layer"]

    args = (x_tm, eps_p, *enc, *mlp, *dec,
            w_fc.astype(BF16), b_fc, w_out.astype(BF16), b_out)

    out_shape = (jax.ShapeDtypeStruct((Bp, target_length * D), F32),
                 jax.ShapeDtypeStruct((Bp, L), F32),
                 jax.ShapeDtypeStruct((Bp, L), F32))

    out_flat, z_mu, z_lv = pl.pallas_call(
        cvae_kernel,
        out_shape=out_shape,
        in_specs=[VMEM_SPEC] * len(args),
        out_specs=(VMEM_SPEC, VMEM_SPEC, VMEM_SPEC),
    )(*args)

    x_mu = out_flat[:B].reshape(B, target_length, D)   # strip batch padding, free reshape
    return x_mu, z_mu[:B], z_lv[:B]


# ---------------------------------------------------------------------------
# pure-JAX reference (mirrors kernel precision: bf16 weights, f32 accumulation)
# ---------------------------------------------------------------------------
@functools.partial(jax.jit, static_argnames=("target_length",))
def cvae_reference(params, past, future, eps, target_length):
    HI = lax.Precision.HIGHEST

    def gru_seq(x, p):
        w_ih, w_hh, b_ih, b_hh = p
        H = w_hh.shape[0]
        B, T, _ = x.shape
        w_ih_b = w_ih.astype(BF16)
        w_hh_b = w_hh.astype(BF16)
        h = jnp.zeros((B, H), F32)
        for t in range(T):
            gi = jnp.dot(x[:, t, :].astype(BF16), w_ih_b, preferred_element_type=F32) + b_ih
            gh = jnp.dot(h.astype(BF16), w_hh_b, preferred_element_type=F32) + b_hh
            r = jax.nn.sigmoid(gi[:, :H] + gh[:, :H])
            z = jax.nn.sigmoid(gi[:, H:2 * H] + gh[:, H:2 * H])
            n = jnp.tanh(gi[:, 2 * H:] + r * gh[:, 2 * H:])
            h = (1.0 - z) * n + z * h
        return h

    def mlp(f, p):
        w1, b1, w2, b2, w3, b3 = p
        a = jnp.dot(f.astype(BF16), w1.astype(BF16), preferred_element_type=F32) + b1
        a = jnp.where(a > 0, a, 0.01 * a)
        a = jnp.dot(a.astype(BF16), w2.astype(BF16), preferred_element_type=F32) + b2
        a = jnp.where(a > 0, a, 0.01 * a)
        return jnp.dot(a, w3, precision=HI) + b3

    h_p = gru_seq(past, params["rnn_phi"])
    h_f = gru_seq(future, params["rnn_x"])
    feat = jnp.concatenate([h_p, h_f], axis=1)
    z_mu = mlp(feat, params["mu_mlp"])
    z_lv = mlp(feat, params["logvar_mlp"])
    z = z_mu + eps * jnp.exp(0.5 * z_lv)

    w_ih, w_hh, b_ih, b_hh = params["rnn_pred"]
    H2 = w_hh.shape[0]
    w_ih_b = w_ih.astype(BF16)
    w_hh_b = w_hh.astype(BF16)
    w_fc, b_fc = params["fc"]
    w_out, b_out = params["output_layer"]
    w_fc_b = w_fc.astype(BF16)
    w_out_b = w_out.astype(BF16)
    h = jnp.concatenate([h_p, z], axis=1)
    y = past[:, -1, :]
    outs = []
    for _ in range(target_length):
        gi = jnp.dot(y.astype(BF16), w_ih_b, preferred_element_type=F32) + b_ih
        gh = jnp.dot(h.astype(BF16), w_hh_b, preferred_element_type=F32) + b_hh
        r = jax.nn.sigmoid(gi[:, :H2] + gh[:, :H2])
        zg = jax.nn.sigmoid(gi[:, H2:2 * H2] + gh[:, H2:2 * H2])
        n = jnp.tanh(gi[:, 2 * H2:] + r * gh[:, 2 * H2:])
        h = (1.0 - zg) * n + zg * h
        fc = jnp.maximum(jnp.dot(h.astype(BF16), w_fc_b, preferred_element_type=F32) + b_fc, 0.0)
        y = jnp.dot(fc.astype(BF16), w_out_b, preferred_element_type=F32) + b_out
        outs.append(y)
    return jnp.stack(outs, axis=1), z_mu, z_lv


# ---------------------------------------------------------------------------
# parameter init (deterministic, PyTorch-like uniform(-1/sqrt(fan), 1/sqrt(fan)))
# ---------------------------------------------------------------------------
def _init_linear(key, fan_in, fan_out):
    k = 1.0 / jnp.sqrt(jnp.float32(fan_in))
    kw, kb = jax.random.split(key)
    w = jax.random.uniform(kw, (fan_in, fan_out), F32, -k, k)
    b = jax.random.uniform(kb, (1, fan_out), F32, -k, k)
    return w, b


def _init_gru(key, input_size, hidden_size):
    k = 1.0 / jnp.sqrt(jnp.float32(hidden_size))
    k1, k2, k3, k4 = jax.random.split(key, 4)
    w_ih = jax.random.uniform(k1, (input_size, 3 * hidden_size), F32, -k, k)
    w_hh = jax.random.uniform(k2, (hidden_size, 3 * hidden_size), F32, -k, k)
    b_ih = jax.random.uniform(k3, (1, 3 * hidden_size), F32, -k, k)
    b_hh = jax.random.uniform(k4, (1, 3 * hidden_size), F32, -k, k)
    return (w_ih, w_hh, b_ih, b_hh)


def init_cvae_params(key, input_size, rnn_units, latent_dim, fc_units):
    keys = jax.random.split(key, 12)
    flat_dim = 2 * rnn_units                      # n_directions=1 -> 1*rnn_units*2
    dec_hidden = rnn_units + latent_dim
    params = {
        "rnn_phi": _init_gru(keys[0], input_size, rnn_units),
        "rnn_x": _init_gru(keys[1], input_size, rnn_units),
        "mu_mlp": sum((_init_linear(keys[2], flat_dim, 512),
                       _init_linear(keys[3], 512, 256),
                       _init_linear(keys[4], 256, latent_dim)), ()),
        "logvar_mlp": sum((_init_linear(keys[5], flat_dim, 512),
                           _init_linear(keys[6], 512, 256),
                           _init_linear(keys[7], 256, latent_dim)), ()),
        "rnn_pred": _init_gru(keys[8], input_size, dec_hidden),
        "fc": _init_linear(keys[9], dec_hidden, fc_units),
        "output_layer": _init_linear(keys[10], fc_units, input_size),
    }
    return params


# ---------------------------------------------------------------------------
if __name__ == "__main__":
    # small config consistent with the module (nlayers=1, bidirectional=False)
    input_size = 8
    rnn_units = 32
    latent_dim = 16
    fc_units = 64
    target_length = 8
    batch = 4
    seq_len = 8

    root = jax.random.PRNGKey(0)
    k_params, k_past, k_future, k_eps = jax.random.split(root, 4)

    params = init_cvae_params(k_params, input_size, rnn_units, latent_dim, fc_units)
    past = jax.random.normal(k_past, (batch, seq_len, input_size), F32)
    future = jax.random.normal(k_future, (batch, seq_len, input_size), F32)
    eps = jax.random.normal(k_eps, (batch, latent_dim), F32)

    x_mu, z_mu, z_logvar = cvae_forward(params, past, future, eps, target_length)
    jax.block_until_ready((x_mu, z_mu, z_logvar))

    assert x_mu.shape == (batch, target_length, input_size)
    assert z_mu.shape == (batch, latent_dim)
    assert z_logvar.shape == (batch, latent_dim)

    x_ref, mu_ref, lv_ref = cvae_reference(params, past, future, eps, target_length)
    np.testing.assert_allclose(np.asarray(z_mu), np.asarray(mu_ref), rtol=1e-2, atol=1e-2)
    np.testing.assert_allclose(np.asarray(z_logvar), np.asarray(lv_ref), rtol=1e-2, atol=1e-2)
    np.testing.assert_allclose(np.asarray(x_mu), np.asarray(x_ref), rtol=1e-2, atol=1e-2)

    print("KERNEL_OK")
</pallas_src>

<mosaic_0001>
module attributes {stable_mosaic.version = 11 : i64} {
  func.func @cvae_kernel(%arg0: memref<64x16xf32, #tpu.memory_space<vmem>>, %arg1: memref<8x16xf32, #tpu.memory_space<vmem>>, %arg2: memref<16x384xbf16, #tpu.memory_space<vmem>>, %arg3: memref<1x384xf32, #tpu.memory_space<vmem>>, %arg4: memref<64x384xbf16, #tpu.memory_space<vmem>>, %arg5: memref<1x64xf32, #tpu.memory_space<vmem>>, %arg6: memref<64x1024xbf16, #tpu.memory_space<vmem>>, %arg7: memref<1x1024xf32, #tpu.memory_space<vmem>>, %arg8: memref<1024x512xbf16, #tpu.memory_space<vmem>>, %arg9: memref<1x512xf32, #tpu.memory_space<vmem>>, %arg10: memref<512x256xf32, #tpu.memory_space<vmem>>, %arg11: memref<1x256xf32, #tpu.memory_space<vmem>>, %arg12: memref<8x384xbf16, #tpu.memory_space<vmem>>, %arg13: memref<48x384xbf16, #tpu.memory_space<vmem>>, %arg14: memref<1x384xf32, #tpu.memory_space<vmem>>, %arg15: memref<1x48xf32, #tpu.memory_space<vmem>>, %arg16: memref<48x64xbf16, #tpu.memory_space<vmem>>, %arg17: memref<1x64xf32, #tpu.memory_space<vmem>>, %arg18: memref<64x8xbf16, #tpu.memory_space<vmem>>, %arg19: memref<1x8xf32, #tpu.memory_space<vmem>>, %arg20: memref<8x64xf32, #tpu.memory_space<vmem>>, %arg21: memref<8x16xf32, #tpu.memory_space<vmem>>, %arg22: memref<8x16xf32, #tpu.memory_space<vmem>>) attributes {dimension_semantics = [], scalar_prefetch = 0 : i64, scratch_operands = 0 : i64, tpu.core_type = #tpu.core_type<tc>} {
    %c0 = arith.constant 0 : index
    %c0_0 = arith.constant 0 : index
    %0 = vector.load %arg0[%c0, %c0_0] : memref<64x16xf32, #tpu.memory_space<vmem>>, vector<64x16xf32>
    %1 = arith.truncf %0 : vector<64x16xf32> to vector<64x16xbf16>
    %c0_1 = arith.constant 0 : index
    %c0_2 = arith.constant 0 : index
    %2 = vector.load %arg2[%c0_1, %c0_2] : memref<16x384xbf16, #tpu.memory_space<vmem>>, vector<16x384xbf16>
    %cst = arith.constant dense<0.000000e+00> : vector<64x384xf32>
    %3 = tpu.matmul %1, %2, %cst {dimension_numbers = #tpu.dot_dimension_numbers<[1], [0], [0], [1], [0, 0, 1, 1], [], []>} : vector<64x16xbf16>, vector<16x384xbf16>, vector<64x384xf32> -> vector<64x384xf32>
    %c0_3 = arith.constant 0 : index
    %c0_4 = arith.constant 0 : index
    %4 = vector.load %arg3[%c0_3, %c0_4] : memref<1x384xf32, #tpu.memory_space<vmem>>, vector<1x384xf32>
    %5 = vector.broadcast %4 : vector<1x384xf32> to vector<64x384xf32>
    %6 = arith.addf %3, %5 : vector<64x384xf32>
    %c0_5 = arith.constant 0 : index
    %c0_6 = arith.constant 0 : index
    %7 = vector.load %arg4[%c0_5, %c0_6] : memref<64x384xbf16, #tpu.memory_space<vmem>>, vector<64x384xbf16>
    %c0_7 = arith.constant 0 : index
    %c0_8 = arith.constant 0 : index
    %8 = vector.load %arg5[%c0_7, %c0_8] : memref<1x64xf32, #tpu.memory_space<vmem>>, vector<1x64xf32>
    %9 = vector.shape_cast %8 : vector<1x64xf32> to vector<1x64xf32>
    %10 = vector.broadcast %9 : vector<1x64xf32> to vector<8x64xf32>
    %cst_9 = arith.constant 0.000000e+00 : f32
    %11 = vector.broadcast %cst_9 : f32 to vector<8x64xf32>
    %12 = arith.truncf %11 : vector<8x64xf32> to vector<8x64xbf16>
    %cst_10 = arith.constant dense<0.000000e+00> : vector<8x384xf32>
    %13 = tpu.matmul %12, %7, %cst_10 {dimension_numbers = #tpu.dot_dimension_numbers<[1], [0], [0], [1], [0, 0, 1, 1], [], []>} : vector<8x64xbf16>, vector<64x384xbf16>, vector<8x384xf32> -> vector<8x384xf32>
    %14 = vector.extract_strided_slice %6 {offsets = [0, 0], sizes = [8, 64], strides = [1, 1]} : vector<64x384xf32> to vector<8x64xf32>
    %15 = vector.extract_strided_slice %13 {offsets = [0, 0], sizes = [8, 64], strides = [1, 1]} : vector<8x384xf32> to vector<8x64xf32>
    %16 = arith.addf %14, %15 : vector<8x64xf32>
    %17 = arith.negf %16 : vector<8x64xf32>
    %18 = math.exp %17 : vector<8x64xf32>
    %cst_11 = arith.constant 1.000000e+00 : f32
    %19 = vector.broadcast %cst_11 : f32 to vector<8x64xf32>
    %20 = arith.addf %19, %18 : vector<8x64xf32>
    %21 = arith.divf %19, %20 : vector<8x64xf32>
    %22 = vector.extract_strided_slice %6 {offsets = [0, 128], sizes = [8, 64], strides = [1, 1]} : vector<64x384xf32> to vector<8x64xf32>
    %23 = vector.extract_strided_slice %13 {offsets = [0, 128], sizes = [8, 64], strides = [1, 1]} : vector<8x384xf32> to vector<8x64xf32>
    %24 = arith.addf %22, %23 : vector<8x64xf32>
    %25 = arith.negf %24 : vector<8x64xf32>
    %26 = math.exp %25 : vector<8x64xf32>
    %cst_12 = arith.constant 1.000000e+00 : f32
    %27 = vector.broadcast %cst_12 : f32 to vector<8x64xf32>
    %28 = arith.addf %27, %26 : vector<8x64xf32>
    %29 = arith.divf %27, %28 : vector<8x64xf32>
    %30 = vector.extract_strided_slice %6 {offsets = [0, 256], sizes = [8, 64], strides = [1, 1]} : vector<64x384xf32> to vector<8x64xf32>
    %31 = vector.extract_strided_slice %13 {offsets = [0, 256], sizes = [8, 64], strides = [1, 1]} : vector<8x384xf32> to vector<8x64xf32>
    %32 = arith.addf %31, %10 : vector<8x64xf32>
    %33 = arith.mulf %21, %32 : vector<8x64xf32>
    %34 = arith.addf %30, %33 : vector<8x64xf32>
    %35 = math.tanh %34 : vector<8x64xf32>
    %cst_13 = arith.constant 1.000000e+00 : f32
    %36 = vector.broadcast %cst_13 : f32 to vector<8x64xf32>
    %37 = arith.subf %36, %29 : vector<8x64xf32>
    %38 = arith.mulf %37, %35 : vector<8x64xf32>
    %39 = arith.mulf %29, %11 : vector<8x64xf32>
    %40 = arith.addf %38, %39 : vector<8x64xf32>
    %41 = arith.truncf %40 : vector<8x64xf32> to vector<8x64xbf16>
    %cst_14 = arith.constant dense<0.000000e+00> : vector<8x384xf32>
    %42 = tpu.matmul %41, %7, %cst_14 {dimension_numbers = #tpu.dot_dimension_numbers<[1], [0], [0], [1], [0, 0, 1, 1], [], []>} : vector<8x64xbf16>, vector<64x384xbf16>, vector<8x384xf32> -> vector<8x384xf32>
    %43 = vector.extract_strided_slice %6 {offsets = [8, 0], sizes = [8, 64], strides = [1, 1]} : vector<64x384xf32> to vector<8x64xf32>
    %44 = vector.extract_strided_slice %42 {offsets = [0, 0], sizes = [8, 64], strides = [1, 1]} : vector<8x384xf32> to vector<8x64xf32>
    %45 = arith.addf %43, %44 : vector<8x64xf32>
    %46 = arith.negf %45 : vector<8x64xf32>
    %47 = math.exp %46 : vector<8x64xf32>
    %cst_15 = arith.constant 1.000000e+00 : f32
    %48 = vector.broadcast %cst_15 : f32 to vector<8x64xf32>
    %49 = arith.addf %48, %47 : vector<8x64xf32>
    %50 = arith.divf %48, %49 : vector<8x64xf32>
    %51 = vector.extract_strided_slice %6 {offsets = [8, 128], sizes = [8, 64], strides = [1, 1]} : vector<64x384xf32> to vector<8x64xf32>
    %52 = vector.extract_strided_slice %42 {offsets = [0, 128], sizes = [8, 64], strides = [1, 1]} : vector<8x384xf32> to vector<8x64xf32>
    %53 = arith.addf %51, %52 : vector<8x64xf32>
    %54 = arith.negf %53 : vector<8x64xf32>
    %55 = math.exp %54 : vector<8x64xf32>
    %cst_16 = arith.constant 1.000000e+00 : f32
    %56 = vector.broadcast %cst_16 : f32 to vector<8x64xf32>
    %57 = arith.addf %56, %55 : vector<8x64xf32>
    %58 = arith.divf %56, %57 : vector<8x64xf32>
    %59 = vector.extract_strided_slice %6 {offsets = [8, 256], sizes = [8, 64], strides = [1, 1]} : vector<64x384xf32> to vector<8x64xf32>
    %60 = vector.extract_strided_slice %42 {offsets = [0, 256], sizes = [8, 64], strides = [1, 1]} : vector<8x384xf32> to vector<8x64xf32>
    %61 = arith.addf %60, %10 : vector<8x64xf32>
    %62 = arith.mulf %50, %61 : vector<8x64xf32>
    %63 = arith.addf %59, %62 : vector<8x64xf32>
    %64 = math.tanh %63 : vector<8x64xf32>
    %cst_17 = arith.constant 1.000000e+00 : f32
    %65 = vector.broadcast %cst_17 : f32 to vector<8x64xf32>
    %66 = arith.subf %65, %58 : vector<8x64xf32>
    %67 = arith.mulf %66, %64 : vector<8x64xf32>
    %68 = arith.mulf %58, %40 : vector<8x64xf32>
    %69 = arith.addf %67, %68 : vector<8x64xf32>
    %70 = arith.truncf %69 : vector<8x64xf32> to vector<8x64xbf16>
    %cst_18 = arith.constant dense<0.000000e+00> : vector<8x384xf32>
    %71 = tpu.matmul %70, %7, %cst_18 {dimension_numbers = #tpu.dot_dimension_numbers<[1], [0], [0], [1], [0, 0, 1, 1], [], []>} : vector<8x64xbf16>, vector<64x384xbf16>, vector<8x384xf32> -> vector<8x384xf32>
    %72 = vector.extract_strided_slice %6 {offsets = [16, 0], sizes = [8, 64], strides = [1, 1]} : vector<64x384xf32> to vector<8x64xf32>
    %73 = vector.extract_strided_slice %71 {offsets = [0, 0], sizes = [8, 64], strides = [1, 1]} : vector<8x384xf32> to vector<8x64xf32>
    %74 = arith.addf %72, %73 : vector<8x64xf32>
    %75 = arith.negf %74 : vector<8x64xf32>
    %76 = math.exp %75 : vector<8x64xf32>
    %cst_19 = arith.constant 1.000000e+00 : f32
    %77 = vector.broadcast %cst_19 : f32 to vector<8x64xf32>
    %78 = arith.addf %77, %76 : vector<8x64xf32>
    %79 = arith.divf %77, %78 : vector<8x64xf32>
    %80 = vector.extract_strided_slice %6 {offsets = [16, 128], sizes = [8, 64], strides = [1, 1]} : vector<64x384xf32> to vector<8x64xf32>
    %81 = vector.extract_strided_slice %71 {offsets = [0, 128], sizes = [8, 64], strides = [1, 1]} : vector<8x384xf32> to vector<8x64xf32>
    %82 = arith.addf %80, %81 : vector<8x64xf32>
    %83 = arith.negf %82 : vector<8x64xf32>
    %84 = math.exp %83 : vector<8x64xf32>
    %cst_20 = arith.constant 1.000000e+00 : f32
    %85 = vector.broadcast %cst_20 : f32 to vector<8x64xf32>
    %86 = arith.addf %85, %84 : vector<8x64xf32>
    %87 = arith.divf %85, %86 : vector<8x64xf32>
    %88 = vector.extract_strided_slice %6 {offsets = [16, 256], sizes = [8, 64], strides = [1, 1]} : vector<64x384xf32> to vector<8x64xf32>
    %89 = vector.extract_strided_slice %71 {offsets = [0, 256], sizes = [8, 64], strides = [1, 1]} : vector<8x384xf32> to vector<8x64xf32>
    %90 = arith.addf %89, %10 : vector<8x64xf32>
    %91 = arith.mulf %79, %90 : vector<8x64xf32>
    %92 = arith.addf %88, %91 : vector<8x64xf32>
    %93 = math.tanh %92 : vector<8x64xf32>
    %cst_21 = arith.constant 1.000000e+00 : f32
    %94 = vector.broadcast %cst_21 : f32 to vector<8x64xf32>
    %95 = arith.subf %94, %87 : vector<8x64xf32>
    %96 = arith.mulf %95, %93 : vector<8x64xf32>
    %97 = arith.mulf %87, %69 : vector<8x64xf32>
    %98 = arith.addf %96, %97 : vector<8x64xf32>
    %99 = arith.truncf %98 : vector<8x64xf32> to vector<8x64xbf16>
    %cst_22 = arith.constant dense<0.000000e+00> : vector<8x384xf32>
    %100 = tpu.matmul %99, %7, %cst_22 {dimension_numbers = #tpu.dot_dimension_numbers<[1], [0], [0], [1], [0, 0, 1, 1], [], []>} : vector<8x64xbf16>, vector<64x384xbf16>, vector<8x384xf32> -> vector<8x384xf32>
    %101 = vector.extract_strided_slice %6 {offsets = [24, 0], sizes = [8, 64], strides = [1, 1]} : vector<64x384xf32> to vector<8x64xf32>
    %102 = vector.extract_strided_slice %100 {offsets = [0, 0], sizes = [8, 64], strides = [1, 1]} : vector<8x384xf32> to vector<8x64xf32>
    %103 = arith.addf %101, %102 : vector<8x64xf32>
    %104 = arith.negf %103 : vector<8x64xf32>
    %105 = math.exp %104 : vector<8x64xf32>
    %cst_23 = arith.constant 1.000000e+00 : f32
    %106 = vector.broadcast %cst_23 : f32 to vector<8x64xf32>
    %107 = arith.addf %106, %105 : vector<8x64xf32>
    %108 = arith.divf %106, %107 : vector<8x64xf32>
    %109 = vector.extract_strided_slice %6 {offsets = [24, 128], sizes = [8, 64], strides = [1, 1]} : vector<64x384xf32> to vector<8x64xf32>
    %110 = vector.extract_strided_slice %100 {offsets = [0, 128], sizes = [8, 64], strides = [1, 1]} : vector<8x384xf32> to vector<8x64xf32>
    %111 = arith.addf %109, %110 : vector<8x64xf32>
    %112 = arith.negf %111 : vector<8x64xf32>
    %113 = math.exp %112 : vector<8x64xf32>
    %cst_24 = arith.constant 1.000000e+00 : f32
    %114 = vector.broadcast %cst_24 : f32 to vector<8x64xf32>
    %115 = arith.addf %114, %113 : vector<8x64xf32>
    %116 = arith.divf %114, %115 : vector<8x64xf32>
    %117 = vector.extract_strided_slice %6 {offsets = [24, 256], sizes = [8, 64], strides = [1, 1]} : vector<64x384xf32> to vector<8x64xf32>
    %118 = vector.extract_strided_slice %100 {offsets = [0, 256], sizes = [8, 64], strides = [1, 1]} : vector<8x384xf32> to vector<8x64xf32>
    %119 = arith.addf %118, %10 : vector<8x64xf32>
    %120 = arith.mulf %108, %119 : vector<8x64xf32>
    %121 = arith.addf %117, %120 : vector<8x64xf32>
    %122 = math.tanh %121 : vector<8x64xf32>
    %cst_25 = arith.constant 1.000000e+00 : f32
    %123 = vector.broadcast %cst_25 : f32 to vector<8x64xf32>
    %124 = arith.subf %123, %116 : vector<8x64xf32>
    %125 = arith.mulf %124, %122 : vector<8x64xf32>
    %126 = arith.mulf %116, %98 : vector<8x64xf32>
    %127 = arith.addf %125, %126 : vector<8x64xf32>
    %128 = arith.truncf %127 : vector<8x64xf32> to vector<8x64xbf16>
    %cst_26 = arith.constant dense<0.000000e+00> : vector<8x384xf32>
    %129 = tpu.matmul %128, %7, %cst_26 {dimension_numbers = #tpu.dot_dimension_numbers<[1], [0], [0], [1], [0, 0, 1, 1], [], []>} : vector<8x64xbf16>, vector<64x384xbf16>, vector<8x384xf32> -> vector<8x384xf32>
    %130 = vector.extract_strided_slice %6 {offsets = [32, 0], sizes = [8, 64], strides = [1, 1]} : vector<64x384xf32> to vector<8x64xf32>
    %131 = vector.extract_strided_slice %129 {offsets = [0, 0], sizes = [8, 64], strides = [1, 1]} : vector<8x384xf32> to vector<8x64xf32>
    %132 = arith.addf %130, %131 : vector<8x64xf32>
    %133 = arith.negf %132 : vector<8x64xf32>
    %134 = math.exp %133 : vector<8x64xf32>
    %cst_27 = arith.constant 1.000000e+00 : f32
    %135 = vector.broadcast %cst_27 : f32 to vector<8x64xf32>
    %136 = arith.addf %135, %134 : vector<8x64xf32>
    %137 = arith.divf %135, %136 : vector<8x64xf32>
    %138 = vector.extract_strided_slice %6 {offsets = [32, 128], sizes = [8, 64], strides = [1, 1]} : vector<64x384xf32> to vector<8x64xf32>
    %139 = vector.extract_strided_slice %129 {offsets = [0, 128], sizes = [8, 64], strides = [1, 1]} : vector<8x384xf32> to vector<8x64xf32>
    %140 = arith.addf %138, %139 : vector<8x64xf32>
    %141 = arith.negf %140 : vector<8x64xf32>
    %142 = math.exp %141 : vector<8x64xf32>
    %cst_28 = arith.constant 1.000000e+00 : f32
    %143 = vector.broadcast %cst_28 : f32 to vector<8x64xf32>
    %144 = arith.addf %143, %142 : vector<8x64xf32>
    %145 = arith.divf %143, %144 : vector<8x64xf32>
    %146 = vector.extract_strided_slice %6 {offsets = [32, 256], sizes = [8, 64], strides = [1, 1]} : vector<64x384xf32> to vector<8x64xf32>
    %147 = vector.extract_strided_slice %129 {offsets = [0, 256], sizes = [8, 64], strides = [1, 1]} : vector<8x384xf32> to vector<8x64xf32>
    %148 = arith.addf %147, %10 : vector<8x64xf32>
    %149 = arith.mulf %137, %148 : vector<8x64xf32>
    %150 = arith.addf %146, %149 : vector<8x64xf32>
    %151 = math.tanh %150 : vector<8x64xf32>
    %cst_29 = arith.constant 1.000000e+00 : f32
    %152 = vector.broadcast %cst_29 : f32 to vector<8x64xf32>
    %153 = arith.subf %152, %145 : vector<8x64xf32>
    %154 = arith.mulf %153, %151 : vector<8x64xf32>
    %155 = arith.mulf %145, %127 : vector<8x64xf32>
    %156 = arith.addf %154, %155 : vector<8x64xf32>
    %157 = arith.truncf %156 : vector<8x64xf32> to vector<8x64xbf16>
    %cst_30 = arith.constant dense<0.000000e+00> : vector<8x384xf32>
    %158 = tpu.matmul %157, %7, %cst_30 {dimension_numbers = #tpu.dot_dimension_numbers<[1], [0], [0], [1], [0, 0, 1, 1], [], []>} : vector<8x64xbf16>, vector<64x384xbf16>, vector<8x384xf32> -> vector<8x384xf32>
    %159 = vector.extract_strided_slice %6 {offsets = [40, 0], sizes = [8, 64], strides = [1, 1]} : vector<64x384xf32> to vector<8x64xf32>
    %160 = vector.extract_strided_slice %158 {offsets = [0, 0], sizes = [8, 64], strides = [1, 1]} : vector<8x384xf32> to vector<8x64xf32>
    %161 = arith.addf %159, %160 : vector<8x64xf32>
    %162 = arith.negf %161 : vector<8x64xf32>
    %163 = math.exp %162 : vector<8x64xf32>
    %cst_31 = arith.constant 1.000000e+00 : f32
    %164 = vector.broadcast %cst_31 : f32 to vector<8x64xf32>
    %165 = arith.addf %164, %163 : vector<8x64xf32>
    %166 = arith.divf %164, %165 : vector<8x64xf32>
    %167 = vector.extract_strided_slice %6 {offsets = [40, 128], sizes = [8, 64], strides = [1, 1]} : vector<64x384xf32> to vector<8x64xf32>
    %168 = vector.extract_strided_slice %158 {offsets = [0, 128], sizes = [8, 64], strides = [1, 1]} : vector<8x384xf32> to vector<8x64xf32>
    %169 = arith.addf %167, %168 : vector<8x64xf32>
    %170 = arith.negf %169 : vector<8x64xf32>
    %171 = math.exp %170 : vector<8x64xf32>
    %cst_32 = arith.constant 1.000000e+00 : f32
    %172 = vector.broadcast %cst_32 : f32 to vector<8x64xf32>
    %173 = arith.addf %172, %171 : vector<8x64xf32>
    %174 = arith.divf %172, %173 : vector<8x64xf32>
    %175 = vector.extract_strided_slice %6 {offsets = [40, 256], sizes = [8, 64], strides = [1, 1]} : vector<64x384xf32> to vector<8x64xf32>
    %176 = vector.extract_strided_slice %158 {offsets = [0, 256], sizes = [8, 64], strides = [1, 1]} : vector<8x384xf32> to vector<8x64xf32>
    %177 = arith.addf %176, %10 : vector<8x64xf32>
    %178 = arith.mulf %166, %177 : vector<8x64xf32>
    %179 = arith.addf %175, %178 : vector<8x64xf32>
    %180 = math.tanh %179 : vector<8x64xf32>
    %cst_33 = arith.constant 1.000000e+00 : f32
    %181 = vector.broadcast %cst_33 : f32 to vector<8x64xf32>
    %182 = arith.subf %181, %174 : vector<8x64xf32>
    %183 = arith.mulf %182, %180 : vector<8x64xf32>
    %184 = arith.mulf %174, %156 : vector<8x64xf32>
    %185 = arith.addf %183, %184 : vector<8x64xf32>
    %186 = arith.truncf %185 : vector<8x64xf32> to vector<8x64xbf16>
    %cst_34 = arith.constant dense<0.000000e+00> : vector<8x384xf32>
    %187 = tpu.matmul %186, %7, %cst_34 {dimension_numbers = #tpu.dot_dimension_numbers<[1], [0], [0], [1], [0, 0, 1, 1], [], []>} : vector<8x64xbf16>, vector<64x384xbf16>, vector<8x384xf32> -> vector<8x384xf32>
    %188 = vector.extract_strided_slice %6 {offsets = [48, 0], sizes = [8, 64], strides = [1, 1]} : vector<64x384xf32> to vector<8x64xf32>
    %189 = vector.extract_strided_slice %187 {offsets = [0, 0], sizes = [8, 64], strides = [1, 1]} : vector<8x384xf32> to vector<8x64xf32>
    %190 = arith.addf %188, %189 : vector<8x64xf32>
    %191 = arith.negf %190 : vector<8x64xf32>
    %192 = math.exp %191 : vector<8x64xf32>
    %cst_35 = arith.constant 1.000000e+00 : f32
    %193 = vector.broadcast %cst_35 : f32 to vector<8x64xf32>
    %194 = arith.addf %193, %192 : vector<8x64xf32>
    %195 = arith.divf %193, %194 : vector<8x64xf32>
    %196 = vector.extract_strided_slice %6 {offsets = [48, 128], sizes = [8, 64], strides = [1, 1]} : vector<64x384xf32> to vector<8x64xf32>
    %197 = vector.extract_strided_slice %187 {offsets = [0, 128], sizes = [8, 64], strides = [1, 1]} : vector<8x384xf32> to vector<8x64xf32>
    %198 = arith.addf %196, %197 : vector<8x64xf32>
    %199 = arith.negf %198 : vector<8x64xf32>
    %200 = math.exp %199 : vector<8x64xf32>
    %cst_36 = arith.constant 1.000000e+00 : f32
    %201 = vector.broadcast %cst_36 : f32 to vector<8x64xf32>
    %202 = arith.addf %201, %200 : vector<8x64xf32>
    %203 = arith.divf %201, %202 : vector<8x64xf32>
    %204 = vector.extract_strided_slice %6 {offsets = [48, 256], sizes = [8, 64], strides = [1, 1]} : vector<64x384xf32> to vector<8x64xf32>
    %205 = vector.extract_strided_slice %187 {offsets = [0, 256], sizes = [8, 64], strides = [1, 1]} : vector<8x384xf32> to vector<8x64xf32>
    %206 = arith.addf %205, %10 : vector<8x64xf32>
    %207 = arith.mulf %195, %206 : vector<8x64xf32>
    %208 = arith.addf %204, %207 : vector<8x64xf32>
    %209 = math.tanh %208 : vector<8x64xf32>
    %cst_37 = arith.constant 1.000000e+00 : f32
    %210 = vector.broadcast %cst_37 : f32 to vector<8x64xf32>
    %211 = arith.subf %210, %203 : vector<8x64xf32>
    %212 = arith.mulf %211, %209 : vector<8x64xf32>
    %213 = arith.mulf %203, %185 : vector<8x64xf32>
    %214 = arith.addf %212, %213 : vector<8x64xf32>
    %215 = arith.truncf %214 : vector<8x64xf32> to vector<8x64xbf16>
    %cst_38 = arith.constant dense<0.000000e+00> : vector<8x384xf32>
    %216 = tpu.matmul %215, %7, %cst_38 {dimension_numbers = #tpu.dot_dimension_numbers<[1], [0], [0], [1], [0, 0, 1, 1], [], []>} : vector<8x64xbf16>, vector<64x384xbf16>, vector<8x384xf32> -> vector<8x384xf32>
    %217 = vector.extract_strided_slice %6 {offsets = [56, 0], sizes = [8, 64], strides = [1, 1]} : vector<64x384xf32> to vector<8x64xf32>
    %218 = vector.extract_strided_slice %216 {offsets = [0, 0], sizes = [8, 64], strides = [1, 1]} : vector<8x384xf32> to vector<8x64xf32>
    %219 = arith.addf %217, %218 : vector<8x64xf32>
    %220 = arith.negf %219 : vector<8x64xf32>
    %221 = math.exp %220 : vector<8x64xf32>
    %cst_39 = arith.constant 1.000000e+00 : f32
    %222 = vector.broadcast %cst_39 : f32 to vector<8x64xf32>
    %223 = arith.addf %222, %221 : vector<8x64xf32>
    %224 = arith.divf %222, %223 : vector<8x64xf32>
    %225 = vector.extract_strided_slice %6 {offsets = [56, 128], sizes = [8, 64], strides = [1, 1]} : vector<64x384xf32> to vector<8x64xf32>
    %226 = vector.extract_strided_slice %216 {offsets = [0, 128], sizes = [8, 64], strides = [1, 1]} : vector<8x384xf32> to vector<8x64xf32>
    %227 = arith.addf %225, %226 : vector<8x64xf32>
    %228 = arith.negf %227 : vector<8x64xf32>
    %229 = math.exp %228 : vector<8x64xf32>
    %cst_40 = arith.constant 1.000000e+00 : f32
    %230 = vector.broadcast %cst_40 : f32 to vector<8x64xf32>
    %231 = arith.addf %230, %229 : vector<8x64xf32>
    %232 = arith.divf %230, %231 : vector<8x64xf32>
    %233 = vector.extract_strided_slice %6 {offsets = [56, 256], sizes = [8, 64], strides = [1, 1]} : vector<64x384xf32> to vector<8x64xf32>
    %234 = vector.extract_strided_slice %216 {offsets = [0, 256], sizes = [8, 64], strides = [1, 1]} : vector<8x384xf32> to vector<8x64xf32>
    %235 = arith.addf %234, %10 : vector<8x64xf32>
    %236 = arith.mulf %224, %235 : vector<8x64xf32>
    %237 = arith.addf %233, %236 : vector<8x64xf32>
    %238 = math.tanh %237 : vector<8x64xf32>
    %cst_41 = arith.constant 1.000000e+00 : f32
    %239 = vector.broadcast %cst_41 : f32 to vector<8x64xf32>
    %240 = arith.subf %239, %232 : vector<8x64xf32>
    %241 = arith.mulf %240, %238 : vector<8x64xf32>
    %242 = arith.mulf %232, %214 : vector<8x64xf32>
    %243 = arith.addf %241, %242 : vector<8x64xf32>
    %244 = arith.truncf %243 : vector<8x64xf32> to vector<8x64xbf16>
    %c0_42 = arith.constant 0 : index
    %c0_43 = arith.constant 0 : index
    %245 = vector.load %arg6[%c0_42, %c0_43] : memref<64x1024xbf16, #tpu.memory_space<vmem>>, vector<64x1024xbf16>
    %cst_44 = arith.constant dense<0.000000e+00> : vector<8x1024xf32>
    %246 = tpu.matmul %244, %245, %cst_44 {dimension_numbers = #tpu.dot_dimension_numbers<[1], [0], [0], [1], [0, 0, 1, 1], [], []>} : vector<8x64xbf16>, vector<64x1024xbf16>, vector<8x1024xf32> -> vector<8x1024xf32>
    %c0_45 = arith.constant 0 : index
    %c0_46 = arith.constant 0 : index
    %247 = vector.load %arg7[%c0_45, %c0_46] : memref<1x1024xf32, #tpu.memory_space<vmem>>, vector<1x1024xf32>
    %248 = vector.broadcast %247 : vector<1x1024xf32> to vector<8x1024xf32>
    %249 = arith.addf %246, %248 : vector<8x1024xf32>
    %cst_47 = arith.constant 0.000000e+00 : f32
    %250 = vector.broadcast %cst_47 : f32 to vector<8x1024xf32>
    %251 = arith.cmpf ogt, %249, %250 : vector<8x1024xf32>
    %cst_48 = arith.constant 0.00999999977 : f32
    %252 = vector.broadcast %cst_48 : f32 to vector<8x1024xf32>
    %253 = arith.mulf %252, %249 : vector<8x1024xf32>
    %254 = arith.select %251, %249, %253 : vector<8x1024xi1>, vector<8x1024xf32>
    %255 = arith.truncf %254 : vector<8x1024xf32> to vector<8x1024xbf16>
    %c0_49 = arith.constant 0 : index
    %c0_50 = arith.constant 0 : index
    %256 = vector.load %arg8[%c0_49, %c0_50] : memref<1024x512xbf16, #tpu.memory_space<vmem>>, vector<1024x512xbf16>
    %cst_51 = arith.constant dense<0.000000e+00> : vector<8x512xf32>
    %257 = tpu.matmul %255, %256, %cst_51 {dimension_numbers = #tpu.dot_dimension_numbers<[1], [0], [0], [1], [0, 0, 1, 1], [], []>} : vector<8x1024xbf16>, vector<1024x512xbf16>, vector<8x512xf32> -> vector<8x512xf32>
    %c0_52 = arith.constant 0 : index
    %c0_53 = arith.constant 0 : index
    %258 = vector.load %arg9[%c0_52, %c0_53] : memref<1x512xf32, #tpu.memory_space<vmem>>, vector<1x512xf32>
    %259 = vector.broadcast %258 : vector<1x512xf32> to vector<8x512xf32>
    %260 = arith.addf %257, %259 : vector<8x512xf32>
    %cst_54 = arith.constant 0.000000e+00 : f32
    %261 = vector.broadcast %cst_54 : f32 to vector<8x512xf32>
    %262 = arith.cmpf ogt, %260, %261 : vector<8x512xf32>
    %cst_55 = arith.constant 0.00999999977 : f32
    %263 = vector.broadcast %cst_55 : f32 to vector<8x512xf32>
    %264 = arith.mulf %263, %260 : vector<8x512xf32>
    %265 = arith.select %262, %260, %264 : vector<8x512xi1>, vector<8x512xf32>
    %c0_56 = arith.constant 0 : index
    %c0_57 = arith.constant 0 : index
    %266 = vector.load %arg10[%c0_56, %c0_57] : memref<512x256xf32, #tpu.memory_space<vmem>>, vector<512x256xf32>
    %cst_58 = arith.constant dense<0.000000e+00> : vector<8x256xf32>
    %267 = tpu.matmul %265, %266, %cst_58 {dimension_numbers = #tpu.dot_dimension_numbers<[1], [0], [0], [1], [0, 0, 1, 1], [], []>} : vector<8x512xf32>, vector<512x256xf32>, vector<8x256xf32> -> vector<8x256xf32>
    %c0_59 = arith.constant 0 : index
    %c0_60 = arith.constant 0 : index
    %268 = vector.load %arg11[%c0_59, %c0_60] : memref<1x256xf32, #tpu.memory_space<vmem>>, vector<1x256xf32>
    %269 = vector.broadcast %268 : vector<1x256xf32> to vector<8x256xf32>
    %270 = arith.addf %267, %269 : vector<8x256xf32>
    %271 = vector.extract_strided_slice %270 {offsets = [0, 0], sizes = [8, 16], strides = [1, 1]} : vector<8x256xf32> to vector<8x16xf32>
    %272 = vector.extract_strided_slice %270 {offsets = [0, 128], sizes = [8, 16], strides = [1, 1]} : vector<8x256xf32> to vector<8x16xf32>
    %c0_61 = arith.constant 0 : index
    %c0_62 = arith.constant 0 : index
    %273 = vector.load %arg21[%c0_61, %c0_62] : memref<8x16xf32, #tpu.memory_space<vmem>>, vector<8x16xf32>
    tpu.vector_store %arg21[%c0_61, %c0_62], %271 {strides = array<i32>} : memref<8x16xf32, #tpu.memory_space<vmem>>, vector<8x16xf32>,
    %c0_63 = arith.constant 0 : index
    %c0_64 = arith.constant 0 : index
    %274 = vector.load %arg22[%c0_63, %c0_64] : memref<8x16xf32, #tpu.memory_space<vmem>>, vector<8x16xf32>
    tpu.vector_store %arg22[%c0_63, %c0_64], %272 {strides = array<i32>} : memref<8x16xf32, #tpu.memory_space<vmem>>, vector<8x16xf32>,
    %c0_65 = arith.constant 0 : index
    %c0_66 = arith.constant 0 : index
    %275 = vector.load %arg1[%c0_65, %c0_66] : memref<8x16xf32, #tpu.memory_space<vmem>>, vector<8x16xf32>
    %cst_67 = arith.constant 5.000000e-01 : f32
    %276 = vector.broadcast %cst_67 : f32 to vector<8x16xf32>
    %277 = arith.mulf %276, %272 : vector<8x16xf32>
    %278 = math.exp %277 : vector<8x16xf32>
    %279 = arith.mulf %275, %278 : vector<8x16xf32>
    %280 = arith.addf %271, %279 : vector<8x16xf32>
    %281 = vector.extract_strided_slice %243 {offsets = [0, 0], sizes = [8, 32], strides = [1, 1]} : vector<8x64xf32> to vector<8x32xf32>
    %282 = tpu.concatenate %281, %280 in 1 : vector<8x32xf32>, vector<8x16xf32> -> vector<8x48xf32>
    %283 = vector.extract_strided_slice %0 {offsets = [56, 0], sizes = [8, 8], strides = [1, 1]} : vector<64x16xf32> to vector<8x8xf32>
    %c0_68 = arith.constant 0 : index
    %c0_69 = arith.constant 0 : index
    %284 = vector.load %arg12[%c0_68, %c0_69] : memref<8x384xbf16, #tpu.memory_space<vmem>>, vector<8x384xbf16>
    %c0_70 = arith.constant 0 : index
    %c0_71 = arith.constant 0 : index
    %285 = vector.load %arg13[%c0_70, %c0_71] : memref<48x384xbf16, #tpu.memory_space<vmem>>, vector<48x384xbf16>
    %c0_72 = arith.constant 0 : index
    %c0_73 = arith.constant 0 : index
    %286 = vector.load %arg14[%c0_72, %c0_73] : memref<1x384xf32, #tpu.memory_space<vmem>>, vector<1x384xf32>
    %287 = vector.shape_cast %286 : vector<1x384xf32> to vector<1x384xf32>
    %288 = vector.broadcast %287 : vector<1x384xf32> to vector<8x384xf32>
    %c0_74 = arith.constant 0 : index
    %c0_75 = arith.constant 0 : index
    %289 = vector.load %arg15[%c0_74, %c0_75] : memref<1x48xf32, #tpu.memory_space<vmem>>, vector<1x48xf32>
    %290 = vector.shape_cast %289 : vector<1x48xf32> to vector<1x48xf32>
    %291 = vector.broadcast %290 : vector<1x48xf32> to vector<8x48xf32>
    %c0_76 = arith.constant 0 : index
    %c0_77 = arith.constant 0 : index
    %292 = vector.load %arg16[%c0_76, %c0_77] : memref<48x64xbf16, #tpu.memory_space<vmem>>, vector<48x64xbf16>
    %c0_78 = arith.constant 0 : index
    %c0_79 = arith.constant 0 : index
    %293 = vector.load %arg18[%c0_78, %c0_79] : memref<64x8xbf16, #tpu.memory_space<vmem>>, vector<64x8xbf16>
    %c0_80 = arith.constant 0 : index
    %c0_81 = arith.constant 0 : index
    %294 = vector.load %arg17[%c0_80, %c0_81] : memref<1x64xf32, #tpu.memory_space<vmem>>, vector<1x64xf32>
    %295 = vector.shape_cast %294 : vector<1x64xf32> to vector<1x64xf32>
    %296 = vector.broadcast %295 : vector<1x64xf32> to vector<8x64xf32>
    %c0_82 = arith.constant 0 : index
    %c0_83 = arith.constant 0 : index
    %297 = vector.load %arg19[%c0_82, %c0_83] : memref<1x8xf32, #tpu.memory_space<vmem>>, vector<1x8xf32>
    %298 = vector.shape_cast %297 : vector<1x8xf32> to vector<1x8xf32>
    %299 = vector.broadcast %298 : vector<1x8xf32> to vector<8x8xf32>
    %300 = arith.truncf %283 : vector<8x8xf32> to vector<8x8xbf16>
    %cst_84 = arith.constant dense<0.000000e+00> : vector<8x384xf32>
    %301 = tpu.matmul %300, %284, %cst_84 {dimension_numbers = #tpu.dot_dimension_numbers<[1], [0], [0], [1], [0, 0, 1, 1], [], []>} : vector<8x8xbf16>, vector<8x384xbf16>, vector<8x384xf32> -> vector<8x384xf32>
    %302 = arith.addf %301, %288 : vector<8x384xf32>
    %303 = arith.truncf %282 : vector<8x48xf32> to vector<8x48xbf16>
    %cst_85 = arith.constant dense<0.000000e+00> : vector<8x384xf32>
    %304 = tpu.matmul %303, %285, %cst_85 {dimension_numbers = #tpu.dot_dimension_numbers<[1], [0], [0], [1], [0, 0, 1, 1], [], []>} : vector<8x48xbf16>, vector<48x384xbf16>, vector<8x384xf32> -> vector<8x384xf32>
    %305 = vector.extract_strided_slice %302 {offsets = [0, 0], sizes = [8, 48], strides = [1, 1]} : vector<8x384xf32> to vector<8x48xf32>
    %306 = vector.extract_strided_slice %304 {offsets = [0, 0], sizes = [8, 48], strides = [1, 1]} : vector<8x384xf32> to vector<8x48xf32>
    %307 = arith.addf %305, %306 : vector<8x48xf32>
    %308 = arith.negf %307 : vector<8x48xf32>
    %309 = math.exp %308 : vector<8x48xf32>
    %cst_86 = arith.constant 1.000000e+00 : f32
    %310 = vector.broadcast %cst_86 : f32 to vector<8x48xf32>
    %311 = arith.addf %310, %309 : vector<8x48xf32>
    %312 = arith.divf %310, %311 : vector<8x48xf32>
    %313 = vector.extract_strided_slice %302 {offsets = [0, 128], sizes = [8, 48], strides = [1, 1]} : vector<8x384xf32> to vector<8x48xf32>
    %314 = vector.extract_strided_slice %304 {offsets = [0, 128], sizes = [8, 48], strides = [1, 1]} : vector<8x384xf32> to vector<8x48xf32>
    %315 = arith.addf %313, %314 : vector<8x48xf32>
    %316 = arith.negf %315 : vector<8x48xf32>
    %317 = math.exp %316 : vector<8x48xf32>
    %cst_87 = arith.constant 1.000000e+00 : f32
    %318 = vector.broadcast %cst_87 : f32 to vector<8x48xf32>
    %319 = arith.addf %318, %317 : vector<8x48xf32>
    %320 = arith.divf %318, %319 : vector<8x48xf32>
    %321 = vector.extract_strided_slice %302 {offsets = [0, 256], sizes = [8, 48], strides = [1, 1]} : vector<8x384xf32> to vector<8x48xf32>
    %322 = vector.extract_strided_slice %304 {offsets = [0, 256], sizes = [8, 48], strides = [1, 1]} : vector<8x384xf32> to vector<8x48xf32>
    %323 = arith.addf %322, %291 : vector<8x48xf32>
    %324 = arith.mulf %312, %323 : vector<8x48xf32>
    %325 = arith.addf %321, %324 : vector<8x48xf32>
    %326 = math.tanh %325 : vector<8x48xf32>
    %cst_88 = arith.constant 1.000000e+00 : f32
    %327 = vector.broadcast %cst_88 : f32 to vector<8x48xf32>
    %328 = arith.subf %327, %320 : vector<8x48xf32>
    %329 = arith.mulf %328, %326 : vector<8x48xf32>
    %330 = arith.mulf %320, %282 : vector<8x48xf32>
    %331 = arith.addf %329, %330 : vector<8x48xf32>
    %332 = arith.truncf %331 : vector<8x48xf32> to vector<8x48xbf16>
    %cst_89 = arith.constant dense<0.000000e+00> : vector<8x64xf32>
    %333 = tpu.matmul %332, %292, %cst_89 {dimension_numbers = #tpu.dot_dimension_numbers<[1], [0], [0], [1], [0, 0, 1, 1], [], []>} : vector<8x48xbf16>, vector<48x64xbf16>, vector<8x64xf32> -> vector<8x64xf32>
    %334 = arith.addf %333, %296 : vector<8x64xf32>
    %cst_90 = arith.constant 0.000000e+00 : f32
    %335 = vector.broadcast %cst_90 : f32 to vector<8x64xf32>
    %336 = arith.maximumf %334, %335 : vector<8x64xf32>
    %337 = arith.truncf %336 : vector<8x64xf32> to vector<8x64xbf16>
    %cst_91 = arith.constant dense<0.000000e+00> : vector<8x8xf32>
    %338 = tpu.matmul %337, %293, %cst_91 {dimension_numbers = #tpu.dot_dimension_numbers<[1], [0], [0], [1], [0, 0, 1, 1], [], []>} : vector<8x64xbf16>, vector<64x8xbf16>, vector<8x8xf32> -> vector<8x8xf32>
    %339 = arith.addf %338, %299 : vector<8x8xf32>
    %340 = arith.truncf %339 : vector<8x8xf32> to vector<8x8xbf16>
    %cst_92 = arith.constant dense<0.000000e+00> : vector<8x384xf32>
    %341 = tpu.matmul %340, %284, %cst_92 {dimension_numbers = #tpu.dot_dimension_numbers<[1], [0], [0], [1], [0, 0, 1, 1], [], []>} : vector<8x8xbf16>, vector<8x384xbf16>, vector<8x384xf32> -> vector<8x384xf32>
    %342 = arith.addf %341, %288 : vector<8x384xf32>
    %343 = arith.truncf %331 : vector<8x48xf32> to vector<8x48xbf16>
    %cst_93 = arith.constant dense<0.000000e+00> : vector<8x384xf32>
    %344 = tpu.matmul %343, %285, %cst_93 {dimension_numbers = #tpu.dot_dimension_numbers<[1], [0], [0], [1], [0, 0, 1, 1], [], []>} : vector<8x48xbf16>, vector<48x384xbf16>, vector<8x384xf32> -> vector<8x384xf32>
    %345 = vector.extract_strided_slice %342 {offsets = [0, 0], sizes = [8, 48], strides = [1, 1]} : vector<8x384xf32> to vector<8x48xf32>
    %346 = vector.extract_strided_slice %344 {offsets = [0, 0], sizes = [8, 48], strides = [1, 1]} : vector<8x384xf32> to vector<8x48xf32>
    %347 = arith.addf %345, %346 : vector<8x48xf32>
    %348 = arith.negf %347 : vector<8x48xf32>
    %349 = math.exp %348 : vector<8x48xf32>
    %cst_94 = arith.constant 1.000000e+00 : f32
    %350 = vector.broadcast %cst_94 : f32 to vector<8x48xf32>
    %351 = arith.addf %350, %349 : vector<8x48xf32>
    %352 = arith.divf %350, %351 : vector<8x48xf32>
    %353 = vector.extract_strided_slice %342 {offsets = [0, 128], sizes = [8, 48], strides = [1, 1]} : vector<8x384xf32> to vector<8x48xf32>
    %354 = vector.extract_strided_slice %344 {offsets = [0, 128], sizes = [8, 48], strides = [1, 1]} : vector<8x384xf32> to vector<8x48xf32>
    %355 = arith.addf %353, %354 : vector<8x48xf32>
    %356 = arith.negf %355 : vector<8x48xf32>
    %357 = math.exp %356 : vector<8x48xf32>
    %cst_95 = arith.constant 1.000000e+00 : f32
    %358 = vector.broadcast %cst_95 : f32 to vector<8x48xf32>
    %359 = arith.addf %358, %357 : vector<8x48xf32>
    %360 = arith.divf %358, %359 : vector<8x48xf32>
    %361 = vector.extract_strided_slice %342 {offsets = [0, 256], sizes = [8, 48], strides = [1, 1]} : vector<8x384xf32> to vector<8x48xf32>
    %362 = vector.extract_strided_slice %344 {offsets = [0, 256], sizes = [8, 48], strides = [1, 1]} : vector<8x384xf32> to vector<8x48xf32>
    %363 = arith.addf %362, %291 : vector<8x48xf32>
    %364 = arith.mulf %352, %363 : vector<8x48xf32>
    %365 = arith.addf %361, %364 : vector<8x48xf32>
    %366 = math.tanh %365 : vector<8x48xf32>
    %cst_96 = arith.constant 1.000000e+00 : f32
    %367 = vector.broadcast %cst_96 : f32 to vector<8x48xf32>
    %368 = arith.subf %367, %360 : vector<8x48xf32>
    %369 = arith.mulf %368, %366 : vector<8x48xf32>
    %370 = arith.mulf %360, %331 : vector<8x48xf32>
    %371 = arith.addf %369, %370 : vector<8x48xf32>
    %372 = arith.truncf %371 : vector<8x48xf32> to vector<8x48xbf16>
    %cst_97 = arith.constant dense<0.000000e+00> : vector<8x64xf32>
    %373 = tpu.matmul %372, %292, %cst_97 {dimension_numbers = #tpu.dot_dimension_numbers<[1], [0], [0], [1], [0, 0, 1, 1], [], []>} : vector<8x48xbf16>, vector<48x64xbf16>, vector<8x64xf32> -> vector<8x64xf32>
    %374 = arith.addf %373, %296 : vector<8x64xf32>
    %cst_98 = arith.constant 0.000000e+00 : f32
    %375 = vector.broadcast %cst_98 : f32 to vector<8x64xf32>
    %376 = arith.maximumf %374, %375 : vector<8x64xf32>
    %377 = arith.truncf %376 : vector<8x64xf32> to vector<8x64xbf16>
    %cst_99 = arith.constant dense<0.000000e+00> : vector<8x8xf32>
    %378 = tpu.matmul %377, %293, %cst_99 {dimension_numbers = #tpu.dot_dimension_numbers<[1], [0], [0], [1], [0, 0, 1, 1], [], []>} : vector<8x64xbf16>, vector<64x8xbf16>, vector<8x8xf32> -> vector<8x8xf32>
    %379 = arith.addf %378, %299 : vector<8x8xf32>
    %380 = arith.truncf %379 : vector<8x8xf32> to vector<8x8xbf16>
    %cst_100 = arith.constant dense<0.000000e+00> : vector<8x384xf32>
    %381 = tpu.matmul %380, %284, %cst_100 {dimension_numbers = #tpu.dot_dimension_numbers<[1], [0], [0], [1], [0, 0, 1, 1], [], []>} : vector<8x8xbf16>, vector<8x384xbf16>, vector<8x384xf32> -> vector<8x384xf32>
    %382 = arith.addf %381, %288 : vector<8x384xf32>
    %383 = arith.truncf %371 : vector<8x48xf32> to vector<8x48xbf16>
    %cst_101 = arith.constant dense<0.000000e+00> : vector<8x384xf32>
    %384 = tpu.matmul %383, %285, %cst_101 {dimension_numbers = #tpu.dot_dimension_numbers<[1], [0], [0], [1], [0, 0, 1, 1], [], []>} : vector<8x48xbf16>, vector<48x384xbf16>, vector<8x384xf32> -> vector<8x384xf32>
    %385 = vector.extract_strided_slice %382 {offsets = [0, 0], sizes = [8, 48], strides = [1, 1]} : vector<8x384xf32> to vector<8x48xf32>
    %386 = vector.extract_strided_slice %384 {offsets = [0, 0], sizes = [8, 48], strides = [1, 1]} : vector<8x384xf32> to vector<8x48xf32>
    %387 = arith.addf %385, %386 : vector<8x48xf32>
    %388 = arith.negf %387 : vector<8x48xf32>
    %389 = math.exp %388 : vector<8x48xf32>
    %cst_102 = arith.constant 1.000000e+00 : f32
    %390 = vector.broadcast %cst_102 : f32 to vector<8x48xf32>
    %391 = arith.addf %390, %389 : vector<8x48xf32>
    %392 = arith.divf %390, %391 : vector<8x48xf32>
    %393 = vector.extract_strided_slice %382 {offsets = [0, 128], sizes = [8, 48], strides = [1, 1]} : vector<8x384xf32> to vector<8x48xf32>
    %394 = vector.extract_strided_slice %384 {offsets = [0, 128], sizes = [8, 48], strides = [1, 1]} : vector<8x384xf32> to vector<8x48xf32>
    %395 = arith.addf %393, %394 : vector<8x48xf32>
    %396 = arith.negf %395 : vector<8x48xf32>
    %397 = math.exp %396 : vector<8x48xf32>
    %cst_103 = arith.constant 1.000000e+00 : f32
    %398 = vector.broadcast %cst_103 : f32 to vector<8x48xf32>
    %399 = arith.addf %398, %397 : vector<8x48xf32>
    %400 = arith.divf %398, %399 : vector<8x48xf32>
    %401 = vector.extract_strided_slice %382 {offsets = [0, 256], sizes = [8, 48], strides = [1, 1]} : vector<8x384xf32> to vector<8x48xf32>
    %402 = vector.extract_strided_slice %384 {offsets = [0, 256], sizes = [8, 48], strides = [1, 1]} : vector<8x384xf32> to vector<8x48xf32>
    %403 = arith.addf %402, %291 : vector<8x48xf32>
    %404 = arith.mulf %392, %403 : vector<8x48xf32>
    %405 = arith.addf %401, %404 : vector<8x48xf32>
    %406 = math.tanh %405 : vector<8x48xf32>
    %cst_104 = arith.constant 1.000000e+00 : f32
    %407 = vector.broadcast %cst_104 : f32 to vector<8x48xf32>
    %408 = arith.subf %407, %400 : vector<8x48xf32>
    %409 = arith.mulf %408, %406 : vector<8x48xf32>
    %410 = arith.mulf %400, %371 : vector<8x48xf32>
    %411 = arith.addf %409, %410 : vector<8x48xf32>
    %412 = arith.truncf %411 : vector<8x48xf32> to vector<8x48xbf16>
    %cst_105 = arith.constant dense<0.000000e+00> : vector<8x64xf32>
    %413 = tpu.matmul %412, %292, %cst_105 {dimension_numbers = #tpu.dot_dimension_numbers<[1], [0], [0], [1], [0, 0, 1, 1], [], []>} : vector<8x48xbf16>, vector<48x64xbf16>, vector<8x64xf32> -> vector<8x64xf32>
    %414 = arith.addf %413, %296 : vector<8x64xf32>
    %cst_106 = arith.constant 0.000000e+00 : f32
    %415 = vector.broadcast %cst_106 : f32 to vector<8x64xf32>
    %416 = arith.maximumf %414, %415 : vector<8x64xf32>
    %417 = arith.truncf %416 : vector<8x64xf32> to vector<8x64xbf16>
    %cst_107 = arith.constant dense<0.000000e+00> : vector<8x8xf32>
    %418 = tpu.matmul %417, %293, %cst_107 {dimension_numbers = #tpu.dot_dimension_numbers<[1], [0], [0], [1], [0, 0, 1, 1], [], []>} : vector<8x64xbf16>, vector<64x8xbf16>, vector<8x8xf32> -> vector<8x8xf32>
    %419 = arith.addf %418, %299 : vector<8x8xf32>
    %420 = arith.truncf %419 : vector<8x8xf32> to vector<8x8xbf16>
    %cst_108 = arith.constant dense<0.000000e+00> : vector<8x384xf32>
    %421 = tpu.matmul %420, %284, %cst_108 {dimension_numbers = #tpu.dot_dimension_numbers<[1], [0], [0], [1], [0, 0, 1, 1], [], []>} : vector<8x8xbf16>, vector<8x384xbf16>, vector<8x384xf32> -> vector<8x384xf32>
    %422 = arith.addf %421, %288 : vector<8x384xf32>
    %423 = arith.truncf %411 : vector<8x48xf32> to vector<8x48xbf16>
    %cst_109 = arith.constant dense<0.000000e+00> : vector<8x384xf32>
    %424 = tpu.matmul %423, %285, %cst_109 {dimension_numbers = #tpu.dot_dimension_numbers<[1], [0], [0], [1], [0, 0, 1, 1], [], []>} : vector<8x48xbf16>, vector<48x384xbf16>, vector<8x384xf32> -> vector<8x384xf32>
    %425 = vector.extract_strided_slice %422 {offsets = [0, 0], sizes = [8, 48], strides = [1, 1]} : vector<8x384xf32> to vector<8x48xf32>
    %426 = vector.extract_strided_slice %424 {offsets = [0, 0], sizes = [8, 48], strides = [1, 1]} : vector<8x384xf32> to vector<8x48xf32>
    %427 = arith.addf %425, %426 : vector<8x48xf32>
    %428 = arith.negf %427 : vector<8x48xf32>
    %429 = math.exp %428 : vector<8x48xf32>
    %cst_110 = arith.constant 1.000000e+00 : f32
    %430 = vector.broadcast %cst_110 : f32 to vector<8x48xf32>
    %431 = arith.addf %430, %429 : vector<8x48xf32>
    %432 = arith.divf %430, %431 : vector<8x48xf32>
    %433 = vector.extract_strided_slice %422 {offsets = [0, 128], sizes = [8, 48], strides = [1, 1]} : vector<8x384xf32> to vector<8x48xf32>
    %434 = vector.extract_strided_slice %424 {offsets = [0, 128], sizes = [8, 48], strides = [1, 1]} : vector<8x384xf32> to vector<8x48xf32>
    %435 = arith.addf %433, %434 : vector<8x48xf32>
    %436 = arith.negf %435 : vector<8x48xf32>
    %437 = math.exp %436 : vector<8x48xf32>
    %cst_111 = arith.constant 1.000000e+00 : f32
    %438 = vector.broadcast %cst_111 : f32 to vector<8x48xf32>
    %439 = arith.addf %438, %437 : vector<8x48xf32>
    %440 = arith.divf %438, %439 : vector<8x48xf32>
    %441 = vector.extract_strided_slice %422 {offsets = [0, 256], sizes = [8, 48], strides = [1, 1]} : vector<8x384xf32> to vector<8x48xf32>
    %442 = vector.extract_strided_slice %424 {offsets = [0, 256], sizes = [8, 48], strides = [1, 1]} : vector<8x384xf32> to vector<8x48xf32>
    %443 = arith.addf %442, %291 : vector<8x48xf32>
    %444 = arith.mulf %432, %443 : vector<8x48xf32>
    %445 = arith.addf %441, %444 : vector<8x48xf32>
    %446 = math.tanh %445 : vector<8x48xf32>
    %cst_112 = arith.constant 1.000000e+00 : f32
    %447 = vector.broadcast %cst_112 : f32 to vector<8x48xf32>
    %448 = arith.subf %447, %440 : vector<8x48xf32>
    %449 = arith.mulf %448, %446 : vector<8x48xf32>
    %450 = arith.mulf %440, %411 : vector<8x48xf32>
    %451 = arith.addf %449, %450 : vector<8x48xf32>
    %452 = arith.truncf %451 : vector<8x48xf32> to vector<8x48xbf16>
    %cst_113 = arith.constant dense<0.000000e+00> : vector<8x64xf32>
    %453 = tpu.matmul %452, %292, %cst_113 {dimension_numbers = #tpu.dot_dimension_numbers<[1], [0], [0], [1], [0, 0, 1, 1], [], []>} : vector<8x48xbf16>, vector<48x64xbf16>, vector<8x64xf32> -> vector<8x64xf32>
    %454 = arith.addf %453, %296 : vector<8x64xf32>
    %cst_114 = arith.constant 0.000000e+00 : f32
    %455 = vector.broadcast %cst_114 : f32 to vector<8x64xf32>
    %456 = arith.maximumf %454, %455 : vector<8x64xf32>
    %457 = arith.truncf %456 : vector<8x64xf32> to vector<8x64xbf16>
    %cst_115 = arith.constant dense<0.000000e+00> : vector<8x8xf32>
    %458 = tpu.matmul %457, %293, %cst_115 {dimension_numbers = #tpu.dot_dimension_numbers<[1], [0], [0], [1], [0, 0, 1, 1], [], []>} : vector<8x64xbf16>, vector<64x8xbf16>, vector<8x8xf32> -> vector<8x8xf32>
    %459 = arith.addf %458, %299 : vector<8x8xf32>
    %460 = arith.truncf %459 : vector<8x8xf32> to vector<8x8xbf16>
    %cst_116 = arith.constant dense<0.000000e+00> : vector<8x384xf32>
    %461 = tpu.matmul %460, %284, %cst_116 {dimension_numbers = #tpu.dot_dimension_numbers<[1], [0], [0], [1], [0, 0, 1, 1], [], []>} : vector<8x8xbf16>, vector<8x384xbf16>, vector<8x384xf32> -> vector<8x384xf32>
    %462 = arith.addf %461, %288 : vector<8x384xf32>
    %463 = arith.truncf %451 : vector<8x48xf32> to vector<8x48xbf16>
    %cst_117 = arith.constant dense<0.000000e+00> : vector<8x384xf32>
    %464 = tpu.matmul %463, %285, %cst_117 {dimension_numbers = #tpu.dot_dimension_numbers<[1], [0], [0], [1], [0, 0, 1, 1], [], []>} : vector<8x48xbf16>, vector<48x384xbf16>, vector<8x384xf32> -> vector<8x384xf32>
    %465 = vector.extract_strided_slice %462 {offsets = [0, 0], sizes = [8, 48], strides = [1, 1]} : vector<8x384xf32> to vector<8x48xf32>
    %466 = vector.extract_strided_slice %464 {offsets = [0, 0], sizes = [8, 48], strides = [1, 1]} : vector<8x384xf32> to vector<8x48xf32>
    %467 = arith.addf %465, %466 : vector<8x48xf32>
    %468 = arith.negf %467 : vector<8x48xf32>
    %469 = math.exp %468 : vector<8x48xf32>
    %cst_118 = arith.constant 1.000000e+00 : f32
    %470 = vector.broadcast %cst_118 : f32 to vector<8x48xf32>
    %471 = arith.addf %470, %469 : vector<8x48xf32>
    %472 = arith.divf %470, %471 : vector<8x48xf32>
    %473 = vector.extract_strided_slice %462 {offsets = [0, 128], sizes = [8, 48], strides = [1, 1]} : vector<8x384xf32> to vector<8x48xf32>
    %474 = vector.extract_strided_slice %464 {offsets = [0, 128], sizes = [8, 48], strides = [1, 1]} : vector<8x384xf32> to vector<8x48xf32>
    %475 = arith.addf %473, %474 : vector<8x48xf32>
    %476 = arith.negf %475 : vector<8x48xf32>
    %477 = math.exp %476 : vector<8x48xf32>
    %cst_119 = arith.constant 1.000000e+00 : f32
    %478 = vector.broadcast %cst_119 : f32 to vector<8x48xf32>
    %479 = arith.addf %478, %477 : vector<8x48xf32>
    %480 = arith.divf %478, %479 : vector<8x48xf32>
    %481 = vector.extract_strided_slice %462 {offsets = [0, 256], sizes = [8, 48], strides = [1, 1]} : vector<8x384xf32> to vector<8x48xf32>
    %482 = vector.extract_strided_slice %464 {offsets = [0, 256], sizes = [8, 48], strides = [1, 1]} : vector<8x384xf32> to vector<8x48xf32>
    %483 = arith.addf %482, %291 : vector<8x48xf32>
    %484 = arith.mulf %472, %483 : vector<8x48xf32>
    %485 = arith.addf %481, %484 : vector<8x48xf32>
    %486 = math.tanh %485 : vector<8x48xf32>
    %cst_120 = arith.constant 1.000000e+00 : f32
    %487 = vector.broadcast %cst_120 : f32 to vector<8x48xf32>
    %488 = arith.subf %487, %480 : vector<8x48xf32>
    %489 = arith.mulf %488, %486 : vector<8x48xf32>
    %490 = arith.mulf %480, %451 : vector<8x48xf32>
    %491 = arith.addf %489, %490 : vector<8x48xf32>
    %492 = arith.truncf %491 : vector<8x48xf32> to vector<8x48xbf16>
    %cst_121 = arith.constant dense<0.000000e+00> : vector<8x64xf32>
    %493 = tpu.matmul %492, %292, %cst_121 {dimension_numbers = #tpu.dot_dimension_numbers<[1], [0], [0], [1], [0, 0, 1, 1], [], []>} : vector<8x48xbf16>, vector<48x64xbf16>, vector<8x64xf32> -> vector<8x64xf32>
    %494 = arith.addf %493, %296 : vector<8x64xf32>
    %cst_122 = arith.constant 0.000000e+00 : f32
    %495 = vector.broadcast %cst_122 : f32 to vector<8x64xf32>
    %496 = arith.maximumf %494, %495 : vector<8x64xf32>
    %497 = arith.truncf %496 : vector<8x64xf32> to vector<8x64xbf16>
    %cst_123 = arith.constant dense<0.000000e+00> : vector<8x8xf32>
    %498 = tpu.matmul %497, %293, %cst_123 {dimension_numbers = #tpu.dot_dimension_numbers<[1], [0], [0], [1], [0, 0, 1, 1], [], []>} : vector<8x64xbf16>, vector<64x8xbf16>, vector<8x8xf32> -> vector<8x8xf32>
    %499 = arith.addf %498, %299 : vector<8x8xf32>
    %500 = arith.truncf %499 : vector<8x8xf32> to vector<8x8xbf16>
    %cst_124 = arith.constant dense<0.000000e+00> : vector<8x384xf32>
    %501 = tpu.matmul %500, %284, %cst_124 {dimension_numbers = #tpu.dot_dimension_numbers<[1], [0], [0], [1], [0, 0, 1, 1], [], []>} : vector<8x8xbf16>, vector<8x384xbf16>, vector<8x384xf32> -> vector<8x384xf32>
    %502 = arith.addf %501, %288 : vector<8x384xf32>
    %503 = arith.truncf %491 : vector<8x48xf32> to vector<8x48xbf16>
    %cst_125 = arith.constant dense<0.000000e+00> : vector<8x384xf32>
    %504 = tpu.matmul %503, %285, %cst_125 {dimension_numbers = #tpu.dot_dimension_numbers<[1], [0], [0], [1], [0, 0, 1, 1], [], []>} : vector<8x48xbf16>, vector<48x384xbf16>, vector<8x384xf32> -> vector<8x384xf32>
    %505 = vector.extract_strided_slice %502 {offsets = [0, 0], sizes = [8, 48], strides = [1, 1]} : vector<8x384xf32> to vector<8x48xf32>
    %506 = vector.extract_strided_slice %504 {offsets = [0, 0], sizes = [8, 48], strides = [1, 1]} : vector<8x384xf32> to vector<8x48xf32>
    %507 = arith.addf %505, %506 : vector<8x48xf32>
    %508 = arith.negf %507 : vector<8x48xf32>
    %509 = math.exp %508 : vector<8x48xf32>
    %cst_126 = arith.constant 1.000000e+00 : f32
    %510 = vector.broadcast %cst_126 : f32 to vector<8x48xf32>
    %511 = arith.addf %510, %509 : vector<8x48xf32>
    %512 = arith.divf %510, %511 : vector<8x48xf32>
    %513 = vector.extract_strided_slice %502 {offsets = [0, 128], sizes = [8, 48], strides = [1, 1]} : vector<8x384xf32> to vector<8x48xf32>
    %514 = vector.extract_strided_slice %504 {offsets = [0, 128], sizes = [8, 48], strides = [1, 1]} : vector<8x384xf32> to vector<8x48xf32>
    %515 = arith.addf %513, %514 : vector<8x48xf32>
    %516 = arith.negf %515 : vector<8x48xf32>
    %517 = math.exp %516 : vector<8x48xf32>
    %cst_127 = arith.constant 1.000000e+00 : f32
    %518 = vector.broadcast %cst_127 : f32 to vector<8x48xf32>
    %519 = arith.addf %518, %517 : vector<8x48xf32>
    %520 = arith.divf %518, %519 : vector<8x48xf32>
    %521 = vector.extract_strided_slice %502 {offsets = [0, 256], sizes = [8, 48], strides = [1, 1]} : vector<8x384xf32> to vector<8x48xf32>
    %522 = vector.extract_strided_slice %504 {offsets = [0, 256], sizes = [8, 48], strides = [1, 1]} : vector<8x384xf32> to vector<8x48xf32>
    %523 = arith.addf %522, %291 : vector<8x48xf32>
    %524 = arith.mulf %512, %523 : vector<8x48xf32>
    %525 = arith.addf %521, %524 : vector<8x48xf32>
    %526 = math.tanh %525 : vector<8x48xf32>
    %cst_128 = arith.constant 1.000000e+00 : f32
    %527 = vector.broadcast %cst_128 : f32 to vector<8x48xf32>
    %528 = arith.subf %527, %520 : vector<8x48xf32>
    %529 = arith.mulf %528, %526 : vector<8x48xf32>
    %530 = arith.mulf %520, %491 : vector<8x48xf32>
    %531 = arith.addf %529, %530 : vector<8x48xf32>
    %532 = arith.truncf %531 : vector<8x48xf32> to vector<8x48xbf16>
    %cst_129 = arith.constant dense<0.000000e+00> : vector<8x64xf32>
    %533 = tpu.matmul %532, %292, %cst_129 {dimension_numbers = #tpu.dot_dimension_numbers<[1], [0], [0], [1], [0, 0, 1, 1], [], []>} : vector<8x48xbf16>, vector<48x64xbf16>, vector<8x64xf32> -> vector<8x64xf32>
    %534 = arith.addf %533, %296 : vector<8x64xf32>
    %cst_130 = arith.constant 0.000000e+00 : f32
    %535 = vector.broadcast %cst_130 : f32 to vector<8x64xf32>
    %536 = arith.maximumf %534, %535 : vector<8x64xf32>
    %537 = arith.truncf %536 : vector<8x64xf32> to vector<8x64xbf16>
    %cst_131 = arith.constant dense<0.000000e+00> : vector<8x8xf32>
    %538 = tpu.matmul %537, %293, %cst_131 {dimension_numbers = #tpu.dot_dimension_numbers<[1], [0], [0], [1], [0, 0, 1, 1], [], []>} : vector<8x64xbf16>, vector<64x8xbf16>, vector<8x8xf32> -> vector<8x8xf32>
    %539 = arith.addf %538, %299 : vector<8x8xf32>
    %540 = arith.truncf %539 : vector<8x8xf32> to vector<8x8xbf16>
    %cst_132 = arith.constant dense<0.000000e+00> : vector<8x384xf32>
    %541 = tpu.matmul %540, %284, %cst_132 {dimension_numbers = #tpu.dot_dimension_numbers<[1], [0], [0], [1], [0, 0, 1, 1], [], []>} : vector<8x8xbf16>, vector<8x384xbf16>, vector<8x384xf32> -> vector<8x384xf32>
    %542 = arith.addf %541, %288 : vector<8x384xf32>
    %543 = arith.truncf %531 : vector<8x48xf32> to vector<8x48xbf16>
    %cst_133 = arith.constant dense<0.000000e+00> : vector<8x384xf32>
    %544 = tpu.matmul %543, %285, %cst_133 {dimension_numbers = #tpu.dot_dimension_numbers<[1], [0], [0], [1], [0, 0, 1, 1], [], []>} : vector<8x48xbf16>, vector<48x384xbf16>, vector<8x384xf32> -> vector<8x384xf32>
    %545 = vector.extract_strided_slice %542 {offsets = [0, 0], sizes = [8, 48], strides = [1, 1]} : vector<8x384xf32> to vector<8x48xf32>
    %546 = vector.extract_strided_slice %544 {offsets = [0, 0], sizes = [8, 48], strides = [1, 1]} : vector<8x384xf32> to vector<8x48xf32>
    %547 = arith.addf %545, %546 : vector<8x48xf32>
    %548 = arith.negf %547 : vector<8x48xf32>
    %549 = math.exp %548 : vector<8x48xf32>
    %cst_134 = arith.constant 1.000000e+00 : f32
    %550 = vector.broadcast %cst_134 : f32 to vector<8x48xf32>
    %551 = arith.addf %550, %549 : vector<8x48xf32>
    %552 = arith.divf %550, %551 : vector<8x48xf32>
    %553 = vector.extract_strided_slice %542 {offsets = [0, 128], sizes = [8, 48], strides = [1, 1]} : vector<8x384xf32> to vector<8x48xf32>
    %554 = vector.extract_strided_slice %544 {offsets = [0, 128], sizes = [8, 48], strides = [1, 1]} : vector<8x384xf32> to vector<8x48xf32>
    %555 = arith.addf %553, %554 : vector<8x48xf32>
    %556 = arith.negf %555 : vector<8x48xf32>
    %557 = math.exp %556 : vector<8x48xf32>
    %cst_135 = arith.constant 1.000000e+00 : f32
    %558 = vector.broadcast %cst_135 : f32 to vector<8x48xf32>
    %559 = arith.addf %558, %557 : vector<8x48xf32>
    %560 = arith.divf %558, %559 : vector<8x48xf32>
    %561 = vector.extract_strided_slice %542 {offsets = [0, 256], sizes = [8, 48], strides = [1, 1]} : vector<8x384xf32> to vector<8x48xf32>
    %562 = vector.extract_strided_slice %544 {offsets = [0, 256], sizes = [8, 48], strides = [1, 1]} : vector<8x384xf32> to vector<8x48xf32>
    %563 = arith.addf %562, %291 : vector<8x48xf32>
    %564 = arith.mulf %552, %563 : vector<8x48xf32>
    %565 = arith.addf %561, %564 : vector<8x48xf32>
    %566 = math.tanh %565 : vector<8x48xf32>
    %cst_136 = arith.constant 1.000000e+00 : f32
    %567 = vector.broadcast %cst_136 : f32 to vector<8x48xf32>
    %568 = arith.subf %567, %560 : vector<8x48xf32>
    %569 = arith.mulf %568, %566 : vector<8x48xf32>
    %570 = arith.mulf %560, %531 : vector<8x48xf32>
    %571 = arith.addf %569, %570 : vector<8x48xf32>
    %572 = arith.truncf %571 : vector<8x48xf32> to vector<8x48xbf16>
    %cst_137 = arith.constant dense<0.000000e+00> : vector<8x64xf32>
    %573 = tpu.matmul %572, %292, %cst_137 {dimension_numbers = #tpu.dot_dimension_numbers<[1], [0], [0], [1], [0, 0, 1, 1], [], []>} : vector<8x48xbf16>, vector<48x64xbf16>, vector<8x64xf32> -> vector<8x64xf32>
    %574 = arith.addf %573, %296 : vector<8x64xf32>
    %cst_138 = arith.constant 0.000000e+00 : f32
    %575 = vector.broadcast %cst_138 : f32 to vector<8x64xf32>
    %576 = arith.maximumf %574, %575 : vector<8x64xf32>
    %577 = arith.truncf %576 : vector<8x64xf32> to vector<8x64xbf16>
    %cst_139 = arith.constant dense<0.000000e+00> : vector<8x8xf32>
    %578 = tpu.matmul %577, %293, %cst_139 {dimension_numbers = #tpu.dot_dimension_numbers<[1], [0], [0], [1], [0, 0, 1, 1], [], []>} : vector<8x64xbf16>, vector<64x8xbf16>, vector<8x8xf32> -> vector<8x8xf32>
    %579 = arith.addf %578, %299 : vector<8x8xf32>
    %580 = arith.truncf %579 : vector<8x8xf32> to vector<8x8xbf16>
    %cst_140 = arith.constant dense<0.000000e+00> : vector<8x384xf32>
    %581 = tpu.matmul %580, %284, %cst_140 {dimension_numbers = #tpu.dot_dimension_numbers<[1], [0], [0], [1], [0, 0, 1, 1], [], []>} : vector<8x8xbf16>, vector<8x384xbf16>, vector<8x384xf32> -> vector<8x384xf32>
    %582 = arith.addf %581, %288 : vector<8x384xf32>
    %583 = arith.truncf %571 : vector<8x48xf32> to vector<8x48xbf16>
    %cst_141 = arith.constant dense<0.000000e+00> : vector<8x384xf32>
    %584 = tpu.matmul %583, %285, %cst_141 {dimension_numbers = #tpu.dot_dimension_numbers<[1], [0], [0], [1], [0, 0, 1, 1], [], []>} : vector<8x48xbf16>, vector<48x384xbf16>, vector<8x384xf32> -> vector<8x384xf32>
    %585 = vector.extract_strided_slice %582 {offsets = [0, 0], sizes = [8, 48], strides = [1, 1]} : vector<8x384xf32> to vector<8x48xf32>
    %586 = vector.extract_strided_slice %584 {offsets = [0, 0], sizes = [8, 48], strides = [1, 1]} : vector<8x384xf32> to vector<8x48xf32>
    %587 = arith.addf %585, %586 : vector<8x48xf32>
    %588 = arith.negf %587 : vector<8x48xf32>
    %589 = math.exp %588 : vector<8x48xf32>
    %cst_142 = arith.constant 1.000000e+00 : f32
    %590 = vector.broadcast %cst_142 : f32 to vector<8x48xf32>
    %591 = arith.addf %590, %589 : vector<8x48xf32>
    %592 = arith.divf %590, %591 : vector<8x48xf32>
    %593 = vector.extract_strided_slice %582 {offsets = [0, 128], sizes = [8, 48], strides = [1, 1]} : vector<8x384xf32> to vector<8x48xf32>
    %594 = vector.extract_strided_slice %584 {offsets = [0, 128], sizes = [8, 48], strides = [1, 1]} : vector<8x384xf32> to vector<8x48xf32>
    %595 = arith.addf %593, %594 : vector<8x48xf32>
    %596 = arith.negf %595 : vector<8x48xf32>
    %597 = math.exp %596 : vector<8x48xf32>
    %cst_143 = arith.constant 1.000000e+00 : f32
    %598 = vector.broadcast %cst_143 : f32 to vector<8x48xf32>
    %599 = arith.addf %598, %597 : vector<8x48xf32>
    %600 = arith.divf %598, %599 : vector<8x48xf32>
    %601 = vector.extract_strided_slice %582 {offsets = [0, 256], sizes = [8, 48], strides = [1, 1]} : vector<8x384xf32> to vector<8x48xf32>
    %602 = vector.extract_strided_slice %584 {offsets = [0, 256], sizes = [8, 48], strides = [1, 1]} : vector<8x384xf32> to vector<8x48xf32>
    %603 = arith.addf %602, %291 : vector<8x48xf32>
    %604 = arith.mulf %592, %603 : vector<8x48xf32>
    %605 = arith.addf %601, %604 : vector<8x48xf32>
    %606 = math.tanh %605 : vector<8x48xf32>
    %cst_144 = arith.constant 1.000000e+00 : f32
    %607 = vector.broadcast %cst_144 : f32 to vector<8x48xf32>
    %608 = arith.subf %607, %600 : vector<8x48xf32>
    %609 = arith.mulf %608, %606 : vector<8x48xf32>
    %610 = arith.mulf %600, %571 : vector<8x48xf32>
    %611 = arith.addf %609, %610 : vector<8x48xf32>
    %612 = arith.truncf %611 : vector<8x48xf32> to vector<8x48xbf16>
    %cst_145 = arith.constant dense<0.000000e+00> : vector<8x64xf32>
    %613 = tpu.matmul %612, %292, %cst_145 {dimension_numbers = #tpu.dot_dimension_numbers<[1], [0], [0], [1], [0, 0, 1, 1], [], []>} : vector<8x48xbf16>, vector<48x64xbf16>, vector<8x64xf32> -> vector<8x64xf32>
    %614 = arith.addf %613, %296 : vector<8x64xf32>
    %cst_146 = arith.constant 0.000000e+00 : f32
    %615 = vector.broadcast %cst_146 : f32 to vector<8x64xf32>
    %616 = arith.maximumf %614, %615 : vector<8x64xf32>
    %617 = arith.truncf %616 : vector<8x64xf32> to vector<8x64xbf16>
    %cst_147 = arith.constant dense<0.000000e+00> : vector<8x8xf32>
    %618 = tpu.matmul %617, %293, %cst_147 {dimension_numbers = #tpu.dot_dimension_numbers<[1], [0], [0], [1], [0, 0, 1, 1], [], []>} : vector<8x64xbf16>, vector<64x8xbf16>, vector<8x8xf32> -> vector<8x8xf32>
    %619 = arith.addf %618, %299 : vector<8x8xf32>
    %620 = tpu.concatenate %339, %379, %419, %459, %499, %539, %579, %619 in 1 : vector<8x8xf32>, vector<8x8xf32>, vector<8x8xf32>, vector<8x8xf32>, vector<8x8xf32>, vector<8x8xf32>, vector<8x8xf32>, vector<8x8xf32> -> vector<8x64xf32>
    %c0_148 = arith.constant 0 : index
    %c0_149 = arith.constant 0 : index
    %621 = vector.load %arg20[%c0_148, %c0_149] : memref<8x64xf32, #tpu.memory_space<vmem>>, vector<8x64xf32>
    tpu.vector_store %arg20[%c0_148, %c0_149], %620 {strides = array<i32>} : memref<8x64xf32, #tpu.memory_space<vmem>>, vector<8x64xf32>,
    return
  }
}

</mosaic_0001>

<llo_original>
// kernel: cvae_forward.1
$region0: #{cvae_forward.1}
  #allocation0 [shape = 'u32[]', space=smem, size = 0x4, offset = 0x4, fixed_abs, tag = 'smem constant byte address 0x4 - core index']
  #allocation1 [shape = 'u32[144,128]{1,0:T(1,128)}', space=vmem, size = 0x12000, scoped, tag = 'internal scratch']
  %s0 = inlined_call_operand.vmem [shape: f32[64,16], index: 0, kind: input, shape index: {}]
  %s1 = inlined_call_operand.vmem [shape: f32[8,16], index: 1, kind: input, shape index: {}]
  %s2 = inlined_call_operand.vmem [shape: bf16[16,384], index: 2, kind: input, shape index: {}]
  %s3 = inlined_call_operand.vmem [shape: f32[1,384], index: 3, kind: input, shape index: {}]
  %s4 = inlined_call_operand.vmem [shape: bf16[64,384], index: 4, kind: input, shape index: {}]
  %s5 = inlined_call_operand.vmem [shape: f32[1,64], index: 5, kind: input, shape index: {}]
  %s6 = inlined_call_operand.vmem [shape: bf16[64,1024], index: 6, kind: input, shape index: {}]
  %s7 = inlined_call_operand.vmem [shape: f32[1,1024], index: 7, kind: input, shape index: {}]
  %s8 = inlined_call_operand.vmem [shape: bf16[1024,512], index: 8, kind: input, shape index: {}]
  %s9 = inlined_call_operand.vmem [shape: f32[1,512], index: 9, kind: input, shape index: {}]
  %s10 = inlined_call_operand.vmem [shape: f32[512,256], index: 10, kind: input, shape index: {}]
  %s11 = inlined_call_operand.vmem [shape: f32[1,256], index: 11, kind: input, shape index: {}]
  %s12 = inlined_call_operand.vmem [shape: bf16[8,384], index: 12, kind: input, shape index: {}]
  %s13 = inlined_call_operand.vmem [shape: bf16[48,384], index: 13, kind: input, shape index: {}]
  %s14 = inlined_call_operand.vmem [shape: f32[1,384], index: 14, kind: input, shape index: {}]
  %s15 = inlined_call_operand.vmem [shape: f32[1,48], index: 15, kind: input, shape index: {}]
  %s16 = inlined_call_operand.vmem [shape: bf16[48,64], index: 16, kind: input, shape index: {}]
  %s17 = inlined_call_operand.vmem [shape: f32[1,64], index: 17, kind: input, shape index: {}]
  %s18 = inlined_call_operand.vmem [shape: bf16[64,8], index: 18, kind: input, shape index: {}]
  %s19 = inlined_call_operand.vmem [shape: f32[1,8], index: 19, kind: input, shape index: {}]
  %s20 = inlined_call_operand.vmem [shape: f32[8,64], index: 20, kind: output, shape index: {0}]
  %s21 = inlined_call_operand.vmem [shape: f32[8,16], index: 21, kind: output, shape index: {1}]
  %s22 = inlined_call_operand.vmem [shape: f32[8,16], index: 22, kind: output, shape index: {2}]
  %23 = xla_tuple %s20, %s21, %s22
  %s24 = sld [smem:[#allocation0]]
  $region106: #{cvae_forward.1} parent=0
    _
  %s26 = ssub.s32 1, %s24
  %s27 = scalar_select 0, %s26, %s24
  // Predicated region
  $region2: #{cvae_forward.1} parent=0 // pred_check
    _
  $region3: #{cvae_forward.1} parent=0 // pred_check_branch
    %29 = sbr.rel (0) target = $region5
  $region4: #{cvae_forward.1} parent=0 // pred_region
    _
  $region5: #{cvae_forward.1} parent=0 // pred_fallthru
    _
  // Predicated region
  $region6: #{cvae_forward.1} parent=0 // pred_check
    _
  $region7: #{cvae_forward.1} parent=0 // pred_check_branch
    %31 = sbr.rel (0) target = $region9
  $region8: #{cvae_forward.1} parent=0 // pred_region
    _
  $region9: #{cvae_forward.1} parent=0 // pred_fallthru
    _
  // Predicated region
  $region10: #{cvae_forward.1} parent=0 // pred_check
    _
  $region11: #{cvae_forward.1} parent=0 // pred_check_branch
    %33 = sbr.rel (0) target = $region13
  $region12: #{cvae_forward.1} parent=0 // pred_region
    _
  $region13: #{cvae_forward.1} parent=0 // pred_fallthru
    _
  // Predicated region
  $region14: #{cvae_forward.1} parent=0 // pred_check
    _
  $region15: #{cvae_forward.1} parent=0 // pred_check_branch
    %35 = sbr.rel (0) target = $region17
  $region16: #{cvae_forward.1} parent=0 // pred_region
    _
  $region17: #{cvae_forward.1} parent=0 // pred_fallthru
    _
  // Predicated region
  $region18: #{cvae_forward.1} parent=0 // pred_check
    _
  $region19: #{cvae_forward.1} parent=0 // pred_check_branch
    %37 = sbr.rel (0) target = $region21
  $region20: #{cvae_forward.1} parent=0 // pred_region
    _
  $region21: #{cvae_forward.1} parent=0 // pred_fallthru
    _
  // Predicated region
  $region22: #{cvae_forward.1} parent=0 // pred_check
    _
  $region23: #{cvae_forward.1} parent=0 // pred_check_branch
    %39 = sbr.rel (0) target = $region25
  $region24: #{cvae_forward.1} parent=0 // pred_region
    _
  $region25: #{cvae_forward.1} parent=0 // pred_fallthru
    _
  // Predicated region
  $region26: #{cvae_forward.1} parent=0 // pred_check
    _
  $region27: #{cvae_forward.1} parent=0 // pred_check_branch
    %41 = sbr.rel (0) target = $region29
  $region28: #{cvae_forward.1} parent=0 // pred_region
    _
  $region29: #{cvae_forward.1} parent=0 // pred_fallthru
    _
  // Predicated region
  $region30: #{cvae_forward.1} parent=0 // pred_check
    _
  $region31: #{cvae_forward.1} parent=0 // pred_check_branch
    %43 = sbr.rel (0) target = $region33
  $region32: #{cvae_forward.1} parent=0 // pred_region
    _
  $region33: #{cvae_forward.1} parent=0 // pred_fallthru
    _
  // Predicated region
  $region34: #{cvae_forward.1} parent=0 // pred_check
    _
  $region35: #{cvae_forward.1} parent=0 // pred_check_branch
    %45 = sbr.rel (0) target = $region37
  $region36: #{cvae_forward.1} parent=0 // pred_region
    _
  $region37: #{cvae_forward.1} parent=0 // pred_fallthru
    _
  // Predicated region
  $region38: #{cvae_forward.1} parent=0 // pred_check
    _
  $region39: #{cvae_forward.1} parent=0 // pred_check_branch
    %47 = sbr.rel (0) target = $region41
  $region40: #{cvae_forward.1} parent=0 // pred_region
    _
  $region41: #{cvae_forward.1} parent=0 // pred_fallthru
    _
  // Predicated region
  $region42: #{cvae_forward.1} parent=0 // pred_check
    _
  $region43: #{cvae_forward.1} parent=0 // pred_check_branch
    %49 = sbr.rel (0) target = $region45
  $region44: #{cvae_forward.1} parent=0 // pred_region
    _
  $region45: #{cvae_forward.1} parent=0 // pred_fallthru
    _
  // Predicated region
  $region46: #{cvae_forward.1} parent=0 // pred_check
    _
  $region47: #{cvae_forward.1} parent=0 // pred_check_branch
    %51 = sbr.rel (0) target = $region49
  $region48: #{cvae_forward.1} parent=0 // pred_region
    _
  $region49: #{cvae_forward.1} parent=0 // pred_fallthru
    _
  // Predicated region
  $region50: #{cvae_forward.1} parent=0 // pred_check
    _
  $region51: #{cvae_forward.1} parent=0 // pred_check_branch
    %53 = sbr.rel (0) target = $region53
  $region52: #{cvae_forward.1} parent=0 // pred_region
    _
  $region53: #{cvae_forward.1} parent=0 // pred_fallthru
    _
  // Predicated region
  $region54: #{cvae_forward.1} parent=0 // pred_check
    _
  $region55: #{cvae_forward.1} parent=0 // pred_check_branch
    %55 = sbr.rel (0) target = $region57
  $region56: #{cvae_forward.1} parent=0 // pred_region
    _
  $region57: #{cvae_forward.1} parent=0 // pred_fallthru
    _
  // Predicated region
  $region58: #{cvae_forward.1} parent=0 // pred_check
    _
  $region59: #{cvae_forward.1} parent=0 // pred_check_branch
    %57 = sbr.rel (0) target = $region61
  $region60: #{cvae_forward.1} parent=0 // pred_region
    _
  $region61: #{cvae_forward.1} parent=0 // pred_fallthru
    _
  // Predicated region
  $region62: #{cvae_forward.1} parent=0 // pred_check
    _
  $region63: #{cvae_forward.1} parent=0 // pred_check_branch
    %59 = sbr.rel (0) target = $region65
  $region64: #{cvae_forward.1} parent=0 // pred_region
    _
  $region65: #{cvae_forward.1} parent=0 // pred_fallthru
    _
  // Predicated region
  $region66: #{cvae_forward.1} parent=0 // pred_check
    _
  $region67: #{cvae_forward.1} parent=0 // pred_check_branch
    %61 = sbr.rel (0) target = $region69
  $region68: #{cvae_forward.1} parent=0 // pred_region
    _
  $region69: #{cvae_forward.1} parent=0 // pred_fallthru
    _
  // Predicated region
  $region70: #{cvae_forward.1} parent=0 // pred_check
    _
  $region71: #{cvae_forward.1} parent=0 // pred_check_branch
    %63 = sbr.rel (0) target = $region73
  $region72: #{cvae_forward.1} parent=0 // pred_region
    _
  $region73: #{cvae_forward.1} parent=0 // pred_fallthru
    _
  // Predicated region
  $region74: #{cvae_forward.1} parent=0 // pred_check
    _
  $region75: #{cvae_forward.1} parent=0 // pred_check_branch
    %65 = sbr.rel (0) target = $region77
  $region76: #{cvae_forward.1} parent=0 // pred_region
    _
  $region77: #{cvae_forward.1} parent=0 // pred_fallthru
    _
  // Predicated region
  $region78: #{cvae_forward.1} parent=0 // pred_check
    _
  $region79: #{cvae_forward.1} parent=0 // pred_check_branch
    %67 = sbr.rel (0) target = $region81
  $region80: #{cvae_forward.1} parent=0 // pred_region
    _
  $region81: #{cvae_forward.1} parent=0 // pred_fallthru
    _
  %v69 = vld [vmem:[%s0] sm:$0xff]
  %v70 = vld [vmem:[%s0 + $0x8] sm:$0xff]
  %v71 = vld [vmem:[%s0 + $0x10] sm:$0xff]
  %v72 = vld [vmem:[%s0 + $0x18] sm:$0xff]
  %v73 = vld [vmem:[%s0 + $0x20] sm:$0xff]
  %v74 = vld [vmem:[%s0 + $0x28] sm:$0xff]
  %v75 = vld [vmem:[%s0 + $0x30] sm:$0xff]
  %v76 = vld [vmem:[%s0 + $0x38] sm:$0xff]
  %v77 = vpack.c.bf16 %v70, %v69
  %v78 = vpack.c.bf16 %v72, %v71
  %v79 = vpack.c.bf16 %v74, %v73
  %v80 = vpack.c.bf16 %v76, %v75
  %v81 = vld [vmem:[%s2] sm:$0xff]
  %v82 = vld [vmem:[%s2 + $0x8] sm:$0xf]
  %v83 = vld [vmem:[%s2 + $0xc] sm:$0xff]
  %v84 = vld [vmem:[%s2 + $0x14] sm:$0xf]
  %v85 = vld [vmem:[%s3] sm:$0x7]
  %v87 = vlaneseq
  %v88 = vshrl.u32 %v87, 7
  %v89 = vsub.s32 0, %v88
  %v90 = vrot.slane %v85, %v89
  %v91 = vlaneseq
  %v92 = vshrl.u32 %v91, 7
  %v93 = vsub.s32 1, %v92
  %v94 = vrot.slane %v85, %v93
  %v95 = vlaneseq
  %v96 = vshrl.u32 %v95, 7
  %v97 = vsub.s32 2, %v96
  %v98 = vrot.slane %v85, %v97
  %v106 = vunpack.c.l.b16 %v81
  %v107 = vunpack.c.h.b16 %v81
  %v108 = vunpack.c.l.b16 %v82
  %v109 = vunpack.c.l.b16 %v83
  %v110 = vunpack.c.h.b16 %v83
  %v111 = vunpack.c.l.b16 %v84
  %v112 = vpack.c.b16 %v109, %v106
  %v113 = vpack.c.b16 %v110, %v107
  %v114 = vpack.c.b16 %v111, %v108
  %vm118 = vcmask 130048
  %v120 = vsel %vm118, %v77, 0
  %v123 = vsel %vm118, %v78, 0
  %v126 = vsel %vm118, %v79, 0
  %v129 = vsel %vm118, %v80, 0
  %131 = vmatprep.subr.bf16.mxu0 0
  %132 = vmatpush1.bf16.msra.mxu0 0
  %133 = vmatprep.subr.bf16.mxu0 0
  %134 = vmatpush1.bf16.msra.mxu0 0
  %135 = vmatprep.subr.bf16.mxu0 0
  %136 = vmatpush1.bf16.msra.mxu0 0
  %137 = vmatprep.subr.bf16.mxu0 0
  %138 = vmatpush1.bf16.msra.mxu0 0
  %139 = vmatprep.subr.bf16.mxu0 0
  %140 = vmatpush1.bf16.msra.mxu0 0
  %141 = vmatprep.subr.bf16.mxu0 0
  %142 = vmatpush1.bf16.msra.mxu0 0
  %143 = vmatprep.subr.bf16.mxu0 0
  %144 = vmatpush1.bf16.msra.mxu0 0
  %145 = vmatprep.subr.bf16.mxu0 %v113
  %146 = vmatpush1.bf16.msra.mxu0 %v112
  %147 = vmatprep.subr.bf16.mxu0 0
  %148 = vmatpush2.bf16.msra.mxu0 0
  %149 = vmatprep.subr.bf16.mxu0 0
  %150 = vmatpush2.bf16.msra.mxu0 0
  %151 = vmatprep.subr.bf16.mxu0 0
  %152 = vmatpush2.bf16.msra.mxu0 0
  %153 = vmatprep.subr.bf16.mxu0 0
  %154 = vmatpush2.bf16.msra.mxu0 0
  %155 = vmatprep.subr.bf16.mxu0 0
  %156 = vmatpush2.bf16.msra.mxu0 0
  %157 = vmatprep.subr.bf16.mxu0 0
  %158 = vmatpush2.bf16.msra.mxu0 0
  %159 = vmatprep.subr.bf16.mxu0 0
  %160 = vmatpush2.bf16.msra.mxu0 0
  %161 = vmatprep.subr.bf16.mxu0 0
  %162 = vmatpush2.bf16.msra.mxu0 0
  %163 = vmatprep.mubr.bf16.mxu0 0
  %164 = vmatmul.mubr.bf16.gmra.mxu0 %v120
  %v165 = vpop.f32.mrf.mxu0
  %v166 = vadd.f32 %v90, %v165
  %v167 = vpop.f32.mrf.mxu0
  %v168 = vadd.f32 %v94, %v167
  %v169 = vpop.f32.mrf.mxu0
  %v170 = vadd.f32 %v90, %v169
  %v171 = vpop.f32.mrf.mxu0
  %v172 = vadd.f32 %v94, %v171
  %173 = vmatprep.mubr.bf16.mxu0 0
  %174 = vmatmul.mubr.bf16.gmra.mxu0 %v123
  %v175 = vpop.f32.mrf.mxu0
  %v176 = vadd.f32 %v90, %v175
  %v177 = vpop.f32.mrf.mxu0
  %v178 = vadd.f32 %v94, %v177
  %v179 = vpop.f32.mrf.mxu0
  %v180 = vadd.f32 %v90, %v179
  %v181 = vpop.f32.mrf.mxu0
  %v182 = vadd.f32 %v94, %v181
  %183 = vmatprep.mubr.bf16.mxu0 0
  %184 = vmatmul.mubr.bf16.gmra.mxu0 %v126
  %v185 = vpop.f32.mrf.mxu0
  %v186 = vadd.f32 %v90, %v185
  %v187 = vpop.f32.mrf.mxu0
  %v188 = vadd.f32 %v94, %v187
  %v189 = vpop.f32.mrf.mxu0
  %v190 = vadd.f32 %v90, %v189
  %v191 = vpop.f32.mrf.mxu0
  %v192 = vadd.f32 %v94, %v191
  %193 = vmatprep.mubr.bf16.mxu0 0
  %194 = vmatmul.mubr.bf16.gmra.mxu0 %v129
  %v195 = vpop.f32.mrf.mxu0
  %v196 = vadd.f32 %v90, %v195
  %v197 = vpop.f32.mrf.mxu0
  %v198 = vadd.f32 %v94, %v197
  %v199 = vpop.f32.mrf.mxu0
  %v200 = vadd.f32 %v90, %v199
  %v201 = vpop.f32.mrf.mxu0
  %v202 = vadd.f32 %v94, %v201
  %203 = vdwg.mxu0
  %204 = vmatprep.subr.bf16.mxu0 0
  %205 = vmatpush1.bf16.msra.mxu0 0
  %206 = vmatprep.subr.bf16.mxu0 0
  %207 = vmatpush1.bf16.msra.mxu0 0
  %208 = vmatprep.subr.bf16.mxu0 0
  %209 = vmatpush1.bf16.msra.mxu0 0
  %210 = vmatprep.subr.bf16.mxu0 0
  %211 = vmatpush1.bf16.msra.mxu0 0
  %212 = vmatprep.subr.bf16.mxu0 0
  %213 = vmatpush1.bf16.msra.mxu0 0
  %214 = vmatprep.subr.bf16.mxu0 0
  %215 = vmatpush1.bf16.msra.mxu0 0
  %216 = vmatprep.subr.bf16.mxu0 0
  %217 = vmatpush1.bf16.msra.mxu0 0
  %218 = vmatprep.subr.bf16.mxu0 0
  %219 = vmatpush1.bf16.msra.mxu0 %v114
  %220 = vmatprep.subr.bf16.mxu0 0
  %221 = vmatpush2.bf16.msra.mxu0 0
  %222 = vmatprep.subr.bf16.mxu0 0
  %223 = vmatpush2.bf16.msra.mxu0 0
  %224 = vmatprep.subr.bf16.mxu0 0
  %225 = vmatpush2.bf16.msra.mxu0 0
  %226 = vmatprep.subr.bf16.mxu0 0
  %227 = vmatpush2.bf16.msra.mxu0 0
  %228 = vmatprep.subr.bf16.mxu0 0
  %229 = vmatpush2.bf16.msra.mxu0 0
  %230 = vmatprep.subr.bf16.mxu0 0
  %231 = vmatpush2.bf16.msra.mxu0 0
  %232 = vmatprep.subr.bf16.mxu0 0
  %233 = vmatpush2.bf16.msra.mxu0 0
  %234 = vmatprep.subr.bf16.mxu0 0
  %235 = vmatpush2.bf16.msra.mxu0 0
  %236 = vmatprep.mubr.bf16.mxu0 0
  %237 = vmatmul.mubr.bf16.gmra.mxu0 %v120
  %v238 = vpop.f32.mrf.mxu0
  %v239 = vadd.f32 %v98, %v238
  %v240 = vpop.f32.mrf.mxu0
  %v241 = vpop.f32.mrf.mxu0
  %v242 = vadd.f32 %v98, %v241
  %v243 = vpop.f32.mrf.mxu0
  %244 = vmatprep.mubr.bf16.mxu0 0
  %245 = vmatmul.mubr.bf16.gmra.mxu0 %v123
  %v246 = vpop.f32.mrf.mxu0
  %v247 = vadd.f32 %v98, %v246
  %v248 = vpop.f32.mrf.mxu0
  %v249 = vpop.f32.mrf.mxu0
  %v250 = vadd.f32 %v98, %v249
  %v251 = vpop.f32.mrf.mxu0
  %252 = vmatprep.mubr.bf16.mxu0 0
  %253 = vmatmul.mubr.bf16.gmra.mxu0 %v126
  %v254 = vpop.f32.mrf.mxu0
  %v255 = vadd.f32 %v98, %v254
  %v256 = vpop.f32.mrf.mxu0
  %v257 = vpop.f32.mrf.mxu0
  %v258 = vadd.f32 %v98, %v257
  %v259 = vpop.f32.mrf.mxu0
  %260 = vmatprep.mubr.bf16.mxu0 0
  %261 = vmatmul.mubr.bf16.gmra.mxu0 %v129
  %v262 = vpop.f32.mrf.mxu0
  %v263 = vadd.f32 %v98, %v262
  %v264 = vpop.f32.mrf.mxu0
  %v265 = vpop.f32.mrf.mxu0
  %v266 = vadd.f32 %v98, %v265
  %v267 = vpop.f32.mrf.mxu0
  %268 = vdwg.mxu0
  %v269 = vld [vmem:[%s4] sm:$0xff]
  %v270 = vld [vmem:[%s4 + $0x8] sm:$0xf]
  %v271 = vld [vmem:[%s4 + $0xc] sm:$0xff]
  %v272 = vld [vmem:[%s4 + $0x14] sm:$0xf]
  %v273 = vld [vmem:[%s4 + $0x18] sm:$0xff]
  %v274 = vld [vmem:[%s4 + $0x20] sm:$0xf]
  %v275 = vld [vmem:[%s4 + $0x24] sm:$0xff]
  %v276 = vld [vmem:[%s4 + $0x2c] sm:$0xf]
  %v277 = vld [vmem:[%s4 + $0x30] sm:$0xff]
  %v278 = vld [vmem:[%s4 + $0x38] sm:$0xf]
  %v279 = vld [vmem:[%s4 + $0x3c] sm:$0xff]
  %v280 = vld [vmem:[%s4 + $0x44] sm:$0xf]
  %v281 = vld [vmem:[%s4 + $0x48] sm:$0xff]
  %v282 = vld [vmem:[%s4 + $0x50] sm:$0xf]
  %v283 = vld [vmem:[%s4 + $0x54] sm:$0xff]
  %v284 = vld [vmem:[%s4 + $0x5c] sm:$0xf]
  %v285 = vld [vmem:[%s5] sm:$0x1]
  %v287 = vlaneseq
  %v288 = vshrl.u32 %v287, 7
  %v289 = vsub.s32 0, %v288
  %v290 = vrot.slane %v285, %v289
  %v308 = vunpack.c.l.b16 %v269
  %v309 = vunpack.c.h.b16 %v269
  %v310 = vunpack.c.l.b16 %v270
  %v311 = vunpack.c.l.b16 %v271
  %v312 = vunpack.c.h.b16 %v271
  %v313 = vunpack.c.l.b16 %v272
  %v314 = vunpack.c.l.b16 %v273
  %v315 = vunpack.c.h.b16 %v273
  %v316 = vunpack.c.l.b16 %v274
  %v317 = vunpack.c.l.b16 %v275
  %v318 = vunpack.c.h.b16 %v275
  %v319 = vunpack.c.l.b16 %v276
  %v320 = vunpack.c.l.b16 %v277
  %v321 = vunpack.c.h.b16 %v277
  %v322 = vunpack.c.l.b16 %v278
  %v323 = vunpack.c.l.b16 %v279
  %v324 = vunpack.c.h.b16 %v279
  %v325 = vunpack.c.l.b16 %v280
  %v326 = vunpack.c.l.b16 %v281
  %v327 = vunpack.c.h.b16 %v281
  %v328 = vunpack.c.l.b16 %v282
  %v329 = vunpack.c.l.b16 %v283
  %v330 = vunpack.c.h.b16 %v283
  %v331 = vunpack.c.l.b16 %v284
  %v332 = vpack.c.b16 %v311, %v308
  %v333 = vpack.c.b16 %v312, %v309
  %v334 = vpack.c.b16 %v313, %v310
  %v335 = vpack.c.b16 %v317, %v314
  %v336 = vpack.c.b16 %v318, %v315
  %v337 = vpack.c.b16 %v319, %v316
  %v338 = vpack.c.b16 %v323, %v320
  %v339 = vpack.c.b16 %v324, %v321
  %v340 = vpack.c.b16 %v325, %v322
  %v341 = vpack.c.b16 %v329, %v326
  %v342 = vpack.c.b16 %v330, %v327
  %v343 = vpack.c.b16 %v331, %v328
  %vm356 = vcmask 523264
  %v358 = vsel %vm356, 0, 0
  %360 = vmatprep.subr.bf16.mxu0 0
  %361 = vmatpush1.bf16.msra.mxu0 0
  %362 = vmatprep.subr.bf16.mxu0 0
  %363 = vmatpush1.bf16.msra.mxu0 0
  %364 = vmatprep.subr.bf16.mxu0 0
  %365 = vmatpush1.bf16.msra.mxu0 0
  %366 = vmatprep.subr.bf16.mxu0 0
  %367 = vmatpush1.bf16.msra.mxu0 0
  %368 = vmatprep.subr.bf16.mxu0 %v342
  %369 = vmatpush1.bf16.msra.mxu0 %v341
  %370 = vmatprep.subr.bf16.mxu0 %v339
  %371 = vmatpush1.bf16.msra.mxu0 %v338
  %372 = vmatprep.subr.bf16.mxu0 %v336
  %373 = vmatpush1.bf16.msra.mxu0 %v335
  %374 = vmatprep.subr.bf16.mxu0 %v333
  %375 = vmatpush1.bf16.msra.mxu0 %v332
  %376 = vmatprep.subr.bf16.mxu0 0
  %377 = vmatpush2.bf16.msra.mxu0 0
  %378 = vmatprep.subr.bf16.mxu0 0
  %379 = vmatpush2.bf16.msra.mxu0 0
  %380 = vmatprep.subr.bf16.mxu0 0
  %381 = vmatpush2.bf16.msra.mxu0 0
  %382 = vmatprep.subr.bf16.mxu0 0
  %383 = vmatpush2.bf16.msra.mxu0 0
  %384 = vmatprep.subr.bf16.mxu0 0
  %385 = vmatpush2.bf16.msra.mxu0 0
  %386 = vmatprep.subr.bf16.mxu0 0
  %387 = vmatpush2.bf16.msra.mxu0 0
  %388 = vmatprep.subr.bf16.mxu0 0
  %389 = vmatpush2.bf16.msra.mxu0 0
  %390 = vmatprep.subr.bf16.mxu0 0
  %391 = vmatpush2.bf16.msra.mxu0 0
  %392 = vmatprep.mubr.bf16.mxu0 0
  %393 = vmatmul.mubr.bf16.gmra.mxu0 %v358
  %v394 = vpop.f32.mrf.mxu0
  %v395 = vadd.f32 0.0, %v394
  %v396 = vpop.f32.mrf.mxu0
  %v397 = vadd.f32 0.0, %v396
  %v398 = vpop.f32.mrf.mxu0
  %v399 = vpop.f32.mrf.mxu0
  %400 = vdwg.mxu0
  %401 = vmatprep.subr.bf16.mxu0 0
  %402 = vmatpush1.bf16.msra.mxu0 0
  %403 = vmatprep.subr.bf16.mxu0 0
  %404 = vmatpush1.bf16.msra.mxu0 0
  %405 = vmatprep.subr.bf16.mxu0 0
  %406 = vmatpush1.bf16.msra.mxu0 0
  %407 = vmatprep.subr.bf16.mxu0 0
  %408 = vmatpush1.bf16.msra.mxu0 0
  %409 = vmatprep.subr.bf16.mxu0 0
  %410 = vmatpush1.bf16.msra.mxu0 %v343
  %411 = vmatprep.subr.bf16.mxu0 0
  %412 = vmatpush1.bf16.msra.mxu0 %v340
  %413 = vmatprep.subr.bf16.mxu0 0
  %414 = vmatpush1.bf16.msra.mxu0 %v337
  %415 = vmatprep.subr.bf16.mxu0 0
  %416 = vmatpush1.bf16.msra.mxu0 %v334
  %417 = vmatprep.subr.bf16.mxu0 0
  %418 = vmatpush2.bf16.msra.mxu0 0
  %419 = vmatprep.subr.bf16.mxu0 0
  %420 = vmatpush2.bf16.msra.mxu0 0
  %421 = vmatprep.subr.bf16.mxu0 0
  %422 = vmatpush2.bf16.msra.mxu0 0
  %423 = vmatprep.subr.bf16.mxu0 0
  %424 = vmatpush2.bf16.msra.mxu0 0
  %425 = vmatprep.subr.bf16.mxu0 0
  %426 = vmatpush2.bf16.msra.mxu0 0
  %427 = vmatprep.subr.bf16.mxu0 0
  %428 = vmatpush2.bf16.msra.mxu0 0
  %429 = vmatprep.subr.bf16.mxu0 0
  %430 = vmatpush2.bf16.msra.mxu0 0
  %431 = vmatprep.subr.bf16.mxu0 0
  %432 = vmatpush2.bf16.msra.mxu0 0
  %433 = vmatprep.mubr.bf16.mxu0 0
  %434 = vmatmul.mubr.bf16.gmra.mxu0 %v358
  %v435 = vpop.f32.mrf.mxu0
  %v436 = vadd.f32 0.0, %v435
  %v437 = vpop.f32.mrf.mxu0
  %v438 = vpop.f32.mrf.mxu0
  %v439 = vpop.f32.mrf.mxu0
  %440 = vdwg.mxu0
  %v441 = vadd.f32 %v166, %v395
  %v442 = vxor.u32 %v441, 2147483648
  %v443 = vmul.f32 %v442, 1.442695
  %v444 = vpow.pop %v443
  %v445 = vadd.f32 %v444, 1.0
  %v446 = vrcp.pop %v445
  %v447 = vmul.f32 1.0, %v446
  %v448 = vadd.f32 %v168, %v397
  %v449 = vxor.u32 %v448, 2147483648
  %v450 = vmul.f32 %v449, 1.442695
  %v451 = vpow.pop %v450
  %v452 = vadd.f32 %v451, 1.0
  %v453 = vrcp.pop %v452
  %v454 = vmul.f32 1.0, %v453
  %v455 = vadd.f32 %v436, %v290
  %v456 = vmul.f32 %v447, %v455
  %v457 = vadd.f32 %v239, %v456
  %v458 = vtanh.pop %v457
  %v459 = vsub.f32 1.0, %v454
  %v460 = vmul.f32 %v459, %v458
  %v461 = vmul.f32 %v454, 0.0
  %v462 = vadd.f32 %v460, %v461
  %v463 = vpack.c.bf16 %v462, %v462
  %v465 = vsel %vm356, %v463, 0
  %467 = vmatprep.subr.bf16.mxu0 0
  %468 = vmatpush1.bf16.msra.mxu0 0
  %469 = vmatprep.subr.bf16.mxu0 0
  %470 = vmatpush1.bf16.msra.mxu0 0
  %471 = vmatprep.subr.bf16.mxu0 0
  %472 = vmatpush1.bf16.msra.mxu0 0
  %473 = vmatprep.subr.bf16.mxu0 0
  %474 = vmatpush1.bf16.msra.mxu0 0
  %475 = vmatprep.subr.bf16.mxu0 %v342
  %476 = vmatpush1.bf16.msra.mxu0 %v341
  %477 = vmatprep.subr.bf16.mxu0 %v339
  %478 = vmatpush1.bf16.msra.mxu0 %v338
  %479 = vmatprep.subr.bf16.mxu0 %v336
  %480 = vmatpush1.bf16.msra.mxu0 %v335
  %481 = vmatprep.subr.bf16.mxu0 %v333
  %482 = vmatpush1.bf16.msra.mxu0 %v332
  %483 = vmatprep.subr.bf16.mxu0 0
  %484 = vmatpush2.bf16.msra.mxu0 0
  %485 = vmatprep.subr.bf16.mxu0 0
  %486 = vmatpush2.bf16.msra.mxu0 0
  %487 = vmatprep.subr.bf16.mxu0 0
  %488 = vmatpush2.bf16.msra.mxu0 0
  %489 = vmatprep.subr.bf16.mxu0 0
  %490 = vmatpush2.bf16.msra.mxu0 0
  %491 = vmatprep.subr.bf16.mxu0 0
  %492 = vmatpush2.bf16.msra.mxu0 0
  %493 = vmatprep.subr.bf16.mxu0 0
  %494 = vmatpush2.bf16.msra.mxu0 0
  %495 = vmatprep.subr.bf16.mxu0 0
  %496 = vmatpush2.bf16.msra.mxu0 0
  %497 = vmatprep.subr.bf16.mxu0 0
  %498 = vmatpush2.bf16.msra.mxu0 0
  %499 = vmatprep.mubr.bf16.mxu0 0
  %500 = vmatmul.mubr.bf16.gmra.mxu0 %v465
  %v501 = vpop.f32.mrf.mxu0
  %v502 = vadd.f32 0.0, %v501
  %v503 = vpop.f32.mrf.mxu0
  %v504 = vadd.f32 0.0, %v503
  %v505 = vpop.f32.mrf.mxu0
  %v506 = vpop.f32.mrf.mxu0
  %507 = vdwg.mxu0
  %508 = vmatprep.subr.bf16.mxu0 0
  %509 = vmatpush1.bf16.msra.mxu0 0
  %510 = vmatprep.subr.bf16.mxu0 0
  %511 = vmatpush1.bf16.msra.mxu0 0
  %512 = vmatprep.subr.bf16.mxu0 0
  %513 = vmatpush1.bf16.msra.mxu0 0
  %514 = vmatprep.subr.bf16.mxu0 0
  %515 = vmatpush1.bf16.msra.mxu0 0
  %516 = vmatprep.subr.bf16.mxu0 0
  %517 = vmatpush1.bf16.msra.mxu0 %v343
  %518 = vmatprep.subr.bf16.mxu0 0
  %519 = vmatpush1.bf16.msra.mxu0 %v340
  %520 = vmatprep.subr.bf16.mxu0 0
  %521 = vmatpush1.bf16.msra.mxu0 %v337
  %522 = vmatprep.subr.bf16.mxu0 0
  %523 = vmatpush1.bf16.msra.mxu0 %v334
  %524 = vmatprep.subr.bf16.mxu0 0
  %525 = vmatpush2.bf16.msra.mxu0 0
  %526 = vmatprep.subr.bf16.mxu0 0
  %527 = vmatpush2.bf16.msra.mxu0 0
  %528 = vmatprep.subr.bf16.mxu0 0
  %529 = vmatpush2.bf16.msra.mxu0 0
  %530 = vmatprep.subr.bf16.mxu0 0
  %531 = vmatpush2.bf16.msra.mxu0 0
  %532 = vmatprep.subr.bf16.mxu0 0
  %533 = vmatpush2.bf16.msra.mxu0 0
  %534 = vmatprep.subr.bf16.mxu0 0
  %535 = vmatpush2.bf16.msra.mxu0 0
  %536 = vmatprep.subr.bf16.mxu0 0
  %537 = vmatpush2.bf16.msra.mxu0 0
  %538 = vmatprep.subr.bf16.mxu0 0
  %539 = vmatpush2.bf16.msra.mxu0 0
  %540 = vmatprep.mubr.bf16.mxu0 0
  %541 = vmatmul.mubr.bf16.gmra.mxu0 %v465
  %v542 = vpop.f32.mrf.mxu0
  %v543 = vadd.f32 0.0, %v542
  %v544 = vpop.f32.mrf.mxu0
  %v545 = vpop.f32.mrf.mxu0
  %v546 = vpop.f32.mrf.mxu0
  %547 = vdwg.mxu0
  %v548 = vadd.f32 %v170, %v502
  %v549 = vxor.u32 %v548, 2147483648
  %v550 = vmul.f32 %v549, 1.442695
  %v551 = vpow.pop %v550
  %v552 = vadd.f32 %v551, 1.0
  %v553 = vrcp.pop %v552
  %v554 = vmul.f32 1.0, %v553
  %v555 = vadd.f32 %v172, %v504
  %v556 = vxor.u32 %v555, 2147483648
  %v557 = vmul.f32 %v556, 1.442695
  %v558 = vpow.pop %v557
  %v559 = vadd.f32 %v558, 1.0
  %v560 = vrcp.pop %v559
  %v561 = vmul.f32 1.0, %v560
  %v562 = vadd.f32 %v543, %v290
  %v563 = vmul.f32 %v554, %v562
  %v564 = vadd.f32 %v242, %v563
  %v565 = vtanh.pop %v564
  %v566 = vsub.f32 1.0, %v561
  %v567 = vmul.f32 %v566, %v565
  %v568 = vmul.f32 %v561, %v462
  %v569 = vadd.f32 %v567, %v568
  %v570 = vpack.c.bf16 %v569, %v569
  %v572 = vsel %vm356, %v570, 0
  %574 = vmatprep.subr.bf16.mxu0 0
  %575 = vmatpush1.bf16.msra.mxu0 0
  %576 = vmatprep.subr.bf16.mxu0 0
  %577 = vmatpush1.bf16.msra.mxu0 0
  %578 = vmatprep.subr.bf16.mxu0 0
  %579 = vmatpush1.bf16.msra.mxu0 0
  %580 = vmatprep.subr.bf16.mxu0 0
  %581 = vmatpush1.bf16.msra.mxu0 0
  %582 = vmatprep.subr.bf16.mxu0 %v342
  %583 = vmatpush1.bf16.msra.mxu0 %v341
  %584 = vmatprep.subr.bf16.mxu0 %v339
  %585 = vmatpush1.bf16.msra.mxu0 %v338
  %586 = vmatprep.subr.bf16.mxu0 %v336
  %587 = vmatpush1.bf16.msra.mxu0 %v335
  %588 = vmatprep.subr.bf16.mxu0 %v333
  %589 = vmatpush1.bf16.msra.mxu0 %v332
  %590 = vmatprep.subr.bf16.mxu0 0
  %591 = vmatpush2.bf16.msra.mxu0 0
  %592 = vmatprep.subr.bf16.mxu0 0
  %593 = vmatpush2.bf16.msra.mxu0 0
  %594 = vmatprep.subr.bf16.mxu0 0
  %595 = vmatpush2.bf16.msra.mxu0 0
  %596 = vmatprep.subr.bf16.mxu0 0
  %597 = vmatpush2.bf16.msra.mxu0 0
  %598 = vmatprep.subr.bf16.mxu0 0
  %599 = vmatpush2.bf16.msra.mxu0 0
  %600 = vmatprep.subr.bf16.mxu0 0
  %601 = vmatpush2.bf16.msra.mxu0 0
  %602 = vmatprep.subr.bf16.mxu0 0
  %603 = vmatpush2.bf16.msra.mxu0 0
  %604 = vmatprep.subr.bf16.mxu0 0
  %605 = vmatpush2.bf16.msra.mxu0 0
  %606 = vmatprep.mubr.bf16.mxu0 0
  %607 = vmatmul.mubr.bf16.gmra.mxu0 %v572
  %v608 = vpop.f32.mrf.mxu0
  %v609 = vadd.f32 0.0, %v608
  %v610 = vpop.f32.mrf.mxu0
  %v611 = vadd.f32 0.0, %v610
  %v612 = vpop.f32.mrf.mxu0
  %v613 = vpop.f32.mrf.mxu0
  %614 = vdwg.mxu0
  %615 = vmatprep.subr.bf16.mxu0 0
  %616 = vmatpush1.bf16.msra.mxu0 0
  %617 = vmatprep.subr.bf16.mxu0 0
  %618 = vmatpush1.bf16.msra.mxu0 0
  %619 = vmatprep.subr.bf16.mxu0 0
  %620 = vmatpush1.bf16.msra.mxu0 0
  %621 = vmatprep.subr.bf16.mxu0 0
  %622 = vmatpush1.bf16.msra.mxu0 0
  %623 = vmatprep.subr.bf16.mxu0 0
  %624 = vmatpush1.bf16.msra.mxu0 %v343
  %625 = vmatprep.subr.bf16.mxu0 0
  %626 = vmatpush1.bf16.msra.mxu0 %v340
  %627 = vmatprep.subr.bf16.mxu0 0
  %628 = vmatpush1.bf16.msra.mxu0 %v337
  %629 = vmatprep.subr.bf16.mxu0 0
  %630 = vmatpush1.bf16.msra.mxu0 %v334
  %631 = vmatprep.subr.bf16.mxu0 0
  %632 = vmatpush2.bf16.msra.mxu0 0
  %633 = vmatprep.subr.bf16.mxu0 0
  %634 = vmatpush2.bf16.msra.mxu0 0
  %635 = vmatprep.subr.bf16.mxu0 0
  %636 = vmatpush2.bf16.msra.mxu0 0
  %637 = vmatprep.subr.bf16.mxu0 0
  %638 = vmatpush2.bf16.msra.mxu0 0
  %639 = vmatprep.subr.bf16.mxu0 0
  %640 = vmatpush2.bf16.msra.mxu0 0
  %641 = vmatprep.subr.bf16.mxu0 0
  %642 = vmatpush2.bf16.msra.mxu0 0
  %643 = vmatprep.subr.bf16.mxu0 0
  %644 = vmatpush2.bf16.msra.mxu0 0
  %645 = vmatprep.subr.bf16.mxu0 0
  %646 = vmatpush2.bf16.msra.mxu0 0
  %647 = vmatprep.mubr.bf16.mxu0 0
  %648 = vmatmul.mubr.bf16.gmra.mxu0 %v572
  %v649 = vpop.f32.mrf.mxu0
  %v650 = vadd.f32 0.0, %v649
  %v651 = vpop.f32.mrf.mxu0
  %v652 = vpop.f32.mrf.mxu0
  %v653 = vpop.f32.mrf.mxu0
  %654 = vdwg.mxu0
  %v655 = vadd.f32 %v176, %v609
  %v656 = vxor.u32 %v655, 2147483648
  %v657 = vmul.f32 %v656, 1.442695
  %v658 = vpow.pop %v657
  %v659 = vadd.f32 %v658, 1.0
  %v660 = vrcp.pop %v659
  %v661 = vmul.f32 1.0, %v660
  %v662 = vadd.f32 %v178, %v611
  %v663 = vxor.u32 %v662, 2147483648
  %v664 = vmul.f32 %v663, 1.442695
  %v665 = vpow.pop %v664
  %v666 = vadd.f32 %v665, 1.0
  %v667 = vrcp.pop %v666
  %v668 = vmul.f32 1.0, %v667
  %v669 = vadd.f32 %v650, %v290
  %v670 = vmul.f32 %v661, %v669
  %v671 = vadd.f32 %v247, %v670
  %v672 = vtanh.pop %v671
  %v673 = vsub.f32 1.0, %v668
  %v674 = vmul.f32 %v673, %v672
  %v675 = vmul.f32 %v668, %v569
  %v676 = vadd.f32 %v674, %v675
  %v677 = vpack.c.bf16 %v676, %v676
  %v679 = vsel %vm356, %v677, 0
  %681 = vmatprep.subr.bf16.mxu0 0
  %682 = vmatpush1.bf16.msra.mxu0 0
  %683 = vmatprep.subr.bf16.mxu0 0
  %684 = vmatpush1.bf16.msra.mxu0 0
  %685 = vmatprep.subr.bf16.mxu0 0
  %686 = vmatpush1.bf16.msra.mxu0 0
  %687 = vmatprep.subr.bf16.mxu0 0
  %688 = vmatpush1.bf16.msra.mxu0 0
  %689 = vmatprep.subr.bf16.mxu0 %v342
  %690 = vmatpush1.bf16.msra.mxu0 %v341
  %691 = vmatprep.subr.bf16.mxu0 %v339
  %692 = vmatpush1.bf16.msra.mxu0 %v338
  %693 = vmatprep.subr.bf16.mxu0 %v336
  %694 = vmatpush1.bf16.msra.mxu0 %v335
  %695 = vmatprep.subr.bf16.mxu0 %v333
  %696 = vmatpush1.bf16.msra.mxu0 %v332
  %697 = vmatprep.subr.bf16.mxu0 0
  %698 = vmatpush2.bf16.msra.mxu0 0
  %699 = vmatprep.subr.bf16.mxu0 0
  %700 = vmatpush2.bf16.msra.mxu0 0
  %701 = vmatprep.subr.bf16.mxu0 0
  %702 = vmatpush2.bf16.msra.mxu0 0
  %703 = vmatprep.subr.bf16.mxu0 0
  %704 = vmatpush2.bf16.msra.mxu0 0
  %705 = vmatprep.subr.bf16.mxu0 0
  %706 = vmatpush2.bf16.msra.mxu0 0
  %707 = vmatprep.subr.bf16.mxu0 0
  %708 = vmatpush2.bf16.msra.mxu0 0
  %709 = vmatprep.subr.bf16.mxu0 0
  %710 = vmatpush2.bf16.msra.mxu0 0
  %711 = vmatprep.subr.bf16.mxu0 0
  %712 = vmatpush2.bf16.msra.mxu0 0
  %713 = vmatprep.mubr.bf16.mxu0 0
  %714 = vmatmul.mubr.bf16.gmra.mxu0 %v679
  %v715 = vpop.f32.mrf.mxu0
  %v716 = vadd.f32 0.0, %v715
  %v717 = vpop.f32.mrf.mxu0
  %v718 = vadd.f32 0.0, %v717
  %v719 = vpop.f32.mrf.mxu0
  %v720 = vpop.f32.mrf.mxu0
  %721 = vdwg.mxu0
  %722 = vmatprep.subr.bf16.mxu0 0
  %723 = vmatpush1.bf16.msra.mxu0 0
  %724 = vmatprep.subr.bf16.mxu0 0
  %725 = vmatpush1.bf16.msra.mxu0 0
  %726 = vmatprep.subr.bf16.mxu0 0
  %727 = vmatpush1.bf16.msra.mxu0 0
  %728 = vmatprep.subr.bf16.mxu0 0
  %729 = vmatpush1.bf16.msra.mxu0 0
  %730 = vmatprep.subr.bf16.mxu0 0
  %731 = vmatpush1.bf16.msra.mxu0 %v343
  %732 = vmatprep.subr.bf16.mxu0 0
  %733 = vmatpush1.bf16.msra.mxu0 %v340
  %734 = vmatprep.subr.bf16.mxu0 0
  %735 = vmatpush1.bf16.msra.mxu0 %v337
  %736 = vmatprep.subr.bf16.mxu0 0
  %737 = vmatpush1.bf16.msra.mxu0 %v334
  %738 = vmatprep.subr.bf16.mxu0 0
  %739 = vmatpush2.bf16.msra.mxu0 0
  %740 = vmatprep.subr.bf16.mxu0 0
  %741 = vmatpush2.bf16.msra.mxu0 0
  %742 = vmatprep.subr.bf16.mxu0 0
  %743 = vmatpush2.bf16.msra.mxu0 0
  %744 = vmatprep.subr.bf16.mxu0 0
  %745 = vmatpush2.bf16.msra.mxu0 0
  %746 = vmatprep.subr.bf16.mxu0 0
  %747 = vmatpush2.bf16.msra.mxu0 0
  %748 = vmatprep.subr.bf16.mxu0 0
  %749 = vmatpush2.bf16.msra.mxu0 0
  %750 = vmatprep.subr.bf16.mxu0 0
  %751 = vmatpush2.bf16.msra.mxu0 0
  %752 = vmatprep.subr.bf16.mxu0 0
  %753 = vmatpush2.bf16.msra.mxu0 0
  %754 = vmatprep.mubr.bf16.mxu0 0
  %755 = vmatmul.mubr.bf16.gmra.mxu0 %v679
  %v756 = vpop.f32.mrf.mxu0
  %v757 = vadd.f32 0.0, %v756
  %v758 = vpop.f32.mrf.mxu0
  %v759 = vpop.f32.mrf.mxu0
  %v760 = vpop.f32.mrf.mxu0
  %761 = vdwg.mxu0
  %v762 = vadd.f32 %v180, %v716
  %v763 = vxor.u32 %v762, 2147483648
  %v764 = vmul.f32 %v763, 1.442695
  %v765 = vpow.pop %v764
  %v766 = vadd.f32 %v765, 1.0
  %v767 = vrcp.pop %v766
  %v768 = vmul.f32 1.0, %v767
  %v769 = vadd.f32 %v182, %v718
  %v770 = vxor.u32 %v769, 2147483648
  %v771 = vmul.f32 %v770, 1.442695
  %v772 = vpow.pop %v771
  %v773 = vadd.f32 %v772, 1.0
  %v774 = vrcp.pop %v773
  %v775 = vmul.f32 1.0, %v774
  %v776 = vadd.f32 %v757, %v290
  %v777 = vmul.f32 %v768, %v776
  %v778 = vadd.f32 %v250, %v777
  %v779 = vtanh.pop %v778
  %v780 = vsub.f32 1.0, %v775
  %v781 = vmul.f32 %v780, %v779
  %v782 = vmul.f32 %v775, %v676
  %v783 = vadd.f32 %v781, %v782
  %v784 = vpack.c.bf16 %v783, %v783
  %v786 = vsel %vm356, %v784, 0
  %788 = vmatprep.subr.bf16.mxu0 0
  %789 = vmatpush1.bf16.msra.mxu0 0
  %790 = vmatprep.subr.bf16.mxu0 0
  %791 = vmatpush1.bf16.msra.mxu0 0
  %792 = vmatprep.subr.bf16.mxu0 0
  %793 = vmatpush1.bf16.msra.mxu0 0
  %794 = vmatprep.subr.bf16.mxu0 0
  %795 = vmatpush1.bf16.msra.mxu0 0
  %796 = vmatprep.subr.bf16.mxu0 %v342
  %797 = vmatpush1.bf16.msra.mxu0 %v341
  %798 = vmatprep.subr.bf16.mxu0 %v339
  %799 = vmatpush1.bf16.msra.mxu0 %v338
  %800 = vmatprep.subr.bf16.mxu0 %v336
  %801 = vmatpush1.bf16.msra.mxu0 %v335
  %802 = vmatprep.subr.bf16.mxu0 %v333
  %803 = vmatpush1.bf16.msra.mxu0 %v332
  %804 = vmatprep.subr.bf16.mxu0 0
  %805 = vmatpush2.bf16.msra.mxu0 0
  %806 = vmatprep.subr.bf16.mxu0 0
  %807 = vmatpush2.bf16.msra.mxu0 0
  %808 = vmatprep.subr.bf16.mxu0 0
  %809 = vmatpush2.bf16.msra.mxu0 0
  %810 = vmatprep.subr.bf16.mxu0 0
  %811 = vmatpush2.bf16.msra.mxu0 0
  %812 = vmatprep.subr.bf16.mxu0 0
  %813 = vmatpush2.bf16.msra.mxu0 0
  %814 = vmatprep.subr.bf16.mxu0 0
  %815 = vmatpush2.bf16.msra.mxu0 0
  %816 = vmatprep.subr.bf16.mxu0 0
  %817 = vmatpush2.bf16.msra.mxu0 0
  %818 = vmatprep.subr.bf16.mxu0 0
  %819 = vmatpush2.bf16.msra.mxu0 0
  %820 = vmatprep.mubr.bf16.mxu0 0
  %821 = vmatmul.mubr.bf16.gmra.mxu0 %v786
  %v822 = vpop.f32.mrf.mxu0
  %v823 = vadd.f32 0.0, %v822
  %v824 = vpop.f32.mrf.mxu0
  %v825 = vadd.f32 0.0, %v824
  %v826 = vpop.f32.mrf.mxu0
  %v827 = vpop.f32.mrf.mxu0
  %828 = vdwg.mxu0
  %829 = vmatprep.subr.bf16.mxu0 0
  %830 = vmatpush1.bf16.msra.mxu0 0
  %831 = vmatprep.subr.bf16.mxu0 0
  %832 = vmatpush1.bf16.msra.mxu0 0
  %833 = vmatprep.subr.bf16.mxu0 0
  %834 = vmatpush1.bf16.msra.mxu0 0
  %835 = vmatprep.subr.bf16.mxu0 0
  %836 = vmatpush1.bf16.msra.mxu0 0
  %837 = vmatprep.subr.bf16.mxu0 0
  %838 = vmatpush1.bf16.msra.mxu0 %v343
  %839 = vmatprep.subr.bf16.mxu0 0
  %840 = vmatpush1.bf16.msra.mxu0 %v340
  %841 = vmatprep.subr.bf16.mxu0 0
  %842 = vmatpush1.bf16.msra.mxu0 %v337
  %843 = vmatprep.subr.bf16.mxu0 0
  %844 = vmatpush1.bf16.msra.mxu0 %v334
  %845 = vmatprep.subr.bf16.mxu0 0
  %846 = vmatpush2.bf16.msra.mxu0 0
  %847 = vmatprep.subr.bf16.mxu0 0
  %848 = vmatpush2.bf16.msra.mxu0 0
  %849 = vmatprep.subr.bf16.mxu0 0
  %850 = vmatpush2.bf16.msra.mxu0 0
  %851 = vmatprep.subr.bf16.mxu0 0
  %852 = vmatpush2.bf16.msra.mxu0 0
  %853 = vmatprep.subr.bf16.mxu0 0
  %854 = vmatpush2.bf16.msra.mxu0 0
  %855 = vmatprep.subr.bf16.mxu0 0
  %856 = vmatpush2.bf16.msra.mxu0 0
  %857 = vmatprep.subr.bf16.mxu0 0
  %858 = vmatpush2.bf16.msra.mxu0 0
  %859 = vmatprep.subr.bf16.mxu0 0
  %860 = vmatpush2.bf16.msra.mxu0 0
  %861 = vmatprep.mubr.bf16.mxu0 0
  %862 = vmatmul.mubr.bf16.gmra.mxu0 %v786
  %v863 = vpop.f32.mrf.mxu0
  %v864 = vadd.f32 0.0, %v863
  %v865 = vpop.f32.mrf.mxu0
  %v866 = vpop.f32.mrf.mxu0
  %v867 = vpop.f32.mrf.mxu0
  %868 = vdwg.mxu0
  %v869 = vadd.f32 %v186, %v823
  %v870 = vxor.u32 %v869, 2147483648
  %v871 = vmul.f32 %v870, 1.442695
  %v872 = vpow.pop %v871
  %v873 = vadd.f32 %v872, 1.0
  %v874 = vrcp.pop %v873
  %v875 = vmul.f32 1.0, %v874
  %v876 = vadd.f32 %v188, %v825
  %v877 = vxor.u32 %v876, 2147483648
  %v878 = vmul.f32 %v877, 1.442695
  %v879 = vpow.pop %v878
  %v880 = vadd.f32 %v879, 1.0
  %v881 = vrcp.pop %v880
  %v882 = vmul.f32 1.0, %v881
  %v883 = vadd.f32 %v864, %v290
  %v884 = vmul.f32 %v875, %v883
  %v885 = vadd.f32 %v255, %v884
  %v886 = vtanh.pop %v885
  %v887 = vsub.f32 1.0, %v882
  %v888 = vmul.f32 %v887, %v886
  %v889 = vmul.f32 %v882, %v783
  %v890 = vadd.f32 %v888, %v889
  %v891 = vpack.c.bf16 %v890, %v890
  %v893 = vsel %vm356, %v891, 0
  %895 = vmatprep.subr.bf16.mxu0 0
  %896 = vmatpush1.bf16.msra.mxu0 0
  %897 = vmatprep.subr.bf16.mxu0 0
  %898 = vmatpush1.bf16.msra.mxu0 0
  %899 = vmatprep.subr.bf16.mxu0 0
  %900 = vmatpush1.bf16.msra.mxu0 0
  %901 = vmatprep.subr.bf16.mxu0 0
  %902 = vmatpush1.bf16.msra.mxu0 0
  %903 = vmatprep.subr.bf16.mxu0 %v342
  %904 = vmatpush1.bf16.msra.mxu0 %v341
  %905 = vmatprep.subr.bf16.mxu0 %v339
  %906 = vmatpush1.bf16.msra.mxu0 %v338
  %907 = vmatprep.subr.bf16.mxu0 %v336
  %908 = vmatpush1.bf16.msra.mxu0 %v335
  %909 = vmatprep.subr.bf16.mxu0 %v333
  %910 = vmatpush1.bf16.msra.mxu0 %v332
  %911 = vmatprep.subr.bf16.mxu0 0
  %912 = vmatpush2.bf16.msra.mxu0 0
  %913 = vmatprep.subr.bf16.mxu0 0
  %914 = vmatpush2.bf16.msra.mxu0 0
  %915 = vmatprep.subr.bf16.mxu0 0
  %916 = vmatpush2.bf16.msra.mxu0 0
  %917 = vmatprep.subr.bf16.mxu0 0
  %918 = vmatpush2.bf16.msra.mxu0 0
  %919 = vmatprep.subr.bf16.mxu0 0
  %920 = vmatpush2.bf16.msra.mxu0 0
  %921 = vmatprep.subr.bf16.mxu0 0
  %922 = vmatpush2.bf16.msra.mxu0 0
  %923 = vmatprep.subr.bf16.mxu0 0
  %924 = vmatpush2.bf16.msra.mxu0 0
  %925 = vmatprep.subr.bf16.mxu0 0
  %926 = vmatpush2.bf16.msra.mxu0 0
  %927 = vmatprep.mubr.bf16.mxu0 0
  %928 = vmatmul.mubr.bf16.gmra.mxu0 %v893
  %v929 = vpop.f32.mrf.mxu0
  %v930 = vadd.f32 0.0, %v929
  %v931 = vpop.f32.mrf.mxu0
  %v932 = vadd.f32 0.0, %v931
  %v933 = vpop.f32.mrf.mxu0
  %v934 = vpop.f32.mrf.mxu0
  %935 = vdwg.mxu0
  %936 = vmatprep.subr.bf16.mxu0 0
  %937 = vmatpush1.bf16.msra.mxu0 0
  %938 = vmatprep.subr.bf16.mxu0 0
  %939 = vmatpush1.bf16.msra.mxu0 0
  %940 = vmatprep.subr.bf16.mxu0 0
  %941 = vmatpush1.bf16.msra.mxu0 0
  %942 = vmatprep.subr.bf16.mxu0 0
  %943 = vmatpush1.bf16.msra.mxu0 0
  %944 = vmatprep.subr.bf16.mxu0 0
  %945 = vmatpush1.bf16.msra.mxu0 %v343
  %946 = vmatprep.subr.bf16.mxu0 0
  %947 = vmatpush1.bf16.msra.mxu0 %v340
  %948 = vmatprep.subr.bf16.mxu0 0
  %949 = vmatpush1.bf16.msra.mxu0 %v337
  %950 = vmatprep.subr.bf16.mxu0 0
  %951 = vmatpush1.bf16.msra.mxu0 %v334
  %952 = vmatprep.subr.bf16.mxu0 0
  %953 = vmatpush2.bf16.msra.mxu0 0
  %954 = vmatprep.subr.bf16.mxu0 0
  %955 = vmatpush2.bf16.msra.mxu0 0
  %956 = vmatprep.subr.bf16.mxu0 0
  %957 = vmatpush2.bf16.msra.mxu0 0
  %958 = vmatprep.subr.bf16.mxu0 0
  %959 = vmatpush2.bf16.msra.mxu0 0
  %960 = vmatprep.subr.bf16.mxu0 0
  %961 = vmatpush2.bf16.msra.mxu0 0
  %962 = vmatprep.subr.bf16.mxu0 0
  %963 = vmatpush2.bf16.msra.mxu0 0
  %964 = vmatprep.subr.bf16.mxu0 0
  %965 = vmatpush2.bf16.msra.mxu0 0
  %966 = vmatprep.subr.bf16.mxu0 0
  %967 = vmatpush2.bf16.msra.mxu0 0
  %968 = vmatprep.mubr.bf16.mxu0 0
  %969 = vmatmul.mubr.bf16.gmra.mxu0 %v893
  %v970 = vpop.f32.mrf.mxu0
  %v971 = vadd.f32 0.0, %v970
  %v972 = vpop.f32.mrf.mxu0
  %v973 = vpop.f32.mrf.mxu0
  %v974 = vpop.f32.mrf.mxu0
  %975 = vdwg.mxu0
  %v976 = vadd.f32 %v190, %v930
  %v977 = vxor.u32 %v976, 2147483648
  %v978 = vmul.f32 %v977, 1.442695
  %v979 = vpow.pop %v978
  %v980 = vadd.f32 %v979, 1.0
  %v981 = vrcp.pop %v980
  %v982 = vmul.f32 1.0, %v981
  %v983 = vadd.f32 %v192, %v932
  %v984 = vxor.u32 %v983, 2147483648
  %v985 = vmul.f32 %v984, 1.442695
  %v986 = vpow.pop %v985
  %v987 = vadd.f32 %v986, 1.0
  %v988 = vrcp.pop %v987
  %v989 = vmul.f32 1.0, %v988
  %v990 = vadd.f32 %v971, %v290
  %v991 = vmul.f32 %v982, %v990
  %v992 = vadd.f32 %v258, %v991
  %v993 = vtanh.pop %v992
  %v994 = vsub.f32 1.0, %v989
  %v995 = vmul.f32 %v994, %v993
  %v996 = vmul.f32 %v989, %v890
  %v997 = vadd.f32 %v995, %v996
  %v998 = vpack.c.bf16 %v997, %v997
  %v1000 = vsel %vm356, %v998, 0
  %1002 = vmatprep.subr.bf16.mxu0 0
  %1003 = vmatpush1.bf16.msra.mxu0 0
  %1004 = vmatprep.subr.bf16.mxu0 0
  %1005 = vmatpush1.bf16.msra.mxu0 0
  %1006 = vmatprep.subr.bf16.mxu0 0
  %1007 = vmatpush1.bf16.msra.mxu0 0
  %1008 = vmatprep.subr.bf16.mxu0 0
  %1009 = vmatpush1.bf16.msra.mxu0 0
  %1010 = vmatprep.subr.bf16.mxu0 %v342
  %1011 = vmatpush1.bf16.msra.mxu0 %v341
  %1012 = vmatprep.subr.bf16.mxu0 %v339
  %1013 = vmatpush1.bf16.msra.mxu0 %v338
  %1014 = vmatprep.subr.bf16.mxu0 %v336
  %1015 = vmatpush1.bf16.msra.mxu0 %v335
  %1016 = vmatprep.subr.bf16.mxu0 %v333
  %1017 = vmatpush1.bf16.msra.mxu0 %v332
  %1018 = vmatprep.subr.bf16.mxu0 0
  %1019 = vmatpush2.bf16.msra.mxu0 0
  %1020 = vmatprep.subr.bf16.mxu0 0
  %1021 = vmatpush2.bf16.msra.mxu0 0
  %1022 = vmatprep.subr.bf16.mxu0 0
  %1023 = vmatpush2.bf16.msra.mxu0 0
  %1024 = vmatprep.subr.bf16.mxu0 0
  %1025 = vmatpush2.bf16.msra.mxu0 0
  %1026 = vmatprep.subr.bf16.mxu0 0
  %1027 = vmatpush2.bf16.msra.mxu0 0
  %1028 = vmatprep.subr.bf16.mxu0 0
  %1029 = vmatpush2.bf16.msra.mxu0 0
  %1030 = vmatprep.subr.bf16.mxu0 0
  %1031 = vmatpush2.bf16.msra.mxu0 0
  %1032 = vmatprep.subr.bf16.mxu0 0
  %1033 = vmatpush2.bf16.msra.mxu0 0
  %1034 = vmatprep.mubr.bf16.mxu0 0
  %1035 = vmatmul.mubr.bf16.gmra.mxu0 %v1000
  %v1036 = vpop.f32.mrf.mxu0
  %v1037 = vadd.f32 0.0, %v1036
  %v1038 = vpop.f32.mrf.mxu0
  %v1039 = vadd.f32 0.0, %v1038
  %v1040 = vpop.f32.mrf.mxu0
  %v1041 = vpop.f32.mrf.mxu0
  %1042 = vdwg.mxu0
  %1043 = vmatprep.subr.bf16.mxu0 0
  %1044 = vmatpush1.bf16.msra.mxu0 0
  %1045 = vmatprep.subr.bf16.mxu0 0
  %1046 = vmatpush1.bf16.msra.mxu0 0
  %1047 = vmatprep.subr.bf16.mxu0 0
  %1048 = vmatpush1.bf16.msra.mxu0 0
  %1049 = vmatprep.subr.bf16.mxu0 0
  %1050 = vmatpush1.bf16.msra.mxu0 0
  %1051 = vmatprep.subr.bf16.mxu0 0
  %1052 = vmatpush1.bf16.msra.mxu0 %v343
  %1053 = vmatprep.subr.bf16.mxu0 0
  %1054 = vmatpush1.bf16.msra.mxu0 %v340
  %1055 = vmatprep.subr.bf16.mxu0 0
  %1056 = vmatpush1.bf16.msra.mxu0 %v337
  %1057 = vmatprep.subr.bf16.mxu0 0
  %1058 = vmatpush1.bf16.msra.mxu0 %v334
  %1059 = vmatprep.subr.bf16.mxu0 0
  %1060 = vmatpush2.bf16.msra.mxu0 0
  %1061 = vmatprep.subr.bf16.mxu0 0
  %1062 = vmatpush2.bf16.msra.mxu0 0
  %1063 = vmatprep.subr.bf16.mxu0 0
  %1064 = vmatpush2.bf16.msra.mxu0 0
  %1065 = vmatprep.subr.bf16.mxu0 0
  %1066 = vmatpush2.bf16.msra.mxu0 0
  %1067 = vmatprep.subr.bf16.mxu0 0
  %1068 = vmatpush2.bf16.msra.mxu0 0
  %1069 = vmatprep.subr.bf16.mxu0 0
  %1070 = vmatpush2.bf16.msra.mxu0 0
  %1071 = vmatprep.subr.bf16.mxu0 0
  %1072 = vmatpush2.bf16.msra.mxu0 0
  %1073 = vmatprep.subr.bf16.mxu0 0
  %1074 = vmatpush2.bf16.msra.mxu0 0
  %1075 = vmatprep.mubr.bf16.mxu0 0
  %1076 = vmatmul.mubr.bf16.gmra.mxu0 %v1000
  %v1077 = vpop.f32.mrf.mxu0
  %v1078 = vadd.f32 0.0, %v1077
  %v1079 = vpop.f32.mrf.mxu0
  %v1080 = vpop.f32.mrf.mxu0
  %v1081 = vpop.f32.mrf.mxu0
  %1082 = vdwg.mxu0
  %v1083 = vadd.f32 %v196, %v1037
  %v1084 = vxor.u32 %v1083, 2147483648
  %v1085 = vmul.f32 %v1084, 1.442695
  %v1086 = vpow.pop %v1085
  %v1087 = vadd.f32 %v1086, 1.0
  %v1088 = vrcp.pop %v1087
  %v1089 = vmul.f32 1.0, %v1088
  %v1090 = vadd.f32 %v198, %v1039
  %v1091 = vxor.u32 %v1090, 2147483648
  %v1092 = vmul.f32 %v1091, 1.442695
  %v1093 = vpow.pop %v1092
  %v1094 = vadd.f32 %v1093, 1.0
  %v1095 = vrcp.pop %v1094
  %v1096 = vmul.f32 1.0, %v1095
  %v1097 = vadd.f32 %v1078, %v290
  %v1098 = vmul.f32 %v1089, %v1097
  %v1099 = vadd.f32 %v263, %v1098
  %v1100 = vtanh.pop %v1099
  %v1101 = vsub.f32 1.0, %v1096
  %v1102 = vmul.f32 %v1101, %v1100
  %v1103 = vmul.f32 %v1096, %v997
  %v1104 = vadd.f32 %v1102, %v1103
  %v1105 = vpack.c.bf16 %v1104, %v1104
  %v1107 = vsel %vm356, %v1105, 0
  %1109 = vmatprep.subr.bf16.mxu0 0
  %1110 = vmatpush1.bf16.msra.mxu0 0
  %1111 = vmatprep.subr.bf16.mxu0 0
  %1112 = vmatpush1.bf16.msra.mxu0 0
  %1113 = vmatprep.subr.bf16.mxu0 0
  %1114 = vmatpush1.bf16.msra.mxu0 0
  %1115 = vmatprep.subr.bf16.mxu0 0
  %1116 = vmatpush1.bf16.msra.mxu0 0
  %1117 = vmatprep.subr.bf16.mxu0 %v342
  %1118 = vmatpush1.bf16.msra.mxu0 %v341
  %1119 = vmatprep.subr.bf16.mxu0 %v339
  %1120 = vmatpush1.bf16.msra.mxu0 %v338
  %1121 = vmatprep.subr.bf16.mxu0 %v336
  %1122 = vmatpush1.bf16.msra.mxu0 %v335
  %1123 = vmatprep.subr.bf16.mxu0 %v333
  %1124 = vmatpush1.bf16.msra.mxu0 %v332
  %1125 = vmatprep.subr.bf16.mxu0 0
  %1126 = vmatpush2.bf16.msra.mxu0 0
  %1127 = vmatprep.subr.bf16.mxu0 0
  %1128 = vmatpush2.bf16.msra.mxu0 0
  %1129 = vmatprep.subr.bf16.mxu0 0
  %1130 = vmatpush2.bf16.msra.mxu0 0
  %1131 = vmatprep.subr.bf16.mxu0 0
  %1132 = vmatpush2.bf16.msra.mxu0 0
  %1133 = vmatprep.subr.bf16.mxu0 0
  %1134 = vmatpush2.bf16.msra.mxu0 0
  %1135 = vmatprep.subr.bf16.mxu0 0
  %1136 = vmatpush2.bf16.msra.mxu0 0
  %1137 = vmatprep.subr.bf16.mxu0 0
  %1138 = vmatpush2.bf16.msra.mxu0 0
  %1139 = vmatprep.subr.bf16.mxu0 0
  %1140 = vmatpush2.bf16.msra.mxu0 0
  %1141 = vmatprep.mubr.bf16.mxu0 0
  %1142 = vmatmul.mubr.bf16.gmra.mxu0 %v1107
  %v1143 = vpop.f32.mrf.mxu0
  %v1144 = vadd.f32 0.0, %v1143
  %v1145 = vpop.f32.mrf.mxu0
  %v1146 = vadd.f32 0.0, %v1145
  %v1147 = vpop.f32.mrf.mxu0
  %v1148 = vpop.f32.mrf.mxu0
  %1149 = vdwg.mxu0
  %1150 = vmatprep.subr.bf16.mxu0 0
  %1151 = vmatpush1.bf16.msra.mxu0 0
  %1152 = vmatprep.subr.bf16.mxu0 0
  %1153 = vmatpush1.bf16.msra.mxu0 0
  %1154 = vmatprep.subr.bf16.mxu0 0
  %1155 = vmatpush1.bf16.msra.mxu0 0
  %1156 = vmatprep.subr.bf16.mxu0 0
  %1157 = vmatpush1.bf16.msra.mxu0 0
  %1158 = vmatprep.subr.bf16.mxu0 0
  %1159 = vmatpush1.bf16.msra.mxu0 %v343
  %1160 = vmatprep.subr.bf16.mxu0 0
  %1161 = vmatpush1.bf16.msra.mxu0 %v340
  %1162 = vmatprep.subr.bf16.mxu0 0
  %1163 = vmatpush1.bf16.msra.mxu0 %v337
  %1164 = vmatprep.subr.bf16.mxu0 0
  %1165 = vmatpush1.bf16.msra.mxu0 %v334
  %1166 = vmatprep.subr.bf16.mxu0 0
  %1167 = vmatpush2.bf16.msra.mxu0 0
  %1168 = vmatprep.subr.bf16.mxu0 0
  %1169 = vmatpush2.bf16.msra.mxu0 0
  %1170 = vmatprep.subr.bf16.mxu0 0
  %1171 = vmatpush2.bf16.msra.mxu0 0
  %1172 = vmatprep.subr.bf16.mxu0 0
  %1173 = vmatpush2.bf16.msra.mxu0 0
  %1174 = vmatprep.subr.bf16.mxu0 0
  %1175 = vmatpush2.bf16.msra.mxu0 0
  %1176 = vmatprep.subr.bf16.mxu0 0
  %1177 = vmatpush2.bf16.msra.mxu0 0
  %1178 = vmatprep.subr.bf16.mxu0 0
  %1179 = vmatpush2.bf16.msra.mxu0 0
  %1180 = vmatprep.subr.bf16.mxu0 0
  %1181 = vmatpush2.bf16.msra.mxu0 0
  %1182 = vmatprep.mubr.bf16.mxu0 0
  %1183 = vmatmul.mubr.bf16.gmra.mxu0 %v1107
  %v1184 = vpop.f32.mrf.mxu0
  %v1185 = vadd.f32 0.0, %v1184
  %v1186 = vpop.f32.mrf.mxu0
  %v1187 = vpop.f32.mrf.mxu0
  %v1188 = vpop.f32.mrf.mxu0
  %1189 = vdwg.mxu0
  %v1190 = vadd.f32 %v200, %v1144
  %v1191 = vxor.u32 %v1190, 2147483648
  %v1192 = vmul.f32 %v1191, 1.442695
  %v1193 = vpow.pop %v1192
  %v1194 = vadd.f32 %v1193, 1.0
  %v1195 = vrcp.pop %v1194
  %v1196 = vmul.f32 1.0, %v1195
  %v1197 = vadd.f32 %v202, %v1146
  %v1198 = vxor.u32 %v1197, 2147483648
  %v1199 = vmul.f32 %v1198, 1.442695
  %v1200 = vpow.pop %v1199
  %v1201 = vadd.f32 %v1200, 1.0
  %v1202 = vrcp.pop %v1201
  %v1203 = vmul.f32 1.0, %v1202
  %v1204 = vadd.f32 %v1185, %v290
  %v1205 = vmul.f32 %v1196, %v1204
  %v1206 = vadd.f32 %v266, %v1205
  %v1207 = vtanh.pop %v1206
  %v1208 = vsub.f32 1.0, %v1203
  %v1209 = vmul.f32 %v1208, %v1207
  %v1210 = vmul.f32 %v1203, %v1104
  %v1211 = vadd.f32 %v1209, %v1210
  %v1212 = vpack.c.bf16 %v1211, %v1211
  %v1213 = vld [vmem:[%s6] sm:$0xff]
  %v1214 = vld [vmem:[%s6 + $0x8] sm:$0xff]
  %v1215 = vld [vmem:[%s6 + $0x10] sm:$0xff]
  %v1216 = vld [vmem:[%s6 + $0x18] sm:$0xff]
  %v1217 = vld [vmem:[%s6 + $0x20] sm:$0xff]
  %v1218 = vld [vmem:[%s6 + $0x28] sm:$0xff]
  %v1219 = vld [vmem:[%s6 + $0x30] sm:$0xff]
  %v1220 = vld [vmem:[%s6 + $0x38] sm:$0xff]
  %v1221 = vld [vmem:[%s6 + $0x40] sm:$0xff]
  %v1222 = vld [vmem:[%s6 + $0x48] sm:$0xff]
  %v1223 = vld [vmem:[%s6 + $0x50] sm:$0xff]
  %v1224 = vld [vmem:[%s6 + $0x58] sm:$0xff]
  %v1225 = vld [vmem:[%s6 + $0x60] sm:$0xff]
  %v1226 = vld [vmem:[%s6 + $0x68] sm:$0xff]
  %v1227 = vld [vmem:[%s6 + $0x70] sm:$0xff]
  %v1228 = vld [vmem:[%s6 + $0x78] sm:$0xff]
  %v1229 = vld [vmem:[%s6 + $0x80] sm:$0xff]
  %v1230 = vld [vmem:[%s6 + $0x88] sm:$0xff]
  %v1231 = vld [vmem:[%s6 + $0x90] sm:$0xff]
  %v1232 = vld [vmem:[%s6 + $0x98] sm:$0xff]
  %v1233 = vld [vmem:[%s6 + $0xa0] sm:$0xff]
  %v1234 = vld [vmem:[%s6 + $0xa8] sm:$0xff]
  %v1235 = vld [vmem:[%s6 + $0xb0] sm:$0xff]
  %v1236 = vld [vmem:[%s6 + $0xb8] sm:$0xff]
  %v1237 = vld [vmem:[%s6 + $0xc0] sm:$0xff]
  %v1238 = vld [vmem:[%s6 + $0xc8] sm:$0xff]
  %v1239 = vld [vmem:[%s6 + $0xd0] sm:$0xff]
  %v1240 = vld [vmem:[%s6 + $0xd8] sm:$0xff]
  %v1241 = vld [vmem:[%s6 + $0xe0] sm:$0xff]
  %v1242 = vld [vmem:[%s6 + $0xe8] sm:$0xff]
  %v1243 = vld [vmem:[%s6 + $0xf0] sm:$0xff]
  %v1244 = vld [vmem:[%s6 + $0xf8] sm:$0xff]
  %v1245 = vld [vmem:[%s7] sm:$0xff]
  %v1247 = vlaneseq
  %v1248 = vshrl.u32 %v1247, 7
  %v1249 = vsub.s32 0, %v1248
  %v1250 = vrot.slane %v1245, %v1249
  %v1251 = vlaneseq
  %v1252 = vshrl.u32 %v1251, 7
  %v1253 = vsub.s32 1, %v1252
  %v1254 = vrot.slane %v1245, %v1253
  %v1255 = vlaneseq
  %v1256 = vshrl.u32 %v1255, 7
  %v1257 = vsub.s32 2, %v1256
  %v1258 = vrot.slane %v1245, %v1257
  %v1259 = vlaneseq
  %v1260 = vshrl.u32 %v1259, 7
  %v1261 = vsub.s32 3, %v1260
  %v1262 = vrot.slane %v1245, %v1261
  %v1263 = vlaneseq
  %v1264 = vshrl.u32 %v1263, 7
  %v1265 = vsub.s32 4, %v1264
  %v1266 = vrot.slane %v1245, %v1265
  %v1267 = vlaneseq
  %v1268 = vshrl.u32 %v1267, 7
  %v1269 = vsub.s32 5, %v1268
  %v1270 = vrot.slane %v1245, %v1269
  %v1271 = vlaneseq
  %v1272 = vshrl.u32 %v1271, 7
  %v1273 = vsub.s32 6, %v1272
  %v1274 = vrot.slane %v1245, %v1273
  %v1275 = vlaneseq
  %v1276 = vshrl.u32 %v1275, 7
  %v1277 = vsub.s32 7, %v1276
  %v1278 = vrot.slane %v1245, %v1277
  %v1319 = vunpack.c.l.b16 %v1213
  %v1320 = vunpack.c.h.b16 %v1213
  %v1321 = vunpack.c.l.b16 %v1214
  %v1322 = vunpack.c.h.b16 %v1214
  %v1323 = vunpack.c.l.b16 %v1215
  %v1324 = vunpack.c.h.b16 %v1215
  %v1325 = vunpack.c.l.b16 %v1216
  %v1326 = vunpack.c.h.b16 %v1216
  %v1327 = vunpack.c.l.b16 %v1217
  %v1328 = vunpack.c.h.b16 %v1217
  %v1329 = vunpack.c.l.b16 %v1218
  %v1330 = vunpack.c.h.b16 %v1218
  %v1331 = vunpack.c.l.b16 %v1219
  %v1332 = vunpack.c.h.b16 %v1219
  %v1333 = vunpack.c.l.b16 %v1220
  %v1334 = vunpack.c.h.b16 %v1220
  %v1335 = vunpack.c.l.b16 %v1221
  %v1336 = vunpack.c.h.b16 %v1221
  %v1337 = vunpack.c.l.b16 %v1222
  %v1338 = vunpack.c.h.b16 %v1222
  %v1339 = vunpack.c.l.b16 %v1223
  %v1340 = vunpack.c.h.b16 %v1223
  %v1341 = vunpack.c.l.b16 %v1224
  %v1342 = vunpack.c.h.b16 %v1224
  %v1343 = vunpack.c.l.b16 %v1225
  %v1344 = vunpack.c.h.b16 %v1225
  %v1345 = vunpack.c.l.b16 %v1226
  %v1346 = vunpack.c.h.b16 %v1226
  %v1347 = vunpack.c.l.b16 %v1227
  %v1348 = vunpack.c.h.b16 %v1227
  %v1349 = vunpack.c.l.b16 %v1228
  %v1350 = vunpack.c.h.b16 %v1228
  %v1351 = vunpack.c.l.b16 %v1229
  %v1352 = vunpack.c.h.b16 %v1229
  %v1353 = vunpack.c.l.b16 %v1230
  %v1354 = vunpack.c.h.b16 %v1230
  %v1355 = vunpack.c.l.b16 %v1231
  %v1356 = vunpack.c.h.b16 %v1231
  %v1357 = vunpack.c.l.b16 %v1232
  %v1358 = vunpack.c.h.b16 %v1232
  %v1359 = vunpack.c.l.b16 %v1233
  %v1360 = vunpack.c.h.b16 %v1233
  %v1361 = vunpack.c.l.b16 %v1234
  %v1362 = vunpack.c.h.b16 %v1234
  %v1363 = vunpack.c.l.b16 %v1235
  %v1364 = vunpack.c.h.b16 %v1235
  %v1365 = vunpack.c.l.b16 %v1236
  %v1366 = vunpack.c.h.b16 %v1236
  %v1367 = vunpack.c.l.b16 %v1237
  %v1368 = vunpack.c.h.b16 %v1237
  %v1369 = vunpack.c.l.b16 %v1238
  %v1370 = vunpack.c.h.b16 %v1238
  %v1371 = vunpack.c.l.b16 %v1239
  %v1372 = vunpack.c.h.b16 %v1239
  %v1373 = vunpack.c.l.b16 %v1240
  %v1374 = vunpack.c.h.b16 %v1240
  %v1375 = vunpack.c.l.b16 %v1241
  %v1376 = vunpack.c.h.b16 %v1241
  %v1377 = vunpack.c.l.b16 %v1242
  %v1378 = vunpack.c.h.b16 %v1242
  %v1379 = vunpack.c.l.b16 %v1243
  %v1380 = vunpack.c.h.b16 %v1243
  %v1381 = vunpack.c.l.b16 %v1244
  %v1382 = vunpack.c.h.b16 %v1244
  %v1383 = vpack.c.b16 %v1327, %v1319
  %v1384 = vpack.c.b16 %v1328, %v1320
  %v1385 = vpack.c.b16 %v1329, %v1321
  %v1386 = vpack.c.b16 %v1330, %v1322
  %v1387 = vpack.c.b16 %v1331, %v1323
  %v1388 = vpack.c.b16 %v1332, %v1324
  %v1389 = vpack.c.b16 %v1333, %v1325
  %v1390 = vpack.c.b16 %v1334, %v1326
  %v1391 = vpack.c.b16 %v1343, %v1335
  %v1392 = vpack.c.b16 %v1344, %v1336
  %v1393 = vpack.c.b16 %v1345, %v1337
  %v1394 = vpack.c.b16 %v1346, %v1338
  %v1395 = vpack.c.b16 %v1347, %v1339
  %v1396 = vpack.c.b16 %v1348, %v1340
  %v1397 = vpack.c.b16 %v1349, %v1341
  %v1398 = vpack.c.b16 %v1350, %v1342
  %v1399 = vpack.c.b16 %v1359, %v1351
  %v1400 = vpack.c.b16 %v1360, %v1352
  %v1401 = vpack.c.b16 %v1361, %v1353
  %v1402 = vpack.c.b16 %v1362, %v1354
  %v1403 = vpack.c.b16 %v1363, %v1355
  %v1404 = vpack.c.b16 %v1364, %v1356
  %v1405 = vpack.c.b16 %v1365, %v1357
  %v1406 = vpack.c.b16 %v1366, %v1358
  %v1407 = vpack.c.b16 %v1375, %v1367
  %v1408 = vpack.c.b16 %v1376, %v1368
  %v1409 = vpack.c.b16 %v1377, %v1369
  %v1410 = vpack.c.b16 %v1378, %v1370
  %v1411 = vpack.c.b16 %v1379, %v1371
  %v1412 = vpack.c.b16 %v1380, %v1372
  %v1413 = vpack.c.b16 %v1381, %v1373
  %v1414 = vpack.c.b16 %v1382, %v1374
  %v1448 = vsel %vm356, %v1212, 0
  %1450 = vmatprep.subr.bf16.mxu0 0
  %1451 = vmatpush1.bf16.msra.mxu0 0
  %1452 = vmatprep.subr.bf16.mxu0 0
  %1453 = vmatpush1.bf16.msra.mxu0 0
  %1454 = vmatprep.subr.bf16.mxu0 0
  %1455 = vmatpush1.bf16.msra.mxu0 0
  %1456 = vmatprep.subr.bf16.mxu0 0
  %1457 = vmatpush1.bf16.msra.mxu0 0
  %1458 = vmatprep.subr.bf16.mxu0 %v1408
  %1459 = vmatpush1.bf16.msra.mxu0 %v1407
  %1460 = vmatprep.subr.bf16.mxu0 %v1400
  %1461 = vmatpush1.bf16.msra.mxu0 %v1399
  %1462 = vmatprep.subr.bf16.mxu0 %v1392
  %1463 = vmatpush1.bf16.msra.mxu0 %v1391
  %1464 = vmatprep.subr.bf16.mxu0 %v1384
  %1465 = vmatpush1.bf16.msra.mxu0 %v1383
  %1466 = vmatprep.subr.bf16.mxu0 0
  %1467 = vmatpush2.bf16.msra.mxu0 0
  %1468 = vmatprep.subr.bf16.mxu0 0
  %1469 = vmatpush2.bf16.msra.mxu0 0
  %1470 = vmatprep.subr.bf16.mxu0 0
  %1471 = vmatpush2.bf16.msra.mxu0 0
  %1472 = vmatprep.subr.bf16.mxu0 0
  %1473 = vmatpush2.bf16.msra.mxu0 0
  %1474 = vmatprep.subr.bf16.mxu0 0
  %1475 = vmatpush2.bf16.msra.mxu0 0
  %1476 = vmatprep.subr.bf16.mxu0 0
  %1477 = vmatpush2.bf16.msra.mxu0 0
  %1478 = vmatprep.subr.bf16.mxu0 0
  %1479 = vmatpush2.bf16.msra.mxu0 0
  %1480 = vmatprep.subr.bf16.mxu0 0
  %1481 = vmatpush2.bf16.msra.mxu0 0
  %1482 = vmatprep.mubr.bf16.mxu0 0
  %1483 = vmatmul.mubr.bf16.gmra.mxu0 %v1448
  %v1484 = vpop.f32.mrf.mxu0
  %v1485 = vadd.f32 %v1250, %v1484
  %v1486 = vpop.f32.mrf.mxu0
  %v1487 = vadd.f32 %v1254, %v1486
  %v1488 = vpop.f32.mrf.mxu0
  %v1489 = vpop.f32.mrf.mxu0
  %1490 = vdwg.mxu0
  %1491 = vmatprep.subr.bf16.mxu0 0
  %1492 = vmatpush1.bf16.msra.mxu0 0
  %1493 = vmatprep.subr.bf16.mxu0 0
  %1494 = vmatpush1.bf16.msra.mxu0 0
  %1495 = vmatprep.subr.bf16.mxu0 0
  %1496 = vmatpush1.bf16.msra.mxu0 0
  %1497 = vmatprep.subr.bf16.mxu0 0
  %1498 = vmatpush1.bf16.msra.mxu0 0
  %1499 = vmatprep.subr.bf16.mxu0 %v1410
  %1500 = vmatpush1.bf16.msra.mxu0 %v1409
  %1501 = vmatprep.subr.bf16.mxu0 %v1402
  %1502 = vmatpush1.bf16.msra.mxu0 %v1401
  %1503 = vmatprep.subr.bf16.mxu0 %v1394
  %1504 = vmatpush1.bf16.msra.mxu0 %v1393
  %1505 = vmatprep.subr.bf16.mxu0 %v1386
  %1506 = vmatpush1.bf16.msra.mxu0 %v1385
  %1507 = vmatprep.subr.bf16.mxu0 0
  %1508 = vmatpush2.bf16.msra.mxu0 0
  %1509 = vmatprep.subr.bf16.mxu0 0
  %1510 = vmatpush2.bf16.msra.mxu0 0
  %1511 = vmatprep.subr.bf16.mxu0 0
  %1512 = vmatpush2.bf16.msra.mxu0 0
  %1513 = vmatprep.subr.bf16.mxu0 0
  %1514 = vmatpush2.bf16.msra.mxu0 0
  %1515 = vmatprep.subr.bf16.mxu0 0
  %1516 = vmatpush2.bf16.msra.mxu0 0
  %1517 = vmatprep.subr.bf16.mxu0 0
  %1518 = vmatpush2.bf16.msra.mxu0 0
  %1519 = vmatprep.subr.bf16.mxu0 0
  %1520 = vmatpush2.bf16.msra.mxu0 0
  %1521 = vmatprep.subr.bf16.mxu0 0
  %1522 = vmatpush2.bf16.msra.mxu0 0
  %1523 = vmatprep.mubr.bf16.mxu0 0
  %1524 = vmatmul.mubr.bf16.gmra.mxu0 %v1448
  %v1525 = vpop.f32.mrf.mxu0
  %v1526 = vadd.f32 %v1258, %v1525
  %v1527 = vpop.f32.mrf.mxu0
  %v1528 = vadd.f32 %v1262, %v1527
  %v1529 = vpop.f32.mrf.mxu0
  %v1530 = vpop.f32.mrf.mxu0
  %1531 = vdwg.mxu0
  %1532 = vmatprep.subr.bf16.mxu0 0
  %1533 = vmatpush1.bf16.msra.mxu0 0
  %1534 = vmatprep.subr.bf16.mxu0 0
  %1535 = vmatpush1.bf16.msra.mxu0 0
  %1536 = vmatprep.subr.bf16.mxu0 0
  %1537 = vmatpush1.bf16.msra.mxu0 0
  %1538 = vmatprep.subr.bf16.mxu0 0
  %1539 = vmatpush1.bf16.msra.mxu0 0
  %1540 = vmatprep.subr.bf16.mxu0 %v1412
  %1541 = vmatpush1.bf16.msra.mxu0 %v1411
  %1542 = vmatprep.subr.bf16.mxu0 %v1404
  %1543 = vmatpush1.bf16.msra.mxu0 %v1403
  %1544 = vmatprep.subr.bf16.mxu0 %v1396
  %1545 = vmatpush1.bf16.msra.mxu0 %v1395
  %1546 = vmatprep.subr.bf16.mxu0 %v1388
  %1547 = vmatpush1.bf16.msra.mxu0 %v1387
  %1548 = vmatprep.subr.bf16.mxu0 0
  %1549 = vmatpush2.bf16.msra.mxu0 0
  %1550 = vmatprep.subr.bf16.mxu0 0
  %1551 = vmatpush2.bf16.msra.mxu0 0
  %1552 = vmatprep.subr.bf16.mxu0 0
  %1553 = vmatpush2.bf16.msra.mxu0 0
  %1554 = vmatprep.subr.bf16.mxu0 0
  %1555 = vmatpush2.bf16.msra.mxu0 0
  %1556 = vmatprep.subr.bf16.mxu0 0
  %1557 = vmatpush2.bf16.msra.mxu0 0
  %1558 = vmatprep.subr.bf16.mxu0 0
  %1559 = vmatpush2.bf16.msra.mxu0 0
  %1560 = vmatprep.subr.bf16.mxu0 0
  %1561 = vmatpush2.bf16.msra.mxu0 0
  %1562 = vmatprep.subr.bf16.mxu0 0
  %1563 = vmatpush2.bf16.msra.mxu0 0
  %1564 = vmatprep.mubr.bf16.mxu0 0
  %1565 = vmatmul.mubr.bf16.gmra.mxu0 %v1448
  %v1566 = vpop.f32.mrf.mxu0
  %v1567 = vadd.f32 %v1266, %v1566
  %v1568 = vpop.f32.mrf.mxu0
  %v1569 = vadd.f32 %v1270, %v1568
  %v1570 = vpop.f32.mrf.mxu0
  %v1571 = vpop.f32.mrf.mxu0
  %1572 = vdwg.mxu0
  %1573 = vmatprep.subr.bf16.mxu0 0
  %1574 = vmatpush1.bf16.msra.mxu0 0
  %1575 = vmatprep.subr.bf16.mxu0 0
  %1576 = vmatpush1.bf16.msra.mxu0 0
  %1577 = vmatprep.subr.bf16.mxu0 0
  %1578 = vmatpush1.bf16.msra.mxu0 0
  %1579 = vmatprep.subr.bf16.mxu0 0
  %1580 = vmatpush1.bf16.msra.mxu0 0
  %1581 = vmatprep.subr.bf16.mxu0 %v1414
  %1582 = vmatpush1.bf16.msra.mxu0 %v1413
  %1583 = vmatprep.subr.bf16.mxu0 %v1406
  %1584 = vmatpush1.bf16.msra.mxu0 %v1405
  %1585 = vmatprep.subr.bf16.mxu0 %v1398
  %1586 = vmatpush1.bf16.msra.mxu0 %v1397
  %1587 = vmatprep.subr.bf16.mxu0 %v1390
  %1588 = vmatpush1.bf16.msra.mxu0 %v1389
  %1589 = vmatprep.subr.bf16.mxu0 0
  %1590 = vmatpush2.bf16.msra.mxu0 0
  %1591 = vmatprep.subr.bf16.mxu0 0
  %1592 = vmatpush2.bf16.msra.mxu0 0
  %1593 = vmatprep.subr.bf16.mxu0 0
  %1594 = vmatpush2.bf16.msra.mxu0 0
  %1595 = vmatprep.subr.bf16.mxu0 0
  %1596 = vmatpush2.bf16.msra.mxu0 0
  %1597 = vmatprep.subr.bf16.mxu0 0
  %1598 = vmatpush2.bf16.msra.mxu0 0
  %1599 = vmatprep.subr.bf16.mxu0 0
  %1600 = vmatpush2.bf16.msra.mxu0 0
  %1601 = vmatprep.subr.bf16.mxu0 0
  %1602 = vmatpush2.bf16.msra.mxu0 0
  %1603 = vmatprep.subr.bf16.mxu0 0
  %1604 = vmatpush2.bf16.msra.mxu0 0
  %1605 = vmatprep.mubr.bf16.mxu0 0
  %1606 = vmatmul.mubr.bf16.gmra.mxu0 %v1448
  %v1607 = vpop.f32.mrf.mxu0
  %v1608 = vadd.f32 %v1274, %v1607
  %v1609 = vpop.f32.mrf.mxu0
  %v1610 = vadd.f32 %v1278, %v1609
  %v1611 = vpop.f32.mrf.mxu0
  %v1612 = vpop.f32.mrf.mxu0
  %1613 = vdwg.mxu0
  %vm1614 = vcmp.gt.f32.partialorder %v1485, 0.0
  %vm1615 = vcmp.gt.f32.partialorder %v1487, 0.0
  %vm1616 = vcmp.gt.f32.partialorder %v1526, 0.0
  %vm1617 = vcmp.gt.f32.partialorder %v1528, 0.0
  %vm1618 = vcmp.gt.f32.partialorder %v1567, 0.0
  %vm1619 = vcmp.gt.f32.partialorder %v1569, 0.0
  %vm1620 = vcmp.gt.f32.partialorder %v1608, 0.0
  %vm1621 = vcmp.gt.f32.partialorder %v1610, 0.0
  %v1622 = vmul.f32 %v1485, 0.01
  %v1623 = vmul.f32 %v1487, 0.01
  %v1624 = vmul.f32 %v1526, 0.01
  %v1625 = vmul.f32 %v1528, 0.01
  %v1626 = vmul.f32 %v1567, 0.01
  %v1627 = vmul.f32 %v1569, 0.01
  %v1628 = vmul.f32 %v1608, 0.01
  %v1629 = vmul.f32 %v1610, 0.01
  %v1630 = vsel %vm1614, %v1485, %v1622
  %v1631 = vsel %vm1615, %v1487, %v1623
  %v1632 = vsel %vm1616, %v1526, %v1624
  %v1633 = vsel %vm1617, %v1528, %v1625
  %v1634 = vsel %vm1618, %v1567, %v1626
  %v1635 = vsel %vm1619, %v1569, %v1627
  %v1636 = vsel %vm1620, %v1608, %v1628
  %v1637 = vsel %vm1621, %v1610, %v1629
  %v1638 = vpack.c.bf16 %v1630, %v1630
  %v1639 = vpack.c.bf16 %v1631, %v1631
  %v1640 = vpack.c.bf16 %v1632, %v1632
  %v1641 = vpack.c.bf16 %v1633, %v1633
  %v1642 = vpack.c.bf16 %v1634, %v1634
  %v1643 = vpack.c.bf16 %v1635, %v1635
  %v1644 = vpack.c.bf16 %v1636, %v1636
  %v1645 = vpack.c.bf16 %v1637, %v1637
  %v1646 = vld [vmem:[%s8] sm:$0xff]
  %v1647 = vld [vmem:[%s8 + $0x8] sm:$0xff]
  %v1648 = vld [vmem:[%s8 + $0x10] sm:$0xff]
  %v1649 = vld [vmem:[%s8 + $0x18] sm:$0xff]
  %v1650 = vld [vmem:[%s8 + $0x20] sm:$0xff]
  %v1651 = vld [vmem:[%s8 + $0x28] sm:$0xff]
  %v1652 = vld [vmem:[%s8 + $0x30] sm:$0xff]
  %v1653 = vld [vmem:[%s8 + $0x38] sm:$0xff]
  %v1654 = vld [vmem:[%s8 + $0x40] sm:$0xff]
  %v1655 = vld [vmem:[%s8 + $0x48] sm:$0xff]
  %v1656 = vld [vmem:[%s8 + $0x50] sm:$0xff]
  %v1657 = vld [vmem:[%s8 + $0x58] sm:$0xff]
  %v1658 = vld [vmem:[%s8 + $0x60] sm:$0xff]
  %v1659 = vld [vmem:[%s8 + $0x68] sm:$0xff]
  %v1660 = vld [vmem:[%s8 + $0x70] sm:$0xff]
  %v1661 = vld [vmem:[%s8 + $0x78] sm:$0xff]
  %v1662 = vld [vmem:[%s8 + $0x80] sm:$0xff]
  %v1663 = vld [vmem:[%s8 + $0x88] sm:$0xff]
  %v1664 = vld [vmem:[%s8 + $0x90] sm:$0xff]
  %v1665 = vld [vmem:[%s8 + $0x98] sm:$0xff]
  %v1666 = vld [vmem:[%s8 + $0xa0] sm:$0xff]
  %v1667 = vld [vmem:[%s8 + $0xa8] sm:$0xff]
  %v1668 = vld [vmem:[%s8 + $0xb0] sm:$0xff]
  %v1669 = vld [vmem:[%s8 + $0xb8] sm:$0xff]
  %v1670 = vld [vmem:[%s8 + $0xc0] sm:$0xff]
  %v1671 = vld [vmem:[%s8 + $0xc8] sm:$0xff]
  %v1672 = vld [vmem:[%s8 + $0xd0] sm:$0xff]
  %v1673 = vld [vmem:[%s8 + $0xd8] sm:$0xff]
  %v1674 = vld [vmem:[%s8 + $0xe0] sm:$0xff]
  %v1675 = vld [vmem:[%s8 + $0xe8] sm:$0xff]
  %v1676 = vld [vmem:[%s8 + $0xf0] sm:$0xff]
  %v1677 = vld [vmem:[%s8 + $0xf8] sm:$0xff]
  %v1678 = vld [vmem:[%s8 + $0x100] sm:$0xff]
  %v1679 = vld [vmem:[%s8 + $0x108] sm:$0xff]
  %v1680 = vld [vmem:[%s8 + $0x110] sm:$0xff]
  %v1681 = vld [vmem:[%s8 + $0x118] sm:$0xff]
  %v1682 = vld [vmem:[%s8 + $0x120] sm:$0xff]
  %v1683 = vld [vmem:[%s8 + $0x128] sm:$0xff]
  %v1684 = vld [vmem:[%s8 + $0x130] sm:$0xff]
  %v1685 = vld [vmem:[%s8 + $0x138] sm:$0xff]
  %v1686 = vld [vmem:[%s8 + $0x140] sm:$0xff]
  %v1687 = vld [vmem:[%s8 + $0x148] sm:$0xff]
  %v1688 = vld [vmem:[%s8 + $0x150] sm:$0xff]
  %v1689 = vld [vmem:[%s8 + $0x158] sm:$0xff]
  %v1690 = vld [vmem:[%s8 + $0x160] sm:$0xff]
  %v1691 = vld [vmem:[%s8 + $0x168] sm:$0xff]
  %v1692 = vld [vmem:[%s8 + $0x170] sm:$0xff]
  %v1693 = vld [vmem:[%s8 + $0x178] sm:$0xff]
  %v1694 = vld [vmem:[%s8 + $0x180] sm:$0xff]
  %v1695 = vld [vmem:[%s8 + $0x188] sm:$0xff]
  %v1696 = vld [vmem:[%s8 + $0x190] sm:$0xff]
  %v1697 = vld [vmem:[%s8 + $0x198] sm:$0xff]
  %v1698 = vld [vmem:[%s8 + $0x1a0] sm:$0xff]
  %v1699 = vld [vmem:[%s8 + $0x1a8] sm:$0xff]
  %v1700 = vld [vmem:[%s8 + $0x1b0] sm:$0xff]
  %v1701 = vld [vmem:[%s8 + $0x1b8] sm:$0xff]
  %v1702 = vld [vmem:[%s8 + $0x1c0] sm:$0xff]
  %v1703 = vld [vmem:[%s8 + $0x1c8] sm:$0xff]
  %v1704 = vld [vmem:[%s8 + $0x1d0] sm:$0xff]
  %v1705 = vld [vmem:[%s8 + $0x1d8] sm:$0xff]
  %v1706 = vld [vmem:[%s8 + $0x1e0] sm:$0xff]
  %v1707 = vld [vmem:[%s8 + $0x1e8] sm:$0xff]
  %v1708 = vld [vmem:[%s8 + $0x1f0] sm:$0xff]
  %v1709 = vld [vmem:[%s8 + $0x1f8] sm:$0xff]
  %v1710 = vld [vmem:[%s8 + $0x200] sm:$0xff]
  %v1711 = vld [vmem:[%s8 + $0x208] sm:$0xff]
  %v1712 = vld [vmem:[%s8 + $0x210] sm:$0xff]
  %v1713 = vld [vmem:[%s8 + $0x218] sm:$0xff]
  %v1714 = vld [vmem:[%s8 + $0x220] sm:$0xff]
  %v1715 = vld [vmem:[%s8 + $0x228] sm:$0xff]
  %v1716 = vld [vmem:[%s8 + $0x230] sm:$0xff]
  %v1717 = vld [vmem:[%s8 + $0x238] sm:$0xff]
  %v1718 = vld [vmem:[%s8 + $0x240] sm:$0xff]
  %v1719 = vld [vmem:[%s8 + $0x248] sm:$0xff]
  %v1720 = vld [vmem:[%s8 + $0x250] sm:$0xff]
  %v1721 = vld [vmem:[%s8 + $0x258] sm:$0xff]
  %v1722 = vld [vmem:[%s8 + $0x260] sm:$0xff]
  %v1723 = vld [vmem:[%s8 + $0x268] sm:$0xff]
  %v1724 = vld [vmem:[%s8 + $0x270] sm:$0xff]
  %v1725 = vld [vmem:[%s8 + $0x278] sm:$0xff]
  %v1726 = vld [vmem:[%s8 + $0x280] sm:$0xff]
  %v1727 = vld [vmem:[%s8 + $0x288] sm:$0xff]
  %v1728 = vld [vmem:[%s8 + $0x290] sm:$0xff]
  %v1729 = vld [vmem:[%s8 + $0x298] sm:$0xff]
  %v1730 = vld [vmem:[%s8 + $0x2a0] sm:$0xff]
  %v1731 = vld [vmem:[%s8 + $0x2a8] sm:$0xff]
  %v1732 = vld [vmem:[%s8 + $0x2b0] sm:$0xff]
  %v1733 = vld [vmem:[%s8 + $0x2b8] sm:$0xff]
  %v1734 = vld [vmem:[%s8 + $0x2c0] sm:$0xff]
  %v1735 = vld [vmem:[%s8 + $0x2c8] sm:$0xff]
  %v1736 = vld [vmem:[%s8 + $0x2d0] sm:$0xff]
  %v1737 = vld [vmem:[%s8 + $0x2d8] sm:$0xff]
  %v1738 = vld [vmem:[%s8 + $0x2e0] sm:$0xff]
  %v1739 = vld [vmem:[%s8 + $0x2e8] sm:$0xff]
  %v1740 = vld [vmem:[%s8 + $0x2f0] sm:$0xff]
  %v1741 = vld [vmem:[%s8 + $0x2f8] sm:$0xff]
  %v1742 = vld [vmem:[%s8 + $0x300] sm:$0xff]
  %v1743 = vld [vmem:[%s8 + $0x308] sm:$0xff]
  %v1744 = vld [vmem:[%s8 + $0x310] sm:$0xff]
  %v1745 = vld [vmem:[%s8 + $0x318] sm:$0xff]
  %v1746 = vld [vmem:[%s8 + $0x320] sm:$0xff]
  %v1747 = vld [vmem:[%s8 + $0x328] sm:$0xff]
  %v1748 = vld [vmem:[%s8 + $0x330] sm:$0xff]
  %v1749 = vld [vmem:[%s8 + $0x338] sm:$0xff]
  %v1750 = vld [vmem:[%s8 + $0x340] sm:$0xff]
  %v1751 = vld [vmem:[%s8 + $0x348] sm:$0xff]
  %v1752 = vld [vmem:[%s8 + $0x350] sm:$0xff]
  %v1753 = vld [vmem:[%s8 + $0x358] sm:$0xff]
  %v1754 = vld [vmem:[%s8 + $0x360] sm:$0xff]
  %v1755 = vld [vmem:[%s8 + $0x368] sm:$0xff]
  %v1756 = vld [vmem:[%s8 + $0x370] sm:$0xff]
  %v1757 = vld [vmem:[%s8 + $0x378] sm:$0xff]
  %v1758 = vld [vmem:[%s8 + $0x380] sm:$0xff]
  %v1759 = vld [vmem:[%s8 + $0x388] sm:$0xff]
  %v1760 = vld [vmem:[%s8 + $0x390] sm:$0xff]
  %v1761 = vld [vmem:[%s8 + $0x398] sm:$0xff]
  %v1762 = vld [vmem:[%s8 + $0x3a0] sm:$0xff]
  %v1763 = vld [vmem:[%s8 + $0x3a8] sm:$0xff]
  %v1764 = vld [vmem:[%s8 + $0x3b0] sm:$0xff]
  %v1765 = vld [vmem:[%s8 + $0x3b8] sm:$0xff]
  %v1766 = vld [vmem:[%s8 + $0x3c0] sm:$0xff]
  %v1767 = vld [vmem:[%s8 + $0x3c8] sm:$0xff]
  %v1768 = vld [vmem:[%s8 + $0x3d0] sm:$0xff]
  %v1769 = vld [vmem:[%s8 + $0x3d8] sm:$0xff]
  %v1770 = vld [vmem:[%s8 + $0x3e0] sm:$0xff]
  %v1771 = vld [vmem:[%s8 + $0x3e8] sm:$0xff]
  %v1772 = vld [vmem:[%s8 + $0x3f0] sm:$0xff]
  %v1773 = vld [vmem:[%s8 + $0x3f8] sm:$0xff]
  %v1774 = vld [vmem:[%s8 + $0x400] sm:$0xff]
  %v1775 = vld [vmem:[%s8 + $0x408] sm:$0xff]
  %v1776 = vld [vmem:[%s8 + $0x410] sm:$0xff]
  %v1777 = vld [vmem:[%s8 + $0x418] sm:$0xff]
  %v1778 = vld [vmem:[%s8 + $0x420] sm:$0xff]
  %v1779 = vld [vmem:[%s8 + $0x428] sm:$0xff]
  %v1780 = vld [vmem:[%s8 + $0x430] sm:$0xff]
  %v1781 = vld [vmem:[%s8 + $0x438] sm:$0xff]
  %v1782 = vld [vmem:[%s8 + $0x440] sm:$0xff]
  %v1783 = vld [vmem:[%s8 + $0x448] sm:$0xff]
  %v1784 = vld [vmem:[%s8 + $0x450] sm:$0xff]
  %v1785 = vld [vmem:[%s8 + $0x458] sm:$0xff]
  %v1786 = vld [vmem:[%s8 + $0x460] sm:$0xff]
  %v1787 = vld [vmem:[%s8 + $0x468] sm:$0xff]
  %v1788 = vld [vmem:[%s8 + $0x470] sm:$0xff]
  %v1789 = vld [vmem:[%s8 + $0x478] sm:$0xff]
  %v1790 = vld [vmem:[%s8 + $0x480] sm:$0xff]
  %v1791 = vld [vmem:[%s8 + $0x488] sm:$0xff]
  %v1792 = vld [vmem:[%s8 + $0x490] sm:$0xff]
  %v1793 = vld [vmem:[%s8 + $0x498] sm:$0xff]
  %v1794 = vld [vmem:[%s8 + $0x4a0] sm:$0xff]
  %v1795 = vld [vmem:[%s8 + $0x4a8] sm:$0xff]
  %v1796 = vld [vmem:[%s8 + $0x4b0] sm:$0xff]
  %v1797 = vld [vmem:[%s8 + $0x4b8] sm:$0xff]
  %v1798 = vld [vmem:[%s8 + $0x4c0] sm:$0xff]
  %v1799 = vld [vmem:[%s8 + $0x4c8] sm:$0xff]
  %v1800 = vld [vmem:[%s8 + $0x4d0] sm:$0xff]
  %v1801 = vld [vmem:[%s8 + $0x4d8] sm:$0xff]
  %v1802 = vld [vmem:[%s8 + $0x4e0] sm:$0xff]
  %v1803 = vld [vmem:[%s8 + $0x4e8] sm:$0xff]
  %v1804 = vld [vmem:[%s8 + $0x4f0] sm:$0xff]
  %v1805 = vld [vmem:[%s8 + $0x4f8] sm:$0xff]
  %v1806 = vld [vmem:[%s8 + $0x500] sm:$0xff]
  %v1807 = vld [vmem:[%s8 + $0x508] sm:$0xff]
  %v1808 = vld [vmem:[%s8 + $0x510] sm:$0xff]
  %v1809 = vld [vmem:[%s8 + $0x518] sm:$0xff]
  %v1810 = vld [vmem:[%s8 + $0x520] sm:$0xff]
  %v1811 = vld [vmem:[%s8 + $0x528] sm:$0xff]
  %v1812 = vld [vmem:[%s8 + $0x530] sm:$0xff]
  %v1813 = vld [vmem:[%s8 + $0x538] sm:$0xff]
  %v1814 = vld [vmem:[%s8 + $0x540] sm:$0xff]
  %v1815 = vld [vmem:[%s8 + $0x548] sm:$0xff]
  %v1816 = vld [vmem:[%s8 + $0x550] sm:$0xff]
  %v1817 = vld [vmem:[%s8 + $0x558] sm:$0xff]
  %v1818 = vld [vmem:[%s8 + $0x560] sm:$0xff]
  %v1819 = vld [vmem:[%s8 + $0x568] sm:$0xff]
  %v1820 = vld [vmem:[%s8 + $0x570] sm:$0xff]
  %v1821 = vld [vmem:[%s8 + $0x578] sm:$0xff]
  %v1822 = vld [vmem:[%s8 + $0x580] sm:$0xff]
  %v1823 = vld [vmem:[%s8 + $0x588] sm:$0xff]
  %v1824 = vld [vmem:[%s8 + $0x590] sm:$0xff]
  %v1825 = vld [vmem:[%s8 + $0x598] sm:$0xff]
  %v1826 = vld [vmem:[%s8 + $0x5a0] sm:$0xff]
  %v1827 = vld [vmem:[%s8 + $0x5a8] sm:$0xff]
  %v1828 = vld [vmem:[%s8 + $0x5b0] sm:$0xff]
  %v1829 = vld [vmem:[%s8 + $0x5b8] sm:$0xff]
  %v1830 = vld [vmem:[%s8 + $0x5c0] sm:$0xff]
  %v1831 = vld [vmem:[%s8 + $0x5c8] sm:$0xff]
  %v1832 = vld [vmem:[%s8 + $0x5d0] sm:$0xff]
  %v1833 = vld [vmem:[%s8 + $0x5d8] sm:$0xff]
  %v1834 = vld [vmem:[%s8 + $0x5e0] sm:$0xff]
  %v1835 = vld [vmem:[%s8 + $0x5e8] sm:$0xff]
  %v1836 = vld [vmem:[%s8 + $0x5f0] sm:$0xff]
  %v1837 = vld [vmem:[%s8 + $0x5f8] sm:$0xff]
  %v1838 = vld [vmem:[%s8 + $0x600] sm:$0xff]
  %v1839 = vld [vmem:[%s8 + $0x608] sm:$0xff]
  %v1840 = vld [vmem:[%s8 + $0x610] sm:$0xff]
  %v1841 = vld [vmem:[%s8 + $0x618] sm:$0xff]
  %v1842 = vld [vmem:[%s8 + $0x620] sm:$0xff]
  %v1843 = vld [vmem:[%s8 + $0x628] sm:$0xff]
  %v1844 = vld [vmem:[%s8 + $0x630] sm:$0xff]
  %v1845 = vld [vmem:[%s8 + $0x638] sm:$0xff]
  %v1846 = vld [vmem:[%s8 + $0x640] sm:$0xff]
  %v1847 = vld [vmem:[%s8 + $0x648] sm:$0xff]
  %v1848 = vld [vmem:[%s8 + $0x650] sm:$0xff]
  %v1849 = vld [vmem:[%s8 + $0x658] sm:$0xff]
  %v1850 = vld [vmem:[%s8 + $0x660] sm:$0xff]
  %v1851 = vld [vmem:[%s8 + $0x668] sm:$0xff]
  %v1852 = vld [vmem:[%s8 + $0x670] sm:$0xff]
  %v1853 = vld [vmem:[%s8 + $0x678] sm:$0xff]
  %v1854 = vld [vmem:[%s8 + $0x680] sm:$0xff]
  %v1855 = vld [vmem:[%s8 + $0x688] sm:$0xff]
  %v1856 = vld [vmem:[%s8 + $0x690] sm:$0xff]
  %v1857 = vld [vmem:[%s8 + $0x698] sm:$0xff]
  %v1858 = vld [vmem:[%s8 + $0x6a0] sm:$0xff]
  %v1859 = vld [vmem:[%s8 + $0x6a8] sm:$0xff]
  %v1860 = vld [vmem:[%s8 + $0x6b0] sm:$0xff]
  %v1861 = vld [vmem:[%s8 + $0x6b8] sm:$0xff]
  %v1862 = vld [vmem:[%s8 + $0x6c0] sm:$0xff]
  %v1863 = vld [vmem:[%s8 + $0x6c8] sm:$0xff]
  %v1864 = vld [vmem:[%s8 + $0x6d0] sm:$0xff]
  %v1865 = vld [vmem:[%s8 + $0x6d8] sm:$0xff]
  %v1866 = vld [vmem:[%s8 + $0x6e0] sm:$0xff]
  %v1867 = vld [vmem:[%s8 + $0x6e8] sm:$0xff]
  %v1868 = vld [vmem:[%s8 + $0x6f0] sm:$0xff]
  %v1869 = vld [vmem:[%s8 + $0x6f8] sm:$0xff]
  %v1870 = vld [vmem:[%s8 + $0x700] sm:$0xff]
  %v1871 = vld [vmem:[%s8 + $0x708] sm:$0xff]
  %v1872 = vld [vmem:[%s8 + $0x710] sm:$0xff]
  %v1873 = vld [vmem:[%s8 + $0x718] sm:$0xff]
  %v1874 = vld [vmem:[%s8 + $0x720] sm:$0xff]
  %v1875 = vld [vmem:[%s8 + $0x728] sm:$0xff]
  %v1876 = vld [vmem:[%s8 + $0x730] sm:$0xff]
  %v1877 = vld [vmem:[%s8 + $0x738] sm:$0xff]
  %v1878 = vld [vmem:[%s8 + $0x740] sm:$0xff]
  %v1879 = vld [vmem:[%s8 + $0x748] sm:$0xff]
  %v1880 = vld [vmem:[%s8 + $0x750] sm:$0xff]
  %v1881 = vld [vmem:[%s8 + $0x758] sm:$0xff]
  %v1882 = vld [vmem:[%s8 + $0x760] sm:$0xff]
  %v1883 = vld [vmem:[%s8 + $0x768] sm:$0xff]
  %v1884 = vld [vmem:[%s8 + $0x770] sm:$0xff]
  %v1885 = vld [vmem:[%s8 + $0x778] sm:$0xff]
  %v1886 = vld [vmem:[%s8 + $0x780] sm:$0xff]
  %v1887 = vld [vmem:[%s8 + $0x788] sm:$0xff]
  %v1888 = vld [vmem:[%s8 + $0x790] sm:$0xff]
  %v1889 = vld [vmem:[%s8 + $0x798] sm:$0xff]
  %v1890 = vld [vmem:[%s8 + $0x7a0] sm:$0xff]
  %v1891 = vld [vmem:[%s8 + $0x7a8] sm:$0xff]
  %v1892 = vld [vmem:[%s8 + $0x7b0] sm:$0xff]
  %v1893 = vld [vmem:[%s8 + $0x7b8] sm:$0xff]
  %v1894 = vld [vmem:[%s8 + $0x7c0] sm:$0xff]
  %v1895 = vld [vmem:[%s8 + $0x7c8] sm:$0xff]
  %v1896 = vld [vmem:[%s8 + $0x7d0] sm:$0xff]
  %v1897 = vld [vmem:[%s8 + $0x7d8] sm:$0xff]
  %v1898 = vld [vmem:[%s8 + $0x7e0] sm:$0xff]
  %v1899 = vld [vmem:[%s8 + $0x7e8] sm:$0xff]
  %v1900 = vld [vmem:[%s8 + $0x7f0] sm:$0xff]
  %v1901 = vld [vmem:[%s8 + $0x7f8] sm:$0xff]
  %v1902 = vld [vmem:[%s9] sm:$0xf]
  %v1904 = vlaneseq
  %v1905 = vshrl.u32 %v1904, 7
  %v1906 = vsub.s32 0, %v1905
  %v1907 = vrot.slane %v1902, %v1906
  %v1908 = vlaneseq
  %v1909 = vshrl.u32 %v1908, 7
  %v1910 = vsub.s32 1, %v1909
  %v1911 = vrot.slane %v1902, %v1910
  %v1912 = vlaneseq
  %v1913 = vshrl.u32 %v1912, 7
  %v1914 = vsub.s32 2, %v1913
  %v1915 = vrot.slane %v1902, %v1914
  %v1916 = vlaneseq
  %v1917 = vshrl.u32 %v1916, 7
  %v1918 = vsub.s32 3, %v1917
  %v1919 = vrot.slane %v1902, %v1918
  %v2180 = vunpack.c.l.b16 %v1646
  %v2181 = vunpack.c.h.b16 %v1646
  %v2182 = vunpack.c.l.b16 %v1647
  %v2183 = vunpack.c.h.b16 %v1647
  %v2184 = vunpack.c.l.b16 %v1648
  %v2185 = vunpack.c.h.b16 %v1648
  %v2186 = vunpack.c.l.b16 %v1649
  %v2187 = vunpack.c.h.b16 %v1649
  %v2188 = vunpack.c.l.b16 %v1650
  %v2189 = vunpack.c.h.b16 %v1650
  %v2190 = vunpack.c.l.b16 %v1651
  %v2191 = vunpack.c.h.b16 %v1651
  %v2192 = vunpack.c.l.b16 %v1652
  %v2193 = vunpack.c.h.b16 %v1652
  %v2194 = vunpack.c.l.b16 %v1653
  %v2195 = vunpack.c.h.b16 %v1653
  %v2196 = vunpack.c.l.b16 %v1654
  %v2197 = vunpack.c.h.b16 %v1654
  %v2198 = vunpack.c.l.b16 %v1655
  %v2199 = vunpack.c.h.b16 %v1655
  %v2200 = vunpack.c.l.b16 %v1656
  %v2201 = vunpack.c.h.b16 %v1656
  %v2202 = vunpack.c.l.b16 %v1657
  %v2203 = vunpack.c.h.b16 %v1657
  %v2204 = vunpack.c.l.b16 %v1658
  %v2205 = vunpack.c.h.b16 %v1658
  %v2206 = vunpack.c.l.b16 %v1659
  %v2207 = vunpack.c.h.b16 %v1659
  %v2208 = vunpack.c.l.b16 %v1660
  %v2209 = vunpack.c.h.b16 %v1660
  %v2210 = vunpack.c.l.b16 %v1661
  %v2211 = vunpack.c.h.b16 %v1661
  %v2212 = vunpack.c.l.b16 %v1662
  %v2213 = vunpack.c.h.b16 %v1662
  %v2214 = vunpack.c.l.b16 %v1663
  %v2215 = vunpack.c.h.b16 %v1663
  %v2216 = vunpack.c.l.b16 %v1664
  %v2217 = vunpack.c.h.b16 %v1664
  %v2218 = vunpack.c.l.b16 %v1665
  %v2219 = vunpack.c.h.b16 %v1665
  %v2220 = vunpack.c.l.b16 %v1666
  %v2221 = vunpack.c.h.b16 %v1666
  %v2222 = vunpack.c.l.b16 %v1667
  %v2223 = vunpack.c.h.b16 %v1667
  %v2224 = vunpack.c.l.b16 %v1668
  %v2225 = vunpack.c.h.b16 %v1668
  %v2226 = vunpack.c.l.b16 %v1669
  %v2227 = vunpack.c.h.b16 %v1669
  %v2228 = vunpack.c.l.b16 %v1670
  %v2229 = vunpack.c.h.b16 %v1670
  %v2230 = vunpack.c.l.b16 %v1671
  %v2231 = vunpack.c.h.b16 %v1671
  %v2232 = vunpack.c.l.b16 %v1672
  %v2233 = vunpack.c.h.b16 %v1672
  %v2234 = vunpack.c.l.b16 %v1673
  %v2235 = vunpack.c.h.b16 %v1673
  %v2236 = vunpack.c.l.b16 %v1674
  %v2237 = vunpack.c.h.b16 %v1674
  %v2238 = vunpack.c.l.b16 %v1675
  %v2239 = vunpack.c.h.b16 %v1675
  %v2240 = vunpack.c.l.b16 %v1676
  %v2241 = vunpack.c.h.b16 %v1676
  %v2242 = vunpack.c.l.b16 %v1677
  %v2243 = vunpack.c.h.b16 %v1677
  %v2244 = vunpack.c.l.b16 %v1678
  %v2245 = vunpack.c.h.b16 %v1678
  %v2246 = vunpack.c.l.b16 %v1679
  %v2247 = vunpack.c.h.b16 %v1679
  %v2248 = vunpack.c.l.b16 %v1680
  %v2249 = vunpack.c.h.b16 %v1680
  %v2250 = vunpack.c.l.b16 %v1681
  %v2251 = vunpack.c.h.b16 %v1681
  %v2252 = vunpack.c.l.b16 %v1682
  %v2253 = vunpack.c.h.b16 %v1682
  %v2254 = vunpack.c.l.b16 %v1683
  %v2255 = vunpack.c.h.b16 %v1683
  %v2256 = vunpack.c.l.b16 %v1684
  %v2257 = vunpack.c.h.b16 %v1684
  %v2258 = vunpack.c.l.b16 %v1685
  %v2259 = vunpack.c.h.b16 %v1685
  %v2260 = vunpack.c.l.b16 %v1686
  %v2261 = vunpack.c.h.b16 %v1686
  %v2262 = vunpack.c.l.b16 %v1687
  %v2263 = vunpack.c.h.b16 %v1687
  %v2264 = vunpack.c.l.b16 %v1688
  %v2265 = vunpack.c.h.b16 %v1688
  %v2266 = vunpack.c.l.b16 %v1689
  %v2267 = vunpack.c.h.b16 %v1689
  %v2268 = vunpack.c.l.b16 %v1690
  %v2269 = vunpack.c.h.b16 %v1690
  %v2270 = vunpack.c.l.b16 %v1691
  %v2271 = vunpack.c.h.b16 %v1691
  %v2272 = vunpack.c.l.b16 %v1692
  %v2273 = vunpack.c.h.b16 %v1692
  %v2274 = vunpack.c.l.b16 %v1693
  %v2275 = vunpack.c.h.b16 %v1693
  %v2276 = vunpack.c.l.b16 %v1694
  %v2277 = vunpack.c.h.b16 %v1694
  %v2278 = vunpack.c.l.b16 %v1695
  %v2279 = vunpack.c.h.b16 %v1695
  %v2280 = vunpack.c.l.b16 %v1696
  %v2281 = vunpack.c.h.b16 %v1696
  %v2282 = vunpack.c.l.b16 %v1697
  %v2283 = vunpack.c.h.b16 %v1697
  %v2284 = vunpack.c.l.b16 %v1698
  %v2285 = vunpack.c.h.b16 %v1698
  %v2286 = vunpack.c.l.b16 %v1699
  %v2287 = vunpack.c.h.b16 %v1699
  %v2288 = vunpack.c.l.b16 %v1700
  %v2289 = vunpack.c.h.b16 %v1700
  %v2290 = vunpack.c.l.b16 %v1701
  %v2291 = vunpack.c.h.b16 %v1701
  %v2292 = vunpack.c.l.b16 %v1702
  %v2293 = vunpack.c.h.b16 %v1702
  %v2294 = vunpack.c.l.b16 %v1703
  %v2295 = vunpack.c.h.b16 %v1703
  %v2296 = vunpack.c.l.b16 %v1704
  %v2297 = vunpack.c.h.b16 %v1704
  %v2298 = vunpack.c.l.b16 %v1705
  %v2299 = vunpack.c.h.b16 %v1705
  %v2300 = vunpack.c.l.b16 %v1706
  %v2301 = vunpack.c.h.b16 %v1706
  %v2302 = vunpack.c.l.b16 %v1707
  %v2303 = vunpack.c.h.b16 %v1707
  %v2304 = vunpack.c.l.b16 %v1708
  %v2305 = vunpack.c.h.b16 %v1708
  %v2306 = vunpack.c.l.b16 %v1709
  %v2307 = vunpack.c.h.b16 %v1709
  %v2308 = vunpack.c.l.b16 %v1710
  %v2309 = vunpack.c.h.b16 %v1710
  %v2310 = vunpack.c.l.b16 %v1711
  %v2311 = vunpack.c.h.b16 %v1711
  %v2312 = vunpack.c.l.b16 %v1712
  %v2313 = vunpack.c.h.b16 %v1712
  %v2314 = vunpack.c.l.b16 %v1713
  %v2315 = vunpack.c.h.b16 %v1713
  %v2316 = vunpack.c.l.b16 %v1714
  %v2317 = vunpack.c.h.b16 %v1714
  %v2318 = vunpack.c.l.b16 %v1715
  %v2319 = vunpack.c.h.b16 %v1715
  %v2320 = vunpack.c.l.b16 %v1716
  %v2321 = vunpack.c.h.b16 %v1716
  %v2322 = vunpack.c.l.b16 %v1717
  %v2323 = vunpack.c.h.b16 %v1717
  %v2324 = vunpack.c.l.b16 %v1718
  %v2325 = vunpack.c.h.b16 %v1718
  %v2326 = vunpack.c.l.b16 %v1719
  %v2327 = vunpack.c.h.b16 %v1719
  %v2328 = vunpack.c.l.b16 %v1720
  %v2329 = vunpack.c.h.b16 %v1720
  %v2330 = vunpack.c.l.b16 %v1721
  %v2331 = vunpack.c.h.b16 %v1721
  %v2332 = vunpack.c.l.b16 %v1722
  %v2333 = vunpack.c.h.b16 %v1722
  %v2334 = vunpack.c.l.b16 %v1723
  %v2335 = vunpack.c.h.b16 %v1723
  %v2336 = vunpack.c.l.b16 %v1724
  %v2337 = vunpack.c.h.b16 %v1724
  %v2338 = vunpack.c.l.b16 %v1725
  %v2339 = vunpack.c.h.b16 %v1725
  %v2340 = vunpack.c.l.b16 %v1726
  %v2341 = vunpack.c.h.b16 %v1726
  %v2342 = vunpack.c.l.b16 %v1727
  %v2343 = vunpack.c.h.b16 %v1727
  %v2344 = vunpack.c.l.b16 %v1728
  %v2345 = vunpack.c.h.b16 %v1728
  %v2346 = vunpack.c.l.b16 %v1729
  %v2347 = vunpack.c.h.b16 %v1729
  %v2348 = vunpack.c.l.b16 %v1730
  %v2349 = vunpack.c.h.b16 %v1730
  %v2350 = vunpack.c.l.b16 %v1731
  %v2351 = vunpack.c.h.b16 %v1731
  %v2352 = vunpack.c.l.b16 %v1732
  %v2353 = vunpack.c.h.b16 %v1732
  %v2354 = vunpack.c.l.b16 %v1733
  %v2355 = vunpack.c.h.b16 %v1733
  %v2356 = vunpack.c.l.b16 %v1734
  %v2357 = vunpack.c.h.b16 %v1734
  %v2358 = vunpack.c.l.b16 %v1735
  %v2359 = vunpack.c.h.b16 %v1735
  %v2360 = vunpack.c.l.b16 %v1736
  %v2361 = vunpack.c.h.b16 %v1736
  %v2362 = vunpack.c.l.b16 %v1737
  %v2363 = vunpack.c.h.b16 %v1737
  %v2364 = vunpack.c.l.b16 %v1738
  %v2365 = vunpack.c.h.b16 %v1738
  %v2366 = vunpack.c.l.b16 %v1739
  %v2367 = vunpack.c.h.b16 %v1739
  %v2368 = vunpack.c.l.b16 %v1740
  %v2369 = vunpack.c.h.b16 %v1740
  %v2370 = vunpack.c.l.b16 %v1741
  %v2371 = vunpack.c.h.b16 %v1741
  %v2372 = vunpack.c.l.b16 %v1742
  %v2373 = vunpack.c.h.b16 %v1742
  %v2374 = vunpack.c.l.b16 %v1743
  %v2375 = vunpack.c.h.b16 %v1743
  %v2376 = vunpack.c.l.b16 %v1744
  %v2377 = vunpack.c.h.b16 %v1744
  %v2378 = vunpack.c.l.b16 %v1745
  %v2379 = vunpack.c.h.b16 %v1745
  %v2380 = vunpack.c.l.b16 %v1746
  %v2381 = vunpack.c.h.b16 %v1746
  %v2382 = vunpack.c.l.b16 %v1747
  %v2383 = vunpack.c.h.b16 %v1747
  %v2384 = vunpack.c.l.b16 %v1748
  %v2385 = vunpack.c.h.b16 %v1748
  %v2386 = vunpack.c.l.b16 %v1749
  %v2387 = vunpack.c.h.b16 %v1749
  %v2388 = vunpack.c.l.b16 %v1750
  %v2389 = vunpack.c.h.b16 %v1750
  %v2390 = vunpack.c.l.b16 %v1751
  %v2391 = vunpack.c.h.b16 %v1751
  %v2392 = vunpack.c.l.b16 %v1752
  %v2393 = vunpack.c.h.b16 %v1752
  %v2394 = vunpack.c.l.b16 %v1753
  %v2395 = vunpack.c.h.b16 %v1753
  %v2396 = vunpack.c.l.b16 %v1754
  %v2397 = vunpack.c.h.b16 %v1754
  %v2398 = vunpack.c.l.b16 %v1755
  %v2399 = vunpack.c.h.b16 %v1755
  %v2400 = vunpack.c.l.b16 %v1756
  %v2401 = vunpack.c.h.b16 %v1756
  %v2402 = vunpack.c.l.b16 %v1757
  %v2403 = vunpack.c.h.b16 %v1757
  %v2404 = vunpack.c.l.b16 %v1758
  %v2405 = vunpack.c.h.b16 %v1758
  %v2406 = vunpack.c.l.b16 %v1759
  %v2407 = vunpack.c.h.b16 %v1759
  %v2408 = vunpack.c.l.b16 %v1760
  %v2409 = vunpack.c.h.b16 %v1760
  %v2410 = vunpack.c.l.b16 %v1761
  %v2411 = vunpack.c.h.b16 %v1761
  %v2412 = vunpack.c.l.b16 %v1762
  %v2413 = vunpack.c.h.b16 %v1762
  %v2414 = vunpack.c.l.b16 %v1763
  %v2415 = vunpack.c.h.b16 %v1763
  %v2416 = vunpack.c.l.b16 %v1764
  %v2417 = vunpack.c.h.b16 %v1764
  %v2418 = vunpack.c.l.b16 %v1765
  %v2419 = vunpack.c.h.b16 %v1765
  %v2420 = vunpack.c.l.b16 %v1766
  %v2421 = vunpack.c.h.b16 %v1766
  %v2422 = vunpack.c.l.b16 %v1767
  %v2423 = vunpack.c.h.b16 %v1767
  %v2424 = vunpack.c.l.b16 %v1768
  %v2425 = vunpack.c.h.b16 %v1768
  %v2426 = vunpack.c.l.b16 %v1769
  %v2427 = vunpack.c.h.b16 %v1769
  %v2428 = vunpack.c.l.b16 %v1770
  %v2429 = vunpack.c.h.b16 %v1770
  %v2430 = vunpack.c.l.b16 %v1771
  %v2431 = vunpack.c.h.b16 %v1771
  %v2432 = vunpack.c.l.b16 %v1772
  %v2433 = vunpack.c.h.b16 %v1772
  %v2434 = vunpack.c.l.b16 %v1773
  %v2435 = vunpack.c.h.b16 %v1773
  %v2436 = vunpack.c.l.b16 %v1774
  %v2437 = vunpack.c.h.b16 %v1774
  %v2438 = vunpack.c.l.b16 %v1775
  %v2439 = vunpack.c.h.b16 %v1775
  %v2440 = vunpack.c.l.b16 %v1776
  %v2441 = vunpack.c.h.b16 %v1776
  %v2442 = vunpack.c.l.b16 %v1777
  %v2443 = vunpack.c.h.b16 %v1777
  %v2444 = vunpack.c.l.b16 %v1778
  %v2445 = vunpack.c.h.b16 %v1778
  %v2446 = vunpack.c.l.b16 %v1779
  %v2447 = vunpack.c.h.b16 %v1779
  %v2448 = vunpack.c.l.b16 %v1780
  %v2449 = vunpack.c.h.b16 %v1780
  %v2450 = vunpack.c.l.b16 %v1781
  %v2451 = vunpack.c.h.b16 %v1781
  %v2452 = vunpack.c.l.b16 %v1782
  %v2453 = vunpack.c.h.b16 %v1782
  %v2454 = vunpack.c.l.b16 %v1783
  %v2455 = vunpack.c.h.b16 %v1783
  %v2456 = vunpack.c.l.b16 %v1784
  %v2457 = vunpack.c.h.b16 %v1784
  %v2458 = vunpack.c.l.b16 %v1785
  %v2459 = vunpack.c.h.b16 %v1785
  %v2460 = vunpack.c.l.b16 %v1786
  %v2461 = vunpack.c.h.b16 %v1786
  %v2462 = vunpack.c.l.b16 %v1787
  %v2463 = vunpack.c.h.b16 %v1787
  %v2464 = vunpack.c.l.b16 %v1788
  %v2465 = vunpack.c.h.b16 %v1788
  %v2466 = vunpack.c.l.b16 %v1789
  %v2467 = vunpack.c.h.b16 %v1789
  %v2468 = vunpack.c.l.b16 %v1790
  %v2469 = vunpack.c.h.b16 %v1790
  %v2470 = vunpack.c.l.b16 %v1791
  %v2471 = vunpack.c.h.b16 %v1791
  %v2472 = vunpack.c.l.b16 %v1792
  %v2473 = vunpack.c.h.b16 %v1792
  %v2474 = vunpack.c.l.b16 %v1793
  %v2475 = vunpack.c.h.b16 %v1793
  %v2476 = vunpack.c.l.b16 %v1794
  %v2477 = vunpack.c.h.b16 %v1794
  %v2478 = vunpack.c.l.b16 %v1795
  %v2479 = vunpack.c.h.b16 %v1795
  %v2480 = vunpack.c.l.b16 %v1796
  %v2481 = vunpack.c.h.b16 %v1796
  %v2482 = vunpack.c.l.b16 %v1797
  %v2483 = vunpack.c.h.b16 %v1797
  %v2484 = vunpack.c.l.b16 %v1798
  %v2485 = vunpack.c.h.b16 %v1798
  %v2486 = vunpack.c.l.b16 %v1799
  %v2487 = vunpack.c.h.b16 %v1799
  %v2488 = vunpack.c.l.b16 %v1800
  %v2489 = vunpack.c.h.b16 %v1800
  %v2490 = vunpack.c.l.b16 %v1801
  %v2491 = vunpack.c.h.b16 %v1801
  %v2492 = vunpack.c.l.b16 %v1802
  %v2493 = vunpack.c.h.b16 %v1802
  %v2494 = vunpack.c.l.b16 %v1803
  %v2495 = vunpack.c.h.b16 %v1803
  %v2496 = vunpack.c.l.b16 %v1804
  %v2497 = vunpack.c.h.b16 %v1804
  %v2498 = vunpack.c.l.b16 %v1805
  %v2499 = vunpack.c.h.b16 %v1805
  %v2500 = vunpack.c.l.b16 %v1806
  %v2501 = vunpack.c.h.b16 %v1806
  %v2502 = vunpack.c.l.b16 %v1807
  %v2503 = vunpack.c.h.b16 %v1807
  %v2504 = vunpack.c.l.b16 %v1808
  %v2505 = vunpack.c.h.b16 %v1808
  %v2506 = vunpack.c.l.b16 %v1809
  %v2507 = vunpack.c.h.b16 %v1809
  %v2508 = vunpack.c.l.b16 %v1810
  %v2509 = vunpack.c.h.b16 %v1810
  %v2510 = vunpack.c.l.b16 %v1811
  %v2511 = vunpack.c.h.b16 %v1811
  %v2512 = vunpack.c.l.b16 %v1812
  %v2513 = vunpack.c.h.b16 %v1812
  %v2514 = vunpack.c.l.b16 %v1813
  %v2515 = vunpack.c.h.b16 %v1813
  %v2516 = vunpack.c.l.b16 %v1814
  %v2517 = vunpack.c.h.b16 %v1814
  %v2518 = vunpack.c.l.b16 %v1815
  %v2519 = vunpack.c.h.b16 %v1815
  %v2520 = vunpack.c.l.b16 %v1816
  %v2521 = vunpack.c.h.b16 %v1816
  %v2522 = vunpack.c.l.b16 %v1817
  %v2523 = vunpack.c.h.b16 %v1817
  %v2524 = vunpack.c.l.b16 %v1818
  %v2525 = vunpack.c.h.b16 %v1818
  %v2526 = vunpack.c.l.b16 %v1819
  %v2527 = vunpack.c.h.b16 %v1819
  %v2528 = vunpack.c.l.b16 %v1820
  %v2529 = vunpack.c.h.b16 %v1820
  %v2530 = vunpack.c.l.b16 %v1821
  %v2531 = vunpack.c.h.b16 %v1821
  %v2532 = vunpack.c.l.b16 %v1822
  %v2533 = vunpack.c.h.b16 %v1822
  %v2534 = vunpack.c.l.b16 %v1823
  %v2535 = vunpack.c.h.b16 %v1823
  %v2536 = vunpack.c.l.b16 %v1824
  %v2537 = vunpack.c.h.b16 %v1824
  %v2538 = vunpack.c.l.b16 %v1825
  %v2539 = vunpack.c.h.b16 %v1825
  %v2540 = vunpack.c.l.b16 %v1826
  %v2541 = vunpack.c.h.b16 %v1826
  %v2542 = vunpack.c.l.b16 %v1827
  %v2543 = vunpack.c.h.b16 %v1827
  %v2544 = vunpack.c.l.b16 %v1828
  %v2545 = vunpack.c.h.b16 %v1828
  %v2546 = vunpack.c.l.b16 %v1829
  %v2547 = vunpack.c.h.b16 %v1829
  %v2548 = vunpack.c.l.b16 %v1830
  %v2549 = vunpack.c.h.b16 %v1830
  %v2550 = vunpack.c.l.b16 %v1831
  %v2551 = vunpack.c.h.b16 %v1831
  %v2552 = vunpack.c.l.b16 %v1832
  %v2553 = vunpack.c.h.b16 %v1832
  %v2554 = vunpack.c.l.b16 %v1833
  %v2555 = vunpack.c.h.b16 %v1833
  %v2556 = vunpack.c.l.b16 %v1834
  %v2557 = vunpack.c.h.b16 %v1834
  %v2558 = vunpack.c.l.b16 %v1835
  %v2559 = vunpack.c.h.b16 %v1835
  %v2560 = vunpack.c.l.b16 %v1836
  %v2561 = vunpack.c.h.b16 %v1836
  %v2562 = vunpack.c.l.b16 %v1837
  %v2563 = vunpack.c.h.b16 %v1837
  %v2564 = vunpack.c.l.b16 %v1838
  %v2565 = vunpack.c.h.b16 %v1838
  %v2566 = vunpack.c.l.b16 %v1839
  %v2567 = vunpack.c.h.b16 %v1839
  %v2568 = vunpack.c.l.b16 %v1840
  %v2569 = vunpack.c.h.b16 %v1840
  %v2570 = vunpack.c.l.b16 %v1841
  %v2571 = vunpack.c.h.b16 %v1841
  %v2572 = vunpack.c.l.b16 %v1842
  %v2573 = vunpack.c.h.b16 %v1842
  %v2574 = vunpack.c.l.b16 %v1843
  %v2575 = vunpack.c.h.b16 %v1843
  %v2576 = vunpack.c.l.b16 %v1844
  %v2577 = vunpack.c.h.b16 %v1844
  %v2578 = vunpack.c.l.b16 %v1845
  %v2579 = vunpack.c.h.b16 %v1845
  %v2580 = vunpack.c.l.b16 %v1846
  %v2581 = vunpack.c.h.b16 %v1846
  %v2582 = vunpack.c.l.b16 %v1847
  %v2583 = vunpack.c.h.b16 %v1847
  %v2584 = vunpack.c.l.b16 %v1848
  %v2585 = vunpack.c.h.b16 %v1848
  %v2586 = vunpack.c.l.b16 %v1849
  %v2587 = vunpack.c.h.b16 %v1849
  %v2588 = vunpack.c.l.b16 %v1850
  %v2589 = vunpack.c.h.b16 %v1850
  %v2590 = vunpack.c.l.b16 %v1851
  %v2591 = vunpack.c.h.b16 %v1851
  %v2592 = vunpack.c.l.b16 %v1852
  %v2593 = vunpack.c.h.b16 %v1852
  %v2594 = vunpack.c.l.b16 %v1853
  %v2595 = vunpack.c.h.b16 %v1853
  %v2596 = vunpack.c.l.b16 %v1854
  %v2597 = vunpack.c.h.b16 %v1854
  %v2598 = vunpack.c.l.b16 %v1855
  %v2599 = vunpack.c.h.b16 %v1855
  %v2600 = vunpack.c.l.b16 %v1856
  %v2601 = vunpack.c.h.b16 %v1856
  %v2602 = vunpack.c.l.b16 %v1857
  %v2603 = vunpack.c.h.b16 %v1857
  %v2604 = vunpack.c.l.b16 %v1858
  %v2605 = vunpack.c.h.b16 %v1858
  %v2606 = vunpack.c.l.b16 %v1859
  %v2607 = vunpack.c.h.b16 %v1859
  %v2608 = vunpack.c.l.b16 %v1860
  %v2609 = vunpack.c.h.b16 %v1860
  %v2610 = vunpack.c.l.b16 %v1861
  %v2611 = vunpack.c.h.b16 %v1861
  %v2612 = vunpack.c.l.b16 %v1862
  %v2613 = vunpack.c.h.b16 %v1862
  %v2614 = vunpack.c.l.b16 %v1863
  %v2615 = vunpack.c.h.b16 %v1863
  %v2616 = vunpack.c.l.b16 %v1864
  %v2617 = vunpack.c.h.b16 %v1864
  %v2618 = vunpack.c.l.b16 %v1865
  %v2619 = vunpack.c.h.b16 %v1865
  %v2620 = vunpack.c.l.b16 %v1866
  %v2621 = vunpack.c.h.b16 %v1866
  %v2622 = vunpack.c.l.b16 %v1867
  %v2623 = vunpack.c.h.b16 %v1867
  %v2624 = vunpack.c.l.b16 %v1868
  %v2625 = vunpack.c.h.b16 %v1868
  %v2626 = vunpack.c.l.b16 %v1869
  %v2627 = vunpack.c.h.b16 %v1869
  %v2628 = vunpack.c.l.b16 %v1870
  %v2629 = vunpack.c.h.b16 %v1870
  %v2630 = vunpack.c.l.b16 %v1871
  %v2631 = vunpack.c.h.b16 %v1871
  %v2632 = vunpack.c.l.b16 %v1872
  %v2633 = vunpack.c.h.b16 %v1872
  %v2634 = vunpack.c.l.b16 %v1873
  %v2635 = vunpack.c.h.b16 %v1873
  %v2636 = vunpack.c.l.b16 %v1874
  %v2637 = vunpack.c.h.b16 %v1874
  %v2638 = vunpack.c.l.b16 %v1875
  %v2639 = vunpack.c.h.b16 %v1875
  %v2640 = vunpack.c.l.b16 %v1876
  %v2641 = vunpack.c.h.b16 %v1876
  %v2642 = vunpack.c.l.b16 %v1877
  %v2643 = vunpack.c.h.b16 %v1877
  %v2644 = vunpack.c.l.b16 %v1878
  %v2645 = vunpack.c.h.b16 %v1878
  %v2646 = vunpack.c.l.b16 %v1879
  %v2647 = vunpack.c.h.b16 %v1879
  %v2648 = vunpack.c.l.b16 %v1880
  %v2649 = vunpack.c.h.b16 %v1880
  %v2650 = vunpack.c.l.b16 %v1881
  %v2651 = vunpack.c.h.b16 %v1881
  %v2652 = vunpack.c.l.b16 %v1882
  %v2653 = vunpack.c.h.b16 %v1882
  %v2654 = vunpack.c.l.b16 %v1883
  %v2655 = vunpack.c.h.b16 %v1883
  %v2656 = vunpack.c.l.b16 %v1884
  %v2657 = vunpack.c.h.b16 %v1884
  %v2658 = vunpack.c.l.b16 %v1885
  %v2659 = vunpack.c.h.b16 %v1885
  %v2660 = vunpack.c.l.b16 %v1886
  %v2661 = vunpack.c.h.b16 %v1886
  %v2662 = vunpack.c.l.b16 %v1887
  %v2663 = vunpack.c.h.b16 %v1887
  %v2664 = vunpack.c.l.b16 %v1888
  %v2665 = vunpack.c.h.b16 %v1888
  %v2666 = vunpack.c.l.b16 %v1889
  %v2667 = vunpack.c.h.b16 %v1889
  %v2668 = vunpack.c.l.b16 %v1890
  %v2669 = vunpack.c.h.b16 %v1890
  %v2670 = vunpack.c.l.b16 %v1891
  %v2671 = vunpack.c.h.b16 %v1891
  %v2672 = vunpack.c.l.b16 %v1892
  %v2673 = vunpack.c.h.b16 %v1892
  %v2674 = vunpack.c.l.b16 %v1893
  %v2675 = vunpack.c.h.b16 %v1893
  %v2676 = vunpack.c.l.b16 %v1894
  %v2677 = vunpack.c.h.b16 %v1894
  %v2678 = vunpack.c.l.b16 %v1895
  %v2679 = vunpack.c.h.b16 %v1895
  %v2680 = vunpack.c.l.b16 %v1896
  %v2681 = vunpack.c.h.b16 %v1896
  %v2682 = vunpack.c.l.b16 %v1897
  %v2683 = vunpack.c.h.b16 %v1897
  %v2684 = vunpack.c.l.b16 %v1898
  %v2685 = vunpack.c.h.b16 %v1898
  %v2686 = vunpack.c.l.b16 %v1899
  %v2687 = vunpack.c.h.b16 %v1899
  %v2688 = vunpack.c.l.b16 %v1900
  %v2689 = vunpack.c.h.b16 %v1900
  %v2690 = vunpack.c.l.b16 %v1901
  %v2691 = vunpack.c.h.b16 %v1901
  %v2692 = vpack.c.b16 %v2184, %v2180
  %v2693 = vpack.c.b16 %v2185, %v2181
  %v2694 = vpack.c.b16 %v2186, %v2182
  %v2695 = vpack.c.b16 %v2187, %v2183
  %v2696 = vpack.c.b16 %v2192, %v2188
  %v2697 = vpack.c.b16 %v2193, %v2189
  %v2698 = vpack.c.b16 %v2194, %v2190
  %v2699 = vpack.c.b16 %v2195, %v2191
  %v2700 = vpack.c.b16 %v2200, %v2196
  %v2701 = vpack.c.b16 %v2201, %v2197
  %v2702 = vpack.c.b16 %v2202, %v2198
  %v2703 = vpack.c.b16 %v2203, %v2199
  %v2704 = vpack.c.b16 %v2208, %v2204
  %v2705 = vpack.c.b16 %v2209, %v2205
  %v2706 = vpack.c.b16 %v2210, %v2206
  %v2707 = vpack.c.b16 %v2211, %v2207
  %v2708 = vpack.c.b16 %v2216, %v2212
  %v2709 = vpack.c.b16 %v2217, %v2213
  %v2710 = vpack.c.b16 %v2218, %v2214
  %v2711 = vpack.c.b16 %v2219, %v2215
  %v2712 = vpack.c.b16 %v2224, %v2220
  %v2713 = vpack.c.b16 %v2225, %v2221
  %v2714 = vpack.c.b16 %v2226, %v2222
  %v2715 = vpack.c.b16 %v2227, %v2223
  %v2716 = vpack.c.b16 %v2232, %v2228
  %v2717 = vpack.c.b16 %v2233, %v2229
  %v2718 = vpack.c.b16 %v2234, %v2230
  %v2719 = vpack.c.b16 %v2235, %v2231
  %v2720 = vpack.c.b16 %v2240, %v2236
  %v2721 = vpack.c.b16 %v2241, %v2237
  %v2722 = vpack.c.b16 %v2242, %v2238
  %v2723 = vpack.c.b16 %v2243, %v2239
  %v2724 = vpack.c.b16 %v2248, %v2244
  %v2725 = vpack.c.b16 %v2249, %v2245
  %v2726 = vpack.c.b16 %v2250, %v2246
  %v2727 = vpack.c.b16 %v2251, %v2247
  %v2728 = vpack.c.b16 %v2256, %v2252
  %v2729 = vpack.c.b16 %v2257, %v2253
  %v2730 = vpack.c.b16 %v2258, %v2254
  %v2731 = vpack.c.b16 %v2259, %v2255
  %v2732 = vpack.c.b16 %v2264, %v2260
  %v2733 = vpack.c.b16 %v2265, %v2261
  %v2734 = vpack.c.b16 %v2266, %v2262
  %v2735 = vpack.c.b16 %v2267, %v2263
  %v2736 = vpack.c.b16 %v2272, %v2268
  %v2737 = vpack.c.b16 %v2273, %v2269
  %v2738 = vpack.c.b16 %v2274, %v2270
  %v2739 = vpack.c.b16 %v2275, %v2271
  %v2740 = vpack.c.b16 %v2280, %v2276
  %v2741 = vpack.c.b16 %v2281, %v2277
  %v2742 = vpack.c.b16 %v2282, %v2278
  %v2743 = vpack.c.b16 %v2283, %v2279
  %v2744 = vpack.c.b16 %v2288, %v2284
  %v2745 = vpack.c.b16 %v2289, %v2285
  %v2746 = vpack.c.b16 %v2290, %v2286
  %v2747 = vpack.c.b16 %v2291, %v2287
  %v2748 = vpack.c.b16 %v2296, %v2292
  %v2749 = vpack.c.b16 %v2297, %v2293
  %v2750 = vpack.c.b16 %v2298, %v2294
  %v2751 = vpack.c.b16 %v2299, %v2295
  %v2752 = vpack.c.b16 %v2304, %v2300
  %v2753 = vpack.c.b16 %v2305, %v2301
  %v2754 = vpack.c.b16 %v2306, %v2302
  %v2755 = vpack.c.b16 %v2307, %v2303
  %v2756 = vpack.c.b16 %v2312, %v2308
  %v2757 = vpack.c.b16 %v2313, %v2309
  %v2758 = vpack.c.b16 %v2314, %v2310
  %v2759 = vpack.c.b16 %v2315, %v2311
  %v2760 = vpack.c.b16 %v2320, %v2316
  %v2761 = vpack.c.b16 %v2321, %v2317
  %v2762 = vpack.c.b16 %v2322, %v2318
  %v2763 = vpack.c.b16 %v2323, %v2319
  %v2764 = vpack.c.b16 %v2328, %v2324
  %v2765 = vpack.c.b16 %v2329, %v2325
  %v2766 = vpack.c.b16 %v2330, %v2326
  %v2767 = vpack.c.b16 %v2331, %v2327
  %v2768 = vpack.c.b16 %v2336, %v2332
  %v2769 = vpack.c.b16 %v2337, %v2333
  %v2770 = vpack.c.b16 %v2338, %v2334
  %v2771 = vpack.c.b16 %v2339, %v2335
  %v2772 = vpack.c.b16 %v2344, %v2340
  %v2773 = vpack.c.b16 %v2345, %v2341
  %v2774 = vpack.c.b16 %v2346, %v2342
  %v2775 = vpack.c.b16 %v2347, %v2343
  %v2776 = vpack.c.b16 %v2352, %v2348
  %v2777 = vpack.c.b16 %v2353, %v2349
  %v2778 = vpack.c.b16 %v2354, %v2350
  %v2779 = vpack.c.b16 %v2355, %v2351
  %v2780 = vpack.c.b16 %v2360, %v2356
  %v2781 = vpack.c.b16 %v2361, %v2357
  %v2782 = vpack.c.b16 %v2362, %v2358
  %v2783 = vpack.c.b16 %v2363, %v2359
  %v2784 = vpack.c.b16 %v2368, %v2364
  %v2785 = vpack.c.b16 %v2369, %v2365
  %v2786 = vpack.c.b16 %v2370, %v2366
  %v2787 = vpack.c.b16 %v2371, %v2367
  %v2788 = vpack.c.b16 %v2376, %v2372
  %v2789 = vpack.c.b16 %v2377, %v2373
  %v2790 = vpack.c.b16 %v2378, %v2374
  %v2791 = vpack.c.b16 %v2379, %v2375
  %v2792 = vpack.c.b16 %v2384, %v2380
  %v2793 = vpack.c.b16 %v2385, %v2381
  %v2794 = vpack.c.b16 %v2386, %v2382
  %v2795 = vpack.c.b16 %v2387, %v2383
  %v2796 = vpack.c.b16 %v2392, %v2388
  %v2797 = vpack.c.b16 %v2393, %v2389
  %v2798 = vpack.c.b16 %v2394, %v2390
  %v2799 = vpack.c.b16 %v2395, %v2391
  %v2800 = vpack.c.b16 %v2400, %v2396
  %v2801 = vpack.c.b16 %v2401, %v2397
  %v2802 = vpack.c.b16 %v2402, %v2398
  %v2803 = vpack.c.b16 %v2403, %v2399
  %v2804 = vpack.c.b16 %v2408, %v2404
  %v2805 = vpack.c.b16 %v2409, %v2405
  %v2806 = vpack.c.b16 %v2410, %v2406
  %v2807 = vpack.c.b16 %v2411, %v2407
  %v2808 = vpack.c.b16 %v2416, %v2412
  %v2809 = vpack.c.b16 %v2417, %v2413
  %v2810 = vpack.c.b16 %v2418, %v2414
  %v2811 = vpack.c.b16 %v2419, %v2415
  %v2812 = vpack.c.b16 %v2424, %v2420
  %v2813 = vpack.c.b16 %v2425, %v2421
  %v2814 = vpack.c.b16 %v2426, %v2422
  %v2815 = vpack.c.b16 %v2427, %v2423
  %v2816 = vpack.c.b16 %v2432, %v2428
  %v2817 = vpack.c.b16 %v2433, %v2429
  %v2818 = vpack.c.b16 %v2434, %v2430
  %v2819 = vpack.c.b16 %v2435, %v2431
  %v2820 = vpack.c.b16 %v2440, %v2436
  %v2821 = vpack.c.b16 %v2441, %v2437
  %v2822 = vpack.c.b16 %v2442, %v2438
  %v2823 = vpack.c.b16 %v2443, %v2439
  %v2824 = vpack.c.b16 %v2448, %v2444
  %v2825 = vpack.c.b16 %v2449, %v2445
  %v2826 = vpack.c.b16 %v2450, %v2446
  %v2827 = vpack.c.b16 %v2451, %v2447
  %v2828 = vpack.c.b16 %v2456, %v2452
  %v2829 = vpack.c.b16 %v2457, %v2453
  %v2830 = vpack.c.b16 %v2458, %v2454
  %v2831 = vpack.c.b16 %v2459, %v2455
  %v2832 = vpack.c.b16 %v2464, %v2460
  %v2833 = vpack.c.b16 %v2465, %v2461
  %v2834 = vpack.c.b16 %v2466, %v2462
  %v2835 = vpack.c.b16 %v2467, %v2463
  %v2836 = vpack.c.b16 %v2472, %v2468
  %v2837 = vpack.c.b16 %v2473, %v2469
  %v2838 = vpack.c.b16 %v2474, %v2470
  %v2839 = vpack.c.b16 %v2475, %v2471
  %v2840 = vpack.c.b16 %v2480, %v2476
  %v2841 = vpack.c.b16 %v2481, %v2477
  %v2842 = vpack.c.b16 %v2482, %v2478
  %v2843 = vpack.c.b16 %v2483, %v2479
  %v2844 = vpack.c.b16 %v2488, %v2484
  %v2845 = vpack.c.b16 %v2489, %v2485
  %v2846 = vpack.c.b16 %v2490, %v2486
  %v2847 = vpack.c.b16 %v2491, %v2487
  %v2848 = vpack.c.b16 %v2496, %v2492
  %v2849 = vpack.c.b16 %v2497, %v2493
  %v2850 = vpack.c.b16 %v2498, %v2494
  %v2851 = vpack.c.b16 %v2499, %v2495
  %v2852 = vpack.c.b16 %v2504, %v2500
  %v2853 = vpack.c.b16 %v2505, %v2501
  %v2854 = vpack.c.b16 %v2506, %v2502
  %v2855 = vpack.c.b16 %v2507, %v2503
  %v2856 = vpack.c.b16 %v2512, %v2508
  %v2857 = vpack.c.b16 %v2513, %v2509
  %v2858 = vpack.c.b16 %v2514, %v2510
  %v2859 = vpack.c.b16 %v2515, %v2511
  %v2860 = vpack.c.b16 %v2520, %v2516
  %v2861 = vpack.c.b16 %v2521, %v2517
  %v2862 = vpack.c.b16 %v2522, %v2518
  %v2863 = vpack.c.b16 %v2523, %v2519
  %v2864 = vpack.c.b16 %v2528, %v2524
  %v2865 = vpack.c.b16 %v2529, %v2525
  %v2866 = vpack.c.b16 %v2530, %v2526
  %v2867 = vpack.c.b16 %v2531, %v2527
  %v2868 = vpack.c.b16 %v2536, %v2532
  %v2869 = vpack.c.b16 %v2537, %v2533
  %v2870 = vpack.c.b16 %v2538, %v2534
  %v2871 = vpack.c.b16 %v2539, %v2535
  %v2872 = vpack.c.b16 %v2544, %v2540
  %v2873 = vpack.c.b16 %v2545, %v2541
  %v2874 = vpack.c.b16 %v2546, %v2542
  %v2875 = vpack.c.b16 %v2547, %v2543
  %v2876 = vpack.c.b16 %v2552, %v2548
  %v2877 = vpack.c.b16 %v2553, %v2549
  %v2878 = vpack.c.b16 %v2554, %v2550
  %v2879 = vpack.c.b16 %v2555, %v2551
  %v2880 = vpack.c.b16 %v2560, %v2556
  %v2881 = vpack.c.b16 %v2561, %v2557
  %v2882 = vpack.c.b16 %v2562, %v2558
  %v2883 = vpack.c.b16 %v2563, %v2559
  %v2884 = vpack.c.b16 %v2568, %v2564
  %v2885 = vpack.c.b16 %v2569, %v2565
  %v2886 = vpack.c.b16 %v2570, %v2566
  %v2887 = vpack.c.b16 %v2571, %v2567
  %v2888 = vpack.c.b16 %v2576, %v2572
  %v2889 = vpack.c.b16 %v2577, %v2573
  %v2890 = vpack.c.b16 %v2578, %v2574
  %v2891 = vpack.c.b16 %v2579, %v2575
  %v2892 = vpack.c.b16 %v2584, %v2580
  %v2893 = vpack.c.b16 %v2585, %v2581
  %v2894 = vpack.c.b16 %v2586, %v2582
  %v2895 = vpack.c.b16 %v2587, %v2583
  %v2896 = vpack.c.b16 %v2592, %v2588
  %v2897 = vpack.c.b16 %v2593, %v2589
  %v2898 = vpack.c.b16 %v2594, %v2590
  %v2899 = vpack.c.b16 %v2595, %v2591
  %v2900 = vpack.c.b16 %v2600, %v2596
  %v2901 = vpack.c.b16 %v2601, %v2597
  %v2902 = vpack.c.b16 %v2602, %v2598
  %v2903 = vpack.c.b16 %v2603, %v2599
  %v2904 = vpack.c.b16 %v2608, %v2604
  %v2905 = vpack.c.b16 %v2609, %v2605
  %v2906 = vpack.c.b16 %v2610, %v2606
  %v2907 = vpack.c.b16 %v2611, %v2607
  %v2908 = vpack.c.b16 %v2616, %v2612
  %v2909 = vpack.c.b16 %v2617, %v2613
  %v2910 = vpack.c.b16 %v2618, %v2614
  %v2911 = vpack.c.b16 %v2619, %v2615
  %v2912 = vpack.c.b16 %v2624, %v2620
  %v2913 = vpack.c.b16 %v2625, %v2621
  %v2914 = vpack.c.b16 %v2626, %v2622
  %v2915 = vpack.c.b16 %v2627, %v2623
  %v2916 = vpack.c.b16 %v2632, %v2628
  %v2917 = vpack.c.b16 %v2633, %v2629
  %v2918 = vpack.c.b16 %v2634, %v2630
  %v2919 = vpack.c.b16 %v2635, %v2631
  %v2920 = vpack.c.b16 %v2640, %v2636
  %v2921 = vpack.c.b16 %v2641, %v2637
  %v2922 = vpack.c.b16 %v2642, %v2638
  %v2923 = vpack.c.b16 %v2643, %v2639
  %v2924 = vpack.c.b16 %v2648, %v2644
  %v2925 = vpack.c.b16 %v2649, %v2645
  %v2926 = vpack.c.b16 %v2650, %v2646
  %v2927 = vpack.c.b16 %v2651, %v2647
  %v2928 = vpack.c.b16 %v2656, %v2652
  %v2929 = vpack.c.b16 %v2657, %v2653
  %v2930 = vpack.c.b16 %v2658, %v2654
  %v2931 = vpack.c.b16 %v2659, %v2655
  %v2932 = vpack.c.b16 %v2664, %v2660
  %v2933 = vpack.c.b16 %v2665, %v2661
  %v2934 = vpack.c.b16 %v2666, %v2662
  %v2935 = vpack.c.b16 %v2667, %v2663
  %v2936 = vpack.c.b16 %v2672, %v2668
  %v2937 = vpack.c.b16 %v2673, %v2669
  %v2938 = vpack.c.b16 %v2674, %v2670
  %v2939 = vpack.c.b16 %v2675, %v2671
  %v2940 = vpack.c.b16 %v2680, %v2676
  %v2941 = vpack.c.b16 %v2681, %v2677
  %v2942 = vpack.c.b16 %v2682, %v2678
  %v2943 = vpack.c.b16 %v2683, %v2679
  %v2944 = vpack.c.b16 %v2688, %v2684
  %v2945 = vpack.c.b16 %v2689, %v2685
  %v2946 = vpack.c.b16 %v2690, %v2686
  %v2947 = vpack.c.b16 %v2691, %v2687
  %3204 = vmatprep.subr.bf16.mxu0 %v2721
  %3205 = vmatpush1.bf16.msra.mxu0 %v2720
  %3206 = vmatprep.subr.bf16.mxu0 %v2717
  %3207 = vmatpush1.bf16.msra.mxu0 %v2716
  %3208 = vmatprep.subr.bf16.mxu0 %v2713
  %3209 = vmatpush1.bf16.msra.mxu0 %v2712
  %3210 = vmatprep.subr.bf16.mxu0 %v2709
  %3211 = vmatpush1.bf16.msra.mxu0 %v2708
  %3212 = vmatprep.subr.bf16.mxu0 %v2705
  %3213 = vmatpush1.bf16.msra.mxu0 %v2704
  %3214 = vmatprep.subr.bf16.mxu0 %v2701
  %3215 = vmatpush1.bf16.msra.mxu0 %v2700
  %3216 = vmatprep.subr.bf16.mxu0 %v2697
  %3217 = vmatpush1.bf16.msra.mxu0 %v2696
  %3218 = vmatprep.subr.bf16.mxu0 %v2693
  %3219 = vmatpush1.bf16.msra.mxu0 %v2692
  %3220 = vmatprep.subr.bf16.mxu0 %v2753
  %3221 = vmatpush2.bf16.msra.mxu0 %v2752
  %3222 = vmatprep.subr.bf16.mxu0 %v2749
  %3223 = vmatpush2.bf16.msra.mxu0 %v2748
  %3224 = vmatprep.subr.bf16.mxu0 %v2745
  %3225 = vmatpush2.bf16.msra.mxu0 %v2744
  %3226 = vmatprep.subr.bf16.mxu0 %v2741
  %3227 = vmatpush2.bf16.msra.mxu0 %v2740
  %3228 = vmatprep.subr.bf16.mxu0 %v2737
  %3229 = vmatpush2.bf16.msra.mxu0 %v2736
  %3230 = vmatprep.subr.bf16.mxu0 %v2733
  %3231 = vmatpush2.bf16.msra.mxu0 %v2732
  %3232 = vmatprep.subr.bf16.mxu0 %v2729
  %3233 = vmatpush2.bf16.msra.mxu0 %v2728
  %3234 = vmatprep.subr.bf16.mxu0 %v2725
  %3235 = vmatpush2.bf16.msra.mxu0 %v2724
  %3236 = vmatprep.mubr.bf16.mxu0 %v1639
  %3237 = vmatmul.mubr.bf16.gmra.mxu0 %v1638
  %v3238 = vpop.f32.mrf.mxu0
  %v3239 = vadd.f32 %v1907, %v3238
  %v3240 = vpop.f32.mrf.mxu0
  %v3241 = vadd.f32 %v1911, %v3240
  %v3242 = vpop.f32.mrf.mxu0
  %v3243 = vpop.f32.mrf.mxu0
  %3244 = vdwg.mxu0
  %3245 = vmatprep.subr.bf16.mxu0 %v2785
  %3246 = vmatpush1.bf16.msra.mxu0 %v2784
  %3247 = vmatprep.subr.bf16.mxu0 %v2781
  %3248 = vmatpush1.bf16.msra.mxu0 %v2780
  %3249 = vmatprep.subr.bf16.mxu0 %v2777
  %3250 = vmatpush1.bf16.msra.mxu0 %v2776
  %3251 = vmatprep.subr.bf16.mxu0 %v2773
  %3252 = vmatpush1.bf16.msra.mxu0 %v2772
  %3253 = vmatprep.subr.bf16.mxu0 %v2769
  %3254 = vmatpush1.bf16.msra.mxu0 %v2768
  %3255 = vmatprep.subr.bf16.mxu0 %v2765
  %3256 = vmatpush1.bf16.msra.mxu0 %v2764
  %3257 = vmatprep.subr.bf16.mxu0 %v2761
  %3258 = vmatpush1.bf16.msra.mxu0 %v2760
  %3259 = vmatprep.subr.bf16.mxu0 %v2757
  %3260 = vmatpush1.bf16.msra.mxu0 %v2756
  %3261 = vmatprep.subr.bf16.mxu0 %v2817
  %3262 = vmatpush2.bf16.msra.mxu0 %v2816
  %3263 = vmatprep.subr.bf16.mxu0 %v2813
  %3264 = vmatpush2.bf16.msra.mxu0 %v2812
  %3265 = vmatprep.subr.bf16.mxu0 %v2809
  %3266 = vmatpush2.bf16.msra.mxu0 %v2808
  %3267 = vmatprep.subr.bf16.mxu0 %v2805
  %3268 = vmatpush2.bf16.msra.mxu0 %v2804
  %3269 = vmatprep.subr.bf16.mxu0 %v2801
  %3270 = vmatpush2.bf16.msra.mxu0 %v2800
  %3271 = vmatprep.subr.bf16.mxu0 %v2797
  %3272 = vmatpush2.bf16.msra.mxu0 %v2796
  %3273 = vmatprep.subr.bf16.mxu0 %v2793
  %3274 = vmatpush2.bf16.msra.mxu0 %v2792
  %3275 = vmatprep.subr.bf16.mxu0 %v2789
  %3276 = vmatpush2.bf16.msra.mxu0 %v2788
  %3277 = vmatprep.mubr.bf16.mxu0 %v1641
  %3278 = vmatmul.mubr.bf16.gmra.mxu0 %v1640
  %v3279 = vpop.f32.mrf.mxu0
  %v3280 = vadd.f32 %v3239, %v3279
  %v3281 = vpop.f32.mrf.mxu0
  %v3282 = vadd.f32 %v3241, %v3281
  %v3283 = vpop.f32.mrf.mxu0
  %v3284 = vpop.f32.mrf.mxu0
  %3285 = vdwg.mxu0
  %3286 = vmatprep.subr.bf16.mxu0 %v2849
  %3287 = vmatpush1.bf16.msra.mxu0 %v2848
  %3288 = vmatprep.subr.bf16.mxu0 %v2845
  %3289 = vmatpush1.bf16.msra.mxu0 %v2844
  %3290 = vmatprep.subr.bf16.mxu0 %v2841
  %3291 = vmatpush1.bf16.msra.mxu0 %v2840
  %3292 = vmatprep.subr.bf16.mxu0 %v2837
  %3293 = vmatpush1.bf16.msra.mxu0 %v2836
  %3294 = vmatprep.subr.bf16.mxu0 %v2833
  %3295 = vmatpush1.bf16.msra.mxu0 %v2832
  %3296 = vmatprep.subr.bf16.mxu0 %v2829
  %3297 = vmatpush1.bf16.msra.mxu0 %v2828
  %3298 = vmatprep.subr.bf16.mxu0 %v2825
  %3299 = vmatpush1.bf16.msra.mxu0 %v2824
  %3300 = vmatprep.subr.bf16.mxu0 %v2821
  %3301 = vmatpush1.bf16.msra.mxu0 %v2820
  %3302 = vmatprep.subr.bf16.mxu0 %v2881
  %3303 = vmatpush2.bf16.msra.mxu0 %v2880
  %3304 = vmatprep.subr.bf16.mxu0 %v2877
  %3305 = vmatpush2.bf16.msra.mxu0 %v2876
  %3306 = vmatprep.subr.bf16.mxu0 %v2873
  %3307 = vmatpush2.bf16.msra.mxu0 %v2872
  %3308 = vmatprep.subr.bf16.mxu0 %v2869
  %3309 = vmatpush2.bf16.msra.mxu0 %v2868
  %3310 = vmatprep.subr.bf16.mxu0 %v2865
  %3311 = vmatpush2.bf16.msra.mxu0 %v2864
  %3312 = vmatprep.subr.bf16.mxu0 %v2861
  %3313 = vmatpush2.bf16.msra.mxu0 %v2860
  %3314 = vmatprep.subr.bf16.mxu0 %v2857
  %3315 = vmatpush2.bf16.msra.mxu0 %v2856
  %3316 = vmatprep.subr.bf16.mxu0 %v2853
  %3317 = vmatpush2.bf16.msra.mxu0 %v2852
  %3318 = vmatprep.mubr.bf16.mxu0 %v1643
  %3319 = vmatmul.mubr.bf16.gmra.mxu0 %v1642
  %v3320 = vpop.f32.mrf.mxu0
  %v3321 = vadd.f32 %v3280, %v3320
  %v3322 = vpop.f32.mrf.mxu0
  %v3323 = vadd.f32 %v3282, %v3322
  %v3324 = vpop.f32.mrf.mxu0
  %v3325 = vpop.f32.mrf.mxu0
  %3326 = vdwg.mxu0
  %3327 = vmatprep.subr.bf16.mxu0 %v2913
  %3328 = vmatpush1.bf16.msra.mxu0 %v2912
  %3329 = vmatprep.subr.bf16.mxu0 %v2909
  %3330 = vmatpush1.bf16.msra.mxu0 %v2908
  %3331 = vmatprep.subr.bf16.mxu0 %v2905
  %3332 = vmatpush1.bf16.msra.mxu0 %v2904
  %3333 = vmatprep.subr.bf16.mxu0 %v2901
  %3334 = vmatpush1.bf16.msra.mxu0 %v2900
  %3335 = vmatprep.subr.bf16.mxu0 %v2897
  %3336 = vmatpush1.bf16.msra.mxu0 %v2896
  %3337 = vmatprep.subr.bf16.mxu0 %v2893
  %3338 = vmatpush1.bf16.msra.mxu0 %v2892
  %3339 = vmatprep.subr.bf16.mxu0 %v2889
  %3340 = vmatpush1.bf16.msra.mxu0 %v2888
  %3341 = vmatprep.subr.bf16.mxu0 %v2885
  %3342 = vmatpush1.bf16.msra.mxu0 %v2884
  %3343 = vmatprep.subr.bf16.mxu0 %v2945
  %3344 = vmatpush2.bf16.msra.mxu0 %v2944
  %3345 = vmatprep.subr.bf16.mxu0 %v2941
  %3346 = vmatpush2.bf16.msra.mxu0 %v2940
  %3347 = vmatprep.subr.bf16.mxu0 %v2937
  %3348 = vmatpush2.bf16.msra.mxu0 %v2936
  %3349 = vmatprep.subr.bf16.mxu0 %v2933
  %3350 = vmatpush2.bf16.msra.mxu0 %v2932
  %3351 = vmatprep.subr.bf16.mxu0 %v2929
  %3352 = vmatpush2.bf16.msra.mxu0 %v2928
  %3353 = vmatprep.subr.bf16.mxu0 %v2925
  %3354 = vmatpush2.bf16.msra.mxu0 %v2924
  %3355 = vmatprep.subr.bf16.mxu0 %v2921
  %3356 = vmatpush2.bf16.msra.mxu0 %v2920
  %3357 = vmatprep.subr.bf16.mxu0 %v2917
  %3358 = vmatpush2.bf16.msra.mxu0 %v2916
  %3359 = vmatprep.mubr.bf16.mxu0 %v1645
  %3360 = vmatmul.mubr.bf16.gmra.mxu0 %v1644
  %v3361 = vpop.f32.mrf.mxu0
  %v3362 = vadd.f32 %v3321, %v3361
  %v3363 = vpop.f32.mrf.mxu0
  %v3364 = vadd.f32 %v3323, %v3363
  %v3365 = vpop.f32.mrf.mxu0
  %v3366 = vpop.f32.mrf.mxu0
  %3367 = vdwg.mxu0
  %3368 = vmatprep.subr.bf16.mxu0 %v2723
  %3369 = vmatpush1.bf16.msra.mxu0 %v2722
  %3370 = vmatprep.subr.bf16.mxu0 %v2719
  %3371 = vmatpush1.bf16.msra.mxu0 %v2718
  %3372 = vmatprep.subr.bf16.mxu0 %v2715
  %3373 = vmatpush1.bf16.msra.mxu0 %v2714
  %3374 = vmatprep.subr.bf16.mxu0 %v2711
  %3375 = vmatpush1.bf16.msra.mxu0 %v2710
  %3376 = vmatprep.subr.bf16.mxu0 %v2707
  %3377 = vmatpush1.bf16.msra.mxu0 %v2706
  %3378 = vmatprep.subr.bf16.mxu0 %v2703
  %3379 = vmatpush1.bf16.msra.mxu0 %v2702
  %3380 = vmatprep.subr.bf16.mxu0 %v2699
  %3381 = vmatpush1.bf16.msra.mxu0 %v2698
  %3382 = vmatprep.subr.bf16.mxu0 %v2695
  %3383 = vmatpush1.bf16.msra.mxu0 %v2694
  %3384 = vmatprep.subr.bf16.mxu0 %v2755
  %3385 = vmatpush2.bf16.msra.mxu0 %v2754
  %3386 = vmatprep.subr.bf16.mxu0 %v2751
  %3387 = vmatpush2.bf16.msra.mxu0 %v2750
  %3388 = vmatprep.subr.bf16.mxu0 %v2747
  %3389 = vmatpush2.bf16.msra.mxu0 %v2746
  %3390 = vmatprep.subr.bf16.mxu0 %v2743
  %3391 = vmatpush2.bf16.msra.mxu0 %v2742
  %3392 = vmatprep.subr.bf16.mxu0 %v2739
  %3393 = vmatpush2.bf16.msra.mxu0 %v2738
  %3394 = vmatprep.subr.bf16.mxu0 %v2735
  %3395 = vmatpush2.bf16.msra.mxu0 %v2734
  %3396 = vmatprep.subr.bf16.mxu0 %v2731
  %3397 = vmatpush2.bf16.msra.mxu0 %v2730
  %3398 = vmatprep.subr.bf16.mxu0 %v2727
  %3399 = vmatpush2.bf16.msra.mxu0 %v2726
  %3400 = vmatprep.mubr.bf16.mxu0 %v1639
  %3401 = vmatmul.mubr.bf16.gmra.mxu0 %v1638
  %v3402 = vpop.f32.mrf.mxu0
  %v3403 = vadd.f32 %v1915, %v3402
  %v3404 = vpop.f32.mrf.mxu0
  %v3405 = vadd.f32 %v1919, %v3404
  %v3406 = vpop.f32.mrf.mxu0
  %v3407 = vpop.f32.mrf.mxu0
  %3408 = vdwg.mxu0
  %3409 = vmatprep.subr.bf16.mxu0 %v2787
  %3410 = vmatpush1.bf16.msra.mxu0 %v2786
  %3411 = vmatprep.subr.bf16.mxu0 %v2783
  %3412 = vmatpush1.bf16.msra.mxu0 %v2782
  %3413 = vmatprep.subr.bf16.mxu0 %v2779
  %3414 = vmatpush1.bf16.msra.mxu0 %v2778
  %3415 = vmatprep.subr.bf16.mxu0 %v2775
  %3416 = vmatpush1.bf16.msra.mxu0 %v2774
  %3417 = vmatprep.subr.bf16.mxu0 %v2771
  %3418 = vmatpush1.bf16.msra.mxu0 %v2770
  %3419 = vmatprep.subr.bf16.mxu0 %v2767
  %3420 = vmatpush1.bf16.msra.mxu0 %v2766
  %3421 = vmatprep.subr.bf16.mxu0 %v2763
  %3422 = vmatpush1.bf16.msra.mxu0 %v2762
  %3423 = vmatprep.subr.bf16.mxu0 %v2759
  %3424 = vmatpush1.bf16.msra.mxu0 %v2758
  %3425 = vmatprep.subr.bf16.mxu0 %v2819
  %3426 = vmatpush2.bf16.msra.mxu0 %v2818
  %3427 = vmatprep.subr.bf16.mxu0 %v2815
  %3428 = vmatpush2.bf16.msra.mxu0 %v2814
  %3429 = vmatprep.subr.bf16.mxu0 %v2811
  %3430 = vmatpush2.bf16.msra.mxu0 %v2810
  %3431 = vmatprep.subr.bf16.mxu0 %v2807
  %3432 = vmatpush2.bf16.msra.mxu0 %v2806
  %3433 = vmatprep.subr.bf16.mxu0 %v2803
  %3434 = vmatpush2.bf16.msra.mxu0 %v2802
  %3435 = vmatprep.subr.bf16.mxu0 %v2799
  %3436 = vmatpush2.bf16.msra.mxu0 %v2798
  %3437 = vmatprep.subr.bf16.mxu0 %v2795
  %3438 = vmatpush2.bf16.msra.mxu0 %v2794
  %3439 = vmatprep.subr.bf16.mxu0 %v2791
  %3440 = vmatpush2.bf16.msra.mxu0 %v2790
  %3441 = vmatprep.mubr.bf16.mxu0 %v1641
  %3442 = vmatmul.mubr.bf16.gmra.mxu0 %v1640
  %v3443 = vpop.f32.mrf.mxu0
  %v3444 = vadd.f32 %v3403, %v3443
  %v3445 = vpop.f32.mrf.mxu0
  %v3446 = vadd.f32 %v3405, %v3445
  %v3447 = vpop.f32.mrf.mxu0
  %v3448 = vpop.f32.mrf.mxu0
  %3449 = vdwg.mxu0
  %3450 = vmatprep.subr.bf16.mxu0 %v2851
  %3451 = vmatpush1.bf16.msra.mxu0 %v2850
  %3452 = vmatprep.subr.bf16.mxu0 %v2847
  %3453 = vmatpush1.bf16.msra.mxu0 %v2846
  %3454 = vmatprep.subr.bf16.mxu0 %v2843
  %3455 = vmatpush1.bf16.msra.mxu0 %v2842
  %3456 = vmatprep.subr.bf16.mxu0 %v2839
  %3457 = vmatpush1.bf16.msra.mxu0 %v2838
  %3458 = vmatprep.subr.bf16.mxu0 %v2835
  %3459 = vmatpush1.bf16.msra.mxu0 %v2834
  %3460 = vmatprep.subr.bf16.mxu0 %v2831
  %3461 = vmatpush1.bf16.msra.mxu0 %v2830
  %3462 = vmatprep.subr.bf16.mxu0 %v2827
  %3463 = vmatpush1.bf16.msra.mxu0 %v2826
  %3464 = vmatprep.subr.bf16.mxu0 %v2823
  %3465 = vmatpush1.bf16.msra.mxu0 %v2822
  %3466 = vmatprep.subr.bf16.mxu0 %v2883
  %3467 = vmatpush2.bf16.msra.mxu0 %v2882
  %3468 = vmatprep.subr.bf16.mxu0 %v2879
  %3469 = vmatpush2.bf16.msra.mxu0 %v2878
  %3470 = vmatprep.subr.bf16.mxu0 %v2875
  %3471 = vmatpush2.bf16.msra.mxu0 %v2874
  %3472 = vmatprep.subr.bf16.mxu0 %v2871
  %3473 = vmatpush2.bf16.msra.mxu0 %v2870
  %3474 = vmatprep.subr.bf16.mxu0 %v2867
  %3475 = vmatpush2.bf16.msra.mxu0 %v2866
  %3476 = vmatprep.subr.bf16.mxu0 %v2863
  %3477 = vmatpush2.bf16.msra.mxu0 %v2862
  %3478 = vmatprep.subr.bf16.mxu0 %v2859
  %3479 = vmatpush2.bf16.msra.mxu0 %v2858
  %3480 = vmatprep.subr.bf16.mxu0 %v2855
  %3481 = vmatpush2.bf16.msra.mxu0 %v2854
  %3482 = vmatprep.mubr.bf16.mxu0 %v1643
  %3483 = vmatmul.mubr.bf16.gmra.mxu0 %v1642
  %v3484 = vpop.f32.mrf.mxu0
  %v3485 = vadd.f32 %v3444, %v3484
  %v3486 = vpop.f32.mrf.mxu0
  %v3487 = vadd.f32 %v3446, %v3486
  %v3488 = vpop.f32.mrf.mxu0
  %v3489 = vpop.f32.mrf.mxu0
  %3490 = vdwg.mxu0
  %3491 = vmatprep.subr.bf16.mxu0 %v2915
  %3492 = vmatpush1.bf16.msra.mxu0 %v2914
  %3493 = vmatprep.subr.bf16.mxu0 %v2911
  %3494 = vmatpush1.bf16.msra.mxu0 %v2910
  %3495 = vmatprep.subr.bf16.mxu0 %v2907
  %3496 = vmatpush1.bf16.msra.mxu0 %v2906
  %3497 = vmatprep.subr.bf16.mxu0 %v2903
  %3498 = vmatpush1.bf16.msra.mxu0 %v2902
  %3499 = vmatprep.subr.bf16.mxu0 %v2899
  %3500 = vmatpush1.bf16.msra.mxu0 %v2898
  %3501 = vmatprep.subr.bf16.mxu0 %v2895
  %3502 = vmatpush1.bf16.msra.mxu0 %v2894
  %3503 = vmatprep.subr.bf16.mxu0 %v2891
  %3504 = vmatpush1.bf16.msra.mxu0 %v2890
  %3505 = vmatprep.subr.bf16.mxu0 %v2887
  %3506 = vmatpush1.bf16.msra.mxu0 %v2886
  %3507 = vmatprep.subr.bf16.mxu0 %v2947
  %3508 = vmatpush2.bf16.msra.mxu0 %v2946
  %3509 = vmatprep.subr.bf16.mxu0 %v2943
  %3510 = vmatpush2.bf16.msra.mxu0 %v2942
  %3511 = vmatprep.subr.bf16.mxu0 %v2939
  %3512 = vmatpush2.bf16.msra.mxu0 %v2938
  %3513 = vmatprep.subr.bf16.mxu0 %v2935
  %3514 = vmatpush2.bf16.msra.mxu0 %v2934
  %3515 = vmatprep.subr.bf16.mxu0 %v2931
  %3516 = vmatpush2.bf16.msra.mxu0 %v2930
  %3517 = vmatprep.subr.bf16.mxu0 %v2927
  %3518 = vmatpush2.bf16.msra.mxu0 %v2926
  %3519 = vmatprep.subr.bf16.mxu0 %v2923
  %3520 = vmatpush2.bf16.msra.mxu0 %v2922
  %3521 = vmatprep.subr.bf16.mxu0 %v2919
  %3522 = vmatpush2.bf16.msra.mxu0 %v2918
  %3523 = vmatprep.mubr.bf16.mxu0 %v1645
  %3524 = vmatmul.mubr.bf16.gmra.mxu0 %v1644
  %v3525 = vpop.f32.mrf.mxu0
  %v3526 = vadd.f32 %v3485, %v3525
  %v3527 = vpop.f32.mrf.mxu0
  %v3528 = vadd.f32 %v3487, %v3527
  %v3529 = vpop.f32.mrf.mxu0
  %v3530 = vpop.f32.mrf.mxu0
  %3531 = vdwg.mxu0
  %vm3532 = vcmp.gt.f32.partialorder %v3362, 0.0
  %vm3533 = vcmp.gt.f32.partialorder %v3364, 0.0
  %vm3534 = vcmp.gt.f32.partialorder %v3526, 0.0
  %vm3535 = vcmp.gt.f32.partialorder %v3528, 0.0
  %v3536 = vmul.f32 %v3362, 0.01
  %v3537 = vmul.f32 %v3364, 0.01
  %v3538 = vmul.f32 %v3526, 0.01
  %v3539 = vmul.f32 %v3528, 0.01
  %v3540 = vsel %vm3532, %v3362, %v3536
  %v3541 = vsel %vm3533, %v3364, %v3537
  %v3542 = vsel %vm3534, %v3526, %v3538
  %v3543 = vsel %vm3535, %v3528, %v3539
  %v3544 = vld [vmem:[%s10] sm:$0xff]
  %v3545 = vld [vmem:[%s10 + $0x8] sm:$0xff]
  %v3546 = vld [vmem:[%s10 + $0x10] sm:$0xff]
  %v3547 = vld [vmem:[%s10 + $0x18] sm:$0xff]
  %v3548 = vld [vmem:[%s10 + $0x20] sm:$0xff]
  %v3549 = vld [vmem:[%s10 + $0x28] sm:$0xff]
  %v3550 = vld [vmem:[%s10 + $0x30] sm:$0xff]
  %v3551 = vld [vmem:[%s10 + $0x38] sm:$0xff]
  %v3552 = vld [vmem:[%s10 + $0x40] sm:$0xff]
  %v3553 = vld [vmem:[%s10 + $0x48] sm:$0xff]
  %v3554 = vld [vmem:[%s10 + $0x50] sm:$0xff]
  %v3555 = vld [vmem:[%s10 + $0x58] sm:$0xff]
  %v3556 = vld [vmem:[%s10 + $0x60] sm:$0xff]
  %v3557 = vld [vmem:[%s10 + $0x68] sm:$0xff]
  %v3558 = vld [vmem:[%s10 + $0x70] sm:$0xff]
  %v3559 = vld [vmem:[%s10 + $0x78] sm:$0xff]
  %v3560 = vld [vmem:[%s10 + $0x80] sm:$0xff]
  %v3561 = vld [vmem:[%s10 + $0x88] sm:$0xff]
  %v3562 = vld [vmem:[%s10 + $0x90] sm:$0xff]
  %v3563 = vld [vmem:[%s10 + $0x98] sm:$0xff]
  %v3564 = vld [vmem:[%s10 + $0xa0] sm:$0xff]
  %v3565 = vld [vmem:[%s10 + $0xa8] sm:$0xff]
  %v3566 = vld [vmem:[%s10 + $0xb0] sm:$0xff]
  %v3567 = vld [vmem:[%s10 + $0xb8] sm:$0xff]
  %v3568 = vld [vmem:[%s10 + $0xc0] sm:$0xff]
  %v3569 = vld [vmem:[%s10 + $0xc8] sm:$0xff]
  %v3570 = vld [vmem:[%s10 + $0xd0] sm:$0xff]
  %v3571 = vld [vmem:[%s10 + $0xd8] sm:$0xff]
  %v3572 = vld [vmem:[%s10 + $0xe0] sm:$0xff]
  %v3573 = vld [vmem:[%s10 + $0xe8] sm:$0xff]
  %v3574 = vld [vmem:[%s10 + $0xf0] sm:$0xff]
  %v3575 = vld [vmem:[%s10 + $0xf8] sm:$0xff]
  %v3576 = vld [vmem:[%s10 + $0x100] sm:$0xff]
  %v3577 = vld [vmem:[%s10 + $0x108] sm:$0xff]
  %v3578 = vld [vmem:[%s10 + $0x110] sm:$0xff]
  %v3579 = vld [vmem:[%s10 + $0x118] sm:$0xff]
  %v3580 = vld [vmem:[%s10 + $0x120] sm:$0xff]
  %v3581 = vld [vmem:[%s10 + $0x128] sm:$0xff]
  %v3582 = vld [vmem:[%s10 + $0x130] sm:$0xff]
  %v3583 = vld [vmem:[%s10 + $0x138] sm:$0xff]
  %v3584 = vld [vmem:[%s10 + $0x140] sm:$0xff]
  %v3585 = vld [vmem:[%s10 + $0x148] sm:$0xff]
  %v3586 = vld [vmem:[%s10 + $0x150] sm:$0xff]
  %v3587 = vld [vmem:[%s10 + $0x158] sm:$0xff]
  %v3588 = vld [vmem:[%s10 + $0x160] sm:$0xff]
  %v3589 = vld [vmem:[%s10 + $0x168] sm:$0xff]
  %v3590 = vld [vmem:[%s10 + $0x170] sm:$0xff]
  %v3591 = vld [vmem:[%s10 + $0x178] sm:$0xff]
  %v3592 = vld [vmem:[%s10 + $0x180] sm:$0xff]
  %v3593 = vld [vmem:[%s10 + $0x188] sm:$0xff]
  %v3594 = vld [vmem:[%s10 + $0x190] sm:$0xff]
  %v3595 = vld [vmem:[%s10 + $0x198] sm:$0xff]
  %v3596 = vld [vmem:[%s10 + $0x1a0] sm:$0xff]
  %v3597 = vld [vmem:[%s10 + $0x1a8] sm:$0xff]
  %v3598 = vld [vmem:[%s10 + $0x1b0] sm:$0xff]
  %v3599 = vld [vmem:[%s10 + $0x1b8] sm:$0xff]
  %v3600 = vld [vmem:[%s10 + $0x1c0] sm:$0xff]
  %v3601 = vld [vmem:[%s10 + $0x1c8] sm:$0xff]
  %v3602 = vld [vmem:[%s10 + $0x1d0] sm:$0xff]
  %v3603 = vld [vmem:[%s10 + $0x1d8] sm:$0xff]
  %v3604 = vld [vmem:[%s10 + $0x1e0] sm:$0xff]
  %v3605 = vld [vmem:[%s10 + $0x1e8] sm:$0xff]
  %v3606 = vld [vmem:[%s10 + $0x1f0] sm:$0xff]
  %v3607 = vld [vmem:[%s10 + $0x1f8] sm:$0xff]
  %v3608 = vld [vmem:[%s10 + $0x200] sm:$0xff]
  %v3609 = vld [vmem:[%s10 + $0x208] sm:$0xff]
  %v3610 = vld [vmem:[%s10 + $0x210] sm:$0xff]
  %v3611 = vld [vmem:[%s10 + $0x218] sm:$0xff]
  %v3612 = vld [vmem:[%s10 + $0x220] sm:$0xff]
  %v3613 = vld [vmem:[%s10 + $0x228] sm:$0xff]
  %v3614 = vld [vmem:[%s10 + $0x230] sm:$0xff]
  %v3615 = vld [vmem:[%s10 + $0x238] sm:$0xff]
  %v3616 = vld [vmem:[%s10 + $0x240] sm:$0xff]
  %v3617 = vld [vmem:[%s10 + $0x248] sm:$0xff]
  %v3618 = vld [vmem:[%s10 + $0x250] sm:$0xff]
  %v3619 = vld [vmem:[%s10 + $0x258] sm:$0xff]
  %v3620 = vld [vmem:[%s10 + $0x260] sm:$0xff]
  %v3621 = vld [vmem:[%s10 + $0x268] sm:$0xff]
  %v3622 = vld [vmem:[%s10 + $0x270] sm:$0xff]
  %v3623 = vld [vmem:[%s10 + $0x278] sm:$0xff]
  %v3624 = vld [vmem:[%s10 + $0x280] sm:$0xff]
  %v3625 = vld [vmem:[%s10 + $0x288] sm:$0xff]
  %v3626 = vld [vmem:[%s10 + $0x290] sm:$0xff]
  %v3627 = vld [vmem:[%s10 + $0x298] sm:$0xff]
  %v3628 = vld [vmem:[%s10 + $0x2a0] sm:$0xff]
  %v3629 = vld [vmem:[%s10 + $0x2a8] sm:$0xff]
  %v3630 = vld [vmem:[%s10 + $0x2b0] sm:$0xff]
  %v3631 = vld [vmem:[%s10 + $0x2b8] sm:$0xff]
  %v3632 = vld [vmem:[%s10 + $0x2c0] sm:$0xff]
  %v3633 = vld [vmem:[%s10 + $0x2c8] sm:$0xff]
  %v3634 = vld [vmem:[%s10 + $0x2d0] sm:$0xff]
  %v3635 = vld [vmem:[%s10 + $0x2d8] sm:$0xff]
  %v3636 = vld [vmem:[%s10 + $0x2e0] sm:$0xff]
  %v3637 = vld [vmem:[%s10 + $0x2e8] sm:$0xff]
  %v3638 = vld [vmem:[%s10 + $0x2f0] sm:$0xff]
  %v3639 = vld [vmem:[%s10 + $0x2f8] sm:$0xff]
  %v3640 = vld [vmem:[%s10 + $0x300] sm:$0xff]
  %v3641 = vld [vmem:[%s10 + $0x308] sm:$0xff]
  %v3642 = vld [vmem:[%s10 + $0x310] sm:$0xff]
  %v3643 = vld [vmem:[%s10 + $0x318] sm:$0xff]
  %v3644 = vld [vmem:[%s10 + $0x320] sm:$0xff]
  %v3645 = vld [vmem:[%s10 + $0x328] sm:$0xff]
  %v3646 = vld [vmem:[%s10 + $0x330] sm:$0xff]
  %v3647 = vld [vmem:[%s10 + $0x338] sm:$0xff]
  %v3648 = vld [vmem:[%s10 + $0x340] sm:$0xff]
  %v3649 = vld [vmem:[%s10 + $0x348] sm:$0xff]
  %v3650 = vld [vmem:[%s10 + $0x350] sm:$0xff]
  %v3651 = vld [vmem:[%s10 + $0x358] sm:$0xff]
  %v3652 = vld [vmem:[%s10 + $0x360] sm:$0xff]
  %v3653 = vld [vmem:[%s10 + $0x368] sm:$0xff]
  %v3654 = vld [vmem:[%s10 + $0x370] sm:$0xff]
  %v3655 = vld [vmem:[%s10 + $0x378] sm:$0xff]
  %v3656 = vld [vmem:[%s10 + $0x380] sm:$0xff]
  %v3657 = vld [vmem:[%s10 + $0x388] sm:$0xff]
  %v3658 = vld [vmem:[%s10 + $0x390] sm:$0xff]
  %v3659 = vld [vmem:[%s10 + $0x398] sm:$0xff]
  %v3660 = vld [vmem:[%s10 + $0x3a0] sm:$0xff]
  %v3661 = vld [vmem:[%s10 + $0x3a8] sm:$0xff]
  %v3662 = vld [vmem:[%s10 + $0x3b0] sm:$0xff]
  %v3663 = vld [vmem:[%s10 + $0x3b8] sm:$0xff]
  %v3664 = vld [vmem:[%s10 + $0x3c0] sm:$0xff]
  %v3665 = vld [vmem:[%s10 + $0x3c8] sm:$0xff]
  %v3666 = vld [vmem:[%s10 + $0x3d0] sm:$0xff]
  %v3667 = vld [vmem:[%s10 + $0x3d8] sm:$0xff]
  %v3668 = vld [vmem:[%s10 + $0x3e0] sm:$0xff]
  %v3669 = vld [vmem:[%s10 + $0x3e8] sm:$0xff]
  %v3670 = vld [vmem:[%s10 + $0x3f0] sm:$0xff]
  %v3671 = vld [vmem:[%s10 + $0x3f8] sm:$0xff]
  %v3672 = vld [vmem:[%s11] sm:$0x3]
  %v3674 = vlaneseq
  %v3675 = vshrl.u32 %v3674, 7
  %v3676 = vsub.s32 0, %v3675
  %v3677 = vrot.slane %v3672, %v3676
  %v3678 = vlaneseq
  %v3679 = vshrl.u32 %v3678, 7
  %v3680 = vsub.s32 1, %v3679
  %v3681 = vrot.slane %v3672, %v3680
  %3684 = vmatprep.subr.mxu0 %v3575
  %3685 = vmatpush1.msra.mxu0 %v3574
  %3686 = vmatprep.subr.mxu0 %v3573
  %3687 = vmatpush1.msra.mxu0 %v3572
  %3688 = vmatprep.subr.mxu0 %v3571
  %3689 = vmatpush1.msra.mxu0 %v3570
  %3690 = vmatprep.subr.mxu0 %v3569
  %3691 = vmatpush1.msra.mxu0 %v3568
  %3692 = vmatprep.subr.mxu0 %v3567
  %3693 = vmatpush1.msra.mxu0 %v3566
  %3694 = vmatprep.subr.mxu0 %v3565
  %3695 = vmatpush1.msra.mxu0 %v3564
  %3696 = vmatprep.subr.mxu0 %v3563
  %3697 = vmatpush1.msra.mxu0 %v3562
  %3698 = vmatprep.subr.mxu0 %v3561
  %3699 = vmatpush1.msra.mxu0 %v3560
  %3700 = vmatprep.subr.mxu0 %v3559
  %3701 = vmatpush1.msra.mxu0 %v3558
  %3702 = vmatprep.subr.mxu0 %v3557
  %3703 = vmatpush1.msra.mxu0 %v3556
  %3704 = vmatprep.subr.mxu0 %v3555
  %3705 = vmatpush1.msra.mxu0 %v3554
  %3706 = vmatprep.subr.mxu0 %v3553
  %3707 = vmatpush1.msra.mxu0 %v3552
  %3708 = vmatprep.subr.mxu0 %v3551
  %3709 = vmatpush1.msra.mxu0 %v3550
  %3710 = vmatprep.subr.mxu0 %v3549
  %3711 = vmatpush1.msra.mxu0 %v3548
  %3712 = vmatprep.subr.mxu0 %v3547
  %3713 = vmatpush1.msra.mxu0 %v3546
  %3714 = vmatprep.subr.mxu0 %v3545
  %3715 = vmatpush1.msra.mxu0 %v3544
  %3716 = vmatprep.subr.mxu0 %v3607
  %3717 = vmatpush2.msra.mxu0 %v3606
  %3718 = vmatprep.subr.mxu0 %v3605
  %3719 = vmatpush2.msra.mxu0 %v3604
  %3720 = vmatprep.subr.mxu0 %v3603
  %3721 = vmatpush2.msra.mxu0 %v3602
  %3722 = vmatprep.subr.mxu0 %v3601
  %3723 = vmatpush2.msra.mxu0 %v3600
  %3724 = vmatprep.subr.mxu0 %v3599
  %3725 = vmatpush2.msra.mxu0 %v3598
  %3726 = vmatprep.subr.mxu0 %v3597
  %3727 = vmatpush2.msra.mxu0 %v3596
  %3728 = vmatprep.subr.mxu0 %v3595
  %3729 = vmatpush2.msra.mxu0 %v3594
  %3730 = vmatprep.subr.mxu0 %v3593
  %3731 = vmatpush2.msra.mxu0 %v3592
  %3732 = vmatprep.subr.mxu0 %v3591
  %3733 = vmatpush2.msra.mxu0 %v3590
  %3734 = vmatprep.subr.mxu0 %v3589
  %3735 = vmatpush2.msra.mxu0 %v3588
  %3736 = vmatprep.subr.mxu0 %v3587
  %3737 = vmatpush2.msra.mxu0 %v3586
  %3738 = vmatprep.subr.mxu0 %v3585
  %3739 = vmatpush2.msra.mxu0 %v3584
  %3740 = vmatprep.subr.mxu0 %v3583
  %3741 = vmatpush2.msra.mxu0 %v3582
  %3742 = vmatprep.subr.mxu0 %v3581
  %3743 = vmatpush2.msra.mxu0 %v3580
  %3744 = vmatprep.subr.mxu0 %v3579
  %3745 = vmatpush2.msra.mxu0 %v3578
  %3746 = vmatprep.subr.mxu0 %v3577
  %3747 = vmatpush2.msra.mxu0 %v3576
  %3748 = vmatprep.mubr.f32.mxu0 %v3541
  %3749 = vmatmul.mubr.f32.gmra.mxu0 %v3540
  %v3750 = vpop.f32.mrf.mxu0
  %v3751 = vadd.f32 %v3677, %v3750
  %v3752 = vpop.f32.mrf.mxu0
  %v3753 = vadd.f32 %v3681, %v3752
  %3754 = vdwg.mxu0
  %3755 = vmatprep.subr.mxu0 %v3639
  %3756 = vmatpush1.msra.mxu0 %v3638
  %3757 = vmatprep.subr.mxu0 %v3637
  %3758 = vmatpush1.msra.mxu0 %v3636
  %3759 = vmatprep.subr.mxu0 %v3635
  %3760 = vmatpush1.msra.mxu0 %v3634
  %3761 = vmatprep.subr.mxu0 %v3633
  %3762 = vmatpush1.msra.mxu0 %v3632
  %3763 = vmatprep.subr.mxu0 %v3631
  %3764 = vmatpush1.msra.mxu0 %v3630
  %3765 = vmatprep.subr.mxu0 %v3629
  %3766 = vmatpush1.msra.mxu0 %v3628
  %3767 = vmatprep.subr.mxu0 %v3627
  %3768 = vmatpush1.msra.mxu0 %v3626
  %3769 = vmatprep.subr.mxu0 %v3625
  %3770 = vmatpush1.msra.mxu0 %v3624
  %3771 = vmatprep.subr.mxu0 %v3623
  %3772 = vmatpush1.msra.mxu0 %v3622
  %3773 = vmatprep.subr.mxu0 %v3621
  %3774 = vmatpush1.msra.mxu0 %v3620
  %3775 = vmatprep.subr.mxu0 %v3619
  %3776 = vmatpush1.msra.mxu0 %v3618
  %3777 = vmatprep.subr.mxu0 %v3617
  %3778 = vmatpush1.msra.mxu0 %v3616
  %3779 = vmatprep.subr.mxu0 %v3615
  %3780 = vmatpush1.msra.mxu0 %v3614
  %3781 = vmatprep.subr.mxu0 %v3613
  %3782 = vmatpush1.msra.mxu0 %v3612
  %3783 = vmatprep.subr.mxu0 %v3611
  %3784 = vmatpush1.msra.mxu0 %v3610
  %3785 = vmatprep.subr.mxu0 %v3609
  %3786 = vmatpush1.msra.mxu0 %v3608
  %3787 = vmatprep.subr.mxu0 %v3671
  %3788 = vmatpush2.msra.mxu0 %v3670
  %3789 = vmatprep.subr.mxu0 %v3669
  %3790 = vmatpush2.msra.mxu0 %v3668
  %3791 = vmatprep.subr.mxu0 %v3667
  %3792 = vmatpush2.msra.mxu0 %v3666
  %3793 = vmatprep.subr.mxu0 %v3665
  %3794 = vmatpush2.msra.mxu0 %v3664
  %3795 = vmatprep.subr.mxu0 %v3663
  %3796 = vmatpush2.msra.mxu0 %v3662
  %3797 = vmatprep.subr.mxu0 %v3661
  %3798 = vmatpush2.msra.mxu0 %v3660
  %3799 = vmatprep.subr.mxu0 %v3659
  %3800 = vmatpush2.msra.mxu0 %v3658
  %3801 = vmatprep.subr.mxu0 %v3657
  %3802 = vmatpush2.msra.mxu0 %v3656
  %3803 = vmatprep.subr.mxu0 %v3655
  %3804 = vmatpush2.msra.mxu0 %v3654
  %3805 = vmatprep.subr.mxu0 %v3653
  %3806 = vmatpush2.msra.mxu0 %v3652
  %3807 = vmatprep.subr.mxu0 %v3651
  %3808 = vmatpush2.msra.mxu0 %v3650
  %3809 = vmatprep.subr.mxu0 %v3649
  %3810 = vmatpush2.msra.mxu0 %v3648
  %3811 = vmatprep.subr.mxu0 %v3647
  %3812 = vmatpush2.msra.mxu0 %v3646
  %3813 = vmatprep.subr.mxu0 %v3645
  %3814 = vmatpush2.msra.mxu0 %v3644
  %3815 = vmatprep.subr.mxu0 %v3643
  %3816 = vmatpush2.msra.mxu0 %v3642
  %3817 = vmatprep.subr.mxu0 %v3641
  %3818 = vmatpush2.msra.mxu0 %v3640
  %3819 = vmatprep.mubr.f32.mxu0 %v3543
  %3820 = vmatmul.mubr.f32.gmra.mxu0 %v3542
  %v3821 = vpop.f32.mrf.mxu0
  %v3822 = vadd.f32 %v3751, %v3821
  %v3823 = vpop.f32.mrf.mxu0
  %v3824 = vadd.f32 %v3753, %v3823
  %3825 = vdwg.mxu0
  %3826 = vst.msk [vmem:[%s21] sm:$0xff] %vm118, %v3822
  %3827 = vst.msk [vmem:[%s22] sm:$0xff] %vm118, %v3824
  %v3828 = vld [vmem:[%s1] sm:$0xff]
  %v3829 = vmul.f32 %v3824, 0.5
  %v3830 = vmul.f32 %v3829, 1.442695
  %v3831 = vpow.pop %v3830
  %v3832 = vmul.f32 %v3828, %v3831
  %v3833 = vadd.f32 %v3822, %v3832
  %3835 = vrot.lane.b32.xlu0 %v3833, 32
  %v3836 = vpop.permute.xlu0 %3835
  %vm3838 = vcmask 261120
  %v3839 = vsel %vm3838, %v1211, %v3836
  %v3840 = vld [vmem:[%s12] sm:$0xff]
  %v3841 = vld [vmem:[%s12 + $0x8] sm:$0xf]
  %v3842 = vld [vmem:[%s13] sm:$0xff]
  %v3843 = vld [vmem:[%s13 + $0x8] sm:$0xf]
  %v3844 = vld [vmem:[%s13 + $0xc] sm:$0xff]
  %v3845 = vld [vmem:[%s13 + $0x14] sm:$0xf]
  %v3846 = vld [vmem:[%s13 + $0x18] sm:$0xff]
  %v3847 = vld [vmem:[%s13 + $0x20] sm:$0xf]
  %v3848 = vld [vmem:[%s13 + $0x24] sm:$0xff]
  %v3849 = vld [vmem:[%s13 + $0x2c] sm:$0xf]
  %v3850 = vld [vmem:[%s13 + $0x30] sm:$0xff]
  %v3851 = vld [vmem:[%s13 + $0x38] sm:$0xf]
  %v3852 = vld [vmem:[%s13 + $0x3c] sm:$0xff]
  %v3853 = vld [vmem:[%s13 + $0x44] sm:$0xf]
  %v3854 = vld [vmem:[%s14] sm:$0x7]
  %v3856 = vlaneseq
  %v3857 = vshrl.u32 %v3856, 7
  %v3858 = vsub.s32 0, %v3857
  %v3859 = vrot.slane %v3854, %v3858
  %v3860 = vlaneseq
  %v3861 = vshrl.u32 %v3860, 7
  %v3862 = vsub.s32 1, %v3861
  %v3863 = vrot.slane %v3854, %v3862
  %v3864 = vlaneseq
  %v3865 = vshrl.u32 %v3864, 7
  %v3866 = vsub.s32 2, %v3865
  %v3867 = vrot.slane %v3854, %v3866
  %v3871 = vld [vmem:[%s15] sm:$0x1]
  %v3873 = vlaneseq
  %v3874 = vshrl.u32 %v3873, 7
  %v3875 = vsub.s32 0, %v3874
  %v3876 = vrot.slane %v3871, %v3875
  %v3878 = vld [vmem:[%s16] sm:$0xf]
  %v3879 = vld [vmem:[%s16 + $0x4] sm:$0xf]
  %v3880 = vld [vmem:[%s16 + $0x8] sm:$0xf]
  %v3881 = vld [vmem:[%s16 + $0xc] sm:$0xf]
  %v3882 = vld [vmem:[%s16 + $0x10] sm:$0xf]
  %v3883 = vld [vmem:[%s16 + $0x14] sm:$0xf]
  %v3884 = vld [vmem:[%s18] sm:$0xf]
  %v3885 = vld [vmem:[%s18 + $0x4] sm:$0xf]
  %v3886 = vld [vmem:[%s18 + $0x8] sm:$0xf]
  %v3887 = vld [vmem:[%s18 + $0xc] sm:$0xf]
  %v3888 = vld [vmem:[%s18 + $0x10] sm:$0xf]
  %v3889 = vld [vmem:[%s18 + $0x14] sm:$0xf]
  %v3890 = vld [vmem:[%s18 + $0x18] sm:$0xf]
  %v3891 = vld [vmem:[%s18 + $0x1c] sm:$0xf]
  %v3892 = vld [vmem:[%s17] sm:$0x1]
  %v3894 = vlaneseq
  %v3895 = vshrl.u32 %v3894, 7
  %v3896 = vsub.s32 0, %v3895
  %v3897 = vrot.slane %v3892, %v3896
  %v3899 = vld [vmem:[%s19] sm:$0x1]
  %v3901 = vlaneseq
  %v3902 = vshrl.u32 %v3901, 7
  %v3903 = vsub.s32 0, %v3902
  %v3904 = vrot.slane %v3899, %v3903
  %v3906 = vpack.c.bf16 %v76, %v76
  %v3909 = vunpack.c.l.b16 %v3840
  %v3910 = vunpack.c.h.b16 %v3840
  %v3911 = vunpack.c.l.b16 %v3841
  %v3912 = vpack.c.b16 %v3909, %v3909
  %v3913 = vpack.c.b16 %v3910, %v3910
  %v3914 = vpack.c.b16 %v3911, %v3911
  %vm3915 = vcmask 64512
  %v3917 = vsel %vm3915, %v3906, 0
  %vm3919 = vcmask 1043456
  %v3921 = vsel %vm3919, %v3912, 0
  %v3924 = vsel %vm3919, %v3913, 0
  %v3927 = vsel %vm3919, %v3914, 0
  %3929 = vmatprep.subr.bf16.mxu0 0
  %3930 = vmatpush1.bf16.msra.mxu0 0
  %3931 = vmatprep.subr.bf16.mxu0 0
  %3932 = vmatpush1.bf16.msra.mxu0 0
  %3933 = vmatprep.subr.bf16.mxu0 0
  %3934 = vmatpush1.bf16.msra.mxu0 0
  %3935 = vmatprep.subr.bf16.mxu0 0
  %3936 = vmatpush1.bf16.msra.mxu0 0
  %3937 = vmatprep.subr.bf16.mxu0 0
  %3938 = vmatpush1.bf16.msra.mxu0 0
  %3939 = vmatprep.subr.bf16.mxu0 0
  %3940 = vmatpush1.bf16.msra.mxu0 0
  %3941 = vmatprep.subr.bf16.mxu0 0
  %3942 = vmatpush1.bf16.msra.mxu0 0
  %3943 = vmatprep.subr.bf16.mxu0 %v3924
  %3944 = vmatpush1.bf16.msra.mxu0 %v3921
  %3945 = vmatprep.subr.bf16.mxu0 0
  %3946 = vmatpush2.bf16.msra.mxu0 0
  %3947 = vmatprep.subr.bf16.mxu0 0
  %3948 = vmatpush2.bf16.msra.mxu0 0
  %3949 = vmatprep.subr.bf16.mxu0 0
  %3950 = vmatpush2.bf16.msra.mxu0 0
  %3951 = vmatprep.subr.bf16.mxu0 0
  %3952 = vmatpush2.bf16.msra.mxu0 0
  %3953 = vmatprep.subr.bf16.mxu0 0
  %3954 = vmatpush2.bf16.msra.mxu0 0
  %3955 = vmatprep.subr.bf16.mxu0 0
  %3956 = vmatpush2.bf16.msra.mxu0 0
  %3957 = vmatprep.subr.bf16.mxu0 0
  %3958 = vmatpush2.bf16.msra.mxu0 0
  %3959 = vmatprep.subr.bf16.mxu0 0
  %3960 = vmatpush2.bf16.msra.mxu0 0
  %3961 = vmatprep.mubr.bf16.mxu0 0
  %3962 = vmatmul.mubr.bf16.gmra.mxu0 %v3917
  %v3963 = vpop.f32.mrf.mxu0
  %v3964 = vadd.f32 %v3859, %v3963
  %v3965 = vpop.f32.mrf.mxu0
  %v3966 = vadd.f32 %v3863, %v3965
  %v3967 = vpop.f32.mrf.mxu0
  %v3968 = vpop.f32.mrf.mxu0
  %3969 = vdwg.mxu0
  %3970 = vmatprep.subr.bf16.mxu0 0
  %3971 = vmatpush1.bf16.msra.mxu0 0
  %3972 = vmatprep.subr.bf16.mxu0 0
  %3973 = vmatpush1.bf16.msra.mxu0 0
  %3974 = vmatprep.subr.bf16.mxu0 0
  %3975 = vmatpush1.bf16.msra.mxu0 0
  %3976 = vmatprep.subr.bf16.mxu0 0
  %3977 = vmatpush1.bf16.msra.mxu0 0
  %3978 = vmatprep.subr.bf16.mxu0 0
  %3979 = vmatpush1.bf16.msra.mxu0 0
  %3980 = vmatprep.subr.bf16.mxu0 0
  %3981 = vmatpush1.bf16.msra.mxu0 0
  %3982 = vmatprep.subr.bf16.mxu0 0
  %3983 = vmatpush1.bf16.msra.mxu0 0
  %3984 = vmatprep.subr.bf16.mxu0 0
  %3985 = vmatpush1.bf16.msra.mxu0 %v3927
  %3986 = vmatprep.subr.bf16.mxu0 0
  %3987 = vmatpush2.bf16.msra.mxu0 0
  %3988 = vmatprep.subr.bf16.mxu0 0
  %3989 = vmatpush2.bf16.msra.mxu0 0
  %3990 = vmatprep.subr.bf16.mxu0 0
  %3991 = vmatpush2.bf16.msra.mxu0 0
  %3992 = vmatprep.subr.bf16.mxu0 0
  %3993 = vmatpush2.bf16.msra.mxu0 0
  %3994 = vmatprep.subr.bf16.mxu0 0
  %3995 = vmatpush2.bf16.msra.mxu0 0
  %3996 = vmatprep.subr.bf16.mxu0 0
  %3997 = vmatpush2.bf16.msra.mxu0 0
  %3998 = vmatprep.subr.bf16.mxu0 0
  %3999 = vmatpush2.bf16.msra.mxu0 0
  %4000 = vmatprep.subr.bf16.mxu0 0
  %4001 = vmatpush2.bf16.msra.mxu0 0
  %4002 = vmatprep.mubr.bf16.mxu0 0
  %4003 = vmatmul.mubr.bf16.gmra.mxu0 %v3917
  %v4004 = vpop.f32.mrf.mxu0
  %v4005 = vadd.f32 %v3867, %v4004
  %v4006 = vpop.f32.mrf.mxu0
  %v4007 = vpop.f32.mrf.mxu0
  %v4008 = vpop.f32.mrf.mxu0
  %4009 = vdwg.mxu0
  %v4010 = vpack.c.bf16 %v3839, %v3839
  %v4023 = vunpack.c.l.b16 %v3842
  %v4024 = vunpack.c.h.b16 %v3842
  %v4025 = vunpack.c.l.b16 %v3843
  %v4026 = vunpack.c.l.b16 %v3844
  %v4027 = vunpack.c.h.b16 %v3844
  %v4028 = vunpack.c.l.b16 %v3845
  %v4029 = vunpack.c.l.b16 %v3846
  %v4030 = vunpack.c.h.b16 %v3846
  %v4031 = vunpack.c.l.b16 %v3847
  %v4032 = vunpack.c.l.b16 %v3848
  %v4033 = vunpack.c.h.b16 %v3848
  %v4034 = vunpack.c.l.b16 %v3849
  %v4035 = vunpack.c.l.b16 %v3850
  %v4036 = vunpack.c.h.b16 %v3850
  %v4037 = vunpack.c.l.b16 %v3851
  %v4038 = vunpack.c.l.b16 %v3852
  %v4039 = vunpack.c.h.b16 %v3852
  %v4040 = vunpack.c.l.b16 %v3853
  %v4041 = vpack.c.b16 %v4026, %v4023
  %v4042 = vpack.c.b16 %v4027, %v4024
  %v4043 = vpack.c.b16 %v4028, %v4025
  %v4044 = vpack.c.b16 %v4032, %v4029
  %v4045 = vpack.c.b16 %v4033, %v4030
  %v4046 = vpack.c.b16 %v4034, %v4031
  %v4047 = vpack.c.b16 %v4038, %v4035
  %v4048 = vpack.c.b16 %v4039, %v4036
  %v4049 = vpack.c.b16 %v4040, %v4037
  %vm4059 = vcmask 392192
  %v4061 = vsel %vm4059, %v4010, 0
  %4063 = vmatprep.subr.bf16.mxu0 0
  %4064 = vmatpush1.bf16.msra.mxu0 0
  %4065 = vmatprep.subr.bf16.mxu0 0
  %4066 = vmatpush1.bf16.msra.mxu0 0
  %4067 = vmatprep.subr.bf16.mxu0 0
  %4068 = vmatpush1.bf16.msra.mxu0 0
  %4069 = vmatprep.subr.bf16.mxu0 0
  %4070 = vmatpush1.bf16.msra.mxu0 0
  %4071 = vmatprep.subr.bf16.mxu0 0
  %4072 = vmatpush1.bf16.msra.mxu0 0
  %4073 = vmatprep.subr.bf16.mxu0 %v4048
  %4074 = vmatpush1.bf16.msra.mxu0 %v4047
  %4075 = vmatprep.subr.bf16.mxu0 %v4045
  %4076 = vmatpush1.bf16.msra.mxu0 %v4044
  %4077 = vmatprep.subr.bf16.mxu0 %v4042
  %4078 = vmatpush1.bf16.msra.mxu0 %v4041
  %4079 = vmatprep.subr.bf16.mxu0 0
  %4080 = vmatpush2.bf16.msra.mxu0 0
  %4081 = vmatprep.subr.bf16.mxu0 0
  %4082 = vmatpush2.bf16.msra.mxu0 0
  %4083 = vmatprep.subr.bf16.mxu0 0
  %4084 = vmatpush2.bf16.msra.mxu0 0
  %4085 = vmatprep.subr.bf16.mxu0 0
  %4086 = vmatpush2.bf16.msra.mxu0 0
  %4087 = vmatprep.subr.bf16.mxu0 0
  %4088 = vmatpush2.bf16.msra.mxu0 0
  %4089 = vmatprep.subr.bf16.mxu0 0
  %4090 = vmatpush2.bf16.msra.mxu0 0
  %4091 = vmatprep.subr.bf16.mxu0 0
  %4092 = vmatpush2.bf16.msra.mxu0 0
  %4093 = vmatprep.subr.bf16.mxu0 0
  %4094 = vmatpush2.bf16.msra.mxu0 0
  %4095 = vmatprep.mubr.bf16.mxu0 0
  %4096 = vmatmul.mubr.bf16.gmra.mxu0 %v4061
  %v4097 = vpop.f32.mrf.mxu0
  %v4098 = vadd.f32 0.0, %v4097
  %v4099 = vpop.f32.mrf.mxu0
  %v4100 = vadd.f32 0.0, %v4099
  %v4101 = vpop.f32.mrf.mxu0
  %v4102 = vpop.f32.mrf.mxu0
  %4103 = vdwg.mxu0
  %4104 = vmatprep.subr.bf16.mxu0 0
  %4105 = vmatpush1.bf16.msra.mxu0 0
  %4106 = vmatprep.subr.bf16.mxu0 0
  %4107 = vmatpush1.bf16.msra.mxu0 0
  %4108 = vmatprep.subr.bf16.mxu0 0
  %4109 = vmatpush1.bf16.msra.mxu0 0
  %4110 = vmatprep.subr.bf16.mxu0 0
  %4111 = vmatpush1.bf16.msra.mxu0 0
  %4112 = vmatprep.subr.bf16.mxu0 0
  %4113 = vmatpush1.bf16.msra.mxu0 0
  %4114 = vmatprep.subr.bf16.mxu0 0
  %4115 = vmatpush1.bf16.msra.mxu0 %v4049
  %4116 = vmatprep.subr.bf16.mxu0 0
  %4117 = vmatpush1.bf16.msra.mxu0 %v4046
  %4118 = vmatprep.subr.bf16.mxu0 0
  %4119 = vmatpush1.bf16.msra.mxu0 %v4043
  %4120 = vmatprep.subr.bf16.mxu0 0
  %4121 = vmatpush2.bf16.msra.mxu0 0
  %4122 = vmatprep.subr.bf16.mxu0 0
  %4123 = vmatpush2.bf16.msra.mxu0 0
  %4124 = vmatprep.subr.bf16.mxu0 0
  %4125 = vmatpush2.bf16.msra.mxu0 0
  %4126 = vmatprep.subr.bf16.mxu0 0
  %4127 = vmatpush2.bf16.msra.mxu0 0
  %4128 = vmatprep.subr.bf16.mxu0 0
  %4129 = vmatpush2.bf16.msra.mxu0 0
  %4130 = vmatprep.subr.bf16.mxu0 0
  %4131 = vmatpush2.bf16.msra.mxu0 0
  %4132 = vmatprep.subr.bf16.mxu0 0
  %4133 = vmatpush2.bf16.msra.mxu0 0
  %4134 = vmatprep.subr.bf16.mxu0 0
  %4135 = vmatpush2.bf16.msra.mxu0 0
  %4136 = vmatprep.mubr.bf16.mxu0 0
  %4137 = vmatmul.mubr.bf16.gmra.mxu0 %v4061
  %v4138 = vpop.f32.mrf.mxu0
  %v4139 = vadd.f32 0.0, %v4138
  %v4140 = vpop.f32.mrf.mxu0
  %v4141 = vpop.f32.mrf.mxu0
  %v4142 = vpop.f32.mrf.mxu0
  %4143 = vdwg.mxu0
  %v4144 = vadd.f32 %v3964, %v4098
  %v4145 = vxor.u32 %v4144, 2147483648
  %v4146 = vmul.f32 %v4145, 1.442695
  %v4147 = vpow.pop %v4146
  %v4148 = vadd.f32 %v4147, 1.0
  %v4149 = vrcp.pop %v4148
  %v4150 = vmul.f32 1.0, %v4149
  %v4151 = vadd.f32 %v3966, %v4100
  %v4152 = vxor.u32 %v4151, 2147483648
  %v4153 = vmul.f32 %v4152, 1.442695
  %v4154 = vpow.pop %v4153
  %v4155 = vadd.f32 %v4154, 1.0
  %v4156 = vrcp.pop %v4155
  %v4157 = vmul.f32 1.0, %v4156
  %v4158 = vadd.f32 %v4139, %v3876
  %v4159 = vmul.f32 %v4150, %v4158
  %v4160 = vadd.f32 %v4005, %v4159
  %v4161 = vtanh.pop %v4160
  %v4162 = vsub.f32 1.0, %v4157
  %v4163 = vmul.f32 %v4162, %v4161
  %v4164 = vmul.f32 %v4157, %v3839
  %v4165 = vadd.f32 %v4163, %v4164
  %v4166 = vpack.c.bf16 %v4165, %v4165
  %v4173 = vunpack.c.l.b16 %v3878
  %v4174 = vunpack.c.l.b16 %v3879
  %v4175 = vunpack.c.l.b16 %v3880
  %v4176 = vunpack.c.l.b16 %v3881
  %v4177 = vunpack.c.l.b16 %v3882
  %v4178 = vunpack.c.l.b16 %v3883
  %v4179 = vpack.c.b16 %v4174, %v4173
  %v4180 = vpack.c.b16 %v4176, %v4175
  %v4181 = vpack.c.b16 %v4178, %v4177
  %v4186 = vsel %vm4059, %v4166, 0
  %4188 = vmatprep.subr.bf16.mxu0 0
  %4189 = vmatpush1.bf16.msra.mxu0 0
  %4190 = vmatprep.subr.bf16.mxu0 0
  %4191 = vmatpush1.bf16.msra.mxu0 0
  %4192 = vmatprep.subr.bf16.mxu0 0
  %4193 = vmatpush1.bf16.msra.mxu0 0
  %4194 = vmatprep.subr.bf16.mxu0 0
  %4195 = vmatpush1.bf16.msra.mxu0 0
  %4196 = vmatprep.subr.bf16.mxu0 0
  %4197 = vmatpush1.bf16.msra.mxu0 0
  %4198 = vmatprep.subr.bf16.mxu0 0
  %4199 = vmatpush1.bf16.msra.mxu0 %v4181
  %4200 = vmatprep.subr.bf16.mxu0 0
  %4201 = vmatpush1.bf16.msra.mxu0 %v4180
  %4202 = vmatprep.subr.bf16.mxu0 0
  %4203 = vmatpush1.bf16.msra.mxu0 %v4179
  %4204 = vmatprep.subr.bf16.mxu0 0
  %4205 = vmatpush2.bf16.msra.mxu0 0
  %4206 = vmatprep.subr.bf16.mxu0 0
  %4207 = vmatpush2.bf16.msra.mxu0 0
  %4208 = vmatprep.subr.bf16.mxu0 0
  %4209 = vmatpush2.bf16.msra.mxu0 0
  %4210 = vmatprep.subr.bf16.mxu0 0
  %4211 = vmatpush2.bf16.msra.mxu0 0
  %4212 = vmatprep.subr.bf16.mxu0 0
  %4213 = vmatpush2.bf16.msra.mxu0 0
  %4214 = vmatprep.subr.bf16.mxu0 0
  %4215 = vmatpush2.bf16.msra.mxu0 0
  %4216 = vmatprep.subr.bf16.mxu0 0
  %4217 = vmatpush2.bf16.msra.mxu0 0
  %4218 = vmatprep.subr.bf16.mxu0 0
  %4219 = vmatpush2.bf16.msra.mxu0 0
  %4220 = vmatprep.mubr.bf16.mxu0 0
  %4221 = vmatmul.mubr.bf16.gmra.mxu0 %v4186
  %v4222 = vpop.f32.mrf.mxu0
  %v4223 = vadd.f32 %v3897, %v4222
  %v4224 = vpop.f32.mrf.mxu0
  %v4225 = vpop.f32.mrf.mxu0
  %v4226 = vpop.f32.mrf.mxu0
  %4227 = vdwg.mxu0
  %v4228 = vmax.f32 %v4223, 0.0
  %v4229 = vpack.c.bf16 %v4228, %v4228
  %v4238 = vunpack.c.l.b16 %v3884
  %v4239 = vunpack.c.l.b16 %v3885
  %v4240 = vunpack.c.l.b16 %v3886
  %v4241 = vunpack.c.l.b16 %v3887
  %v4242 = vunpack.c.l.b16 %v3888
  %v4243 = vunpack.c.l.b16 %v3889
  %v4244 = vunpack.c.l.b16 %v3890
  %v4245 = vunpack.c.l.b16 %v3891
  %v4246 = vpack.c.b16 %v4239, %v4238
  %v4247 = vpack.c.b16 %v4241, %v4240
  %v4248 = vpack.c.b16 %v4243, %v4242
  %v4249 = vpack.c.b16 %v4245, %v4244
  %v4255 = vsel %vm356, %v4229, 0
  %4257 = vmatprep.subr.bf16.mxu0 0
  %4258 = vmatpush1.bf16.msra.mxu0 0
  %4259 = vmatprep.subr.bf16.mxu0 0
  %4260 = vmatpush1.bf16.msra.mxu0 0
  %4261 = vmatprep.subr.bf16.mxu0 0
  %4262 = vmatpush1.bf16.msra.mxu0 0
  %4263 = vmatprep.subr.bf16.mxu0 0
  %4264 = vmatpush1.bf16.msra.mxu0 0
  %4265 = vmatprep.subr.bf16.mxu0 0
  %4266 = vmatpush1.bf16.msra.mxu0 %v4249
  %4267 = vmatprep.subr.bf16.mxu0 0
  %4268 = vmatpush1.bf16.msra.mxu0 %v4248
  %4269 = vmatprep.subr.bf16.mxu0 0
  %4270 = vmatpush1.bf16.msra.mxu0 %v4247
  %4271 = vmatprep.subr.bf16.mxu0 0
  %4272 = vmatpush1.bf16.msra.mxu0 %v4246
  %4273 = vmatprep.subr.bf16.mxu0 0
  %4274 = vmatpush2.bf16.msra.mxu0 0
  %4275 = vmatprep.subr.bf16.mxu0 0
  %4276 = vmatpush2.bf16.msra.mxu0 0
  %4277 = vmatprep.subr.bf16.mxu0 0
  %4278 = vmatpush2.bf16.msra.mxu0 0
  %4279 = vmatprep.subr.bf16.mxu0 0
  %4280 = vmatpush2.bf16.msra.mxu0 0
  %4281 = vmatprep.subr.bf16.mxu0 0
  %4282 = vmatpush2.bf16.msra.mxu0 0
  %4283 = vmatprep.subr.bf16.mxu0 0
  %4284 = vmatpush2.bf16.msra.mxu0 0
  %4285 = vmatprep.subr.bf16.mxu0 0
  %4286 = vmatpush2.bf16.msra.mxu0 0
  %4287 = vmatprep.subr.bf16.mxu0 0
  %4288 = vmatpush2.bf16.msra.mxu0 0
  %4289 = vmatprep.mubr.bf16.mxu0 0
  %4290 = vmatmul.mubr.bf16.gmra.mxu0 %v4255
  %v4291 = vpop.f32.mrf.mxu0
  %v4292 = vadd.f32 %v3904, %v4291
  %v4293 = vpop.f32.mrf.mxu0
  %v4294 = vpop.f32.mrf.mxu0
  %v4295 = vpop.f32.mrf.mxu0
  %4296 = vdwg.mxu0
  %v4297 = vpack.c.bf16 %v4292, %v4292
  %v4299 = vsel %vm3915, %v4297, 0
  %4301 = vmatprep.subr.bf16.mxu0 0
  %4302 = vmatpush1.bf16.msra.mxu0 0
  %4303 = vmatprep.subr.bf16.mxu0 0
  %4304 = vmatpush1.bf16.msra.mxu0 0
  %4305 = vmatprep.subr.bf16.mxu0 0
  %4306 = vmatpush1.bf16.msra.mxu0 0
  %4307 = vmatprep.subr.bf16.mxu0 0
  %4308 = vmatpush1.bf16.msra.mxu0 0
  %4309 = vmatprep.subr.bf16.mxu0 0
  %4310 = vmatpush1.bf16.msra.mxu0 0
  %4311 = vmatprep.subr.bf16.mxu0 0
  %4312 = vmatpush1.bf16.msra.mxu0 0
  %4313 = vmatprep.subr.bf16.mxu0 0
  %4314 = vmatpush1.bf16.msra.mxu0 0
  %4315 = vmatprep.subr.bf16.mxu0 %v3924
  %4316 = vmatpush1.bf16.msra.mxu0 %v3921
  %4317 = vmatprep.subr.bf16.mxu0 0
  %4318 = vmatpush2.bf16.msra.mxu0 0
  %4319 = vmatprep.subr.bf16.mxu0 0
  %4320 = vmatpush2.bf16.msra.mxu0 0
  %4321 = vmatprep.subr.bf16.mxu0 0
  %4322 = vmatpush2.bf16.msra.mxu0 0
  %4323 = vmatprep.subr.bf16.mxu0 0
  %4324 = vmatpush2.bf16.msra.mxu0 0
  %4325 = vmatprep.subr.bf16.mxu0 0
  %4326 = vmatpush2.bf16.msra.mxu0 0
  %4327 = vmatprep.subr.bf16.mxu0 0
  %4328 = vmatpush2.bf16.msra.mxu0 0
  %4329 = vmatprep.subr.bf16.mxu0 0
  %4330 = vmatpush2.bf16.msra.mxu0 0
  %4331 = vmatprep.subr.bf16.mxu0 0
  %4332 = vmatpush2.bf16.msra.mxu0 0
  %4333 = vmatprep.mubr.bf16.mxu0 0
  %4334 = vmatmul.mubr.bf16.gmra.mxu0 %v4299
  %v4335 = vpop.f32.mrf.mxu0
  %v4336 = vadd.f32 %v3859, %v4335
  %v4337 = vpop.f32.mrf.mxu0
  %v4338 = vadd.f32 %v3863, %v4337
  %v4339 = vpop.f32.mrf.mxu0
  %v4340 = vpop.f32.mrf.mxu0
  %4341 = vdwg.mxu0
  %4342 = vmatprep.subr.bf16.mxu0 0
  %4343 = vmatpush1.bf16.msra.mxu0 0
  %4344 = vmatprep.subr.bf16.mxu0 0
  %4345 = vmatpush1.bf16.msra.mxu0 0
  %4346 = vmatprep.subr.bf16.mxu0 0
  %4347 = vmatpush1.bf16.msra.mxu0 0
  %4348 = vmatprep.subr.bf16.mxu0 0
  %4349 = vmatpush1.bf16.msra.mxu0 0
  %4350 = vmatprep.subr.bf16.mxu0 0
  %4351 = vmatpush1.bf16.msra.mxu0 0
  %4352 = vmatprep.subr.bf16.mxu0 0
  %4353 = vmatpush1.bf16.msra.mxu0 0
  %4354 = vmatprep.subr.bf16.mxu0 0
  %4355 = vmatpush1.bf16.msra.mxu0 0
  %4356 = vmatprep.subr.bf16.mxu0 0
  %4357 = vmatpush1.bf16.msra.mxu0 %v3927
  %4358 = vmatprep.subr.bf16.mxu0 0
  %4359 = vmatpush2.bf16.msra.mxu0 0
  %4360 = vmatprep.subr.bf16.mxu0 0
  %4361 = vmatpush2.bf16.msra.mxu0 0
  %4362 = vmatprep.subr.bf16.mxu0 0
  %4363 = vmatpush2.bf16.msra.mxu0 0
  %4364 = vmatprep.subr.bf16.mxu0 0
  %4365 = vmatpush2.bf16.msra.mxu0 0
  %4366 = vmatprep.subr.bf16.mxu0 0
  %4367 = vmatpush2.bf16.msra.mxu0 0
  %4368 = vmatprep.subr.bf16.mxu0 0
  %4369 = vmatpush2.bf16.msra.mxu0 0
  %4370 = vmatprep.subr.bf16.mxu0 0
  %4371 = vmatpush2.bf16.msra.mxu0 0
  %4372 = vmatprep.subr.bf16.mxu0 0
  %4373 = vmatpush2.bf16.msra.mxu0 0
  %4374 = vmatprep.mubr.bf16.mxu0 0
  %4375 = vmatmul.mubr.bf16.gmra.mxu0 %v4299
  %v4376 = vpop.f32.mrf.mxu0
  %v4377 = vadd.f32 %v3867, %v4376
  %v4378 = vpop.f32.mrf.mxu0
  %v4379 = vpop.f32.mrf.mxu0
  %v4380 = vpop.f32.mrf.mxu0
  %4381 = vdwg.mxu0
  %4382 = vmatprep.subr.bf16.mxu0 0
  %4383 = vmatpush1.bf16.msra.mxu0 0
  %4384 = vmatprep.subr.bf16.mxu0 0
  %4385 = vmatpush1.bf16.msra.mxu0 0
  %4386 = vmatprep.subr.bf16.mxu0 0
  %4387 = vmatpush1.bf16.msra.mxu0 0
  %4388 = vmatprep.subr.bf16.mxu0 0
  %4389 = vmatpush1.bf16.msra.mxu0 0
  %4390 = vmatprep.subr.bf16.mxu0 0
  %4391 = vmatpush1.bf16.msra.mxu0 0
  %4392 = vmatprep.subr.bf16.mxu0 %v4048
  %4393 = vmatpush1.bf16.msra.mxu0 %v4047
  %4394 = vmatprep.subr.bf16.mxu0 %v4045
  %4395 = vmatpush1.bf16.msra.mxu0 %v4044
  %4396 = vmatprep.subr.bf16.mxu0 %v4042
  %4397 = vmatpush1.bf16.msra.mxu0 %v4041
  %4398 = vmatprep.subr.bf16.mxu0 0
  %4399 = vmatpush2.bf16.msra.mxu0 0
  %4400 = vmatprep.subr.bf16.mxu0 0
  %4401 = vmatpush2.bf16.msra.mxu0 0
  %4402 = vmatprep.subr.bf16.mxu0 0
  %4403 = vmatpush2.bf16.msra.mxu0 0
  %4404 = vmatprep.subr.bf16.mxu0 0
  %4405 = vmatpush2.bf16.msra.mxu0 0
  %4406 = vmatprep.subr.bf16.mxu0 0
  %4407 = vmatpush2.bf16.msra.mxu0 0
  %4408 = vmatprep.subr.bf16.mxu0 0
  %4409 = vmatpush2.bf16.msra.mxu0 0
  %4410 = vmatprep.subr.bf16.mxu0 0
  %4411 = vmatpush2.bf16.msra.mxu0 0
  %4412 = vmatprep.subr.bf16.mxu0 0
  %4413 = vmatpush2.bf16.msra.mxu0 0
  %4414 = vmatprep.mubr.bf16.mxu0 0
  %4415 = vmatmul.mubr.bf16.gmra.mxu0 %v4186
  %v4416 = vpop.f32.mrf.mxu0
  %v4417 = vadd.f32 0.0, %v4416
  %v4418 = vpop.f32.mrf.mxu0
  %v4419 = vadd.f32 0.0, %v4418
  %v4420 = vpop.f32.mrf.mxu0
  %v4421 = vpop.f32.mrf.mxu0
  %4422 = vdwg.mxu0
  %4423 = vmatprep.subr.bf16.mxu0 0
  %4424 = vmatpush1.bf16.msra.mxu0 0
  %4425 = vmatprep.subr.bf16.mxu0 0
  %4426 = vmatpush1.bf16.msra.mxu0 0
  %4427 = vmatprep.subr.bf16.mxu0 0
  %4428 = vmatpush1.bf16.msra.mxu0 0
  %4429 = vmatprep.subr.bf16.mxu0 0
  %4430 = vmatpush1.bf16.msra.mxu0 0
  %4431 = vmatprep.subr.bf16.mxu0 0
  %4432 = vmatpush1.bf16.msra.mxu0 0
  %4433 = vmatprep.subr.bf16.mxu0 0
  %4434 = vmatpush1.bf16.msra.mxu0 %v4049
  %4435 = vmatprep.subr.bf16.mxu0 0
  %4436 = vmatpush1.bf16.msra.mxu0 %v4046
  %4437 = vmatprep.subr.bf16.mxu0 0
  %4438 = vmatpush1.bf16.msra.mxu0 %v4043
  %4439 = vmatprep.subr.bf16.mxu0 0
  %4440 = vmatpush2.bf16.msra.mxu0 0
  %4441 = vmatprep.subr.bf16.mxu0 0
  %4442 = vmatpush2.bf16.msra.mxu0 0
  %4443 = vmatprep.subr.bf16.mxu0 0
  %4444 = vmatpush2.bf16.msra.mxu0 0
  %4445 = vmatprep.subr.bf16.mxu0 0
  %4446 = vmatpush2.bf16.msra.mxu0 0
  %4447 = vmatprep.subr.bf16.mxu0 0
  %4448 = vmatpush2.bf16.msra.mxu0 0
  %4449 = vmatprep.subr.bf16.mxu0 0
  %4450 = vmatpush2.bf16.msra.mxu0 0
  %4451 = vmatprep.subr.bf16.mxu0 0
  %4452 = vmatpush2.bf16.msra.mxu0 0
  %4453 = vmatprep.subr.bf16.mxu0 0
  %4454 = vmatpush2.bf16.msra.mxu0 0
  %4455 = vmatprep.mubr.bf16.mxu0 0
  %4456 = vmatmul.mubr.bf16.gmra.mxu0 %v4186
  %v4457 = vpop.f32.mrf.mxu0
  %v4458 = vadd.f32 0.0, %v4457
  %v4459 = vpop.f32.mrf.mxu0
  %v4460 = vpop.f32.mrf.mxu0
  %v4461 = vpop.f32.mrf.mxu0
  %4462 = vdwg.mxu0
  %v4463 = vadd.f32 %v4336, %v4417
  %v4464 = vxor.u32 %v4463, 2147483648
  %v4465 = vmul.f32 %v4464, 1.442695
  %v4466 = vpow.pop %v4465
  %v4467 = vadd.f32 %v4466, 1.0
  %v4468 = vrcp.pop %v4467
  %v4469 = vmul.f32 1.0, %v4468
  %v4470 = vadd.f32 %v4338, %v4419
  %v4471 = vxor.u32 %v4470, 2147483648
  %v4472 = vmul.f32 %v4471, 1.442695
  %v4473 = vpow.pop %v4472
  %v4474 = vadd.f32 %v4473, 1.0
  %v4475 = vrcp.pop %v4474
  %v4476 = vmul.f32 1.0, %v4475
  %v4477 = vadd.f32 %v4458, %v3876
  %v4478 = vmul.f32 %v4469, %v4477
  %v4479 = vadd.f32 %v4377, %v4478
  %v4480 = vtanh.pop %v4479
  %v4481 = vsub.f32 1.0, %v4476
  %v4482 = vmul.f32 %v4481, %v4480
  %v4483 = vmul.f32 %v4476, %v4165
  %v4484 = vadd.f32 %v4482, %v4483
  %v4485 = vpack.c.bf16 %v4484, %v4484
  %v4487 = vsel %vm4059, %v4485, 0
  %4489 = vmatprep.subr.bf16.mxu0 0
  %4490 = vmatpush1.bf16.msra.mxu0 0
  %4491 = vmatprep.subr.bf16.mxu0 0
  %4492 = vmatpush1.bf16.msra.mxu0 0
  %4493 = vmatprep.subr.bf16.mxu0 0
  %4494 = vmatpush1.bf16.msra.mxu0 0
  %4495 = vmatprep.subr.bf16.mxu0 0
  %4496 = vmatpush1.bf16.msra.mxu0 0
  %4497 = vmatprep.subr.bf16.mxu0 0
  %4498 = vmatpush1.bf16.msra.mxu0 0
  %4499 = vmatprep.subr.bf16.mxu0 0
  %4500 = vmatpush1.bf16.msra.mxu0 %v4181
  %4501 = vmatprep.subr.bf16.mxu0 0
  %4502 = vmatpush1.bf16.msra.mxu0 %v4180
  %4503 = vmatprep.subr.bf16.mxu0 0
  %4504 = vmatpush1.bf16.msra.mxu0 %v4179
  %4505 = vmatprep.subr.bf16.mxu0 0
  %4506 = vmatpush2.bf16.msra.mxu0 0
  %4507 = vmatprep.subr.bf16.mxu0 0
  %4508 = vmatpush2.bf16.msra.mxu0 0
  %4509 = vmatprep.subr.bf16.mxu0 0
  %4510 = vmatpush2.bf16.msra.mxu0 0
  %4511 = vmatprep.subr.bf16.mxu0 0
  %4512 = vmatpush2.bf16.msra.mxu0 0
  %4513 = vmatprep.subr.bf16.mxu0 0
  %4514 = vmatpush2.bf16.msra.mxu0 0
  %4515 = vmatprep.subr.bf16.mxu0 0
  %4516 = vmatpush2.bf16.msra.mxu0 0
  %4517 = vmatprep.subr.bf16.mxu0 0
  %4518 = vmatpush2.bf16.msra.mxu0 0
  %4519 = vmatprep.subr.bf16.mxu0 0
  %4520 = vmatpush2.bf16.msra.mxu0 0
  %4521 = vmatprep.mubr.bf16.mxu0 0
  %4522 = vmatmul.mubr.bf16.gmra.mxu0 %v4487
  %v4523 = vpop.f32.mrf.mxu0
  %v4524 = vadd.f32 %v3897, %v4523
  %v4525 = vpop.f32.mrf.mxu0
  %v4526 = vpop.f32.mrf.mxu0
  %v4527 = vpop.f32.mrf.mxu0
  %4528 = vdwg.mxu0
  %v4529 = vmax.f32 %v4524, 0.0
  %v4530 = vpack.c.bf16 %v4529, %v4529
  %v4532 = vsel %vm356, %v4530, 0
  %4534 = vmatprep.subr.bf16.mxu0 0
  %4535 = vmatpush1.bf16.msra.mxu0 0
  %4536 = vmatprep.subr.bf16.mxu0 0
  %4537 = vmatpush1.bf16.msra.mxu0 0
  %4538 = vmatprep.subr.bf16.mxu0 0
  %4539 = vmatpush1.bf16.msra.mxu0 0
  %4540 = vmatprep.subr.bf16.mxu0 0
  %4541 = vmatpush1.bf16.msra.mxu0 0
  %4542 = vmatprep.subr.bf16.mxu0 0
  %4543 = vmatpush1.bf16.msra.mxu0 %v4249
  %4544 = vmatprep.subr.bf16.mxu0 0
  %4545 = vmatpush1.bf16.msra.mxu0 %v4248
  %4546 = vmatprep.subr.bf16.mxu0 0
  %4547 = vmatpush1.bf16.msra.mxu0 %v4247
  %4548 = vmatprep.subr.bf16.mxu0 0
  %4549 = vmatpush1.bf16.msra.mxu0 %v4246
  %4550 = vmatprep.subr.bf16.mxu0 0
  %4551 = vmatpush2.bf16.msra.mxu0 0
  %4552 = vmatprep.subr.bf16.mxu0 0
  %4553 = vmatpush2.bf16.msra.mxu0 0
  %4554 = vmatprep.subr.bf16.mxu0 0
  %4555 = vmatpush2.bf16.msra.mxu0 0
  %4556 = vmatprep.subr.bf16.mxu0 0
  %4557 = vmatpush2.bf16.msra.mxu0 0
  %4558 = vmatprep.subr.bf16.mxu0 0
  %4559 = vmatpush2.bf16.msra.mxu0 0
  %4560 = vmatprep.subr.bf16.mxu0 0
  %4561 = vmatpush2.bf16.msra.mxu0 0
  %4562 = vmatprep.subr.bf16.mxu0 0
  %4563 = vmatpush2.bf16.msra.mxu0 0
  %4564 = vmatprep.subr.bf16.mxu0 0
  %4565 = vmatpush2.bf16.msra.mxu0 0
  %4566 = vmatprep.mubr.bf16.mxu0 0
  %4567 = vmatmul.mubr.bf16.gmra.mxu0 %v4532
  %v4568 = vpop.f32.mrf.mxu0
  %v4569 = vadd.f32 %v3904, %v4568
  %v4570 = vpop.f32.mrf.mxu0
  %v4571 = vpop.f32.mrf.mxu0
  %v4572 = vpop.f32.mrf.mxu0
  %4573 = vdwg.mxu0
  %v4574 = vpack.c.bf16 %v4569, %v4569
  %v4576 = vsel %vm3915, %v4574, 0
  %4578 = vmatprep.subr.bf16.mxu0 0
  %4579 = vmatpush1.bf16.msra.mxu0 0
  %4580 = vmatprep.subr.bf16.mxu0 0
  %4581 = vmatpush1.bf16.msra.mxu0 0
  %4582 = vmatprep.subr.bf16.mxu0 0
  %4583 = vmatpush1.bf16.msra.mxu0 0
  %4584 = vmatprep.subr.bf16.mxu0 0
  %4585 = vmatpush1.bf16.msra.mxu0 0
  %4586 = vmatprep.subr.bf16.mxu0 0
  %4587 = vmatpush1.bf16.msra.mxu0 0
  %4588 = vmatprep.subr.bf16.mxu0 0
  %4589 = vmatpush1.bf16.msra.mxu0 0
  %4590 = vmatprep.subr.bf16.mxu0 0
  %4591 = vmatpush1.bf16.msra.mxu0 0
  %4592 = vmatprep.subr.bf16.mxu0 %v3924
  %4593 = vmatpush1.bf16.msra.mxu0 %v3921
  %4594 = vmatprep.subr.bf16.mxu0 0
  %4595 = vmatpush2.bf16.msra.mxu0 0
  %4596 = vmatprep.subr.bf16.mxu0 0
  %4597 = vmatpush2.bf16.msra.mxu0 0
  %4598 = vmatprep.subr.bf16.mxu0 0
  %4599 = vmatpush2.bf16.msra.mxu0 0
  %4600 = vmatprep.subr.bf16.mxu0 0
  %4601 = vmatpush2.bf16.msra.mxu0 0
  %4602 = vmatprep.subr.bf16.mxu0 0
  %4603 = vmatpush2.bf16.msra.mxu0 0
  %4604 = vmatprep.subr.bf16.mxu0 0
  %4605 = vmatpush2.bf16.msra.mxu0 0
  %4606 = vmatprep.subr.bf16.mxu0 0
  %4607 = vmatpush2.bf16.msra.mxu0 0
  %4608 = vmatprep.subr.bf16.mxu0 0
  %4609 = vmatpush2.bf16.msra.mxu0 0
  %4610 = vmatprep.mubr.bf16.mxu0 0
  %4611 = vmatmul.mubr.bf16.gmra.mxu0 %v4576
  %v4612 = vpop.f32.mrf.mxu0
  %v4613 = vadd.f32 %v3859, %v4612
  %v4614 = vpop.f32.mrf.mxu0
  %v4615 = vadd.f32 %v3863, %v4614
  %v4616 = vpop.f32.mrf.mxu0
  %v4617 = vpop.f32.mrf.mxu0
  %4618 = vdwg.mxu0
  %4619 = vmatprep.subr.bf16.mxu0 0
  %4620 = vmatpush1.bf16.msra.mxu0 0
  %4621 = vmatprep.subr.bf16.mxu0 0
  %4622 = vmatpush1.bf16.msra.mxu0 0
  %4623 = vmatprep.subr.bf16.mxu0 0
  %4624 = vmatpush1.bf16.msra.mxu0 0
  %4625 = vmatprep.subr.bf16.mxu0 0
  %4626 = vmatpush1.bf16.msra.mxu0 0
  %4627 = vmatprep.subr.bf16.mxu0 0
  %4628 = vmatpush1.bf16.msra.mxu0 0
  %4629 = vmatprep.subr.bf16.mxu0 0
  %4630 = vmatpush1.bf16.msra.mxu0 0
  %4631 = vmatprep.subr.bf16.mxu0 0
  %4632 = vmatpush1.bf16.msra.mxu0 0
  %4633 = vmatprep.subr.bf16.mxu0 0
  %4634 = vmatpush1.bf16.msra.mxu0 %v3927
  %4635 = vmatprep.subr.bf16.mxu0 0
  %4636 = vmatpush2.bf16.msra.mxu0 0
  %4637 = vmatprep.subr.bf16.mxu0 0
  %4638 = vmatpush2.bf16.msra.mxu0 0
  %4639 = vmatprep.subr.bf16.mxu0 0
  %4640 = vmatpush2.bf16.msra.mxu0 0
  %4641 = vmatprep.subr.bf16.mxu0 0
  %4642 = vmatpush2.bf16.msra.mxu0 0
  %4643 = vmatprep.subr.bf16.mxu0 0
  %4644 = vmatpush2.bf16.msra.mxu0 0
  %4645 = vmatprep.subr.bf16.mxu0 0
  %4646 = vmatpush2.bf16.msra.mxu0 0
  %4647 = vmatprep.subr.bf16.mxu0 0
  %4648 = vmatpush2.bf16.msra.mxu0 0
  %4649 = vmatprep.subr.bf16.mxu0 0
  %4650 = vmatpush2.bf16.msra.mxu0 0
  %4651 = vmatprep.mubr.bf16.mxu0 0
  %4652 = vmatmul.mubr.bf16.gmra.mxu0 %v4576
  %v4653 = vpop.f32.mrf.mxu0
  %v4654 = vadd.f32 %v3867, %v4653
  %v4655 = vpop.f32.mrf.mxu0
  %v4656 = vpop.f32.mrf.mxu0
  %v4657 = vpop.f32.mrf.mxu0
  %4658 = vdwg.mxu0
  %4659 = vmatprep.subr.bf16.mxu0 0
  %4660 = vmatpush1.bf16.msra.mxu0 0
  %4661 = vmatprep.subr.bf16.mxu0 0
  %4662 = vmatpush1.bf16.msra.mxu0 0
  %4663 = vmatprep.subr.bf16.mxu0 0
  %4664 = vmatpush1.bf16.msra.mxu0 0
  %4665 = vmatprep.subr.bf16.mxu0 0
  %4666 = vmatpush1.bf16.msra.mxu0 0
  %4667 = vmatprep.subr.bf16.mxu0 0
  %4668 = vmatpush1.bf16.msra.mxu0 0
  %4669 = vmatprep.subr.bf16.mxu0 %v4048
  %4670 = vmatpush1.bf16.msra.mxu0 %v4047
  %4671 = vmatprep.subr.bf16.mxu0 %v4045
  %4672 = vmatpush1.bf16.msra.mxu0 %v4044
  %4673 = vmatprep.subr.bf16.mxu0 %v4042
  %4674 = vmatpush1.bf16.msra.mxu0 %v4041
  %4675 = vmatprep.subr.bf16.mxu0 0
  %4676 = vmatpush2.bf16.msra.mxu0 0
  %4677 = vmatprep.subr.bf16.mxu0 0
  %4678 = vmatpush2.bf16.msra.mxu0 0
  %4679 = vmatprep.subr.bf16.mxu0 0
  %4680 = vmatpush2.bf16.msra.mxu0 0
  %4681 = vmatprep.subr.bf16.mxu0 0
  %4682 = vmatpush2.bf16.msra.mxu0 0
  %4683 = vmatprep.subr.bf16.mxu0 0
  %4684 = vmatpush2.bf16.msra.mxu0 0
  %4685 = vmatprep.subr.bf16.mxu0 0
  %4686 = vmatpush2.bf16.msra.mxu0 0
  %4687 = vmatprep.subr.bf16.mxu0 0
  %4688 = vmatpush2.bf16.msra.mxu0 0
  %4689 = vmatprep.subr.bf16.mxu0 0
  %4690 = vmatpush2.bf16.msra.mxu0 0
  %4691 = vmatprep.mubr.bf16.mxu0 0
  %4692 = vmatmul.mubr.bf16.gmra.mxu0 %v4487
  %v4693 = vpop.f32.mrf.mxu0
  %v4694 = vadd.f32 0.0, %v4693
  %v4695 = vpop.f32.mrf.mxu0
  %v4696 = vadd.f32 0.0, %v4695
  %v4697 = vpop.f32.mrf.mxu0
  %v4698 = vpop.f32.mrf.mxu0
  %4699 = vdwg.mxu0
  %4700 = vmatprep.subr.bf16.mxu0 0
  %4701 = vmatpush1.bf16.msra.mxu0 0
  %4702 = vmatprep.subr.bf16.mxu0 0
  %4703 = vmatpush1.bf16.msra.mxu0 0
  %4704 = vmatprep.subr.bf16.mxu0 0
  %4705 = vmatpush1.bf16.msra.mxu0 0
  %4706 = vmatprep.subr.bf16.mxu0 0
  %4707 = vmatpush1.bf16.msra.mxu0 0
  %4708 = vmatprep.subr.bf16.mxu0 0
  %4709 = vmatpush1.bf16.msra.mxu0 0
  %4710 = vmatprep.subr.bf16.mxu0 0
  %4711 = vmatpush1.bf16.msra.mxu0 %v4049
  %4712 = vmatprep.subr.bf16.mxu0 0
  %4713 = vmatpush1.bf16.msra.mxu0 %v4046
  %4714 = vmatprep.subr.bf16.mxu0 0
  %4715 = vmatpush1.bf16.msra.mxu0 %v4043
  %4716 = vmatprep.subr.bf16.mxu0 0
  %4717 = vmatpush2.bf16.msra.mxu0 0
  %4718 = vmatprep.subr.bf16.mxu0 0
  %4719 = vmatpush2.bf16.msra.mxu0 0
  %4720 = vmatprep.subr.bf16.mxu0 0
  %4721 = vmatpush2.bf16.msra.mxu0 0
  %4722 = vmatprep.subr.bf16.mxu0 0
  %4723 = vmatpush2.bf16.msra.mxu0 0
  %4724 = vmatprep.subr.bf16.mxu0 0
  %4725 = vmatpush2.bf16.msra.mxu0 0
  %4726 = vmatprep.subr.bf16.mxu0 0
  %4727 = vmatpush2.bf16.msra.mxu0 0
  %4728 = vmatprep.subr.bf16.mxu0 0
  %4729 = vmatpush2.bf16.msra.mxu0 0
  %4730 = vmatprep.subr.bf16.mxu0 0
  %4731 = vmatpush2.bf16.msra.mxu0 0
  %4732 = vmatprep.mubr.bf16.mxu0 0
  %4733 = vmatmul.mubr.bf16.gmra.mxu0 %v4487
  %v4734 = vpop.f32.mrf.mxu0
  %v4735 = vadd.f32 0.0, %v4734
  %v4736 = vpop.f32.mrf.mxu0
  %v4737 = vpop.f32.mrf.mxu0
  %v4738 = vpop.f32.mrf.mxu0
  %4739 = vdwg.mxu0
  %v4740 = vadd.f32 %v4613, %v4694
  %v4741 = vxor.u32 %v4740, 2147483648
  %v4742 = vmul.f32 %v4741, 1.442695
  %v4743 = vpow.pop %v4742
  %v4744 = vadd.f32 %v4743, 1.0
  %v4745 = vrcp.pop %v4744
  %v4746 = vmul.f32 1.0, %v4745
  %v4747 = vadd.f32 %v4615, %v4696
  %v4748 = vxor.u32 %v4747, 2147483648
  %v4749 = vmul.f32 %v4748, 1.442695
  %v4750 = vpow.pop %v4749
  %v4751 = vadd.f32 %v4750, 1.0
  %v4752 = vrcp.pop %v4751
  %v4753 = vmul.f32 1.0, %v4752
  %v4754 = vadd.f32 %v4735, %v3876
  %v4755 = vmul.f32 %v4746, %v4754
  %v4756 = vadd.f32 %v4654, %v4755
  %v4757 = vtanh.pop %v4756
  %v4758 = vsub.f32 1.0, %v4753
  %v4759 = vmul.f32 %v4758, %v4757
  %v4760 = vmul.f32 %v4753, %v4484
  %v4761 = vadd.f32 %v4759, %v4760
  %v4762 = vpack.c.bf16 %v4761, %v4761
  %v4764 = vsel %vm4059, %v4762, 0
  %4766 = vmatprep.subr.bf16.mxu0 0
  %4767 = vmatpush1.bf16.msra.mxu0 0
  %4768 = vmatprep.subr.bf16.mxu0 0
  %4769 = vmatpush1.bf16.msra.mxu0 0
  %4770 = vmatprep.subr.bf16.mxu0 0
  %4771 = vmatpush1.bf16.msra.mxu0 0
  %4772 = vmatprep.subr.bf16.mxu0 0
  %4773 = vmatpush1.bf16.msra.mxu0 0
  %4774 = vmatprep.subr.bf16.mxu0 0
  %4775 = vmatpush1.bf16.msra.mxu0 0
  %4776 = vmatprep.subr.bf16.mxu0 0
  %4777 = vmatpush1.bf16.msra.mxu0 %v4181
  %4778 = vmatprep.subr.bf16.mxu0 0
  %4779 = vmatpush1.bf16.msra.mxu0 %v4180
  %4780 = vmatprep.subr.bf16.mxu0 0
  %4781 = vmatpush1.bf16.msra.mxu0 %v4179
  %4782 = vmatprep.subr.bf16.mxu0 0
  %4783 = vmatpush2.bf16.msra.mxu0 0
  %4784 = vmatprep.subr.bf16.mxu0 0
  %4785 = vmatpush2.bf16.msra.mxu0 0
  %4786 = vmatprep.subr.bf16.mxu0 0
  %4787 = vmatpush2.bf16.msra.mxu0 0
  %4788 = vmatprep.subr.bf16.mxu0 0
  %4789 = vmatpush2.bf16.msra.mxu0 0
  %4790 = vmatprep.subr.bf16.mxu0 0
  %4791 = vmatpush2.bf16.msra.mxu0 0
  %4792 = vmatprep.subr.bf16.mxu0 0
  %4793 = vmatpush2.bf16.msra.mxu0 0
  %4794 = vmatprep.subr.bf16.mxu0 0
  %4795 = vmatpush2.bf16.msra.mxu0 0
  %4796 = vmatprep.subr.bf16.mxu0 0
  %4797 = vmatpush2.bf16.msra.mxu0 0
  %4798 = vmatprep.mubr.bf16.mxu0 0
  %4799 = vmatmul.mubr.bf16.gmra.mxu0 %v4764
  %v4800 = vpop.f32.mrf.mxu0
  %v4801 = vadd.f32 %v3897, %v4800
  %v4802 = vpop.f32.mrf.mxu0
  %v4803 = vpop.f32.mrf.mxu0
  %v4804 = vpop.f32.mrf.mxu0
  %4805 = vdwg.mxu0
  %v4806 = vmax.f32 %v4801, 0.0
  %v4807 = vpack.c.bf16 %v4806, %v4806
  %v4809 = vsel %vm356, %v4807, 0
  %4811 = vmatprep.subr.bf16.mxu0 0
  %4812 = vmatpush1.bf16.msra.mxu0 0
  %4813 = vmatprep.subr.bf16.mxu0 0
  %4814 = vmatpush1.bf16.msra.mxu0 0
  %4815 = vmatprep.subr.bf16.mxu0 0
  %4816 = vmatpush1.bf16.msra.mxu0 0
  %4817 = vmatprep.subr.bf16.mxu0 0
  %4818 = vmatpush1.bf16.msra.mxu0 0
  %4819 = vmatprep.subr.bf16.mxu0 0
  %4820 = vmatpush1.bf16.msra.mxu0 %v4249
  %4821 = vmatprep.subr.bf16.mxu0 0
  %4822 = vmatpush1.bf16.msra.mxu0 %v4248
  %4823 = vmatprep.subr.bf16.mxu0 0
  %4824 = vmatpush1.bf16.msra.mxu0 %v4247
  %4825 = vmatprep.subr.bf16.mxu0 0
  %4826 = vmatpush1.bf16.msra.mxu0 %v4246
  %4827 = vmatprep.subr.bf16.mxu0 0
  %4828 = vmatpush2.bf16.msra.mxu0 0
  %4829 = vmatprep.subr.bf16.mxu0 0
  %4830 = vmatpush2.bf16.msra.mxu0 0
  %4831 = vmatprep.subr.bf16.mxu0 0
  %4832 = vmatpush2.bf16.msra.mxu0 0
  %4833 = vmatprep.subr.bf16.mxu0 0
  %4834 = vmatpush2.bf16.msra.mxu0 0
  %4835 = vmatprep.subr.bf16.mxu0 0
  %4836 = vmatpush2.bf16.msra.mxu0 0
  %4837 = vmatprep.subr.bf16.mxu0 0
  %4838 = vmatpush2.bf16.msra.mxu0 0
  %4839 = vmatprep.subr.bf16.mxu0 0
  %4840 = vmatpush2.bf16.msra.mxu0 0
  %4841 = vmatprep.subr.bf16.mxu0 0
  %4842 = vmatpush2.bf16.msra.mxu0 0
  %4843 = vmatprep.mubr.bf16.mxu0 0
  %4844 = vmatmul.mubr.bf16.gmra.mxu0 %v4809
  %v4845 = vpop.f32.mrf.mxu0
  %v4846 = vadd.f32 %v3904, %v4845
  %v4847 = vpop.f32.mrf.mxu0
  %v4848 = vpop.f32.mrf.mxu0
  %v4849 = vpop.f32.mrf.mxu0
  %4850 = vdwg.mxu0
  %v4851 = vpack.c.bf16 %v4846, %v4846
  %v4853 = vsel %vm3915, %v4851, 0
  %4855 = vmatprep.subr.bf16.mxu0 0
  %4856 = vmatpush1.bf16.msra.mxu0 0
  %4857 = vmatprep.subr.bf16.mxu0 0
  %4858 = vmatpush1.bf16.msra.mxu0 0
  %4859 = vmatprep.subr.bf16.mxu0 0
  %4860 = vmatpush1.bf16.msra.mxu0 0
  %4861 = vmatprep.subr.bf16.mxu0 0
  %4862 = vmatpush1.bf16.msra.mxu0 0
  %4863 = vmatprep.subr.bf16.mxu0 0
  %4864 = vmatpush1.bf16.msra.mxu0 0
  %4865 = vmatprep.subr.bf16.mxu0 0
  %4866 = vmatpush1.bf16.msra.mxu0 0
  %4867 = vmatprep.subr.bf16.mxu0 0
  %4868 = vmatpush1.bf16.msra.mxu0 0
  %4869 = vmatprep.subr.bf16.mxu0 %v3924
  %4870 = vmatpush1.bf16.msra.mxu0 %v3921
  %4871 = vmatprep.subr.bf16.mxu0 0
  %4872 = vmatpush2.bf16.msra.mxu0 0
  %4873 = vmatprep.subr.bf16.mxu0 0
  %4874 = vmatpush2.bf16.msra.mxu0 0
  %4875 = vmatprep.subr.bf16.mxu0 0
  %4876 = vmatpush2.bf16.msra.mxu0 0
  %4877 = vmatprep.subr.bf16.mxu0 0
  %4878 = vmatpush2.bf16.msra.mxu0 0
  %4879 = vmatprep.subr.bf16.mxu0 0
  %4880 = vmatpush2.bf16.msra.mxu0 0
  %4881 = vmatprep.subr.bf16.mxu0 0
  %4882 = vmatpush2.bf16.msra.mxu0 0
  %4883 = vmatprep.subr.bf16.mxu0 0
  %4884 = vmatpush2.bf16.msra.mxu0 0
  %4885 = vmatprep.subr.bf16.mxu0 0
  %4886 = vmatpush2.bf16.msra.mxu0 0
  %4887 = vmatprep.mubr.bf16.mxu0 0
  %4888 = vmatmul.mubr.bf16.gmra.mxu0 %v4853
  %v4889 = vpop.f32.mrf.mxu0
  %v4890 = vadd.f32 %v3859, %v4889
  %v4891 = vpop.f32.mrf.mxu0
  %v4892 = vadd.f32 %v3863, %v4891
  %v4893 = vpop.f32.mrf.mxu0
  %v4894 = vpop.f32.mrf.mxu0
  %4895 = vdwg.mxu0
  %4896 = vmatprep.subr.bf16.mxu0 0
  %4897 = vmatpush1.bf16.msra.mxu0 0
  %4898 = vmatprep.subr.bf16.mxu0 0
  %4899 = vmatpush1.bf16.msra.mxu0 0
  %4900 = vmatprep.subr.bf16.mxu0 0
  %4901 = vmatpush1.bf16.msra.mxu0 0
  %4902 = vmatprep.subr.bf16.mxu0 0
  %4903 = vmatpush1.bf16.msra.mxu0 0
  %4904 = vmatprep.subr.bf16.mxu0 0
  %4905 = vmatpush1.bf16.msra.mxu0 0
  %4906 = vmatprep.subr.bf16.mxu0 0
  %4907 = vmatpush1.bf16.msra.mxu0 0
  %4908 = vmatprep.subr.bf16.mxu0 0
  %4909 = vmatpush1.bf16.msra.mxu0 0
  %4910 = vmatprep.subr.bf16.mxu0 0
  %4911 = vmatpush1.bf16.msra.mxu0 %v3927
  %4912 = vmatprep.subr.bf16.mxu0 0
  %4913 = vmatpush2.bf16.msra.mxu0 0
  %4914 = vmatprep.subr.bf16.mxu0 0
  %4915 = vmatpush2.bf16.msra.mxu0 0
  %4916 = vmatprep.subr.bf16.mxu0 0
  %4917 = vmatpush2.bf16.msra.mxu0 0
  %4918 = vmatprep.subr.bf16.mxu0 0
  %4919 = vmatpush2.bf16.msra.mxu0 0
  %4920 = vmatprep.subr.bf16.mxu0 0
  %4921 = vmatpush2.bf16.msra.mxu0 0
  %4922 = vmatprep.subr.bf16.mxu0 0
  %4923 = vmatpush2.bf16.msra.mxu0 0
  %4924 = vmatprep.subr.bf16.mxu0 0
  %4925 = vmatpush2.bf16.msra.mxu0 0
  %4926 = vmatprep.subr.bf16.mxu0 0
  %4927 = vmatpush2.bf16.msra.mxu0 0
  %4928 = vmatprep.mubr.bf16.mxu0 0
  %4929 = vmatmul.mubr.bf16.gmra.mxu0 %v4853
  %v4930 = vpop.f32.mrf.mxu0
  %v4931 = vadd.f32 %v3867, %v4930
  %v4932 = vpop.f32.mrf.mxu0
  %v4933 = vpop.f32.mrf.mxu0
  %v4934 = vpop.f32.mrf.mxu0
  %4935 = vdwg.mxu0
  %4936 = vmatprep.subr.bf16.mxu0 0
  %4937 = vmatpush1.bf16.msra.mxu0 0
  %4938 = vmatprep.subr.bf16.mxu0 0
  %4939 = vmatpush1.bf16.msra.mxu0 0
  %4940 = vmatprep.subr.bf16.mxu0 0
  %4941 = vmatpush1.bf16.msra.mxu0 0
  %4942 = vmatprep.subr.bf16.mxu0 0
  %4943 = vmatpush1.bf16.msra.mxu0 0
  %4944 = vmatprep.subr.bf16.mxu0 0
  %4945 = vmatpush1.bf16.msra.mxu0 0
  %4946 = vmatprep.subr.bf16.mxu0 %v4048
  %4947 = vmatpush1.bf16.msra.mxu0 %v4047
  %4948 = vmatprep.subr.bf16.mxu0 %v4045
  %4949 = vmatpush1.bf16.msra.mxu0 %v4044
  %4950 = vmatprep.subr.bf16.mxu0 %v4042
  %4951 = vmatpush1.bf16.msra.mxu0 %v4041
  %4952 = vmatprep.subr.bf16.mxu0 0
  %4953 = vmatpush2.bf16.msra.mxu0 0
  %4954 = vmatprep.subr.bf16.mxu0 0
  %4955 = vmatpush2.bf16.msra.mxu0 0
  %4956 = vmatprep.subr.bf16.mxu0 0
  %4957 = vmatpush2.bf16.msra.mxu0 0
  %4958 = vmatprep.subr.bf16.mxu0 0
  %4959 = vmatpush2.bf16.msra.mxu0 0
  %4960 = vmatprep.subr.bf16.mxu0 0
  %4961 = vmatpush2.bf16.msra.mxu0 0
  %4962 = vmatprep.subr.bf16.mxu0 0
  %4963 = vmatpush2.bf16.msra.mxu0 0
  %4964 = vmatprep.subr.bf16.mxu0 0
  %4965 = vmatpush2.bf16.msra.mxu0 0
  %4966 = vmatprep.subr.bf16.mxu0 0
  %4967 = vmatpush2.bf16.msra.mxu0 0
  %4968 = vmatprep.mubr.bf16.mxu0 0
  %4969 = vmatmul.mubr.bf16.gmra.mxu0 %v4764
  %v4970 = vpop.f32.mrf.mxu0
  %v4971 = vadd.f32 0.0, %v4970
  %v4972 = vpop.f32.mrf.mxu0
  %v4973 = vadd.f32 0.0, %v4972
  %v4974 = vpop.f32.mrf.mxu0
  %v4975 = vpop.f32.mrf.mxu0
  %4976 = vdwg.mxu0
  %4977 = vmatprep.subr.bf16.mxu0 0
  %4978 = vmatpush1.bf16.msra.mxu0 0
  %4979 = vmatprep.subr.bf16.mxu0 0
  %4980 = vmatpush1.bf16.msra.mxu0 0
  %4981 = vmatprep.subr.bf16.mxu0 0
  %4982 = vmatpush1.bf16.msra.mxu0 0
  %4983 = vmatprep.subr.bf16.mxu0 0
  %4984 = vmatpush1.bf16.msra.mxu0 0
  %4985 = vmatprep.subr.bf16.mxu0 0
  %4986 = vmatpush1.bf16.msra.mxu0 0
  %4987 = vmatprep.subr.bf16.mxu0 0
  %4988 = vmatpush1.bf16.msra.mxu0 %v4049
  %4989 = vmatprep.subr.bf16.mxu0 0
  %4990 = vmatpush1.bf16.msra.mxu0 %v4046
  %4991 = vmatprep.subr.bf16.mxu0 0
  %4992 = vmatpush1.bf16.msra.mxu0 %v4043
  %4993 = vmatprep.subr.bf16.mxu0 0
  %4994 = vmatpush2.bf16.msra.mxu0 0
  %4995 = vmatprep.subr.bf16.mxu0 0
  %4996 = vmatpush2.bf16.msra.mxu0 0
  %4997 = vmatprep.subr.bf16.mxu0 0
  %4998 = vmatpush2.bf16.msra.mxu0 0
  %4999 = vmatprep.subr.bf16.mxu0 0
  %5000 = vmatpush2.bf16.msra.mxu0 0
  %5001 = vmatprep.subr.bf16.mxu0 0
  %5002 = vmatpush2.bf16.msra.mxu0 0
  %5003 = vmatprep.subr.bf16.mxu0 0
  %5004 = vmatpush2.bf16.msra.mxu0 0
  %5005 = vmatprep.subr.bf16.mxu0 0
  %5006 = vmatpush2.bf16.msra.mxu0 0
  %5007 = vmatprep.subr.bf16.mxu0 0
  %5008 = vmatpush2.bf16.msra.mxu0 0
  %5009 = vmatprep.mubr.bf16.mxu0 0
  %5010 = vmatmul.mubr.bf16.gmra.mxu0 %v4764
  %v5011 = vpop.f32.mrf.mxu0
  %v5012 = vadd.f32 0.0, %v5011
  %v5013 = vpop.f32.mrf.mxu0
  %v5014 = vpop.f32.mrf.mxu0
  %v5015 = vpop.f32.mrf.mxu0
  %5016 = vdwg.mxu0
  %v5017 = vadd.f32 %v4890, %v4971
  %v5018 = vxor.u32 %v5017, 2147483648
  %v5019 = vmul.f32 %v5018, 1.442695
  %v5020 = vpow.pop %v5019
  %v5021 = vadd.f32 %v5020, 1.0
  %v5022 = vrcp.pop %v5021
  %v5023 = vmul.f32 1.0, %v5022
  %v5024 = vadd.f32 %v4892, %v4973
  %v5025 = vxor.u32 %v5024, 2147483648
  %v5026 = vmul.f32 %v5025, 1.442695
  %v5027 = vpow.pop %v5026
  %v5028 = vadd.f32 %v5027, 1.0
  %v5029 = vrcp.pop %v5028
  %v5030 = vmul.f32 1.0, %v5029
  %v5031 = vadd.f32 %v5012, %v3876
  %v5032 = vmul.f32 %v5023, %v5031
  %v5033 = vadd.f32 %v4931, %v5032
  %v5034 = vtanh.pop %v5033
  %v5035 = vsub.f32 1.0, %v5030
  %v5036 = vmul.f32 %v5035, %v5034
  %v5037 = vmul.f32 %v5030, %v4761
  %v5038 = vadd.f32 %v5036, %v5037
  %v5039 = vpack.c.bf16 %v5038, %v5038
  %v5041 = vsel %vm4059, %v5039, 0
  %5043 = vmatprep.subr.bf16.mxu0 0
  %5044 = vmatpush1.bf16.msra.mxu0 0
  %5045 = vmatprep.subr.bf16.mxu0 0
  %5046 = vmatpush1.bf16.msra.mxu0 0
  %5047 = vmatprep.subr.bf16.mxu0 0
  %5048 = vmatpush1.bf16.msra.mxu0 0
  %5049 = vmatprep.subr.bf16.mxu0 0
  %5050 = vmatpush1.bf16.msra.mxu0 0
  %5051 = vmatprep.subr.bf16.mxu0 0
  %5052 = vmatpush1.bf16.msra.mxu0 0
  %5053 = vmatprep.subr.bf16.mxu0 0
  %5054 = vmatpush1.bf16.msra.mxu0 %v4181
  %5055 = vmatprep.subr.bf16.mxu0 0
  %5056 = vmatpush1.bf16.msra.mxu0 %v4180
  %5057 = vmatprep.subr.bf16.mxu0 0
  %5058 = vmatpush1.bf16.msra.mxu0 %v4179
  %5059 = vmatprep.subr.bf16.mxu0 0
  %5060 = vmatpush2.bf16.msra.mxu0 0
  %5061 = vmatprep.subr.bf16.mxu0 0
  %5062 = vmatpush2.bf16.msra.mxu0 0
  %5063 = vmatprep.subr.bf16.mxu0 0
  %5064 = vmatpush2.bf16.msra.mxu0 0
  %5065 = vmatprep.subr.bf16.mxu0 0
  %5066 = vmatpush2.bf16.msra.mxu0 0
  %5067 = vmatprep.subr.bf16.mxu0 0
  %5068 = vmatpush2.bf16.msra.mxu0 0
  %5069 = vmatprep.subr.bf16.mxu0 0
  %5070 = vmatpush2.bf16.msra.mxu0 0
  %5071 = vmatprep.subr.bf16.mxu0 0
  %5072 = vmatpush2.bf16.msra.mxu0 0
  %5073 = vmatprep.subr.bf16.mxu0 0
  %5074 = vmatpush2.bf16.msra.mxu0 0
  %5075 = vmatprep.mubr.bf16.mxu0 0
  %5076 = vmatmul.mubr.bf16.gmra.mxu0 %v5041
  %v5077 = vpop.f32.mrf.mxu0
  %v5078 = vadd.f32 %v3897, %v5077
  %v5079 = vpop.f32.mrf.mxu0
  %v5080 = vpop.f32.mrf.mxu0
  %v5081 = vpop.f32.mrf.mxu0
  %5082 = vdwg.mxu0
  %v5083 = vmax.f32 %v5078, 0.0
  %v5084 = vpack.c.bf16 %v5083, %v5083
  %v5086 = vsel %vm356, %v5084, 0
  %5088 = vmatprep.subr.bf16.mxu0 0
  %5089 = vmatpush1.bf16.msra.mxu0 0
  %5090 = vmatprep.subr.bf16.mxu0 0
  %5091 = vmatpush1.bf16.msra.mxu0 0
  %5092 = vmatprep.subr.bf16.mxu0 0
  %5093 = vmatpush1.bf16.msra.mxu0 0
  %5094 = vmatprep.subr.bf16.mxu0 0
  %5095 = vmatpush1.bf16.msra.mxu0 0
  %5096 = vmatprep.subr.bf16.mxu0 0
  %5097 = vmatpush1.bf16.msra.mxu0 %v4249
  %5098 = vmatprep.subr.bf16.mxu0 0
  %5099 = vmatpush1.bf16.msra.mxu0 %v4248
  %5100 = vmatprep.subr.bf16.mxu0 0
  %5101 = vmatpush1.bf16.msra.mxu0 %v4247
  %5102 = vmatprep.subr.bf16.mxu0 0
  %5103 = vmatpush1.bf16.msra.mxu0 %v4246
  %5104 = vmatprep.subr.bf16.mxu0 0
  %5105 = vmatpush2.bf16.msra.mxu0 0
  %5106 = vmatprep.subr.bf16.mxu0 0
  %5107 = vmatpush2.bf16.msra.mxu0 0
  %5108 = vmatprep.subr.bf16.mxu0 0
  %5109 = vmatpush2.bf16.msra.mxu0 0
  %5110 = vmatprep.subr.bf16.mxu0 0
  %5111 = vmatpush2.bf16.msra.mxu0 0
  %5112 = vmatprep.subr.bf16.mxu0 0
  %5113 = vmatpush2.bf16.msra.mxu0 0
  %5114 = vmatprep.subr.bf16.mxu0 0
  %5115 = vmatpush2.bf16.msra.mxu0 0
  %5116 = vmatprep.subr.bf16.mxu0 0
  %5117 = vmatpush2.bf16.msra.mxu0 0
  %5118 = vmatprep.subr.bf16.mxu0 0
  %5119 = vmatpush2.bf16.msra.mxu0 0
  %5120 = vmatprep.mubr.bf16.mxu0 0
  %5121 = vmatmul.mubr.bf16.gmra.mxu0 %v5086
  %v5122 = vpop.f32.mrf.mxu0
  %v5123 = vadd.f32 %v3904, %v5122
  %v5124 = vpop.f32.mrf.mxu0
  %v5125 = vpop.f32.mrf.mxu0
  %v5126 = vpop.f32.mrf.mxu0
  %5127 = vdwg.mxu0
  %v5128 = vpack.c.bf16 %v5123, %v5123
  %v5130 = vsel %vm3915, %v5128, 0
  %5132 = vmatprep.subr.bf16.mxu0 0
  %5133 = vmatpush1.bf16.msra.mxu0 0
  %5134 = vmatprep.subr.bf16.mxu0 0
  %5135 = vmatpush1.bf16.msra.mxu0 0
  %5136 = vmatprep.subr.bf16.mxu0 0
  %5137 = vmatpush1.bf16.msra.mxu0 0
  %5138 = vmatprep.subr.bf16.mxu0 0
  %5139 = vmatpush1.bf16.msra.mxu0 0
  %5140 = vmatprep.subr.bf16.mxu0 0
  %5141 = vmatpush1.bf16.msra.mxu0 0
  %5142 = vmatprep.subr.bf16.mxu0 0
  %5143 = vmatpush1.bf16.msra.mxu0 0
  %5144 = vmatprep.subr.bf16.mxu0 0
  %5145 = vmatpush1.bf16.msra.mxu0 0
  %5146 = vmatprep.subr.bf16.mxu0 %v3924
  %5147 = vmatpush1.bf16.msra.mxu0 %v3921
  %5148 = vmatprep.subr.bf16.mxu0 0
  %5149 = vmatpush2.bf16.msra.mxu0 0
  %5150 = vmatprep.subr.bf16.mxu0 0
  %5151 = vmatpush2.bf16.msra.mxu0 0
  %5152 = vmatprep.subr.bf16.mxu0 0
  %5153 = vmatpush2.bf16.msra.mxu0 0
  %5154 = vmatprep.subr.bf16.mxu0 0
  %5155 = vmatpush2.bf16.msra.mxu0 0
  %5156 = vmatprep.subr.bf16.mxu0 0
  %5157 = vmatpush2.bf16.msra.mxu0 0
  %5158 = vmatprep.subr.bf16.mxu0 0
  %5159 = vmatpush2.bf16.msra.mxu0 0
  %5160 = vmatprep.subr.bf16.mxu0 0
  %5161 = vmatpush2.bf16.msra.mxu0 0
  %5162 = vmatprep.subr.bf16.mxu0 0
  %5163 = vmatpush2.bf16.msra.mxu0 0
  %5164 = vmatprep.mubr.bf16.mxu0 0
  %5165 = vmatmul.mubr.bf16.gmra.mxu0 %v5130
  %v5166 = vpop.f32.mrf.mxu0
  %v5167 = vadd.f32 %v3859, %v5166
  %v5168 = vpop.f32.mrf.mxu0
  %v5169 = vadd.f32 %v3863, %v5168
  %v5170 = vpop.f32.mrf.mxu0
  %v5171 = vpop.f32.mrf.mxu0
  %5172 = vdwg.mxu0
  %5173 = vmatprep.subr.bf16.mxu0 0
  %5174 = vmatpush1.bf16.msra.mxu0 0
  %5175 = vmatprep.subr.bf16.mxu0 0
  %5176 = vmatpush1.bf16.msra.mxu0 0
  %5177 = vmatprep.subr.bf16.mxu0 0
  %5178 = vmatpush1.bf16.msra.mxu0 0
  %5179 = vmatprep.subr.bf16.mxu0 0
  %5180 = vmatpush1.bf16.msra.mxu0 0
  %5181 = vmatprep.subr.bf16.mxu0 0
  %5182 = vmatpush1.bf16.msra.mxu0 0
  %5183 = vmatprep.subr.bf16.mxu0 0
  %5184 = vmatpush1.bf16.msra.mxu0 0
  %5185 = vmatprep.subr.bf16.mxu0 0
  %5186 = vmatpush1.bf16.msra.mxu0 0
  %5187 = vmatprep.subr.bf16.mxu0 0
  %5188 = vmatpush1.bf16.msra.mxu0 %v3927
  %5189 = vmatprep.subr.bf16.mxu0 0
  %5190 = vmatpush2.bf16.msra.mxu0 0
  %5191 = vmatprep.subr.bf16.mxu0 0
  %5192 = vmatpush2.bf16.msra.mxu0 0
  %5193 = vmatprep.subr.bf16.mxu0 0
  %5194 = vmatpush2.bf16.msra.mxu0 0
  %5195 = vmatprep.subr.bf16.mxu0 0
  %5196 = vmatpush2.bf16.msra.mxu0 0
  %5197 = vmatprep.subr.bf16.mxu0 0
  %5198 = vmatpush2.bf16.msra.mxu0 0
  %5199 = vmatprep.subr.bf16.mxu0 0
  %5200 = vmatpush2.bf16.msra.mxu0 0
  %5201 = vmatprep.subr.bf16.mxu0 0
  %5202 = vmatpush2.bf16.msra.mxu0 0
  %5203 = vmatprep.subr.bf16.mxu0 0
  %5204 = vmatpush2.bf16.msra.mxu0 0
  %5205 = vmatprep.mubr.bf16.mxu0 0
  %5206 = vmatmul.mubr.bf16.gmra.mxu0 %v5130
  %v5207 = vpop.f32.mrf.mxu0
  %v5208 = vadd.f32 %v3867, %v5207
  %v5209 = vpop.f32.mrf.mxu0
  %v5210 = vpop.f32.mrf.mxu0
  %v5211 = vpop.f32.mrf.mxu0
  %5212 = vdwg.mxu0
  %5213 = vmatprep.subr.bf16.mxu0 0
  %5214 = vmatpush1.bf16.msra.mxu0 0
  %5215 = vmatprep.subr.bf16.mxu0 0
  %5216 = vmatpush1.bf16.msra.mxu0 0
  %5217 = vmatprep.subr.bf16.mxu0 0
  %5218 = vmatpush1.bf16.msra.mxu0 0
  %5219 = vmatprep.subr.bf16.mxu0 0
  %5220 = vmatpush1.bf16.msra.mxu0 0
  %5221 = vmatprep.subr.bf16.mxu0 0
  %5222 = vmatpush1.bf16.msra.mxu0 0
  %5223 = vmatprep.subr.bf16.mxu0 %v4048
  %5224 = vmatpush1.bf16.msra.mxu0 %v4047
  %5225 = vmatprep.subr.bf16.mxu0 %v4045
  %5226 = vmatpush1.bf16.msra.mxu0 %v4044
  %5227 = vmatprep.subr.bf16.mxu0 %v4042
  %5228 = vmatpush1.bf16.msra.mxu0 %v4041
  %5229 = vmatprep.subr.bf16.mxu0 0
  %5230 = vmatpush2.bf16.msra.mxu0 0
  %5231 = vmatprep.subr.bf16.mxu0 0
  %5232 = vmatpush2.bf16.msra.mxu0 0
  %5233 = vmatprep.subr.bf16.mxu0 0
  %5234 = vmatpush2.bf16.msra.mxu0 0
  %5235 = vmatprep.subr.bf16.mxu0 0
  %5236 = vmatpush2.bf16.msra.mxu0 0
  %5237 = vmatprep.subr.bf16.mxu0 0
  %5238 = vmatpush2.bf16.msra.mxu0 0
  %5239 = vmatprep.subr.bf16.mxu0 0
  %5240 = vmatpush2.bf16.msra.mxu0 0
  %5241 = vmatprep.subr.bf16.mxu0 0
  %5242 = vmatpush2.bf16.msra.mxu0 0
  %5243 = vmatprep.subr.bf16.mxu0 0
  %5244 = vmatpush2.bf16.msra.mxu0 0
  %5245 = vmatprep.mubr.bf16.mxu0 0
  %5246 = vmatmul.mubr.bf16.gmra.mxu0 %v5041
  %v5247 = vpop.f32.mrf.mxu0
  %v5248 = vadd.f32 0.0, %v5247
  %v5249 = vpop.f32.mrf.mxu0
  %v5250 = vadd.f32 0.0, %v5249
  %v5251 = vpop.f32.mrf.mxu0
  %v5252 = vpop.f32.mrf.mxu0
  %5253 = vdwg.mxu0
  %5254 = vmatprep.subr.bf16.mxu0 0
  %5255 = vmatpush1.bf16.msra.mxu0 0
  %5256 = vmatprep.subr.bf16.mxu0 0
  %5257 = vmatpush1.bf16.msra.mxu0 0
  %5258 = vmatprep.subr.bf16.mxu0 0
  %5259 = vmatpush1.bf16.msra.mxu0 0
  %5260 = vmatprep.subr.bf16.mxu0 0
  %5261 = vmatpush1.bf16.msra.mxu0 0
  %5262 = vmatprep.subr.bf16.mxu0 0
  %5263 = vmatpush1.bf16.msra.mxu0 0
  %5264 = vmatprep.subr.bf16.mxu0 0
  %5265 = vmatpush1.bf16.msra.mxu0 %v4049
  %5266 = vmatprep.subr.bf16.mxu0 0
  %5267 = vmatpush1.bf16.msra.mxu0 %v4046
  %5268 = vmatprep.subr.bf16.mxu0 0
  %5269 = vmatpush1.bf16.msra.mxu0 %v4043
  %5270 = vmatprep.subr.bf16.mxu0 0
  %5271 = vmatpush2.bf16.msra.mxu0 0
  %5272 = vmatprep.subr.bf16.mxu0 0
  %5273 = vmatpush2.bf16.msra.mxu0 0
  %5274 = vmatprep.subr.bf16.mxu0 0
  %5275 = vmatpush2.bf16.msra.mxu0 0
  %5276 = vmatprep.subr.bf16.mxu0 0
  %5277 = vmatpush2.bf16.msra.mxu0 0
  %5278 = vmatprep.subr.bf16.mxu0 0
  %5279 = vmatpush2.bf16.msra.mxu0 0
  %5280 = vmatprep.subr.bf16.mxu0 0
  %5281 = vmatpush2.bf16.msra.mxu0 0
  %5282 = vmatprep.subr.bf16.mxu0 0
  %5283 = vmatpush2.bf16.msra.mxu0 0
  %5284 = vmatprep.subr.bf16.mxu0 0
  %5285 = vmatpush2.bf16.msra.mxu0 0
  %5286 = vmatprep.mubr.bf16.mxu0 0
  %5287 = vmatmul.mubr.bf16.gmra.mxu0 %v5041
  %v5288 = vpop.f32.mrf.mxu0
  %v5289 = vadd.f32 0.0, %v5288
  %v5290 = vpop.f32.mrf.mxu0
  %v5291 = vpop.f32.mrf.mxu0
  %v5292 = vpop.f32.mrf.mxu0
  %5293 = vdwg.mxu0
  %v5294 = vadd.f32 %v5167, %v5248
  %v5295 = vxor.u32 %v5294, 2147483648
  %v5296 = vmul.f32 %v5295, 1.442695
  %v5297 = vpow.pop %v5296
  %v5298 = vadd.f32 %v5297, 1.0
  %v5299 = vrcp.pop %v5298
  %v5300 = vmul.f32 1.0, %v5299
  %v5301 = vadd.f32 %v5169, %v5250
  %v5302 = vxor.u32 %v5301, 2147483648
  %v5303 = vmul.f32 %v5302, 1.442695
  %v5304 = vpow.pop %v5303
  %v5305 = vadd.f32 %v5304, 1.0
  %v5306 = vrcp.pop %v5305
  %v5307 = vmul.f32 1.0, %v5306
  %v5308 = vadd.f32 %v5289, %v3876
  %v5309 = vmul.f32 %v5300, %v5308
  %v5310 = vadd.f32 %v5208, %v5309
  %v5311 = vtanh.pop %v5310
  %v5312 = vsub.f32 1.0, %v5307
  %v5313 = vmul.f32 %v5312, %v5311
  %v5314 = vmul.f32 %v5307, %v5038
  %v5315 = vadd.f32 %v5313, %v5314
  %v5316 = vpack.c.bf16 %v5315, %v5315
  %v5318 = vsel %vm4059, %v5316, 0
  %5320 = vmatprep.subr.bf16.mxu0 0
  %5321 = vmatpush1.bf16.msra.mxu0 0
  %5322 = vmatprep.subr.bf16.mxu0 0
  %5323 = vmatpush1.bf16.msra.mxu0 0
  %5324 = vmatprep.subr.bf16.mxu0 0
  %5325 = vmatpush1.bf16.msra.mxu0 0
  %5326 = vmatprep.subr.bf16.mxu0 0
  %5327 = vmatpush1.bf16.msra.mxu0 0
  %5328 = vmatprep.subr.bf16.mxu0 0
  %5329 = vmatpush1.bf16.msra.mxu0 0
  %5330 = vmatprep.subr.bf16.mxu0 0
  %5331 = vmatpush1.bf16.msra.mxu0 %v4181
  %5332 = vmatprep.subr.bf16.mxu0 0
  %5333 = vmatpush1.bf16.msra.mxu0 %v4180
  %5334 = vmatprep.subr.bf16.mxu0 0
  %5335 = vmatpush1.bf16.msra.mxu0 %v4179
  %5336 = vmatprep.subr.bf16.mxu0 0
  %5337 = vmatpush2.bf16.msra.mxu0 0
  %5338 = vmatprep.subr.bf16.mxu0 0
  %5339 = vmatpush2.bf16.msra.mxu0 0
  %5340 = vmatprep.subr.bf16.mxu0 0
  %5341 = vmatpush2.bf16.msra.mxu0 0
  %5342 = vmatprep.subr.bf16.mxu0 0
  %5343 = vmatpush2.bf16.msra.mxu0 0
  %5344 = vmatprep.subr.bf16.mxu0 0
  %5345 = vmatpush2.bf16.msra.mxu0 0
  %5346 = vmatprep.subr.bf16.mxu0 0
  %5347 = vmatpush2.bf16.msra.mxu0 0
  %5348 = vmatprep.subr.bf16.mxu0 0
  %5349 = vmatpush2.bf16.msra.mxu0 0
  %5350 = vmatprep.subr.bf16.mxu0 0
  %5351 = vmatpush2.bf16.msra.mxu0 0
  %5352 = vmatprep.mubr.bf16.mxu0 0
  %5353 = vmatmul.mubr.bf16.gmra.mxu0 %v5318
  %v5354 = vpop.f32.mrf.mxu0
  %v5355 = vadd.f32 %v3897, %v5354
  %v5356 = vpop.f32.mrf.mxu0
  %v5357 = vpop.f32.mrf.mxu0
  %v5358 = vpop.f32.mrf.mxu0
  %5359 = vdwg.mxu0
  %v5360 = vmax.f32 %v5355, 0.0
  %v5361 = vpack.c.bf16 %v5360, %v5360
  %v5363 = vsel %vm356, %v5361, 0
  %5365 = vmatprep.subr.bf16.mxu0 0
  %5366 = vmatpush1.bf16.msra.mxu0 0
  %5367 = vmatprep.subr.bf16.mxu0 0
  %5368 = vmatpush1.bf16.msra.mxu0 0
  %5369 = vmatprep.subr.bf16.mxu0 0
  %5370 = vmatpush1.bf16.msra.mxu0 0
  %5371 = vmatprep.subr.bf16.mxu0 0
  %5372 = vmatpush1.bf16.msra.mxu0 0
  %5373 = vmatprep.subr.bf16.mxu0 0
  %5374 = vmatpush1.bf16.msra.mxu0 %v4249
  %5375 = vmatprep.subr.bf16.mxu0 0
  %5376 = vmatpush1.bf16.msra.mxu0 %v4248
  %5377 = vmatprep.subr.bf16.mxu0 0
  %5378 = vmatpush1.bf16.msra.mxu0 %v4247
  %5379 = vmatprep.subr.bf16.mxu0 0
  %5380 = vmatpush1.bf16.msra.mxu0 %v4246
  %5381 = vmatprep.subr.bf16.mxu0 0
  %5382 = vmatpush2.bf16.msra.mxu0 0
  %5383 = vmatprep.subr.bf16.mxu0 0
  %5384 = vmatpush2.bf16.msra.mxu0 0
  %5385 = vmatprep.subr.bf16.mxu0 0
  %5386 = vmatpush2.bf16.msra.mxu0 0
  %5387 = vmatprep.subr.bf16.mxu0 0
  %5388 = vmatpush2.bf16.msra.mxu0 0
  %5389 = vmatprep.subr.bf16.mxu0 0
  %5390 = vmatpush2.bf16.msra.mxu0 0
  %5391 = vmatprep.subr.bf16.mxu0 0
  %5392 = vmatpush2.bf16.msra.mxu0 0
  %5393 = vmatprep.subr.bf16.mxu0 0
  %5394 = vmatpush2.bf16.msra.mxu0 0
  %5395 = vmatprep.subr.bf16.mxu0 0
  %5396 = vmatpush2.bf16.msra.mxu0 0
  %5397 = vmatprep.mubr.bf16.mxu0 0
  %5398 = vmatmul.mubr.bf16.gmra.mxu0 %v5363
  %v5399 = vpop.f32.mrf.mxu0
  %v5400 = vadd.f32 %v3904, %v5399
  %v5401 = vpop.f32.mrf.mxu0
  %v5402 = vpop.f32.mrf.mxu0
  %v5403 = vpop.f32.mrf.mxu0
  %5404 = vdwg.mxu0
  %v5405 = vpack.c.bf16 %v5400, %v5400
  %v5407 = vsel %vm3915, %v5405, 0
  %5409 = vmatprep.subr.bf16.mxu0 0
  %5410 = vmatpush1.bf16.msra.mxu0 0
  %5411 = vmatprep.subr.bf16.mxu0 0
  %5412 = vmatpush1.bf16.msra.mxu0 0
  %5413 = vmatprep.subr.bf16.mxu0 0
  %5414 = vmatpush1.bf16.msra.mxu0 0
  %5415 = vmatprep.subr.bf16.mxu0 0
  %5416 = vmatpush1.bf16.msra.mxu0 0
  %5417 = vmatprep.subr.bf16.mxu0 0
  %5418 = vmatpush1.bf16.msra.mxu0 0
  %5419 = vmatprep.subr.bf16.mxu0 0
  %5420 = vmatpush1.bf16.msra.mxu0 0
  %5421 = vmatprep.subr.bf16.mxu0 0
  %5422 = vmatpush1.bf16.msra.mxu0 0
  %5423 = vmatprep.subr.bf16.mxu0 %v3924
  %5424 = vmatpush1.bf16.msra.mxu0 %v3921
  %5425 = vmatprep.subr.bf16.mxu0 0
  %5426 = vmatpush2.bf16.msra.mxu0 0
  %5427 = vmatprep.subr.bf16.mxu0 0
  %5428 = vmatpush2.bf16.msra.mxu0 0
  %5429 = vmatprep.subr.bf16.mxu0 0
  %5430 = vmatpush2.bf16.msra.mxu0 0
  %5431 = vmatprep.subr.bf16.mxu0 0
  %5432 = vmatpush2.bf16.msra.mxu0 0
  %5433 = vmatprep.subr.bf16.mxu0 0
  %5434 = vmatpush2.bf16.msra.mxu0 0
  %5435 = vmatprep.subr.bf16.mxu0 0
  %5436 = vmatpush2.bf16.msra.mxu0 0
  %5437 = vmatprep.subr.bf16.mxu0 0
  %5438 = vmatpush2.bf16.msra.mxu0 0
  %5439 = vmatprep.subr.bf16.mxu0 0
  %5440 = vmatpush2.bf16.msra.mxu0 0
  %5441 = vmatprep.mubr.bf16.mxu0 0
  %5442 = vmatmul.mubr.bf16.gmra.mxu0 %v5407
  %v5443 = vpop.f32.mrf.mxu0
  %v5444 = vadd.f32 %v3859, %v5443
  %v5445 = vpop.f32.mrf.mxu0
  %v5446 = vadd.f32 %v3863, %v5445
  %v5447 = vpop.f32.mrf.mxu0
  %v5448 = vpop.f32.mrf.mxu0
  %5449 = vdwg.mxu0
  %5450 = vmatprep.subr.bf16.mxu0 0
  %5451 = vmatpush1.bf16.msra.mxu0 0
  %5452 = vmatprep.subr.bf16.mxu0 0
  %5453 = vmatpush1.bf16.msra.mxu0 0
  %5454 = vmatprep.subr.bf16.mxu0 0
  %5455 = vmatpush1.bf16.msra.mxu0 0
  %5456 = vmatprep.subr.bf16.mxu0 0
  %5457 = vmatpush1.bf16.msra.mxu0 0
  %5458 = vmatprep.subr.bf16.mxu0 0
  %5459 = vmatpush1.bf16.msra.mxu0 0
  %5460 = vmatprep.subr.bf16.mxu0 0
  %5461 = vmatpush1.bf16.msra.mxu0 0
  %5462 = vmatprep.subr.bf16.mxu0 0
  %5463 = vmatpush1.bf16.msra.mxu0 0
  %5464 = vmatprep.subr.bf16.mxu0 0
  %5465 = vmatpush1.bf16.msra.mxu0 %v3927
  %5466 = vmatprep.subr.bf16.mxu0 0
  %5467 = vmatpush2.bf16.msra.mxu0 0
  %5468 = vmatprep.subr.bf16.mxu0 0
  %5469 = vmatpush2.bf16.msra.mxu0 0
  %5470 = vmatprep.subr.bf16.mxu0 0
  %5471 = vmatpush2.bf16.msra.mxu0 0
  %5472 = vmatprep.subr.bf16.mxu0 0
  %5473 = vmatpush2.bf16.msra.mxu0 0
  %5474 = vmatprep.subr.bf16.mxu0 0
  %5475 = vmatpush2.bf16.msra.mxu0 0
  %5476 = vmatprep.subr.bf16.mxu0 0
  %5477 = vmatpush2.bf16.msra.mxu0 0
  %5478 = vmatprep.subr.bf16.mxu0 0
  %5479 = vmatpush2.bf16.msra.mxu0 0
  %5480 = vmatprep.subr.bf16.mxu0 0
  %5481 = vmatpush2.bf16.msra.mxu0 0
  %5482 = vmatprep.mubr.bf16.mxu0 0
  %5483 = vmatmul.mubr.bf16.gmra.mxu0 %v5407
  %v5484 = vpop.f32.mrf.mxu0
  %v5485 = vadd.f32 %v3867, %v5484
  %v5486 = vpop.f32.mrf.mxu0
  %v5487 = vpop.f32.mrf.mxu0
  %v5488 = vpop.f32.mrf.mxu0
  %5489 = vdwg.mxu0
  %5490 = vmatprep.subr.bf16.mxu0 0
  %5491 = vmatpush1.bf16.msra.mxu0 0
  %5492 = vmatprep.subr.bf16.mxu0 0
  %5493 = vmatpush1.bf16.msra.mxu0 0
  %5494 = vmatprep.subr.bf16.mxu0 0
  %5495 = vmatpush1.bf16.msra.mxu0 0
  %5496 = vmatprep.subr.bf16.mxu0 0
  %5497 = vmatpush1.bf16.msra.mxu0 0
  %5498 = vmatprep.subr.bf16.mxu0 0
  %5499 = vmatpush1.bf16.msra.mxu0 0
  %5500 = vmatprep.subr.bf16.mxu0 %v4048
  %5501 = vmatpush1.bf16.msra.mxu0 %v4047
  %5502 = vmatprep.subr.bf16.mxu0 %v4045
  %5503 = vmatpush1.bf16.msra.mxu0 %v4044
  %5504 = vmatprep.subr.bf16.mxu0 %v4042
  %5505 = vmatpush1.bf16.msra.mxu0 %v4041
  %5506 = vmatprep.subr.bf16.mxu0 0
  %5507 = vmatpush2.bf16.msra.mxu0 0
  %5508 = vmatprep.subr.bf16.mxu0 0
  %5509 = vmatpush2.bf16.msra.mxu0 0
  %5510 = vmatprep.subr.bf16.mxu0 0
  %5511 = vmatpush2.bf16.msra.mxu0 0
  %5512 = vmatprep.subr.bf16.mxu0 0
  %5513 = vmatpush2.bf16.msra.mxu0 0
  %5514 = vmatprep.subr.bf16.mxu0 0
  %5515 = vmatpush2.bf16.msra.mxu0 0
  %5516 = vmatprep.subr.bf16.mxu0 0
  %5517 = vmatpush2.bf16.msra.mxu0 0
  %5518 = vmatprep.subr.bf16.mxu0 0
  %5519 = vmatpush2.bf16.msra.mxu0 0
  %5520 = vmatprep.subr.bf16.mxu0 0
  %5521 = vmatpush2.bf16.msra.mxu0 0
  %5522 = vmatprep.mubr.bf16.mxu0 0
  %5523 = vmatmul.mubr.bf16.gmra.mxu0 %v5318
  %v5524 = vpop.f32.mrf.mxu0
  %v5525 = vadd.f32 0.0, %v5524
  %v5526 = vpop.f32.mrf.mxu0
  %v5527 = vadd.f32 0.0, %v5526
  %v5528 = vpop.f32.mrf.mxu0
  %v5529 = vpop.f32.mrf.mxu0
  %5530 = vdwg.mxu0
  %5531 = vmatprep.subr.bf16.mxu0 0
  %5532 = vmatpush1.bf16.msra.mxu0 0
  %5533 = vmatprep.subr.bf16.mxu0 0
  %5534 = vmatpush1.bf16.msra.mxu0 0
  %5535 = vmatprep.subr.bf16.mxu0 0
  %5536 = vmatpush1.bf16.msra.mxu0 0
  %5537 = vmatprep.subr.bf16.mxu0 0
  %5538 = vmatpush1.bf16.msra.mxu0 0
  %5539 = vmatprep.subr.bf16.mxu0 0
  %5540 = vmatpush1.bf16.msra.mxu0 0
  %5541 = vmatprep.subr.bf16.mxu0 0
  %5542 = vmatpush1.bf16.msra.mxu0 %v4049
  %5543 = vmatprep.subr.bf16.mxu0 0
  %5544 = vmatpush1.bf16.msra.mxu0 %v4046
  %5545 = vmatprep.subr.bf16.mxu0 0
  %5546 = vmatpush1.bf16.msra.mxu0 %v4043
  %5547 = vmatprep.subr.bf16.mxu0 0
  %5548 = vmatpush2.bf16.msra.mxu0 0
  %5549 = vmatprep.subr.bf16.mxu0 0
  %5550 = vmatpush2.bf16.msra.mxu0 0
  %5551 = vmatprep.subr.bf16.mxu0 0
  %5552 = vmatpush2.bf16.msra.mxu0 0
  %5553 = vmatprep.subr.bf16.mxu0 0
  %5554 = vmatpush2.bf16.msra.mxu0 0
  %5555 = vmatprep.subr.bf16.mxu0 0
  %5556 = vmatpush2.bf16.msra.mxu0 0
  %5557 = vmatprep.subr.bf16.mxu0 0
  %5558 = vmatpush2.bf16.msra.mxu0 0
  %5559 = vmatprep.subr.bf16.mxu0 0
  %5560 = vmatpush2.bf16.msra.mxu0 0
  %5561 = vmatprep.subr.bf16.mxu0 0
  %5562 = vmatpush2.bf16.msra.mxu0 0
  %5563 = vmatprep.mubr.bf16.mxu0 0
  %5564 = vmatmul.mubr.bf16.gmra.mxu0 %v5318
  %v5565 = vpop.f32.mrf.mxu0
  %v5566 = vadd.f32 0.0, %v5565
  %v5567 = vpop.f32.mrf.mxu0
  %v5568 = vpop.f32.mrf.mxu0
  %v5569 = vpop.f32.mrf.mxu0
  %5570 = vdwg.mxu0
  %v5571 = vadd.f32 %v5444, %v5525
  %v5572 = vxor.u32 %v5571, 2147483648
  %v5573 = vmul.f32 %v5572, 1.442695
  %v5574 = vpow.pop %v5573
  %v5575 = vadd.f32 %v5574, 1.0
  %v5576 = vrcp.pop %v5575
  %v5577 = vmul.f32 1.0, %v5576
  %v5578 = vadd.f32 %v5446, %v5527
  %v5579 = vxor.u32 %v5578, 2147483648
  %v5580 = vmul.f32 %v5579, 1.442695
  %v5581 = vpow.pop %v5580
  %v5582 = vadd.f32 %v5581, 1.0
  %v5583 = vrcp.pop %v5582
  %v5584 = vmul.f32 1.0, %v5583
  %v5585 = vadd.f32 %v5566, %v3876
  %v5586 = vmul.f32 %v5577, %v5585
  %v5587 = vadd.f32 %v5485, %v5586
  %v5588 = vtanh.pop %v5587
  %v5589 = vsub.f32 1.0, %v5584
  %v5590 = vmul.f32 %v5589, %v5588
  %v5591 = vmul.f32 %v5584, %v5315
  %v5592 = vadd.f32 %v5590, %v5591
  %v5593 = vpack.c.bf16 %v5592, %v5592
  %v5595 = vsel %vm4059, %v5593, 0
  %5597 = vmatprep.subr.bf16.mxu0 0
  %5598 = vmatpush1.bf16.msra.mxu0 0
  %5599 = vmatprep.subr.bf16.mxu0 0
  %5600 = vmatpush1.bf16.msra.mxu0 0
  %5601 = vmatprep.subr.bf16.mxu0 0
  %5602 = vmatpush1.bf16.msra.mxu0 0
  %5603 = vmatprep.subr.bf16.mxu0 0
  %5604 = vmatpush1.bf16.msra.mxu0 0
  %5605 = vmatprep.subr.bf16.mxu0 0
  %5606 = vmatpush1.bf16.msra.mxu0 0
  %5607 = vmatprep.subr.bf16.mxu0 0
  %5608 = vmatpush1.bf16.msra.mxu0 %v4181
  %5609 = vmatprep.subr.bf16.mxu0 0
  %5610 = vmatpush1.bf16.msra.mxu0 %v4180
  %5611 = vmatprep.subr.bf16.mxu0 0
  %5612 = vmatpush1.bf16.msra.mxu0 %v4179
  %5613 = vmatprep.subr.bf16.mxu0 0
  %5614 = vmatpush2.bf16.msra.mxu0 0
  %5615 = vmatprep.subr.bf16.mxu0 0
  %5616 = vmatpush2.bf16.msra.mxu0 0
  %5617 = vmatprep.subr.bf16.mxu0 0
  %5618 = vmatpush2.bf16.msra.mxu0 0
  %5619 = vmatprep.subr.bf16.mxu0 0
  %5620 = vmatpush2.bf16.msra.mxu0 0
  %5621 = vmatprep.subr.bf16.mxu0 0
  %5622 = vmatpush2.bf16.msra.mxu0 0
  %5623 = vmatprep.subr.bf16.mxu0 0
  %5624 = vmatpush2.bf16.msra.mxu0 0
  %5625 = vmatprep.subr.bf16.mxu0 0
  %5626 = vmatpush2.bf16.msra.mxu0 0
  %5627 = vmatprep.subr.bf16.mxu0 0
  %5628 = vmatpush2.bf16.msra.mxu0 0
  %5629 = vmatprep.mubr.bf16.mxu0 0
  %5630 = vmatmul.mubr.bf16.gmra.mxu0 %v5595
  %v5631 = vpop.f32.mrf.mxu0
  %v5632 = vadd.f32 %v3897, %v5631
  %v5633 = vpop.f32.mrf.mxu0
  %v5634 = vpop.f32.mrf.mxu0
  %v5635 = vpop.f32.mrf.mxu0
  %5636 = vdwg.mxu0
  %v5637 = vmax.f32 %v5632, 0.0
  %v5638 = vpack.c.bf16 %v5637, %v5637
  %v5640 = vsel %vm356, %v5638, 0
  %5642 = vmatprep.subr.bf16.mxu0 0
  %5643 = vmatpush1.bf16.msra.mxu0 0
  %5644 = vmatprep.subr.bf16.mxu0 0
  %5645 = vmatpush1.bf16.msra.mxu0 0
  %5646 = vmatprep.subr.bf16.mxu0 0
  %5647 = vmatpush1.bf16.msra.mxu0 0
  %5648 = vmatprep.subr.bf16.mxu0 0
  %5649 = vmatpush1.bf16.msra.mxu0 0
  %5650 = vmatprep.subr.bf16.mxu0 0
  %5651 = vmatpush1.bf16.msra.mxu0 %v4249
  %5652 = vmatprep.subr.bf16.mxu0 0
  %5653 = vmatpush1.bf16.msra.mxu0 %v4248
  %5654 = vmatprep.subr.bf16.mxu0 0
  %5655 = vmatpush1.bf16.msra.mxu0 %v4247
  %5656 = vmatprep.subr.bf16.mxu0 0
  %5657 = vmatpush1.bf16.msra.mxu0 %v4246
  %5658 = vmatprep.subr.bf16.mxu0 0
  %5659 = vmatpush2.bf16.msra.mxu0 0
  %5660 = vmatprep.subr.bf16.mxu0 0
  %5661 = vmatpush2.bf16.msra.mxu0 0
  %5662 = vmatprep.subr.bf16.mxu0 0
  %5663 = vmatpush2.bf16.msra.mxu0 0
  %5664 = vmatprep.subr.bf16.mxu0 0
  %5665 = vmatpush2.bf16.msra.mxu0 0
  %5666 = vmatprep.subr.bf16.mxu0 0
  %5667 = vmatpush2.bf16.msra.mxu0 0
  %5668 = vmatprep.subr.bf16.mxu0 0
  %5669 = vmatpush2.bf16.msra.mxu0 0
  %5670 = vmatprep.subr.bf16.mxu0 0
  %5671 = vmatpush2.bf16.msra.mxu0 0
  %5672 = vmatprep.subr.bf16.mxu0 0
  %5673 = vmatpush2.bf16.msra.mxu0 0
  %5674 = vmatprep.mubr.bf16.mxu0 0
  %5675 = vmatmul.mubr.bf16.gmra.mxu0 %v5640
  %v5676 = vpop.f32.mrf.mxu0
  %v5677 = vadd.f32 %v3904, %v5676
  %v5678 = vpop.f32.mrf.mxu0
  %v5679 = vpop.f32.mrf.mxu0
  %v5680 = vpop.f32.mrf.mxu0
  %5681 = vdwg.mxu0
  %v5682 = vpack.c.bf16 %v5677, %v5677
  %v5684 = vsel %vm3915, %v5682, 0
  %5686 = vmatprep.subr.bf16.mxu0 0
  %5687 = vmatpush1.bf16.msra.mxu0 0
  %5688 = vmatprep.subr.bf16.mxu0 0
  %5689 = vmatpush1.bf16.msra.mxu0 0
  %5690 = vmatprep.subr.bf16.mxu0 0
  %5691 = vmatpush1.bf16.msra.mxu0 0
  %5692 = vmatprep.subr.bf16.mxu0 0
  %5693 = vmatpush1.bf16.msra.mxu0 0
  %5694 = vmatprep.subr.bf16.mxu0 0
  %5695 = vmatpush1.bf16.msra.mxu0 0
  %5696 = vmatprep.subr.bf16.mxu0 0
  %5697 = vmatpush1.bf16.msra.mxu0 0
  %5698 = vmatprep.subr.bf16.mxu0 0
  %5699 = vmatpush1.bf16.msra.mxu0 0
  %5700 = vmatprep.subr.bf16.mxu0 %v3924
  %5701 = vmatpush1.bf16.msra.mxu0 %v3921
  %5702 = vmatprep.subr.bf16.mxu0 0
  %5703 = vmatpush2.bf16.msra.mxu0 0
  %5704 = vmatprep.subr.bf16.mxu0 0
  %5705 = vmatpush2.bf16.msra.mxu0 0
  %5706 = vmatprep.subr.bf16.mxu0 0
  %5707 = vmatpush2.bf16.msra.mxu0 0
  %5708 = vmatprep.subr.bf16.mxu0 0
  %5709 = vmatpush2.bf16.msra.mxu0 0
  %5710 = vmatprep.subr.bf16.mxu0 0
  %5711 = vmatpush2.bf16.msra.mxu0 0
  %5712 = vmatprep.subr.bf16.mxu0 0
  %5713 = vmatpush2.bf16.msra.mxu0 0
  %5714 = vmatprep.subr.bf16.mxu0 0
  %5715 = vmatpush2.bf16.msra.mxu0 0
  %5716 = vmatprep.subr.bf16.mxu0 0
  %5717 = vmatpush2.bf16.msra.mxu0 0
  %5718 = vmatprep.mubr.bf16.mxu0 0
  %5719 = vmatmul.mubr.bf16.gmra.mxu0 %v5684
  %v5720 = vpop.f32.mrf.mxu0
  %v5721 = vadd.f32 %v3859, %v5720
  %v5722 = vpop.f32.mrf.mxu0
  %v5723 = vadd.f32 %v3863, %v5722
  %v5724 = vpop.f32.mrf.mxu0
  %v5725 = vpop.f32.mrf.mxu0
  %5726 = vdwg.mxu0
  %5727 = vmatprep.subr.bf16.mxu0 0
  %5728 = vmatpush1.bf16.msra.mxu0 0
  %5729 = vmatprep.subr.bf16.mxu0 0
  %5730 = vmatpush1.bf16.msra.mxu0 0
  %5731 = vmatprep.subr.bf16.mxu0 0
  %5732 = vmatpush1.bf16.msra.mxu0 0
  %5733 = vmatprep.subr.bf16.mxu0 0
  %5734 = vmatpush1.bf16.msra.mxu0 0
  %5735 = vmatprep.subr.bf16.mxu0 0
  %5736 = vmatpush1.bf16.msra.mxu0 0
  %5737 = vmatprep.subr.bf16.mxu0 0
  %5738 = vmatpush1.bf16.msra.mxu0 0
  %5739 = vmatprep.subr.bf16.mxu0 0
  %5740 = vmatpush1.bf16.msra.mxu0 0
  %5741 = vmatprep.subr.bf16.mxu0 0
  %5742 = vmatpush1.bf16.msra.mxu0 %v3927
  %5743 = vmatprep.subr.bf16.mxu0 0
  %5744 = vmatpush2.bf16.msra.mxu0 0
  %5745 = vmatprep.subr.bf16.mxu0 0
  %5746 = vmatpush2.bf16.msra.mxu0 0
  %5747 = vmatprep.subr.bf16.mxu0 0
  %5748 = vmatpush2.bf16.msra.mxu0 0
  %5749 = vmatprep.subr.bf16.mxu0 0
  %5750 = vmatpush2.bf16.msra.mxu0 0
  %5751 = vmatprep.subr.bf16.mxu0 0
  %5752 = vmatpush2.bf16.msra.mxu0 0
  %5753 = vmatprep.subr.bf16.mxu0 0
  %5754 = vmatpush2.bf16.msra.mxu0 0
  %5755 = vmatprep.subr.bf16.mxu0 0
  %5756 = vmatpush2.bf16.msra.mxu0 0
  %5757 = vmatprep.subr.bf16.mxu0 0
  %5758 = vmatpush2.bf16.msra.mxu0 0
  %5759 = vmatprep.mubr.bf16.mxu0 0
  %5760 = vmatmul.mubr.bf16.gmra.mxu0 %v5684
  %v5761 = vpop.f32.mrf.mxu0
  %v5762 = vadd.f32 %v3867, %v5761
  %v5763 = vpop.f32.mrf.mxu0
  %v5764 = vpop.f32.mrf.mxu0
  %v5765 = vpop.f32.mrf.mxu0
  %5766 = vdwg.mxu0
  %5767 = vmatprep.subr.bf16.mxu0 0
  %5768 = vmatpush1.bf16.msra.mxu0 0
  %5769 = vmatprep.subr.bf16.mxu0 0
  %5770 = vmatpush1.bf16.msra.mxu0 0
  %5771 = vmatprep.subr.bf16.mxu0 0
  %5772 = vmatpush1.bf16.msra.mxu0 0
  %5773 = vmatprep.subr.bf16.mxu0 0
  %5774 = vmatpush1.bf16.msra.mxu0 0
  %5775 = vmatprep.subr.bf16.mxu0 0
  %5776 = vmatpush1.bf16.msra.mxu0 0
  %5777 = vmatprep.subr.bf16.mxu0 %v4048
  %5778 = vmatpush1.bf16.msra.mxu0 %v4047
  %5779 = vmatprep.subr.bf16.mxu0 %v4045
  %5780 = vmatpush1.bf16.msra.mxu0 %v4044
  %5781 = vmatprep.subr.bf16.mxu0 %v4042
  %5782 = vmatpush1.bf16.msra.mxu0 %v4041
  %5783 = vmatprep.subr.bf16.mxu0 0
  %5784 = vmatpush2.bf16.msra.mxu0 0
  %5785 = vmatprep.subr.bf16.mxu0 0
  %5786 = vmatpush2.bf16.msra.mxu0 0
  %5787 = vmatprep.subr.bf16.mxu0 0
  %5788 = vmatpush2.bf16.msra.mxu0 0
  %5789 = vmatprep.subr.bf16.mxu0 0
  %5790 = vmatpush2.bf16.msra.mxu0 0
  %5791 = vmatprep.subr.bf16.mxu0 0
  %5792 = vmatpush2.bf16.msra.mxu0 0
  %5793 = vmatprep.subr.bf16.mxu0 0
  %5794 = vmatpush2.bf16.msra.mxu0 0
  %5795 = vmatprep.subr.bf16.mxu0 0
  %5796 = vmatpush2.bf16.msra.mxu0 0
  %5797 = vmatprep.subr.bf16.mxu0 0
  %5798 = vmatpush2.bf16.msra.mxu0 0
  %5799 = vmatprep.mubr.bf16.mxu0 0
  %5800 = vmatmul.mubr.bf16.gmra.mxu0 %v5595
  %v5801 = vpop.f32.mrf.mxu0
  %v5802 = vadd.f32 0.0, %v5801
  %v5803 = vpop.f32.mrf.mxu0
  %v5804 = vadd.f32 0.0, %v5803
  %v5805 = vpop.f32.mrf.mxu0
  %v5806 = vpop.f32.mrf.mxu0
  %5807 = vdwg.mxu0
  %5808 = vmatprep.subr.bf16.mxu0 0
  %5809 = vmatpush1.bf16.msra.mxu0 0
  %5810 = vmatprep.subr.bf16.mxu0 0
  %5811 = vmatpush1.bf16.msra.mxu0 0
  %5812 = vmatprep.subr.bf16.mxu0 0
  %5813 = vmatpush1.bf16.msra.mxu0 0
  %5814 = vmatprep.subr.bf16.mxu0 0
  %5815 = vmatpush1.bf16.msra.mxu0 0
  %5816 = vmatprep.subr.bf16.mxu0 0
  %5817 = vmatpush1.bf16.msra.mxu0 0
  %5818 = vmatprep.subr.bf16.mxu0 0
  %5819 = vmatpush1.bf16.msra.mxu0 %v4049
  %5820 = vmatprep.subr.bf16.mxu0 0
  %5821 = vmatpush1.bf16.msra.mxu0 %v4046
  %5822 = vmatprep.subr.bf16.mxu0 0
  %5823 = vmatpush1.bf16.msra.mxu0 %v4043
  %5824 = vmatprep.subr.bf16.mxu0 0
  %5825 = vmatpush2.bf16.msra.mxu0 0
  %5826 = vmatprep.subr.bf16.mxu0 0
  %5827 = vmatpush2.bf16.msra.mxu0 0
  %5828 = vmatprep.subr.bf16.mxu0 0
  %5829 = vmatpush2.bf16.msra.mxu0 0
  %5830 = vmatprep.subr.bf16.mxu0 0
  %5831 = vmatpush2.bf16.msra.mxu0 0
  %5832 = vmatprep.subr.bf16.mxu0 0
  %5833 = vmatpush2.bf16.msra.mxu0 0
  %5834 = vmatprep.subr.bf16.mxu0 0
  %5835 = vmatpush2.bf16.msra.mxu0 0
  %5836 = vmatprep.subr.bf16.mxu0 0
  %5837 = vmatpush2.bf16.msra.mxu0 0
  %5838 = vmatprep.subr.bf16.mxu0 0
  %5839 = vmatpush2.bf16.msra.mxu0 0
  %5840 = vmatprep.mubr.bf16.mxu0 0
  %5841 = vmatmul.mubr.bf16.gmra.mxu0 %v5595
  %v5842 = vpop.f32.mrf.mxu0
  %v5843 = vadd.f32 0.0, %v5842
  %v5844 = vpop.f32.mrf.mxu0
  %v5845 = vpop.f32.mrf.mxu0
  %v5846 = vpop.f32.mrf.mxu0
  %5847 = vdwg.mxu0
  %v5848 = vadd.f32 %v5721, %v5802
  %v5849 = vxor.u32 %v5848, 2147483648
  %v5850 = vmul.f32 %v5849, 1.442695
  %v5851 = vpow.pop %v5850
  %v5852 = vadd.f32 %v5851, 1.0
  %v5853 = vrcp.pop %v5852
  %v5854 = vmul.f32 1.0, %v5853
  %v5855 = vadd.f32 %v5723, %v5804
  %v5856 = vxor.u32 %v5855, 2147483648
  %v5857 = vmul.f32 %v5856, 1.442695
  %v5858 = vpow.pop %v5857
  %v5859 = vadd.f32 %v5858, 1.0
  %v5860 = vrcp.pop %v5859
  %v5861 = vmul.f32 1.0, %v5860
  %v5862 = vadd.f32 %v5843, %v3876
  %v5863 = vmul.f32 %v5854, %v5862
  %v5864 = vadd.f32 %v5762, %v5863
  %v5865 = vtanh.pop %v5864
  %v5866 = vsub.f32 1.0, %v5861
  %v5867 = vmul.f32 %v5866, %v5865
  %v5868 = vmul.f32 %v5861, %v5592
  %v5869 = vadd.f32 %v5867, %v5868
  %v5870 = vpack.c.bf16 %v5869, %v5869
  %v5872 = vsel %vm4059, %v5870, 0
  %5874 = vmatprep.subr.bf16.mxu0 0
  %5875 = vmatpush1.bf16.msra.mxu0 0
  %5876 = vmatprep.subr.bf16.mxu0 0
  %5877 = vmatpush1.bf16.msra.mxu0 0
  %5878 = vmatprep.subr.bf16.mxu0 0
  %5879 = vmatpush1.bf16.msra.mxu0 0
  %5880 = vmatprep.subr.bf16.mxu0 0
  %5881 = vmatpush1.bf16.msra.mxu0 0
  %5882 = vmatprep.subr.bf16.mxu0 0
  %5883 = vmatpush1.bf16.msra.mxu0 0
  %5884 = vmatprep.subr.bf16.mxu0 0
  %5885 = vmatpush1.bf16.msra.mxu0 %v4181
  %5886 = vmatprep.subr.bf16.mxu0 0
  %5887 = vmatpush1.bf16.msra.mxu0 %v4180
  %5888 = vmatprep.subr.bf16.mxu0 0
  %5889 = vmatpush1.bf16.msra.mxu0 %v4179
  %5890 = vmatprep.subr.bf16.mxu0 0
  %5891 = vmatpush2.bf16.msra.mxu0 0
  %5892 = vmatprep.subr.bf16.mxu0 0
  %5893 = vmatpush2.bf16.msra.mxu0 0
  %5894 = vmatprep.subr.bf16.mxu0 0
  %5895 = vmatpush2.bf16.msra.mxu0 0
  %5896 = vmatprep.subr.bf16.mxu0 0
  %5897 = vmatpush2.bf16.msra.mxu0 0
  %5898 = vmatprep.subr.bf16.mxu0 0
  %5899 = vmatpush2.bf16.msra.mxu0 0
  %5900 = vmatprep.subr.bf16.mxu0 0
  %5901 = vmatpush2.bf16.msra.mxu0 0
  %5902 = vmatprep.subr.bf16.mxu0 0
  %5903 = vmatpush2.bf16.msra.mxu0 0
  %5904 = vmatprep.subr.bf16.mxu0 0
  %5905 = vmatpush2.bf16.msra.mxu0 0
  %5906 = vmatprep.mubr.bf16.mxu0 0
  %5907 = vmatmul.mubr.bf16.gmra.mxu0 %v5872
  %v5908 = vpop.f32.mrf.mxu0
  %v5909 = vadd.f32 %v3897, %v5908
  %v5910 = vpop.f32.mrf.mxu0
  %v5911 = vpop.f32.mrf.mxu0
  %v5912 = vpop.f32.mrf.mxu0
  %5913 = vdwg.mxu0
  %v5914 = vmax.f32 %v5909, 0.0
  %v5915 = vpack.c.bf16 %v5914, %v5914
  %v5917 = vsel %vm356, %v5915, 0
  %5919 = vmatprep.subr.bf16.mxu0 0
  %5920 = vmatpush1.bf16.msra.mxu0 0
  %5921 = vmatprep.subr.bf16.mxu0 0
  %5922 = vmatpush1.bf16.msra.mxu0 0
  %5923 = vmatprep.subr.bf16.mxu0 0
  %5924 = vmatpush1.bf16.msra.mxu0 0
  %5925 = vmatprep.subr.bf16.mxu0 0
  %5926 = vmatpush1.bf16.msra.mxu0 0
  %5927 = vmatprep.subr.bf16.mxu0 0
  %5928 = vmatpush1.bf16.msra.mxu0 %v4249
  %5929 = vmatprep.subr.bf16.mxu0 0
  %5930 = vmatpush1.bf16.msra.mxu0 %v4248
  %5931 = vmatprep.subr.bf16.mxu0 0
  %5932 = vmatpush1.bf16.msra.mxu0 %v4247
  %5933 = vmatprep.subr.bf16.mxu0 0
  %5934 = vmatpush1.bf16.msra.mxu0 %v4246
  %5935 = vmatprep.subr.bf16.mxu0 0
  %5936 = vmatpush2.bf16.msra.mxu0 0
  %5937 = vmatprep.subr.bf16.mxu0 0
  %5938 = vmatpush2.bf16.msra.mxu0 0
  %5939 = vmatprep.subr.bf16.mxu0 0
  %5940 = vmatpush2.bf16.msra.mxu0 0
  %5941 = vmatprep.subr.bf16.mxu0 0
  %5942 = vmatpush2.bf16.msra.mxu0 0
  %5943 = vmatprep.subr.bf16.mxu0 0
  %5944 = vmatpush2.bf16.msra.mxu0 0
  %5945 = vmatprep.subr.bf16.mxu0 0
  %5946 = vmatpush2.bf16.msra.mxu0 0
  %5947 = vmatprep.subr.bf16.mxu0 0
  %5948 = vmatpush2.bf16.msra.mxu0 0
  %5949 = vmatprep.subr.bf16.mxu0 0
  %5950 = vmatpush2.bf16.msra.mxu0 0
  %5951 = vmatprep.mubr.bf16.mxu0 0
  %5952 = vmatmul.mubr.bf16.gmra.mxu0 %v5917
  %v5953 = vpop.f32.mrf.mxu0
  %v5954 = vadd.f32 %v3904, %v5953
  %v5955 = vpop.f32.mrf.mxu0
  %v5956 = vpop.f32.mrf.mxu0
  %v5957 = vpop.f32.mrf.mxu0
  %5958 = vdwg.mxu0
  %v5959 = vpack.c.bf16 %v5954, %v5954
  %v5961 = vsel %vm3915, %v5959, 0
  %5963 = vmatprep.subr.bf16.mxu0 0
  %5964 = vmatpush1.bf16.msra.mxu0 0
  %5965 = vmatprep.subr.bf16.mxu0 0
  %5966 = vmatpush1.bf16.msra.mxu0 0
  %5967 = vmatprep.subr.bf16.mxu0 0
  %5968 = vmatpush1.bf16.msra.mxu0 0
  %5969 = vmatprep.subr.bf16.mxu0 0
  %5970 = vmatpush1.bf16.msra.mxu0 0
  %5971 = vmatprep.subr.bf16.mxu0 0
  %5972 = vmatpush1.bf16.msra.mxu0 0
  %5973 = vmatprep.subr.bf16.mxu0 0
  %5974 = vmatpush1.bf16.msra.mxu0 0
  %5975 = vmatprep.subr.bf16.mxu0 0
  %5976 = vmatpush1.bf16.msra.mxu0 0
  %5977 = vmatprep.subr.bf16.mxu0 %v3924
  %5978 = vmatpush1.bf16.msra.mxu0 %v3921
  %5979 = vmatprep.subr.bf16.mxu0 0
  %5980 = vmatpush2.bf16.msra.mxu0 0
  %5981 = vmatprep.subr.bf16.mxu0 0
  %5982 = vmatpush2.bf16.msra.mxu0 0
  %5983 = vmatprep.subr.bf16.mxu0 0
  %5984 = vmatpush2.bf16.msra.mxu0 0
  %5985 = vmatprep.subr.bf16.mxu0 0
  %5986 = vmatpush2.bf16.msra.mxu0 0
  %5987 = vmatprep.subr.bf16.mxu0 0
  %5988 = vmatpush2.bf16.msra.mxu0 0
  %5989 = vmatprep.subr.bf16.mxu0 0
  %5990 = vmatpush2.bf16.msra.mxu0 0
  %5991 = vmatprep.subr.bf16.mxu0 0
  %5992 = vmatpush2.bf16.msra.mxu0 0
  %5993 = vmatprep.subr.bf16.mxu0 0
  %5994 = vmatpush2.bf16.msra.mxu0 0
  %5995 = vmatprep.mubr.bf16.mxu0 0
  %5996 = vmatmul.mubr.bf16.gmra.mxu0 %v5961
  %v5997 = vpop.f32.mrf.mxu0
  %v5998 = vadd.f32 %v3859, %v5997
  %v5999 = vpop.f32.mrf.mxu0
  %v6000 = vadd.f32 %v3863, %v5999
  %v6001 = vpop.f32.mrf.mxu0
  %v6002 = vpop.f32.mrf.mxu0
  %6003 = vdwg.mxu0
  %6004 = vmatprep.subr.bf16.mxu0 0
  %6005 = vmatpush1.bf16.msra.mxu0 0
  %6006 = vmatprep.subr.bf16.mxu0 0
  %6007 = vmatpush1.bf16.msra.mxu0 0
  %6008 = vmatprep.subr.bf16.mxu0 0
  %6009 = vmatpush1.bf16.msra.mxu0 0
  %6010 = vmatprep.subr.bf16.mxu0 0
  %6011 = vmatpush1.bf16.msra.mxu0 0
  %6012 = vmatprep.subr.bf16.mxu0 0
  %6013 = vmatpush1.bf16.msra.mxu0 0
  %6014 = vmatprep.subr.bf16.mxu0 0
  %6015 = vmatpush1.bf16.msra.mxu0 0
  %6016 = vmatprep.subr.bf16.mxu0 0
  %6017 = vmatpush1.bf16.msra.mxu0 0
  %6018 = vmatprep.subr.bf16.mxu0 0
  %6019 = vmatpush1.bf16.msra.mxu0 %v3927
  %6020 = vmatprep.subr.bf16.mxu0 0
  %6021 = vmatpush2.bf16.msra.mxu0 0
  %6022 = vmatprep.subr.bf16.mxu0 0
  %6023 = vmatpush2.bf16.msra.mxu0 0
  %6024 = vmatprep.subr.bf16.mxu0 0
  %6025 = vmatpush2.bf16.msra.mxu0 0
  %6026 = vmatprep.subr.bf16.mxu0 0
  %6027 = vmatpush2.bf16.msra.mxu0 0
  %6028 = vmatprep.subr.bf16.mxu0 0
  %6029 = vmatpush2.bf16.msra.mxu0 0
  %6030 = vmatprep.subr.bf16.mxu0 0
  %6031 = vmatpush2.bf16.msra.mxu0 0
  %6032 = vmatprep.subr.bf16.mxu0 0
  %6033 = vmatpush2.bf16.msra.mxu0 0
  %6034 = vmatprep.subr.bf16.mxu0 0
  %6035 = vmatpush2.bf16.msra.mxu0 0
  %6036 = vmatprep.mubr.bf16.mxu0 0
  %6037 = vmatmul.mubr.bf16.gmra.mxu0 %v5961
  %v6038 = vpop.f32.mrf.mxu0
  %v6039 = vadd.f32 %v3867, %v6038
  %v6040 = vpop.f32.mrf.mxu0
  %v6041 = vpop.f32.mrf.mxu0
  %v6042 = vpop.f32.mrf.mxu0
  %6043 = vdwg.mxu0
  %6044 = vmatprep.subr.bf16.mxu0 0
  %6045 = vmatpush1.bf16.msra.mxu0 0
  %6046 = vmatprep.subr.bf16.mxu0 0
  %6047 = vmatpush1.bf16.msra.mxu0 0
  %6048 = vmatprep.subr.bf16.mxu0 0
  %6049 = vmatpush1.bf16.msra.mxu0 0
  %6050 = vmatprep.subr.bf16.mxu0 0
  %6051 = vmatpush1.bf16.msra.mxu0 0
  %6052 = vmatprep.subr.bf16.mxu0 0
  %6053 = vmatpush1.bf16.msra.mxu0 0
  %6054 = vmatprep.subr.bf16.mxu0 %v4048
  %6055 = vmatpush1.bf16.msra.mxu0 %v4047
  %6056 = vmatprep.subr.bf16.mxu0 %v4045
  %6057 = vmatpush1.bf16.msra.mxu0 %v4044
  %6058 = vmatprep.subr.bf16.mxu0 %v4042
  %6059 = vmatpush1.bf16.msra.mxu0 %v4041
  %6060 = vmatprep.subr.bf16.mxu0 0
  %6061 = vmatpush2.bf16.msra.mxu0 0
  %6062 = vmatprep.subr.bf16.mxu0 0
  %6063 = vmatpush2.bf16.msra.mxu0 0
  %6064 = vmatprep.subr.bf16.mxu0 0
  %6065 = vmatpush2.bf16.msra.mxu0 0
  %6066 = vmatprep.subr.bf16.mxu0 0
  %6067 = vmatpush2.bf16.msra.mxu0 0
  %6068 = vmatprep.subr.bf16.mxu0 0
  %6069 = vmatpush2.bf16.msra.mxu0 0
  %6070 = vmatprep.subr.bf16.mxu0 0
  %6071 = vmatpush2.bf16.msra.mxu0 0
  %6072 = vmatprep.subr.bf16.mxu0 0
  %6073 = vmatpush2.bf16.msra.mxu0 0
  %6074 = vmatprep.subr.bf16.mxu0 0
  %6075 = vmatpush2.bf16.msra.mxu0 0
  %6076 = vmatprep.mubr.bf16.mxu0 0
  %6077 = vmatmul.mubr.bf16.gmra.mxu0 %v5872
  %v6078 = vpop.f32.mrf.mxu0
  %v6079 = vadd.f32 0.0, %v6078
  %v6080 = vpop.f32.mrf.mxu0
  %v6081 = vadd.f32 0.0, %v6080
  %v6082 = vpop.f32.mrf.mxu0
  %v6083 = vpop.f32.mrf.mxu0
  %6084 = vdwg.mxu0
  %6085 = vmatprep.subr.bf16.mxu0 0
  %6086 = vmatpush1.bf16.msra.mxu0 0
  %6087 = vmatprep.subr.bf16.mxu0 0
  %6088 = vmatpush1.bf16.msra.mxu0 0
  %6089 = vmatprep.subr.bf16.mxu0 0
  %6090 = vmatpush1.bf16.msra.mxu0 0
  %6091 = vmatprep.subr.bf16.mxu0 0
  %6092 = vmatpush1.bf16.msra.mxu0 0
  %6093 = vmatprep.subr.bf16.mxu0 0
  %6094 = vmatpush1.bf16.msra.mxu0 0
  %6095 = vmatprep.subr.bf16.mxu0 0
  %6096 = vmatpush1.bf16.msra.mxu0 %v4049
  %6097 = vmatprep.subr.bf16.mxu0 0
  %6098 = vmatpush1.bf16.msra.mxu0 %v4046
  %6099 = vmatprep.subr.bf16.mxu0 0
  %6100 = vmatpush1.bf16.msra.mxu0 %v4043
  %6101 = vmatprep.subr.bf16.mxu0 0
  %6102 = vmatpush2.bf16.msra.mxu0 0
  %6103 = vmatprep.subr.bf16.mxu0 0
  %6104 = vmatpush2.bf16.msra.mxu0 0
  %6105 = vmatprep.subr.bf16.mxu0 0
  %6106 = vmatpush2.bf16.msra.mxu0 0
  %6107 = vmatprep.subr.bf16.mxu0 0
  %6108 = vmatpush2.bf16.msra.mxu0 0
  %6109 = vmatprep.subr.bf16.mxu0 0
  %6110 = vmatpush2.bf16.msra.mxu0 0
  %6111 = vmatprep.subr.bf16.mxu0 0
  %6112 = vmatpush2.bf16.msra.mxu0 0
  %6113 = vmatprep.subr.bf16.mxu0 0
  %6114 = vmatpush2.bf16.msra.mxu0 0
  %6115 = vmatprep.subr.bf16.mxu0 0
  %6116 = vmatpush2.bf16.msra.mxu0 0
  %6117 = vmatprep.mubr.bf16.mxu0 0
  %6118 = vmatmul.mubr.bf16.gmra.mxu0 %v5872
  %v6119 = vpop.f32.mrf.mxu0
  %v6120 = vadd.f32 0.0, %v6119
  %v6121 = vpop.f32.mrf.mxu0
  %v6122 = vpop.f32.mrf.mxu0
  %v6123 = vpop.f32.mrf.mxu0
  %6124 = vdwg.mxu0
  %v6125 = vadd.f32 %v5998, %v6079
  %v6126 = vxor.u32 %v6125, 2147483648
  %v6127 = vmul.f32 %v6126, 1.442695
  %v6128 = vpow.pop %v6127
  %v6129 = vadd.f32 %v6128, 1.0
  %v6130 = vrcp.pop %v6129
  %v6131 = vmul.f32 1.0, %v6130
  %v6132 = vadd.f32 %v6000, %v6081
  %v6133 = vxor.u32 %v6132, 2147483648
  %v6134 = vmul.f32 %v6133, 1.442695
  %v6135 = vpow.pop %v6134
  %v6136 = vadd.f32 %v6135, 1.0
  %v6137 = vrcp.pop %v6136
  %v6138 = vmul.f32 1.0, %v6137
  %v6139 = vadd.f32 %v6120, %v3876
  %v6140 = vmul.f32 %v6131, %v6139
  %v6141 = vadd.f32 %v6039, %v6140
  %v6142 = vtanh.pop %v6141
  %v6143 = vsub.f32 1.0, %v6138
  %v6144 = vmul.f32 %v6143, %v6142
  %v6145 = vmul.f32 %v6138, %v5869
  %v6146 = vadd.f32 %v6144, %v6145
  %v6147 = vpack.c.bf16 %v6146, %v6146
  %v6149 = vsel %vm4059, %v6147, 0
  %6151 = vmatprep.subr.bf16.mxu0 0
  %6152 = vmatpush1.bf16.msra.mxu0 0
  %6153 = vmatprep.subr.bf16.mxu0 0
  %6154 = vmatpush1.bf16.msra.mxu0 0
  %6155 = vmatprep.subr.bf16.mxu0 0
  %6156 = vmatpush1.bf16.msra.mxu0 0
  %6157 = vmatprep.subr.bf16.mxu0 0
  %6158 = vmatpush1.bf16.msra.mxu0 0
  %6159 = vmatprep.subr.bf16.mxu0 0
  %6160 = vmatpush1.bf16.msra.mxu0 0
  %6161 = vmatprep.subr.bf16.mxu0 0
  %6162 = vmatpush1.bf16.msra.mxu0 %v4181
  %6163 = vmatprep.subr.bf16.mxu0 0
  %6164 = vmatpush1.bf16.msra.mxu0 %v4180
  %6165 = vmatprep.subr.bf16.mxu0 0
  %6166 = vmatpush1.bf16.msra.mxu0 %v4179
  %6167 = vmatprep.subr.bf16.mxu0 0
  %6168 = vmatpush2.bf16.msra.mxu0 0
  %6169 = vmatprep.subr.bf16.mxu0 0
  %6170 = vmatpush2.bf16.msra.mxu0 0
  %6171 = vmatprep.subr.bf16.mxu0 0
  %6172 = vmatpush2.bf16.msra.mxu0 0
  %6173 = vmatprep.subr.bf16.mxu0 0
  %6174 = vmatpush2.bf16.msra.mxu0 0
  %6175 = vmatprep.subr.bf16.mxu0 0
  %6176 = vmatpush2.bf16.msra.mxu0 0
  %6177 = vmatprep.subr.bf16.mxu0 0
  %6178 = vmatpush2.bf16.msra.mxu0 0
  %6179 = vmatprep.subr.bf16.mxu0 0
  %6180 = vmatpush2.bf16.msra.mxu0 0
  %6181 = vmatprep.subr.bf16.mxu0 0
  %6182 = vmatpush2.bf16.msra.mxu0 0
  %6183 = vmatprep.mubr.bf16.mxu0 0
  %6184 = vmatmul.mubr.bf16.gmra.mxu0 %v6149
  %v6185 = vpop.f32.mrf.mxu0
  %v6186 = vadd.f32 %v3897, %v6185
  %v6187 = vpop.f32.mrf.mxu0
  %v6188 = vpop.f32.mrf.mxu0
  %v6189 = vpop.f32.mrf.mxu0
  %6190 = vdwg.mxu0
  %v6191 = vmax.f32 %v6186, 0.0
  %v6192 = vpack.c.bf16 %v6191, %v6191
  %v6194 = vsel %vm356, %v6192, 0
  %6196 = vmatprep.subr.bf16.mxu0 0
  %6197 = vmatpush1.bf16.msra.mxu0 0
  %6198 = vmatprep.subr.bf16.mxu0 0
  %6199 = vmatpush1.bf16.msra.mxu0 0
  %6200 = vmatprep.subr.bf16.mxu0 0
  %6201 = vmatpush1.bf16.msra.mxu0 0
  %6202 = vmatprep.subr.bf16.mxu0 0
  %6203 = vmatpush1.bf16.msra.mxu0 0
  %6204 = vmatprep.subr.bf16.mxu0 0
  %6205 = vmatpush1.bf16.msra.mxu0 %v4249
  %6206 = vmatprep.subr.bf16.mxu0 0
  %6207 = vmatpush1.bf16.msra.mxu0 %v4248
  %6208 = vmatprep.subr.bf16.mxu0 0
  %6209 = vmatpush1.bf16.msra.mxu0 %v4247
  %6210 = vmatprep.subr.bf16.mxu0 0
  %6211 = vmatpush1.bf16.msra.mxu0 %v4246
  %6212 = vmatprep.subr.bf16.mxu0 0
  %6213 = vmatpush2.bf16.msra.mxu0 0
  %6214 = vmatprep.subr.bf16.mxu0 0
  %6215 = vmatpush2.bf16.msra.mxu0 0
  %6216 = vmatprep.subr.bf16.mxu0 0
  %6217 = vmatpush2.bf16.msra.mxu0 0
  %6218 = vmatprep.subr.bf16.mxu0 0
  %6219 = vmatpush2.bf16.msra.mxu0 0
  %6220 = vmatprep.subr.bf16.mxu0 0
  %6221 = vmatpush2.bf16.msra.mxu0 0
  %6222 = vmatprep.subr.bf16.mxu0 0
  %6223 = vmatpush2.bf16.msra.mxu0 0
  %6224 = vmatprep.subr.bf16.mxu0 0
  %6225 = vmatpush2.bf16.msra.mxu0 0
  %6226 = vmatprep.subr.bf16.mxu0 0
  %6227 = vmatpush2.bf16.msra.mxu0 0
  %6228 = vmatprep.mubr.bf16.mxu0 0
  %6229 = vmatmul.mubr.bf16.gmra.mxu0 %v6194
  %v6230 = vpop.f32.mrf.mxu0
  %v6231 = vadd.f32 %v3904, %v6230
  %v6232 = vpop.f32.mrf.mxu0
  %v6233 = vpop.f32.mrf.mxu0
  %v6234 = vpop.f32.mrf.mxu0
  %6235 = vdwg.mxu0
  %6237 = vrot.lane.b32.xlu0 %v4569, 8
  %v6238 = vpop.permute.xlu0 %6237
  %6241 = vrot.lane.b32.xlu0 %v4846, 16
  %v6242 = vpop.permute.xlu0 %6241
  %6245 = vrot.lane.b32.xlu0 %v5123, 24
  %v6246 = vpop.permute.xlu0 %6245
  %6249 = vrot.lane.b32.xlu0 %v5400, 32
  %v6250 = vpop.permute.xlu0 %6249
  %6253 = vrot.lane.b32.xlu0 %v5677, 40
  %v6254 = vpop.permute.xlu0 %6253
  %6257 = vrot.lane.b32.xlu0 %v5954, 48
  %v6258 = vpop.permute.xlu0 %6257
  %6261 = vrot.lane.b32.xlu0 %v6231, 56
  %v6262 = vpop.permute.xlu0 %6261
  %v6264 = vsel %vm3915, %v4292, %v6238
  %v6265 = vsel %vm118, %v6264, %v6242
  %vm6266 = vcmask 195584
  %v6267 = vsel %vm6266, %v6265, %v6246
  %v6268 = vsel %vm3838, %v6267, %v6250
  %vm6269 = vcmask 326656
  %v6270 = vsel %vm6269, %v6268, %v6254
  %v6271 = vsel %vm4059, %v6270, %v6258
  %vm6272 = vcmask 457728
  %v6273 = vsel %vm6272, %v6271, %v6262
  %6274 = vst.msk [vmem:[%s20] sm:$0xff] %vm356, %v6273
  // Predicated region
  $region82: #{cvae_forward.1} parent=0 // pred_check
    _
  $region83: #{cvae_forward.1} parent=0 // pred_check_branch
    %6276 = sbr.rel (0) target = $region85
  $region84: #{cvae_forward.1} parent=0 // pred_region
    _
  $region85: #{cvae_forward.1} parent=0 // pred_fallthru
    _
  // Predicated region
  $region86: #{cvae_forward.1} parent=0 // pred_check
    _
  $region87: #{cvae_forward.1} parent=0 // pred_check_branch
    %6278 = sbr.rel (0) target = $region89
  $region88: #{cvae_forward.1} parent=0 // pred_region
    _
  $region89: #{cvae_forward.1} parent=0 // pred_fallthru
    _
  // Predicated region
  $region90: #{cvae_forward.1} parent=0 // pred_check
    _
  $region91: #{cvae_forward.1} parent=0 // pred_check_branch
    %6280 = sbr.rel (0) target = $region93
  $region92: #{cvae_forward.1} parent=0 // pred_region
    _
  $region93: #{cvae_forward.1} parent=0 // pred_fallthru
    _
  // Predicated region
  $region94: #{cvae_forward.1} parent=0 // pred_check
    _
  $region95: #{cvae_forward.1} parent=0 // pred_check_branch
    %6282 = sbr.rel (0) target = $region97
  $region96: #{cvae_forward.1} parent=0 // pred_region
    _
  $region97: #{cvae_forward.1} parent=0 // pred_fallthru
    _
  // Predicated region
  $region98: #{cvae_forward.1} parent=0 // pred_check
    _
  $region99: #{cvae_forward.1} parent=0 // pred_check_branch
    %6284 = sbr.rel (0) target = $region101
  $region100: #{cvae_forward.1} parent=0 // pred_region
    _
  $region101: #{cvae_forward.1} parent=0 // pred_fallthru
    _
  // Predicated region
  $region102: #{cvae_forward.1} parent=0 // pred_check
    _
  $region103: #{cvae_forward.1} parent=0 // pred_check_branch
    %6286 = sbr.rel (0) target = $region105
  $region104: #{cvae_forward.1} parent=0 // pred_region
    _
  $region105: #{cvae_forward.1} parent=0 // pred_fallthru
    _

</llo_original>
